<compile_context>
chip_gen: v5e
topology: v5e:2x2
jax: 0.10.0
libtpu: 0.0.40
codegen_flags: <defaults>
</compile_context>

<pallas_src>
import jax
import jax.numpy as jnp
from jax.experimental import pallas as pl
from jax.experimental.pallas import tpu as pltpu


def _double_conv_kernel(w1_ref, s1_ref, b1_ref, w2_ref, s2_ref, b2_ref,
                        x_ref, o_ref, mid_ref):
    # x_ref:   (C_in,  H+2, W+2)  VMEM  zero-padded input image (one batch elem)
    # mid_ref: (C_mid, H+2, W+2)  VMEM  scratch; zero halo kept for conv2
    # o_ref:   (C_out, H,   W)    VMEM  output block
    # w1_ref/w2_ref: flattened conv weights in SMEM (scalar reads)
    # s*_ref/b*_ref: folded BatchNorm scale/shift per channel in SMEM
    c_in, hp, wp = x_ref.shape
    h, w = hp - 2, wp - 2
    c_mid = mid_ref.shape[0]
    c_out = o_ref.shape[0]

    # Zero the whole scratch once so the 1-pixel halo stays zero for conv2.
    mid_ref[...] = jnp.zeros_like(mid_ref)

    # ---- conv1 (3x3, pad=1, no bias) -> BN -> ReLU  (into VMEM scratch) ----
    for o in range(c_mid):
        acc = jnp.zeros((h, w), jnp.float32)
        for c in range(c_in):
            for kh in range(3):
                for kw in range(3):
                    wgt = w1_ref[((o * c_in + c) * 3 + kh) * 3 + kw]
                    acc = acc + wgt * x_ref[c, kh:kh + h, kw:kw + w]
        y = jnp.maximum(acc * s1_ref[o] + b1_ref[o], 0.0)
        mid_ref[o, 1:1 + h, 1:1 + w] = y

    # ---- conv2 (3x3, pad=1, no bias) -> BN -> ReLU  (into output block) ----
    for o in range(c_out):
        acc = jnp.zeros((h, w), jnp.float32)
        for c in range(c_mid):
            for kh in range(3):
                for kw in range(3):
                    wgt = w2_ref[((o * c_mid + c) * 3 + kh) * 3 + kw]
                    acc = acc + wgt * mid_ref[c, kh:kh + h, kw:kw + w]
        o_ref[o, :, :] = jnp.maximum(acc * s2_ref[o] + b2_ref[o],
                                     0.0).astype(o_ref.dtype)


def double_conv(x, w1, gamma1, beta1, mean1, var1,
                w2, gamma2, beta2, mean2, var2, *, eps=1e-5):
    """DoubleConv forward, NCHW in / NCHW out (eval-mode BatchNorm)."""
    n, c_in, h, w_ = x.shape
    c_mid = w1.shape[0]
    c_out = w2.shape[0]

    # Fold eval-mode BatchNorm into per-channel scale/shift.
    s1 = (gamma1 / jnp.sqrt(var1 + eps)).astype(jnp.float32)
    b1 = (beta1 - mean1 * s1).astype(jnp.float32)
    s2 = (gamma2 / jnp.sqrt(var2 + eps)).astype(jnp.float32)
    b2 = (beta2 - mean2 * s2).astype(jnp.float32)

    # Zero-pad H/W by 1 (conv padding=1). Channel-major preserved, no transpose.
    x_pad = jnp.pad(x, ((0, 0), (0, 0), (1, 1), (1, 1)))
    hp, wp = h + 2, w_ + 2

    w1_flat = w1.reshape(-1).astype(jnp.float32)   # (C_mid*C_in*9,)
    w2_flat = w2.reshape(-1).astype(jnp.float32)   # (C_out*C_mid*9,)

    smem = pl.BlockSpec(memory_space=pltpu.MemorySpace.SMEM)

    return pl.pallas_call(
        _double_conv_kernel,
        out_shape=jax.ShapeDtypeStruct((n, c_out, h, w_), x.dtype),
        grid_spec=pltpu.PrefetchScalarGridSpec(
            num_scalar_prefetch=0,
            grid=(n,),
            in_specs=[
                smem, smem, smem, smem, smem, smem,           # weights / BN
                pl.BlockSpec((None, c_in, hp, wp), lambda b: (b, 0, 0, 0)),
            ],
            out_specs=pl.BlockSpec((None, c_out, h, w_), lambda b: (b, 0, 0, 0)),
            scratch_shapes=[pltpu.VMEM((c_mid, hp, wp), jnp.float32)],
        ),
        compiler_params=pltpu.CompilerParams(
            dimension_semantics=("parallel",),
        ),
    )(w1_flat, s1, b1, w2_flat, s2, b2, x_pad)


if __name__ == "__main__":
    key = jax.random.PRNGKey(0)
    ks = jax.random.split(key, 11)

    N, C_in, C_mid, C_out, H, W = 2, 4, 4, 4, 16, 16

    x = jax.random.normal(ks[0], (N, C_in, H, W), dtype=jnp.float32)

    def conv_w(k, co, ci):
        bound = 1.0 / (ci * 9) ** 0.5
        return jax.random.uniform(k, (co, ci, 3, 3), minval=-bound,
                                  maxval=bound, dtype=jnp.float32)

    w1 = conv_w(ks[1], C_mid, C_in)
    w2 = conv_w(ks[2], C_out, C_mid)

    gamma1 = jax.random.uniform(ks[3], (C_mid,), minval=0.5, maxval=1.5)
    beta1 = jax.random.uniform(ks[4], (C_mid,), minval=-0.5, maxval=0.5)
    mean1 = jax.random.normal(ks[5], (C_mid,)) * 0.1
    var1 = jax.random.uniform(ks[6], (C_mid,), minval=0.5, maxval=1.5)
    gamma2 = jax.random.uniform(ks[7], (C_out,), minval=0.5, maxval=1.5)
    beta2 = jax.random.uniform(ks[8], (C_out,), minval=-0.5, maxval=0.5)
    mean2 = jax.random.normal(ks[9], (C_out,)) * 0.1
    var2 = jax.random.uniform(ks[10], (C_out,), minval=0.5, maxval=1.5)

    y = double_conv(x, w1, gamma1, beta1, mean1, var1,
                    w2, gamma2, beta2, mean2, var2)
    jax.block_until_ready(y)

    # Plain-JAX reference (same eval-mode BN folding, same math order).
    eps = 1e-5
    s1 = gamma1 / jnp.sqrt(var1 + eps)
    b1 = beta1 - mean1 * s1
    s2 = gamma2 / jnp.sqrt(var2 + eps)
    b2 = beta2 - mean2 * s2
    dn = ("NCHW", "OIHW", "NCHW")
    r = jax.lax.conv_general_dilated(x, w1, (1, 1), "SAME",
                                     dimension_numbers=dn,
                                     precision=jax.lax.Precision.HIGHEST)
    r = jnp.maximum(r * s1[None, :, None, None] + b1[None, :, None, None], 0.0)
    r = jax.lax.conv_general_dilated(r, w2, (1, 1), "SAME",
                                     dimension_numbers=dn,
                                     precision=jax.lax.Precision.HIGHEST)
    r = jnp.maximum(r * s2[None, :, None, None] + b2[None, :, None, None], 0.0)

    assert y.shape == (N, C_out, H, W)
    assert jnp.allclose(y, r, atol=1e-4, rtol=1e-4), float(jnp.max(jnp.abs(y - r)))

    print("KERNEL_OK")
</pallas_src>

<mosaic_0001>
module attributes {stable_mosaic.version = 11 : i64} {
  func.func @_double_conv_kernel(%arg0: i32, %arg1: memref<144xf32, #tpu.memory_space<smem>>, %arg2: memref<4xf32, #tpu.memory_space<smem>>, %arg3: memref<4xf32, #tpu.memory_space<smem>>, %arg4: memref<144xf32, #tpu.memory_space<smem>>, %arg5: memref<4xf32, #tpu.memory_space<smem>>, %arg6: memref<4xf32, #tpu.memory_space<smem>>, %arg7: memref<1x4x18x18xf32, #tpu.memory_space<vmem>>, %arg8: memref<1x4x16x16xf32, #tpu.memory_space<vmem>>, %arg9: memref<4x18x18xf32, #tpu.memory_space<vmem>>) attributes {dimension_semantics = [#tpu.dimension_semantics<parallel>], iteration_bounds = array<i64: 2>, scalar_prefetch = 0 : i64, scratch_operands = 1 : i64, tpu.core_type = #tpu.core_type<tc>, window_params = [{transform_indices = @transform_0, window_bounds = array<i64: 144>}, {transform_indices = @transform_1, window_bounds = array<i64: 4>}, {transform_indices = @transform_2, window_bounds = array<i64: 4>}, {transform_indices = @transform_3, window_bounds = array<i64: 144>}, {transform_indices = @transform_4, window_bounds = array<i64: 4>}, {transform_indices = @transform_5, window_bounds = array<i64: 4>}, {transform_indices = @transform_6, window_bounds = array<i64: 1, 4, 18, 18>}, {transform_indices = @transform_7, window_bounds = array<i64: 1, 4, 16, 16>}]} {
    %cst = arith.constant 0.000000e+00 : f32
    %0 = vector.broadcast %cst : f32 to vector<4x18x18xf32>
    %c0 = arith.constant 0 : index
    %c0_0 = arith.constant 0 : index
    %c0_1 = arith.constant 0 : index
    %1 = vector.load %arg9[%c0, %c0_0, %c0_1] : memref<4x18x18xf32, #tpu.memory_space<vmem>>, vector<4x18x18xf32>
    tpu.vector_store %arg9[%c0, %c0_0, %c0_1], %0 {strides = array<i32>} : memref<4x18x18xf32, #tpu.memory_space<vmem>>, vector<4x18x18xf32>,
    %cst_2 = arith.constant 0.000000e+00 : f32
    %2 = vector.broadcast %cst_2 : f32 to vector<16x16xf32>
    %c0_3 = arith.constant 0 : index
    %3 = memref.load %arg1[%c0_3] : memref<144xf32, #tpu.memory_space<smem>>
    %c0_4 = arith.constant 0 : index
    %c0_5 = arith.constant 0 : index
    %c0_6 = arith.constant 0 : index
    %c0_7 = arith.constant 0 : index
    %4 = vector.load %arg7[%c0_4, %c0_5, %c0_6, %c0_7] : memref<1x4x18x18xf32, #tpu.memory_space<vmem>>, vector<1x1x16x16xf32>
    %5 = vector.shape_cast %4 : vector<1x1x16x16xf32> to vector<16x16xf32>
    %6 = vector.broadcast %3 : f32 to vector<16x16xf32>
    %7 = arith.mulf %6, %5 : vector<16x16xf32>
    %8 = arith.addf %2, %7 : vector<16x16xf32>
    %c1 = arith.constant 1 : index
    %9 = memref.load %arg1[%c1] : memref<144xf32, #tpu.memory_space<smem>>
    %c0_8 = arith.constant 0 : index
    %c0_9 = arith.constant 0 : index
    %c0_10 = arith.constant 0 : index
    %c1_11 = arith.constant 1 : index
    %10 = vector.load %arg7[%c0_8, %c0_9, %c0_10, %c1_11] : memref<1x4x18x18xf32, #tpu.memory_space<vmem>>, vector<1x1x16x16xf32>
    %11 = vector.shape_cast %10 : vector<1x1x16x16xf32> to vector<16x16xf32>
    %12 = vector.broadcast %9 : f32 to vector<16x16xf32>
    %13 = arith.mulf %12, %11 : vector<16x16xf32>
    %14 = arith.addf %8, %13 : vector<16x16xf32>
    %c2 = arith.constant 2 : index
    %15 = memref.load %arg1[%c2] : memref<144xf32, #tpu.memory_space<smem>>
    %c0_12 = arith.constant 0 : index
    %c0_13 = arith.constant 0 : index
    %c0_14 = arith.constant 0 : index
    %c2_15 = arith.constant 2 : index
    %16 = vector.load %arg7[%c0_12, %c0_13, %c0_14, %c2_15] : memref<1x4x18x18xf32, #tpu.memory_space<vmem>>, vector<1x1x16x16xf32>
    %17 = vector.shape_cast %16 : vector<1x1x16x16xf32> to vector<16x16xf32>
    %18 = vector.broadcast %15 : f32 to vector<16x16xf32>
    %19 = arith.mulf %18, %17 : vector<16x16xf32>
    %20 = arith.addf %14, %19 : vector<16x16xf32>
    %c3 = arith.constant 3 : index
    %21 = memref.load %arg1[%c3] : memref<144xf32, #tpu.memory_space<smem>>
    %c0_16 = arith.constant 0 : index
    %c0_17 = arith.constant 0 : index
    %c1_18 = arith.constant 1 : index
    %c0_19 = arith.constant 0 : index
    %22 = vector.load %arg7[%c0_16, %c0_17, %c1_18, %c0_19] : memref<1x4x18x18xf32, #tpu.memory_space<vmem>>, vector<1x1x16x16xf32>
    %23 = vector.shape_cast %22 : vector<1x1x16x16xf32> to vector<16x16xf32>
    %24 = vector.broadcast %21 : f32 to vector<16x16xf32>
    %25 = arith.mulf %24, %23 : vector<16x16xf32>
    %26 = arith.addf %20, %25 : vector<16x16xf32>
    %c4 = arith.constant 4 : index
    %27 = memref.load %arg1[%c4] : memref<144xf32, #tpu.memory_space<smem>>
    %c0_20 = arith.constant 0 : index
    %c0_21 = arith.constant 0 : index
    %c1_22 = arith.constant 1 : index
    %c1_23 = arith.constant 1 : index
    %28 = vector.load %arg7[%c0_20, %c0_21, %c1_22, %c1_23] : memref<1x4x18x18xf32, #tpu.memory_space<vmem>>, vector<1x1x16x16xf32>
    %29 = vector.shape_cast %28 : vector<1x1x16x16xf32> to vector<16x16xf32>
    %30 = vector.broadcast %27 : f32 to vector<16x16xf32>
    %31 = arith.mulf %30, %29 : vector<16x16xf32>
    %32 = arith.addf %26, %31 : vector<16x16xf32>
    %c5 = arith.constant 5 : index
    %33 = memref.load %arg1[%c5] : memref<144xf32, #tpu.memory_space<smem>>
    %c0_24 = arith.constant 0 : index
    %c0_25 = arith.constant 0 : index
    %c1_26 = arith.constant 1 : index
    %c2_27 = arith.constant 2 : index
    %34 = vector.load %arg7[%c0_24, %c0_25, %c1_26, %c2_27] : memref<1x4x18x18xf32, #tpu.memory_space<vmem>>, vector<1x1x16x16xf32>
    %35 = vector.shape_cast %34 : vector<1x1x16x16xf32> to vector<16x16xf32>
    %36 = vector.broadcast %33 : f32 to vector<16x16xf32>
    %37 = arith.mulf %36, %35 : vector<16x16xf32>
    %38 = arith.addf %32, %37 : vector<16x16xf32>
    %c6 = arith.constant 6 : index
    %39 = memref.load %arg1[%c6] : memref<144xf32, #tpu.memory_space<smem>>
    %c0_28 = arith.constant 0 : index
    %c0_29 = arith.constant 0 : index
    %c2_30 = arith.constant 2 : index
    %c0_31 = arith.constant 0 : index
    %40 = vector.load %arg7[%c0_28, %c0_29, %c2_30, %c0_31] : memref<1x4x18x18xf32, #tpu.memory_space<vmem>>, vector<1x1x16x16xf32>
    %41 = vector.shape_cast %40 : vector<1x1x16x16xf32> to vector<16x16xf32>
    %42 = vector.broadcast %39 : f32 to vector<16x16xf32>
    %43 = arith.mulf %42, %41 : vector<16x16xf32>
    %44 = arith.addf %38, %43 : vector<16x16xf32>
    %c7 = arith.constant 7 : index
    %45 = memref.load %arg1[%c7] : memref<144xf32, #tpu.memory_space<smem>>
    %c0_32 = arith.constant 0 : index
    %c0_33 = arith.constant 0 : index
    %c2_34 = arith.constant 2 : index
    %c1_35 = arith.constant 1 : index
    %46 = vector.load %arg7[%c0_32, %c0_33, %c2_34, %c1_35] : memref<1x4x18x18xf32, #tpu.memory_space<vmem>>, vector<1x1x16x16xf32>
    %47 = vector.shape_cast %46 : vector<1x1x16x16xf32> to vector<16x16xf32>
    %48 = vector.broadcast %45 : f32 to vector<16x16xf32>
    %49 = arith.mulf %48, %47 : vector<16x16xf32>
    %50 = arith.addf %44, %49 : vector<16x16xf32>
    %c8 = arith.constant 8 : index
    %51 = memref.load %arg1[%c8] : memref<144xf32, #tpu.memory_space<smem>>
    %c0_36 = arith.constant 0 : index
    %c0_37 = arith.constant 0 : index
    %c2_38 = arith.constant 2 : index
    %c2_39 = arith.constant 2 : index
    %52 = vector.load %arg7[%c0_36, %c0_37, %c2_38, %c2_39] : memref<1x4x18x18xf32, #tpu.memory_space<vmem>>, vector<1x1x16x16xf32>
    %53 = vector.shape_cast %52 : vector<1x1x16x16xf32> to vector<16x16xf32>
    %54 = vector.broadcast %51 : f32 to vector<16x16xf32>
    %55 = arith.mulf %54, %53 : vector<16x16xf32>
    %56 = arith.addf %50, %55 : vector<16x16xf32>
    %c9 = arith.constant 9 : index
    %57 = memref.load %arg1[%c9] : memref<144xf32, #tpu.memory_space<smem>>
    %c0_40 = arith.constant 0 : index
    %c1_41 = arith.constant 1 : index
    %c0_42 = arith.constant 0 : index
    %c0_43 = arith.constant 0 : index
    %58 = vector.load %arg7[%c0_40, %c1_41, %c0_42, %c0_43] : memref<1x4x18x18xf32, #tpu.memory_space<vmem>>, vector<1x1x16x16xf32>
    %59 = vector.shape_cast %58 : vector<1x1x16x16xf32> to vector<16x16xf32>
    %60 = vector.broadcast %57 : f32 to vector<16x16xf32>
    %61 = arith.mulf %60, %59 : vector<16x16xf32>
    %62 = arith.addf %56, %61 : vector<16x16xf32>
    %c10 = arith.constant 10 : index
    %63 = memref.load %arg1[%c10] : memref<144xf32, #tpu.memory_space<smem>>
    %c0_44 = arith.constant 0 : index
    %c1_45 = arith.constant 1 : index
    %c0_46 = arith.constant 0 : index
    %c1_47 = arith.constant 1 : index
    %64 = vector.load %arg7[%c0_44, %c1_45, %c0_46, %c1_47] : memref<1x4x18x18xf32, #tpu.memory_space<vmem>>, vector<1x1x16x16xf32>
    %65 = vector.shape_cast %64 : vector<1x1x16x16xf32> to vector<16x16xf32>
    %66 = vector.broadcast %63 : f32 to vector<16x16xf32>
    %67 = arith.mulf %66, %65 : vector<16x16xf32>
    %68 = arith.addf %62, %67 : vector<16x16xf32>
    %c11 = arith.constant 11 : index
    %69 = memref.load %arg1[%c11] : memref<144xf32, #tpu.memory_space<smem>>
    %c0_48 = arith.constant 0 : index
    %c1_49 = arith.constant 1 : index
    %c0_50 = arith.constant 0 : index
    %c2_51 = arith.constant 2 : index
    %70 = vector.load %arg7[%c0_48, %c1_49, %c0_50, %c2_51] : memref<1x4x18x18xf32, #tpu.memory_space<vmem>>, vector<1x1x16x16xf32>
    %71 = vector.shape_cast %70 : vector<1x1x16x16xf32> to vector<16x16xf32>
    %72 = vector.broadcast %69 : f32 to vector<16x16xf32>
    %73 = arith.mulf %72, %71 : vector<16x16xf32>
    %74 = arith.addf %68, %73 : vector<16x16xf32>
    %c12 = arith.constant 12 : index
    %75 = memref.load %arg1[%c12] : memref<144xf32, #tpu.memory_space<smem>>
    %c0_52 = arith.constant 0 : index
    %c1_53 = arith.constant 1 : index
    %c1_54 = arith.constant 1 : index
    %c0_55 = arith.constant 0 : index
    %76 = vector.load %arg7[%c0_52, %c1_53, %c1_54, %c0_55] : memref<1x4x18x18xf32, #tpu.memory_space<vmem>>, vector<1x1x16x16xf32>
    %77 = vector.shape_cast %76 : vector<1x1x16x16xf32> to vector<16x16xf32>
    %78 = vector.broadcast %75 : f32 to vector<16x16xf32>
    %79 = arith.mulf %78, %77 : vector<16x16xf32>
    %80 = arith.addf %74, %79 : vector<16x16xf32>
    %c13 = arith.constant 13 : index
    %81 = memref.load %arg1[%c13] : memref<144xf32, #tpu.memory_space<smem>>
    %c0_56 = arith.constant 0 : index
    %c1_57 = arith.constant 1 : index
    %c1_58 = arith.constant 1 : index
    %c1_59 = arith.constant 1 : index
    %82 = vector.load %arg7[%c0_56, %c1_57, %c1_58, %c1_59] : memref<1x4x18x18xf32, #tpu.memory_space<vmem>>, vector<1x1x16x16xf32>
    %83 = vector.shape_cast %82 : vector<1x1x16x16xf32> to vector<16x16xf32>
    %84 = vector.broadcast %81 : f32 to vector<16x16xf32>
    %85 = arith.mulf %84, %83 : vector<16x16xf32>
    %86 = arith.addf %80, %85 : vector<16x16xf32>
    %c14 = arith.constant 14 : index
    %87 = memref.load %arg1[%c14] : memref<144xf32, #tpu.memory_space<smem>>
    %c0_60 = arith.constant 0 : index
    %c1_61 = arith.constant 1 : index
    %c1_62 = arith.constant 1 : index
    %c2_63 = arith.constant 2 : index
    %88 = vector.load %arg7[%c0_60, %c1_61, %c1_62, %c2_63] : memref<1x4x18x18xf32, #tpu.memory_space<vmem>>, vector<1x1x16x16xf32>
    %89 = vector.shape_cast %88 : vector<1x1x16x16xf32> to vector<16x16xf32>
    %90 = vector.broadcast %87 : f32 to vector<16x16xf32>
    %91 = arith.mulf %90, %89 : vector<16x16xf32>
    %92 = arith.addf %86, %91 : vector<16x16xf32>
    %c15 = arith.constant 15 : index
    %93 = memref.load %arg1[%c15] : memref<144xf32, #tpu.memory_space<smem>>
    %c0_64 = arith.constant 0 : index
    %c1_65 = arith.constant 1 : index
    %c2_66 = arith.constant 2 : index
    %c0_67 = arith.constant 0 : index
    %94 = vector.load %arg7[%c0_64, %c1_65, %c2_66, %c0_67] : memref<1x4x18x18xf32, #tpu.memory_space<vmem>>, vector<1x1x16x16xf32>
    %95 = vector.shape_cast %94 : vector<1x1x16x16xf32> to vector<16x16xf32>
    %96 = vector.broadcast %93 : f32 to vector<16x16xf32>
    %97 = arith.mulf %96, %95 : vector<16x16xf32>
    %98 = arith.addf %92, %97 : vector<16x16xf32>
    %c16 = arith.constant 16 : index
    %99 = memref.load %arg1[%c16] : memref<144xf32, #tpu.memory_space<smem>>
    %c0_68 = arith.constant 0 : index
    %c1_69 = arith.constant 1 : index
    %c2_70 = arith.constant 2 : index
    %c1_71 = arith.constant 1 : index
    %100 = vector.load %arg7[%c0_68, %c1_69, %c2_70, %c1_71] : memref<1x4x18x18xf32, #tpu.memory_space<vmem>>, vector<1x1x16x16xf32>
    %101 = vector.shape_cast %100 : vector<1x1x16x16xf32> to vector<16x16xf32>
    %102 = vector.broadcast %99 : f32 to vector<16x16xf32>
    %103 = arith.mulf %102, %101 : vector<16x16xf32>
    %104 = arith.addf %98, %103 : vector<16x16xf32>
    %c17 = arith.constant 17 : index
    %105 = memref.load %arg1[%c17] : memref<144xf32, #tpu.memory_space<smem>>
    %c0_72 = arith.constant 0 : index
    %c1_73 = arith.constant 1 : index
    %c2_74 = arith.constant 2 : index
    %c2_75 = arith.constant 2 : index
    %106 = vector.load %arg7[%c0_72, %c1_73, %c2_74, %c2_75] : memref<1x4x18x18xf32, #tpu.memory_space<vmem>>, vector<1x1x16x16xf32>
    %107 = vector.shape_cast %106 : vector<1x1x16x16xf32> to vector<16x16xf32>
    %108 = vector.broadcast %105 : f32 to vector<16x16xf32>
    %109 = arith.mulf %108, %107 : vector<16x16xf32>
    %110 = arith.addf %104, %109 : vector<16x16xf32>
    %c18 = arith.constant 18 : index
    %111 = memref.load %arg1[%c18] : memref<144xf32, #tpu.memory_space<smem>>
    %c0_76 = arith.constant 0 : index
    %c2_77 = arith.constant 2 : index
    %c0_78 = arith.constant 0 : index
    %c0_79 = arith.constant 0 : index
    %112 = vector.load %arg7[%c0_76, %c2_77, %c0_78, %c0_79] : memref<1x4x18x18xf32, #tpu.memory_space<vmem>>, vector<1x1x16x16xf32>
    %113 = vector.shape_cast %112 : vector<1x1x16x16xf32> to vector<16x16xf32>
    %114 = vector.broadcast %111 : f32 to vector<16x16xf32>
    %115 = arith.mulf %114, %113 : vector<16x16xf32>
    %116 = arith.addf %110, %115 : vector<16x16xf32>
    %c19 = arith.constant 19 : index
    %117 = memref.load %arg1[%c19] : memref<144xf32, #tpu.memory_space<smem>>
    %c0_80 = arith.constant 0 : index
    %c2_81 = arith.constant 2 : index
    %c0_82 = arith.constant 0 : index
    %c1_83 = arith.constant 1 : index
    %118 = vector.load %arg7[%c0_80, %c2_81, %c0_82, %c1_83] : memref<1x4x18x18xf32, #tpu.memory_space<vmem>>, vector<1x1x16x16xf32>
    %119 = vector.shape_cast %118 : vector<1x1x16x16xf32> to vector<16x16xf32>
    %120 = vector.broadcast %117 : f32 to vector<16x16xf32>
    %121 = arith.mulf %120, %119 : vector<16x16xf32>
    %122 = arith.addf %116, %121 : vector<16x16xf32>
    %c20 = arith.constant 20 : index
    %123 = memref.load %arg1[%c20] : memref<144xf32, #tpu.memory_space<smem>>
    %c0_84 = arith.constant 0 : index
    %c2_85 = arith.constant 2 : index
    %c0_86 = arith.constant 0 : index
    %c2_87 = arith.constant 2 : index
    %124 = vector.load %arg7[%c0_84, %c2_85, %c0_86, %c2_87] : memref<1x4x18x18xf32, #tpu.memory_space<vmem>>, vector<1x1x16x16xf32>
    %125 = vector.shape_cast %124 : vector<1x1x16x16xf32> to vector<16x16xf32>
    %126 = vector.broadcast %123 : f32 to vector<16x16xf32>
    %127 = arith.mulf %126, %125 : vector<16x16xf32>
    %128 = arith.addf %122, %127 : vector<16x16xf32>
    %c21 = arith.constant 21 : index
    %129 = memref.load %arg1[%c21] : memref<144xf32, #tpu.memory_space<smem>>
    %c0_88 = arith.constant 0 : index
    %c2_89 = arith.constant 2 : index
    %c1_90 = arith.constant 1 : index
    %c0_91 = arith.constant 0 : index
    %130 = vector.load %arg7[%c0_88, %c2_89, %c1_90, %c0_91] : memref<1x4x18x18xf32, #tpu.memory_space<vmem>>, vector<1x1x16x16xf32>
    %131 = vector.shape_cast %130 : vector<1x1x16x16xf32> to vector<16x16xf32>
    %132 = vector.broadcast %129 : f32 to vector<16x16xf32>
    %133 = arith.mulf %132, %131 : vector<16x16xf32>
    %134 = arith.addf %128, %133 : vector<16x16xf32>
    %c22 = arith.constant 22 : index
    %135 = memref.load %arg1[%c22] : memref<144xf32, #tpu.memory_space<smem>>
    %c0_92 = arith.constant 0 : index
    %c2_93 = arith.constant 2 : index
    %c1_94 = arith.constant 1 : index
    %c1_95 = arith.constant 1 : index
    %136 = vector.load %arg7[%c0_92, %c2_93, %c1_94, %c1_95] : memref<1x4x18x18xf32, #tpu.memory_space<vmem>>, vector<1x1x16x16xf32>
    %137 = vector.shape_cast %136 : vector<1x1x16x16xf32> to vector<16x16xf32>
    %138 = vector.broadcast %135 : f32 to vector<16x16xf32>
    %139 = arith.mulf %138, %137 : vector<16x16xf32>
    %140 = arith.addf %134, %139 : vector<16x16xf32>
    %c23 = arith.constant 23 : index
    %141 = memref.load %arg1[%c23] : memref<144xf32, #tpu.memory_space<smem>>
    %c0_96 = arith.constant 0 : index
    %c2_97 = arith.constant 2 : index
    %c1_98 = arith.constant 1 : index
    %c2_99 = arith.constant 2 : index
    %142 = vector.load %arg7[%c0_96, %c2_97, %c1_98, %c2_99] : memref<1x4x18x18xf32, #tpu.memory_space<vmem>>, vector<1x1x16x16xf32>
    %143 = vector.shape_cast %142 : vector<1x1x16x16xf32> to vector<16x16xf32>
    %144 = vector.broadcast %141 : f32 to vector<16x16xf32>
    %145 = arith.mulf %144, %143 : vector<16x16xf32>
    %146 = arith.addf %140, %145 : vector<16x16xf32>
    %c24 = arith.constant 24 : index
    %147 = memref.load %arg1[%c24] : memref<144xf32, #tpu.memory_space<smem>>
    %c0_100 = arith.constant 0 : index
    %c2_101 = arith.constant 2 : index
    %c2_102 = arith.constant 2 : index
    %c0_103 = arith.constant 0 : index
    %148 = vector.load %arg7[%c0_100, %c2_101, %c2_102, %c0_103] : memref<1x4x18x18xf32, #tpu.memory_space<vmem>>, vector<1x1x16x16xf32>
    %149 = vector.shape_cast %148 : vector<1x1x16x16xf32> to vector<16x16xf32>
    %150 = vector.broadcast %147 : f32 to vector<16x16xf32>
    %151 = arith.mulf %150, %149 : vector<16x16xf32>
    %152 = arith.addf %146, %151 : vector<16x16xf32>
    %c25 = arith.constant 25 : index
    %153 = memref.load %arg1[%c25] : memref<144xf32, #tpu.memory_space<smem>>
    %c0_104 = arith.constant 0 : index
    %c2_105 = arith.constant 2 : index
    %c2_106 = arith.constant 2 : index
    %c1_107 = arith.constant 1 : index
    %154 = vector.load %arg7[%c0_104, %c2_105, %c2_106, %c1_107] : memref<1x4x18x18xf32, #tpu.memory_space<vmem>>, vector<1x1x16x16xf32>
    %155 = vector.shape_cast %154 : vector<1x1x16x16xf32> to vector<16x16xf32>
    %156 = vector.broadcast %153 : f32 to vector<16x16xf32>
    %157 = arith.mulf %156, %155 : vector<16x16xf32>
    %158 = arith.addf %152, %157 : vector<16x16xf32>
    %c26 = arith.constant 26 : index
    %159 = memref.load %arg1[%c26] : memref<144xf32, #tpu.memory_space<smem>>
    %c0_108 = arith.constant 0 : index
    %c2_109 = arith.constant 2 : index
    %c2_110 = arith.constant 2 : index
    %c2_111 = arith.constant 2 : index
    %160 = vector.load %arg7[%c0_108, %c2_109, %c2_110, %c2_111] : memref<1x4x18x18xf32, #tpu.memory_space<vmem>>, vector<1x1x16x16xf32>
    %161 = vector.shape_cast %160 : vector<1x1x16x16xf32> to vector<16x16xf32>
    %162 = vector.broadcast %159 : f32 to vector<16x16xf32>
    %163 = arith.mulf %162, %161 : vector<16x16xf32>
    %164 = arith.addf %158, %163 : vector<16x16xf32>
    %c27 = arith.constant 27 : index
    %165 = memref.load %arg1[%c27] : memref<144xf32, #tpu.memory_space<smem>>
    %c0_112 = arith.constant 0 : index
    %c3_113 = arith.constant 3 : index
    %c0_114 = arith.constant 0 : index
    %c0_115 = arith.constant 0 : index
    %166 = vector.load %arg7[%c0_112, %c3_113, %c0_114, %c0_115] : memref<1x4x18x18xf32, #tpu.memory_space<vmem>>, vector<1x1x16x16xf32>
    %167 = vector.shape_cast %166 : vector<1x1x16x16xf32> to vector<16x16xf32>
    %168 = vector.broadcast %165 : f32 to vector<16x16xf32>
    %169 = arith.mulf %168, %167 : vector<16x16xf32>
    %170 = arith.addf %164, %169 : vector<16x16xf32>
    %c28 = arith.constant 28 : index
    %171 = memref.load %arg1[%c28] : memref<144xf32, #tpu.memory_space<smem>>
    %c0_116 = arith.constant 0 : index
    %c3_117 = arith.constant 3 : index
    %c0_118 = arith.constant 0 : index
    %c1_119 = arith.constant 1 : index
    %172 = vector.load %arg7[%c0_116, %c3_117, %c0_118, %c1_119] : memref<1x4x18x18xf32, #tpu.memory_space<vmem>>, vector<1x1x16x16xf32>
    %173 = vector.shape_cast %172 : vector<1x1x16x16xf32> to vector<16x16xf32>
    %174 = vector.broadcast %171 : f32 to vector<16x16xf32>
    %175 = arith.mulf %174, %173 : vector<16x16xf32>
    %176 = arith.addf %170, %175 : vector<16x16xf32>
    %c29 = arith.constant 29 : index
    %177 = memref.load %arg1[%c29] : memref<144xf32, #tpu.memory_space<smem>>
    %c0_120 = arith.constant 0 : index
    %c3_121 = arith.constant 3 : index
    %c0_122 = arith.constant 0 : index
    %c2_123 = arith.constant 2 : index
    %178 = vector.load %arg7[%c0_120, %c3_121, %c0_122, %c2_123] : memref<1x4x18x18xf32, #tpu.memory_space<vmem>>, vector<1x1x16x16xf32>
    %179 = vector.shape_cast %178 : vector<1x1x16x16xf32> to vector<16x16xf32>
    %180 = vector.broadcast %177 : f32 to vector<16x16xf32>
    %181 = arith.mulf %180, %179 : vector<16x16xf32>
    %182 = arith.addf %176, %181 : vector<16x16xf32>
    %c30 = arith.constant 30 : index
    %183 = memref.load %arg1[%c30] : memref<144xf32, #tpu.memory_space<smem>>
    %c0_124 = arith.constant 0 : index
    %c3_125 = arith.constant 3 : index
    %c1_126 = arith.constant 1 : index
    %c0_127 = arith.constant 0 : index
    %184 = vector.load %arg7[%c0_124, %c3_125, %c1_126, %c0_127] : memref<1x4x18x18xf32, #tpu.memory_space<vmem>>, vector<1x1x16x16xf32>
    %185 = vector.shape_cast %184 : vector<1x1x16x16xf32> to vector<16x16xf32>
    %186 = vector.broadcast %183 : f32 to vector<16x16xf32>
    %187 = arith.mulf %186, %185 : vector<16x16xf32>
    %188 = arith.addf %182, %187 : vector<16x16xf32>
    %c31 = arith.constant 31 : index
    %189 = memref.load %arg1[%c31] : memref<144xf32, #tpu.memory_space<smem>>
    %c0_128 = arith.constant 0 : index
    %c3_129 = arith.constant 3 : index
    %c1_130 = arith.constant 1 : index
    %c1_131 = arith.constant 1 : index
    %190 = vector.load %arg7[%c0_128, %c3_129, %c1_130, %c1_131] : memref<1x4x18x18xf32, #tpu.memory_space<vmem>>, vector<1x1x16x16xf32>
    %191 = vector.shape_cast %190 : vector<1x1x16x16xf32> to vector<16x16xf32>
    %192 = vector.broadcast %189 : f32 to vector<16x16xf32>
    %193 = arith.mulf %192, %191 : vector<16x16xf32>
    %194 = arith.addf %188, %193 : vector<16x16xf32>
    %c32 = arith.constant 32 : index
    %195 = memref.load %arg1[%c32] : memref<144xf32, #tpu.memory_space<smem>>
    %c0_132 = arith.constant 0 : index
    %c3_133 = arith.constant 3 : index
    %c1_134 = arith.constant 1 : index
    %c2_135 = arith.constant 2 : index
    %196 = vector.load %arg7[%c0_132, %c3_133, %c1_134, %c2_135] : memref<1x4x18x18xf32, #tpu.memory_space<vmem>>, vector<1x1x16x16xf32>
    %197 = vector.shape_cast %196 : vector<1x1x16x16xf32> to vector<16x16xf32>
    %198 = vector.broadcast %195 : f32 to vector<16x16xf32>
    %199 = arith.mulf %198, %197 : vector<16x16xf32>
    %200 = arith.addf %194, %199 : vector<16x16xf32>
    %c33 = arith.constant 33 : index
    %201 = memref.load %arg1[%c33] : memref<144xf32, #tpu.memory_space<smem>>
    %c0_136 = arith.constant 0 : index
    %c3_137 = arith.constant 3 : index
    %c2_138 = arith.constant 2 : index
    %c0_139 = arith.constant 0 : index
    %202 = vector.load %arg7[%c0_136, %c3_137, %c2_138, %c0_139] : memref<1x4x18x18xf32, #tpu.memory_space<vmem>>, vector<1x1x16x16xf32>
    %203 = vector.shape_cast %202 : vector<1x1x16x16xf32> to vector<16x16xf32>
    %204 = vector.broadcast %201 : f32 to vector<16x16xf32>
    %205 = arith.mulf %204, %203 : vector<16x16xf32>
    %206 = arith.addf %200, %205 : vector<16x16xf32>
    %c34 = arith.constant 34 : index
    %207 = memref.load %arg1[%c34] : memref<144xf32, #tpu.memory_space<smem>>
    %c0_140 = arith.constant 0 : index
    %c3_141 = arith.constant 3 : index
    %c2_142 = arith.constant 2 : index
    %c1_143 = arith.constant 1 : index
    %208 = vector.load %arg7[%c0_140, %c3_141, %c2_142, %c1_143] : memref<1x4x18x18xf32, #tpu.memory_space<vmem>>, vector<1x1x16x16xf32>
    %209 = vector.shape_cast %208 : vector<1x1x16x16xf32> to vector<16x16xf32>
    %210 = vector.broadcast %207 : f32 to vector<16x16xf32>
    %211 = arith.mulf %210, %209 : vector<16x16xf32>
    %212 = arith.addf %206, %211 : vector<16x16xf32>
    %c35 = arith.constant 35 : index
    %213 = memref.load %arg1[%c35] : memref<144xf32, #tpu.memory_space<smem>>
    %c0_144 = arith.constant 0 : index
    %c3_145 = arith.constant 3 : index
    %c2_146 = arith.constant 2 : index
    %c2_147 = arith.constant 2 : index
    %214 = vector.load %arg7[%c0_144, %c3_145, %c2_146, %c2_147] : memref<1x4x18x18xf32, #tpu.memory_space<vmem>>, vector<1x1x16x16xf32>
    %215 = vector.shape_cast %214 : vector<1x1x16x16xf32> to vector<16x16xf32>
    %216 = vector.broadcast %213 : f32 to vector<16x16xf32>
    %217 = arith.mulf %216, %215 : vector<16x16xf32>
    %218 = arith.addf %212, %217 : vector<16x16xf32>
    %c0_148 = arith.constant 0 : index
    %219 = memref.load %arg2[%c0_148] : memref<4xf32, #tpu.memory_space<smem>>
    %220 = vector.broadcast %219 : f32 to vector<16x16xf32>
    %221 = arith.mulf %218, %220 : vector<16x16xf32>
    %c0_149 = arith.constant 0 : index
    %222 = memref.load %arg3[%c0_149] : memref<4xf32, #tpu.memory_space<smem>>
    %223 = vector.broadcast %222 : f32 to vector<16x16xf32>
    %224 = arith.addf %221, %223 : vector<16x16xf32>
    %cst_150 = arith.constant 0.000000e+00 : f32
    %225 = vector.broadcast %cst_150 : f32 to vector<16x16xf32>
    %226 = arith.maximumf %224, %225 : vector<16x16xf32>
    %c0_151 = arith.constant 0 : index
    %c1_152 = arith.constant 1 : index
    %c1_153 = arith.constant 1 : index
    %227 = vector.load %arg9[%c0_151, %c1_152, %c1_153] : memref<4x18x18xf32, #tpu.memory_space<vmem>>, vector<1x16x16xf32>
    %228 = vector.shape_cast %227 : vector<1x16x16xf32> to vector<16x16xf32>
    %229 = vector.shape_cast %226 : vector<16x16xf32> to vector<1x16x16xf32>
    tpu.vector_store %arg9[%c0_151, %c1_152, %c1_153], %229 {strides = array<i32>} : memref<4x18x18xf32, #tpu.memory_space<vmem>>, vector<1x16x16xf32>,
    %cst_154 = arith.constant 0.000000e+00 : f32
    %230 = vector.broadcast %cst_154 : f32 to vector<16x16xf32>
    %c36 = arith.constant 36 : index
    %231 = memref.load %arg1[%c36] : memref<144xf32, #tpu.memory_space<smem>>
    %c0_155 = arith.constant 0 : index
    %c0_156 = arith.constant 0 : index
    %c0_157 = arith.constant 0 : index
    %c0_158 = arith.constant 0 : index
    %232 = vector.load %arg7[%c0_155, %c0_156, %c0_157, %c0_158] : memref<1x4x18x18xf32, #tpu.memory_space<vmem>>, vector<1x1x16x16xf32>
    %233 = vector.shape_cast %232 : vector<1x1x16x16xf32> to vector<16x16xf32>
    %234 = vector.broadcast %231 : f32 to vector<16x16xf32>
    %235 = arith.mulf %234, %233 : vector<16x16xf32>
    %236 = arith.addf %230, %235 : vector<16x16xf32>
    %c37 = arith.constant 37 : index
    %237 = memref.load %arg1[%c37] : memref<144xf32, #tpu.memory_space<smem>>
    %c0_159 = arith.constant 0 : index
    %c0_160 = arith.constant 0 : index
    %c0_161 = arith.constant 0 : index
    %c1_162 = arith.constant 1 : index
    %238 = vector.load %arg7[%c0_159, %c0_160, %c0_161, %c1_162] : memref<1x4x18x18xf32, #tpu.memory_space<vmem>>, vector<1x1x16x16xf32>
    %239 = vector.shape_cast %238 : vector<1x1x16x16xf32> to vector<16x16xf32>
    %240 = vector.broadcast %237 : f32 to vector<16x16xf32>
    %241 = arith.mulf %240, %239 : vector<16x16xf32>
    %242 = arith.addf %236, %241 : vector<16x16xf32>
    %c38 = arith.constant 38 : index
    %243 = memref.load %arg1[%c38] : memref<144xf32, #tpu.memory_space<smem>>
    %c0_163 = arith.constant 0 : index
    %c0_164 = arith.constant 0 : index
    %c0_165 = arith.constant 0 : index
    %c2_166 = arith.constant 2 : index
    %244 = vector.load %arg7[%c0_163, %c0_164, %c0_165, %c2_166] : memref<1x4x18x18xf32, #tpu.memory_space<vmem>>, vector<1x1x16x16xf32>
    %245 = vector.shape_cast %244 : vector<1x1x16x16xf32> to vector<16x16xf32>
    %246 = vector.broadcast %243 : f32 to vector<16x16xf32>
    %247 = arith.mulf %246, %245 : vector<16x16xf32>
    %248 = arith.addf %242, %247 : vector<16x16xf32>
    %c39 = arith.constant 39 : index
    %249 = memref.load %arg1[%c39] : memref<144xf32, #tpu.memory_space<smem>>
    %c0_167 = arith.constant 0 : index
    %c0_168 = arith.constant 0 : index
    %c1_169 = arith.constant 1 : index
    %c0_170 = arith.constant 0 : index
    %250 = vector.load %arg7[%c0_167, %c0_168, %c1_169, %c0_170] : memref<1x4x18x18xf32, #tpu.memory_space<vmem>>, vector<1x1x16x16xf32>
    %251 = vector.shape_cast %250 : vector<1x1x16x16xf32> to vector<16x16xf32>
    %252 = vector.broadcast %249 : f32 to vector<16x16xf32>
    %253 = arith.mulf %252, %251 : vector<16x16xf32>
    %254 = arith.addf %248, %253 : vector<16x16xf32>
    %c40 = arith.constant 40 : index
    %255 = memref.load %arg1[%c40] : memref<144xf32, #tpu.memory_space<smem>>
    %c0_171 = arith.constant 0 : index
    %c0_172 = arith.constant 0 : index
    %c1_173 = arith.constant 1 : index
    %c1_174 = arith.constant 1 : index
    %256 = vector.load %arg7[%c0_171, %c0_172, %c1_173, %c1_174] : memref<1x4x18x18xf32, #tpu.memory_space<vmem>>, vector<1x1x16x16xf32>
    %257 = vector.shape_cast %256 : vector<1x1x16x16xf32> to vector<16x16xf32>
    %258 = vector.broadcast %255 : f32 to vector<16x16xf32>
    %259 = arith.mulf %258, %257 : vector<16x16xf32>
    %260 = arith.addf %254, %259 : vector<16x16xf32>
    %c41 = arith.constant 41 : index
    %261 = memref.load %arg1[%c41] : memref<144xf32, #tpu.memory_space<smem>>
    %c0_175 = arith.constant 0 : index
    %c0_176 = arith.constant 0 : index
    %c1_177 = arith.constant 1 : index
    %c2_178 = arith.constant 2 : index
    %262 = vector.load %arg7[%c0_175, %c0_176, %c1_177, %c2_178] : memref<1x4x18x18xf32, #tpu.memory_space<vmem>>, vector<1x1x16x16xf32>
    %263 = vector.shape_cast %262 : vector<1x1x16x16xf32> to vector<16x16xf32>
    %264 = vector.broadcast %261 : f32 to vector<16x16xf32>
    %265 = arith.mulf %264, %263 : vector<16x16xf32>
    %266 = arith.addf %260, %265 : vector<16x16xf32>
    %c42 = arith.constant 42 : index
    %267 = memref.load %arg1[%c42] : memref<144xf32, #tpu.memory_space<smem>>
    %c0_179 = arith.constant 0 : index
    %c0_180 = arith.constant 0 : index
    %c2_181 = arith.constant 2 : index
    %c0_182 = arith.constant 0 : index
    %268 = vector.load %arg7[%c0_179, %c0_180, %c2_181, %c0_182] : memref<1x4x18x18xf32, #tpu.memory_space<vmem>>, vector<1x1x16x16xf32>
    %269 = vector.shape_cast %268 : vector<1x1x16x16xf32> to vector<16x16xf32>
    %270 = vector.broadcast %267 : f32 to vector<16x16xf32>
    %271 = arith.mulf %270, %269 : vector<16x16xf32>
    %272 = arith.addf %266, %271 : vector<16x16xf32>
    %c43 = arith.constant 43 : index
    %273 = memref.load %arg1[%c43] : memref<144xf32, #tpu.memory_space<smem>>
    %c0_183 = arith.constant 0 : index
    %c0_184 = arith.constant 0 : index
    %c2_185 = arith.constant 2 : index
    %c1_186 = arith.constant 1 : index
    %274 = vector.load %arg7[%c0_183, %c0_184, %c2_185, %c1_186] : memref<1x4x18x18xf32, #tpu.memory_space<vmem>>, vector<1x1x16x16xf32>
    %275 = vector.shape_cast %274 : vector<1x1x16x16xf32> to vector<16x16xf32>
    %276 = vector.broadcast %273 : f32 to vector<16x16xf32>
    %277 = arith.mulf %276, %275 : vector<16x16xf32>
    %278 = arith.addf %272, %277 : vector<16x16xf32>
    %c44 = arith.constant 44 : index
    %279 = memref.load %arg1[%c44] : memref<144xf32, #tpu.memory_space<smem>>
    %c0_187 = arith.constant 0 : index
    %c0_188 = arith.constant 0 : index
    %c2_189 = arith.constant 2 : index
    %c2_190 = arith.constant 2 : index
    %280 = vector.load %arg7[%c0_187, %c0_188, %c2_189, %c2_190] : memref<1x4x18x18xf32, #tpu.memory_space<vmem>>, vector<1x1x16x16xf32>
    %281 = vector.shape_cast %280 : vector<1x1x16x16xf32> to vector<16x16xf32>
    %282 = vector.broadcast %279 : f32 to vector<16x16xf32>
    %283 = arith.mulf %282, %281 : vector<16x16xf32>
    %284 = arith.addf %278, %283 : vector<16x16xf32>
    %c45 = arith.constant 45 : index
    %285 = memref.load %arg1[%c45] : memref<144xf32, #tpu.memory_space<smem>>
    %c0_191 = arith.constant 0 : index
    %c1_192 = arith.constant 1 : index
    %c0_193 = arith.constant 0 : index
    %c0_194 = arith.constant 0 : index
    %286 = vector.load %arg7[%c0_191, %c1_192, %c0_193, %c0_194] : memref<1x4x18x18xf32, #tpu.memory_space<vmem>>, vector<1x1x16x16xf32>
    %287 = vector.shape_cast %286 : vector<1x1x16x16xf32> to vector<16x16xf32>
    %288 = vector.broadcast %285 : f32 to vector<16x16xf32>
    %289 = arith.mulf %288, %287 : vector<16x16xf32>
    %290 = arith.addf %284, %289 : vector<16x16xf32>
    %c46 = arith.constant 46 : index
    %291 = memref.load %arg1[%c46] : memref<144xf32, #tpu.memory_space<smem>>
    %c0_195 = arith.constant 0 : index
    %c1_196 = arith.constant 1 : index
    %c0_197 = arith.constant 0 : index
    %c1_198 = arith.constant 1 : index
    %292 = vector.load %arg7[%c0_195, %c1_196, %c0_197, %c1_198] : memref<1x4x18x18xf32, #tpu.memory_space<vmem>>, vector<1x1x16x16xf32>
    %293 = vector.shape_cast %292 : vector<1x1x16x16xf32> to vector<16x16xf32>
    %294 = vector.broadcast %291 : f32 to vector<16x16xf32>
    %295 = arith.mulf %294, %293 : vector<16x16xf32>
    %296 = arith.addf %290, %295 : vector<16x16xf32>
    %c47 = arith.constant 47 : index
    %297 = memref.load %arg1[%c47] : memref<144xf32, #tpu.memory_space<smem>>
    %c0_199 = arith.constant 0 : index
    %c1_200 = arith.constant 1 : index
    %c0_201 = arith.constant 0 : index
    %c2_202 = arith.constant 2 : index
    %298 = vector.load %arg7[%c0_199, %c1_200, %c0_201, %c2_202] : memref<1x4x18x18xf32, #tpu.memory_space<vmem>>, vector<1x1x16x16xf32>
    %299 = vector.shape_cast %298 : vector<1x1x16x16xf32> to vector<16x16xf32>
    %300 = vector.broadcast %297 : f32 to vector<16x16xf32>
    %301 = arith.mulf %300, %299 : vector<16x16xf32>
    %302 = arith.addf %296, %301 : vector<16x16xf32>
    %c48 = arith.constant 48 : index
    %303 = memref.load %arg1[%c48] : memref<144xf32, #tpu.memory_space<smem>>
    %c0_203 = arith.constant 0 : index
    %c1_204 = arith.constant 1 : index
    %c1_205 = arith.constant 1 : index
    %c0_206 = arith.constant 0 : index
    %304 = vector.load %arg7[%c0_203, %c1_204, %c1_205, %c0_206] : memref<1x4x18x18xf32, #tpu.memory_space<vmem>>, vector<1x1x16x16xf32>
    %305 = vector.shape_cast %304 : vector<1x1x16x16xf32> to vector<16x16xf32>
    %306 = vector.broadcast %303 : f32 to vector<16x16xf32>
    %307 = arith.mulf %306, %305 : vector<16x16xf32>
    %308 = arith.addf %302, %307 : vector<16x16xf32>
    %c49 = arith.constant 49 : index
    %309 = memref.load %arg1[%c49] : memref<144xf32, #tpu.memory_space<smem>>
    %c0_207 = arith.constant 0 : index
    %c1_208 = arith.constant 1 : index
    %c1_209 = arith.constant 1 : index
    %c1_210 = arith.constant 1 : index
    %310 = vector.load %arg7[%c0_207, %c1_208, %c1_209, %c1_210] : memref<1x4x18x18xf32, #tpu.memory_space<vmem>>, vector<1x1x16x16xf32>
    %311 = vector.shape_cast %310 : vector<1x1x16x16xf32> to vector<16x16xf32>
    %312 = vector.broadcast %309 : f32 to vector<16x16xf32>
    %313 = arith.mulf %312, %311 : vector<16x16xf32>
    %314 = arith.addf %308, %313 : vector<16x16xf32>
    %c50 = arith.constant 50 : index
    %315 = memref.load %arg1[%c50] : memref<144xf32, #tpu.memory_space<smem>>
    %c0_211 = arith.constant 0 : index
    %c1_212 = arith.constant 1 : index
    %c1_213 = arith.constant 1 : index
    %c2_214 = arith.constant 2 : index
    %316 = vector.load %arg7[%c0_211, %c1_212, %c1_213, %c2_214] : memref<1x4x18x18xf32, #tpu.memory_space<vmem>>, vector<1x1x16x16xf32>
    %317 = vector.shape_cast %316 : vector<1x1x16x16xf32> to vector<16x16xf32>
    %318 = vector.broadcast %315 : f32 to vector<16x16xf32>
    %319 = arith.mulf %318, %317 : vector<16x16xf32>
    %320 = arith.addf %314, %319 : vector<16x16xf32>
    %c51 = arith.constant 51 : index
    %321 = memref.load %arg1[%c51] : memref<144xf32, #tpu.memory_space<smem>>
    %c0_215 = arith.constant 0 : index
    %c1_216 = arith.constant 1 : index
    %c2_217 = arith.constant 2 : index
    %c0_218 = arith.constant 0 : index
    %322 = vector.load %arg7[%c0_215, %c1_216, %c2_217, %c0_218] : memref<1x4x18x18xf32, #tpu.memory_space<vmem>>, vector<1x1x16x16xf32>
    %323 = vector.shape_cast %322 : vector<1x1x16x16xf32> to vector<16x16xf32>
    %324 = vector.broadcast %321 : f32 to vector<16x16xf32>
    %325 = arith.mulf %324, %323 : vector<16x16xf32>
    %326 = arith.addf %320, %325 : vector<16x16xf32>
    %c52 = arith.constant 52 : index
    %327 = memref.load %arg1[%c52] : memref<144xf32, #tpu.memory_space<smem>>
    %c0_219 = arith.constant 0 : index
    %c1_220 = arith.constant 1 : index
    %c2_221 = arith.constant 2 : index
    %c1_222 = arith.constant 1 : index
    %328 = vector.load %arg7[%c0_219, %c1_220, %c2_221, %c1_222] : memref<1x4x18x18xf32, #tpu.memory_space<vmem>>, vector<1x1x16x16xf32>
    %329 = vector.shape_cast %328 : vector<1x1x16x16xf32> to vector<16x16xf32>
    %330 = vector.broadcast %327 : f32 to vector<16x16xf32>
    %331 = arith.mulf %330, %329 : vector<16x16xf32>
    %332 = arith.addf %326, %331 : vector<16x16xf32>
    %c53 = arith.constant 53 : index
    %333 = memref.load %arg1[%c53] : memref<144xf32, #tpu.memory_space<smem>>
    %c0_223 = arith.constant 0 : index
    %c1_224 = arith.constant 1 : index
    %c2_225 = arith.constant 2 : index
    %c2_226 = arith.constant 2 : index
    %334 = vector.load %arg7[%c0_223, %c1_224, %c2_225, %c2_226] : memref<1x4x18x18xf32, #tpu.memory_space<vmem>>, vector<1x1x16x16xf32>
    %335 = vector.shape_cast %334 : vector<1x1x16x16xf32> to vector<16x16xf32>
    %336 = vector.broadcast %333 : f32 to vector<16x16xf32>
    %337 = arith.mulf %336, %335 : vector<16x16xf32>
    %338 = arith.addf %332, %337 : vector<16x16xf32>
    %c54 = arith.constant 54 : index
    %339 = memref.load %arg1[%c54] : memref<144xf32, #tpu.memory_space<smem>>
    %c0_227 = arith.constant 0 : index
    %c2_228 = arith.constant 2 : index
    %c0_229 = arith.constant 0 : index
    %c0_230 = arith.constant 0 : index
    %340 = vector.load %arg7[%c0_227, %c2_228, %c0_229, %c0_230] : memref<1x4x18x18xf32, #tpu.memory_space<vmem>>, vector<1x1x16x16xf32>
    %341 = vector.shape_cast %340 : vector<1x1x16x16xf32> to vector<16x16xf32>
    %342 = vector.broadcast %339 : f32 to vector<16x16xf32>
    %343 = arith.mulf %342, %341 : vector<16x16xf32>
    %344 = arith.addf %338, %343 : vector<16x16xf32>
    %c55 = arith.constant 55 : index
    %345 = memref.load %arg1[%c55] : memref<144xf32, #tpu.memory_space<smem>>
    %c0_231 = arith.constant 0 : index
    %c2_232 = arith.constant 2 : index
    %c0_233 = arith.constant 0 : index
    %c1_234 = arith.constant 1 : index
    %346 = vector.load %arg7[%c0_231, %c2_232, %c0_233, %c1_234] : memref<1x4x18x18xf32, #tpu.memory_space<vmem>>, vector<1x1x16x16xf32>
    %347 = vector.shape_cast %346 : vector<1x1x16x16xf32> to vector<16x16xf32>
    %348 = vector.broadcast %345 : f32 to vector<16x16xf32>
    %349 = arith.mulf %348, %347 : vector<16x16xf32>
    %350 = arith.addf %344, %349 : vector<16x16xf32>
    %c56 = arith.constant 56 : index
    %351 = memref.load %arg1[%c56] : memref<144xf32, #tpu.memory_space<smem>>
    %c0_235 = arith.constant 0 : index
    %c2_236 = arith.constant 2 : index
    %c0_237 = arith.constant 0 : index
    %c2_238 = arith.constant 2 : index
    %352 = vector.load %arg7[%c0_235, %c2_236, %c0_237, %c2_238] : memref<1x4x18x18xf32, #tpu.memory_space<vmem>>, vector<1x1x16x16xf32>
    %353 = vector.shape_cast %352 : vector<1x1x16x16xf32> to vector<16x16xf32>
    %354 = vector.broadcast %351 : f32 to vector<16x16xf32>
    %355 = arith.mulf %354, %353 : vector<16x16xf32>
    %356 = arith.addf %350, %355 : vector<16x16xf32>
    %c57 = arith.constant 57 : index
    %357 = memref.load %arg1[%c57] : memref<144xf32, #tpu.memory_space<smem>>
    %c0_239 = arith.constant 0 : index
    %c2_240 = arith.constant 2 : index
    %c1_241 = arith.constant 1 : index
    %c0_242 = arith.constant 0 : index
    %358 = vector.load %arg7[%c0_239, %c2_240, %c1_241, %c0_242] : memref<1x4x18x18xf32, #tpu.memory_space<vmem>>, vector<1x1x16x16xf32>
    %359 = vector.shape_cast %358 : vector<1x1x16x16xf32> to vector<16x16xf32>
    %360 = vector.broadcast %357 : f32 to vector<16x16xf32>
    %361 = arith.mulf %360, %359 : vector<16x16xf32>
    %362 = arith.addf %356, %361 : vector<16x16xf32>
    %c58 = arith.constant 58 : index
    %363 = memref.load %arg1[%c58] : memref<144xf32, #tpu.memory_space<smem>>
    %c0_243 = arith.constant 0 : index
    %c2_244 = arith.constant 2 : index
    %c1_245 = arith.constant 1 : index
    %c1_246 = arith.constant 1 : index
    %364 = vector.load %arg7[%c0_243, %c2_244, %c1_245, %c1_246] : memref<1x4x18x18xf32, #tpu.memory_space<vmem>>, vector<1x1x16x16xf32>
    %365 = vector.shape_cast %364 : vector<1x1x16x16xf32> to vector<16x16xf32>
    %366 = vector.broadcast %363 : f32 to vector<16x16xf32>
    %367 = arith.mulf %366, %365 : vector<16x16xf32>
    %368 = arith.addf %362, %367 : vector<16x16xf32>
    %c59 = arith.constant 59 : index
    %369 = memref.load %arg1[%c59] : memref<144xf32, #tpu.memory_space<smem>>
    %c0_247 = arith.constant 0 : index
    %c2_248 = arith.constant 2 : index
    %c1_249 = arith.constant 1 : index
    %c2_250 = arith.constant 2 : index
    %370 = vector.load %arg7[%c0_247, %c2_248, %c1_249, %c2_250] : memref<1x4x18x18xf32, #tpu.memory_space<vmem>>, vector<1x1x16x16xf32>
    %371 = vector.shape_cast %370 : vector<1x1x16x16xf32> to vector<16x16xf32>
    %372 = vector.broadcast %369 : f32 to vector<16x16xf32>
    %373 = arith.mulf %372, %371 : vector<16x16xf32>
    %374 = arith.addf %368, %373 : vector<16x16xf32>
    %c60 = arith.constant 60 : index
    %375 = memref.load %arg1[%c60] : memref<144xf32, #tpu.memory_space<smem>>
    %c0_251 = arith.constant 0 : index
    %c2_252 = arith.constant 2 : index
    %c2_253 = arith.constant 2 : index
    %c0_254 = arith.constant 0 : index
    %376 = vector.load %arg7[%c0_251, %c2_252, %c2_253, %c0_254] : memref<1x4x18x18xf32, #tpu.memory_space<vmem>>, vector<1x1x16x16xf32>
    %377 = vector.shape_cast %376 : vector<1x1x16x16xf32> to vector<16x16xf32>
    %378 = vector.broadcast %375 : f32 to vector<16x16xf32>
    %379 = arith.mulf %378, %377 : vector<16x16xf32>
    %380 = arith.addf %374, %379 : vector<16x16xf32>
    %c61 = arith.constant 61 : index
    %381 = memref.load %arg1[%c61] : memref<144xf32, #tpu.memory_space<smem>>
    %c0_255 = arith.constant 0 : index
    %c2_256 = arith.constant 2 : index
    %c2_257 = arith.constant 2 : index
    %c1_258 = arith.constant 1 : index
    %382 = vector.load %arg7[%c0_255, %c2_256, %c2_257, %c1_258] : memref<1x4x18x18xf32, #tpu.memory_space<vmem>>, vector<1x1x16x16xf32>
    %383 = vector.shape_cast %382 : vector<1x1x16x16xf32> to vector<16x16xf32>
    %384 = vector.broadcast %381 : f32 to vector<16x16xf32>
    %385 = arith.mulf %384, %383 : vector<16x16xf32>
    %386 = arith.addf %380, %385 : vector<16x16xf32>
    %c62 = arith.constant 62 : index
    %387 = memref.load %arg1[%c62] : memref<144xf32, #tpu.memory_space<smem>>
    %c0_259 = arith.constant 0 : index
    %c2_260 = arith.constant 2 : index
    %c2_261 = arith.constant 2 : index
    %c2_262 = arith.constant 2 : index
    %388 = vector.load %arg7[%c0_259, %c2_260, %c2_261, %c2_262] : memref<1x4x18x18xf32, #tpu.memory_space<vmem>>, vector<1x1x16x16xf32>
    %389 = vector.shape_cast %388 : vector<1x1x16x16xf32> to vector<16x16xf32>
    %390 = vector.broadcast %387 : f32 to vector<16x16xf32>
    %391 = arith.mulf %390, %389 : vector<16x16xf32>
    %392 = arith.addf %386, %391 : vector<16x16xf32>
    %c63 = arith.constant 63 : index
    %393 = memref.load %arg1[%c63] : memref<144xf32, #tpu.memory_space<smem>>
    %c0_263 = arith.constant 0 : index
    %c3_264 = arith.constant 3 : index
    %c0_265 = arith.constant 0 : index
    %c0_266 = arith.constant 0 : index
    %394 = vector.load %arg7[%c0_263, %c3_264, %c0_265, %c0_266] : memref<1x4x18x18xf32, #tpu.memory_space<vmem>>, vector<1x1x16x16xf32>
    %395 = vector.shape_cast %394 : vector<1x1x16x16xf32> to vector<16x16xf32>
    %396 = vector.broadcast %393 : f32 to vector<16x16xf32>
    %397 = arith.mulf %396, %395 : vector<16x16xf32>
    %398 = arith.addf %392, %397 : vector<16x16xf32>
    %c64 = arith.constant 64 : index
    %399 = memref.load %arg1[%c64] : memref<144xf32, #tpu.memory_space<smem>>
    %c0_267 = arith.constant 0 : index
    %c3_268 = arith.constant 3 : index
    %c0_269 = arith.constant 0 : index
    %c1_270 = arith.constant 1 : index
    %400 = vector.load %arg7[%c0_267, %c3_268, %c0_269, %c1_270] : memref<1x4x18x18xf32, #tpu.memory_space<vmem>>, vector<1x1x16x16xf32>
    %401 = vector.shape_cast %400 : vector<1x1x16x16xf32> to vector<16x16xf32>
    %402 = vector.broadcast %399 : f32 to vector<16x16xf32>
    %403 = arith.mulf %402, %401 : vector<16x16xf32>
    %404 = arith.addf %398, %403 : vector<16x16xf32>
    %c65 = arith.constant 65 : index
    %405 = memref.load %arg1[%c65] : memref<144xf32, #tpu.memory_space<smem>>
    %c0_271 = arith.constant 0 : index
    %c3_272 = arith.constant 3 : index
    %c0_273 = arith.constant 0 : index
    %c2_274 = arith.constant 2 : index
    %406 = vector.load %arg7[%c0_271, %c3_272, %c0_273, %c2_274] : memref<1x4x18x18xf32, #tpu.memory_space<vmem>>, vector<1x1x16x16xf32>
    %407 = vector.shape_cast %406 : vector<1x1x16x16xf32> to vector<16x16xf32>
    %408 = vector.broadcast %405 : f32 to vector<16x16xf32>
    %409 = arith.mulf %408, %407 : vector<16x16xf32>
    %410 = arith.addf %404, %409 : vector<16x16xf32>
    %c66 = arith.constant 66 : index
    %411 = memref.load %arg1[%c66] : memref<144xf32, #tpu.memory_space<smem>>
    %c0_275 = arith.constant 0 : index
    %c3_276 = arith.constant 3 : index
    %c1_277 = arith.constant 1 : index
    %c0_278 = arith.constant 0 : index
    %412 = vector.load %arg7[%c0_275, %c3_276, %c1_277, %c0_278] : memref<1x4x18x18xf32, #tpu.memory_space<vmem>>, vector<1x1x16x16xf32>
    %413 = vector.shape_cast %412 : vector<1x1x16x16xf32> to vector<16x16xf32>
    %414 = vector.broadcast %411 : f32 to vector<16x16xf32>
    %415 = arith.mulf %414, %413 : vector<16x16xf32>
    %416 = arith.addf %410, %415 : vector<16x16xf32>
    %c67 = arith.constant 67 : index
    %417 = memref.load %arg1[%c67] : memref<144xf32, #tpu.memory_space<smem>>
    %c0_279 = arith.constant 0 : index
    %c3_280 = arith.constant 3 : index
    %c1_281 = arith.constant 1 : index
    %c1_282 = arith.constant 1 : index
    %418 = vector.load %arg7[%c0_279, %c3_280, %c1_281, %c1_282] : memref<1x4x18x18xf32, #tpu.memory_space<vmem>>, vector<1x1x16x16xf32>
    %419 = vector.shape_cast %418 : vector<1x1x16x16xf32> to vector<16x16xf32>
    %420 = vector.broadcast %417 : f32 to vector<16x16xf32>
    %421 = arith.mulf %420, %419 : vector<16x16xf32>
    %422 = arith.addf %416, %421 : vector<16x16xf32>
    %c68 = arith.constant 68 : index
    %423 = memref.load %arg1[%c68] : memref<144xf32, #tpu.memory_space<smem>>
    %c0_283 = arith.constant 0 : index
    %c3_284 = arith.constant 3 : index
    %c1_285 = arith.constant 1 : index
    %c2_286 = arith.constant 2 : index
    %424 = vector.load %arg7[%c0_283, %c3_284, %c1_285, %c2_286] : memref<1x4x18x18xf32, #tpu.memory_space<vmem>>, vector<1x1x16x16xf32>
    %425 = vector.shape_cast %424 : vector<1x1x16x16xf32> to vector<16x16xf32>
    %426 = vector.broadcast %423 : f32 to vector<16x16xf32>
    %427 = arith.mulf %426, %425 : vector<16x16xf32>
    %428 = arith.addf %422, %427 : vector<16x16xf32>
    %c69 = arith.constant 69 : index
    %429 = memref.load %arg1[%c69] : memref<144xf32, #tpu.memory_space<smem>>
    %c0_287 = arith.constant 0 : index
    %c3_288 = arith.constant 3 : index
    %c2_289 = arith.constant 2 : index
    %c0_290 = arith.constant 0 : index
    %430 = vector.load %arg7[%c0_287, %c3_288, %c2_289, %c0_290] : memref<1x4x18x18xf32, #tpu.memory_space<vmem>>, vector<1x1x16x16xf32>
    %431 = vector.shape_cast %430 : vector<1x1x16x16xf32> to vector<16x16xf32>
    %432 = vector.broadcast %429 : f32 to vector<16x16xf32>
    %433 = arith.mulf %432, %431 : vector<16x16xf32>
    %434 = arith.addf %428, %433 : vector<16x16xf32>
    %c70 = arith.constant 70 : index
    %435 = memref.load %arg1[%c70] : memref<144xf32, #tpu.memory_space<smem>>
    %c0_291 = arith.constant 0 : index
    %c3_292 = arith.constant 3 : index
    %c2_293 = arith.constant 2 : index
    %c1_294 = arith.constant 1 : index
    %436 = vector.load %arg7[%c0_291, %c3_292, %c2_293, %c1_294] : memref<1x4x18x18xf32, #tpu.memory_space<vmem>>, vector<1x1x16x16xf32>
    %437 = vector.shape_cast %436 : vector<1x1x16x16xf32> to vector<16x16xf32>
    %438 = vector.broadcast %435 : f32 to vector<16x16xf32>
    %439 = arith.mulf %438, %437 : vector<16x16xf32>
    %440 = arith.addf %434, %439 : vector<16x16xf32>
    %c71 = arith.constant 71 : index
    %441 = memref.load %arg1[%c71] : memref<144xf32, #tpu.memory_space<smem>>
    %c0_295 = arith.constant 0 : index
    %c3_296 = arith.constant 3 : index
    %c2_297 = arith.constant 2 : index
    %c2_298 = arith.constant 2 : index
    %442 = vector.load %arg7[%c0_295, %c3_296, %c2_297, %c2_298] : memref<1x4x18x18xf32, #tpu.memory_space<vmem>>, vector<1x1x16x16xf32>
    %443 = vector.shape_cast %442 : vector<1x1x16x16xf32> to vector<16x16xf32>
    %444 = vector.broadcast %441 : f32 to vector<16x16xf32>
    %445 = arith.mulf %444, %443 : vector<16x16xf32>
    %446 = arith.addf %440, %445 : vector<16x16xf32>
    %c1_299 = arith.constant 1 : index
    %447 = memref.load %arg2[%c1_299] : memref<4xf32, #tpu.memory_space<smem>>
    %448 = vector.broadcast %447 : f32 to vector<16x16xf32>
    %449 = arith.mulf %446, %448 : vector<16x16xf32>
    %c1_300 = arith.constant 1 : index
    %450 = memref.load %arg3[%c1_300] : memref<4xf32, #tpu.memory_space<smem>>
    %451 = vector.broadcast %450 : f32 to vector<16x16xf32>
    %452 = arith.addf %449, %451 : vector<16x16xf32>
    %cst_301 = arith.constant 0.000000e+00 : f32
    %453 = vector.broadcast %cst_301 : f32 to vector<16x16xf32>
    %454 = arith.maximumf %452, %453 : vector<16x16xf32>
    %c1_302 = arith.constant 1 : index
    %c1_303 = arith.constant 1 : index
    %c1_304 = arith.constant 1 : index
    %455 = vector.load %arg9[%c1_302, %c1_303, %c1_304] : memref<4x18x18xf32, #tpu.memory_space<vmem>>, vector<1x16x16xf32>
    %456 = vector.shape_cast %455 : vector<1x16x16xf32> to vector<16x16xf32>
    %457 = vector.shape_cast %454 : vector<16x16xf32> to vector<1x16x16xf32>
    tpu.vector_store %arg9[%c1_302, %c1_303, %c1_304], %457 {strides = array<i32>} : memref<4x18x18xf32, #tpu.memory_space<vmem>>, vector<1x16x16xf32>,
    %cst_305 = arith.constant 0.000000e+00 : f32
    %458 = vector.broadcast %cst_305 : f32 to vector<16x16xf32>
    %c72 = arith.constant 72 : index
    %459 = memref.load %arg1[%c72] : memref<144xf32, #tpu.memory_space<smem>>
    %c0_306 = arith.constant 0 : index
    %c0_307 = arith.constant 0 : index
    %c0_308 = arith.constant 0 : index
    %c0_309 = arith.constant 0 : index
    %460 = vector.load %arg7[%c0_306, %c0_307, %c0_308, %c0_309] : memref<1x4x18x18xf32, #tpu.memory_space<vmem>>, vector<1x1x16x16xf32>
    %461 = vector.shape_cast %460 : vector<1x1x16x16xf32> to vector<16x16xf32>
    %462 = vector.broadcast %459 : f32 to vector<16x16xf32>
    %463 = arith.mulf %462, %461 : vector<16x16xf32>
    %464 = arith.addf %458, %463 : vector<16x16xf32>
    %c73 = arith.constant 73 : index
    %465 = memref.load %arg1[%c73] : memref<144xf32, #tpu.memory_space<smem>>
    %c0_310 = arith.constant 0 : index
    %c0_311 = arith.constant 0 : index
    %c0_312 = arith.constant 0 : index
    %c1_313 = arith.constant 1 : index
    %466 = vector.load %arg7[%c0_310, %c0_311, %c0_312, %c1_313] : memref<1x4x18x18xf32, #tpu.memory_space<vmem>>, vector<1x1x16x16xf32>
    %467 = vector.shape_cast %466 : vector<1x1x16x16xf32> to vector<16x16xf32>
    %468 = vector.broadcast %465 : f32 to vector<16x16xf32>
    %469 = arith.mulf %468, %467 : vector<16x16xf32>
    %470 = arith.addf %464, %469 : vector<16x16xf32>
    %c74 = arith.constant 74 : index
    %471 = memref.load %arg1[%c74] : memref<144xf32, #tpu.memory_space<smem>>
    %c0_314 = arith.constant 0 : index
    %c0_315 = arith.constant 0 : index
    %c0_316 = arith.constant 0 : index
    %c2_317 = arith.constant 2 : index
    %472 = vector.load %arg7[%c0_314, %c0_315, %c0_316, %c2_317] : memref<1x4x18x18xf32, #tpu.memory_space<vmem>>, vector<1x1x16x16xf32>
    %473 = vector.shape_cast %472 : vector<1x1x16x16xf32> to vector<16x16xf32>
    %474 = vector.broadcast %471 : f32 to vector<16x16xf32>
    %475 = arith.mulf %474, %473 : vector<16x16xf32>
    %476 = arith.addf %470, %475 : vector<16x16xf32>
    %c75 = arith.constant 75 : index
    %477 = memref.load %arg1[%c75] : memref<144xf32, #tpu.memory_space<smem>>
    %c0_318 = arith.constant 0 : index
    %c0_319 = arith.constant 0 : index
    %c1_320 = arith.constant 1 : index
    %c0_321 = arith.constant 0 : index
    %478 = vector.load %arg7[%c0_318, %c0_319, %c1_320, %c0_321] : memref<1x4x18x18xf32, #tpu.memory_space<vmem>>, vector<1x1x16x16xf32>
    %479 = vector.shape_cast %478 : vector<1x1x16x16xf32> to vector<16x16xf32>
    %480 = vector.broadcast %477 : f32 to vector<16x16xf32>
    %481 = arith.mulf %480, %479 : vector<16x16xf32>
    %482 = arith.addf %476, %481 : vector<16x16xf32>
    %c76 = arith.constant 76 : index
    %483 = memref.load %arg1[%c76] : memref<144xf32, #tpu.memory_space<smem>>
    %c0_322 = arith.constant 0 : index
    %c0_323 = arith.constant 0 : index
    %c1_324 = arith.constant 1 : index
    %c1_325 = arith.constant 1 : index
    %484 = vector.load %arg7[%c0_322, %c0_323, %c1_324, %c1_325] : memref<1x4x18x18xf32, #tpu.memory_space<vmem>>, vector<1x1x16x16xf32>
    %485 = vector.shape_cast %484 : vector<1x1x16x16xf32> to vector<16x16xf32>
    %486 = vector.broadcast %483 : f32 to vector<16x16xf32>
    %487 = arith.mulf %486, %485 : vector<16x16xf32>
    %488 = arith.addf %482, %487 : vector<16x16xf32>
    %c77 = arith.constant 77 : index
    %489 = memref.load %arg1[%c77] : memref<144xf32, #tpu.memory_space<smem>>
    %c0_326 = arith.constant 0 : index
    %c0_327 = arith.constant 0 : index
    %c1_328 = arith.constant 1 : index
    %c2_329 = arith.constant 2 : index
    %490 = vector.load %arg7[%c0_326, %c0_327, %c1_328, %c2_329] : memref<1x4x18x18xf32, #tpu.memory_space<vmem>>, vector<1x1x16x16xf32>
    %491 = vector.shape_cast %490 : vector<1x1x16x16xf32> to vector<16x16xf32>
    %492 = vector.broadcast %489 : f32 to vector<16x16xf32>
    %493 = arith.mulf %492, %491 : vector<16x16xf32>
    %494 = arith.addf %488, %493 : vector<16x16xf32>
    %c78 = arith.constant 78 : index
    %495 = memref.load %arg1[%c78] : memref<144xf32, #tpu.memory_space<smem>>
    %c0_330 = arith.constant 0 : index
    %c0_331 = arith.constant 0 : index
    %c2_332 = arith.constant 2 : index
    %c0_333 = arith.constant 0 : index
    %496 = vector.load %arg7[%c0_330, %c0_331, %c2_332, %c0_333] : memref<1x4x18x18xf32, #tpu.memory_space<vmem>>, vector<1x1x16x16xf32>
    %497 = vector.shape_cast %496 : vector<1x1x16x16xf32> to vector<16x16xf32>
    %498 = vector.broadcast %495 : f32 to vector<16x16xf32>
    %499 = arith.mulf %498, %497 : vector<16x16xf32>
    %500 = arith.addf %494, %499 : vector<16x16xf32>
    %c79 = arith.constant 79 : index
    %501 = memref.load %arg1[%c79] : memref<144xf32, #tpu.memory_space<smem>>
    %c0_334 = arith.constant 0 : index
    %c0_335 = arith.constant 0 : index
    %c2_336 = arith.constant 2 : index
    %c1_337 = arith.constant 1 : index
    %502 = vector.load %arg7[%c0_334, %c0_335, %c2_336, %c1_337] : memref<1x4x18x18xf32, #tpu.memory_space<vmem>>, vector<1x1x16x16xf32>
    %503 = vector.shape_cast %502 : vector<1x1x16x16xf32> to vector<16x16xf32>
    %504 = vector.broadcast %501 : f32 to vector<16x16xf32>
    %505 = arith.mulf %504, %503 : vector<16x16xf32>
    %506 = arith.addf %500, %505 : vector<16x16xf32>
    %c80 = arith.constant 80 : index
    %507 = memref.load %arg1[%c80] : memref<144xf32, #tpu.memory_space<smem>>
    %c0_338 = arith.constant 0 : index
    %c0_339 = arith.constant 0 : index
    %c2_340 = arith.constant 2 : index
    %c2_341 = arith.constant 2 : index
    %508 = vector.load %arg7[%c0_338, %c0_339, %c2_340, %c2_341] : memref<1x4x18x18xf32, #tpu.memory_space<vmem>>, vector<1x1x16x16xf32>
    %509 = vector.shape_cast %508 : vector<1x1x16x16xf32> to vector<16x16xf32>
    %510 = vector.broadcast %507 : f32 to vector<16x16xf32>
    %511 = arith.mulf %510, %509 : vector<16x16xf32>
    %512 = arith.addf %506, %511 : vector<16x16xf32>
    %c81 = arith.constant 81 : index
    %513 = memref.load %arg1[%c81] : memref<144xf32, #tpu.memory_space<smem>>
    %c0_342 = arith.constant 0 : index
    %c1_343 = arith.constant 1 : index
    %c0_344 = arith.constant 0 : index
    %c0_345 = arith.constant 0 : index
    %514 = vector.load %arg7[%c0_342, %c1_343, %c0_344, %c0_345] : memref<1x4x18x18xf32, #tpu.memory_space<vmem>>, vector<1x1x16x16xf32>
    %515 = vector.shape_cast %514 : vector<1x1x16x16xf32> to vector<16x16xf32>
    %516 = vector.broadcast %513 : f32 to vector<16x16xf32>
    %517 = arith.mulf %516, %515 : vector<16x16xf32>
    %518 = arith.addf %512, %517 : vector<16x16xf32>
    %c82 = arith.constant 82 : index
    %519 = memref.load %arg1[%c82] : memref<144xf32, #tpu.memory_space<smem>>
    %c0_346 = arith.constant 0 : index
    %c1_347 = arith.constant 1 : index
    %c0_348 = arith.constant 0 : index
    %c1_349 = arith.constant 1 : index
    %520 = vector.load %arg7[%c0_346, %c1_347, %c0_348, %c1_349] : memref<1x4x18x18xf32, #tpu.memory_space<vmem>>, vector<1x1x16x16xf32>
    %521 = vector.shape_cast %520 : vector<1x1x16x16xf32> to vector<16x16xf32>
    %522 = vector.broadcast %519 : f32 to vector<16x16xf32>
    %523 = arith.mulf %522, %521 : vector<16x16xf32>
    %524 = arith.addf %518, %523 : vector<16x16xf32>
    %c83 = arith.constant 83 : index
    %525 = memref.load %arg1[%c83] : memref<144xf32, #tpu.memory_space<smem>>
    %c0_350 = arith.constant 0 : index
    %c1_351 = arith.constant 1 : index
    %c0_352 = arith.constant 0 : index
    %c2_353 = arith.constant 2 : index
    %526 = vector.load %arg7[%c0_350, %c1_351, %c0_352, %c2_353] : memref<1x4x18x18xf32, #tpu.memory_space<vmem>>, vector<1x1x16x16xf32>
    %527 = vector.shape_cast %526 : vector<1x1x16x16xf32> to vector<16x16xf32>
    %528 = vector.broadcast %525 : f32 to vector<16x16xf32>
    %529 = arith.mulf %528, %527 : vector<16x16xf32>
    %530 = arith.addf %524, %529 : vector<16x16xf32>
    %c84 = arith.constant 84 : index
    %531 = memref.load %arg1[%c84] : memref<144xf32, #tpu.memory_space<smem>>
    %c0_354 = arith.constant 0 : index
    %c1_355 = arith.constant 1 : index
    %c1_356 = arith.constant 1 : index
    %c0_357 = arith.constant 0 : index
    %532 = vector.load %arg7[%c0_354, %c1_355, %c1_356, %c0_357] : memref<1x4x18x18xf32, #tpu.memory_space<vmem>>, vector<1x1x16x16xf32>
    %533 = vector.shape_cast %532 : vector<1x1x16x16xf32> to vector<16x16xf32>
    %534 = vector.broadcast %531 : f32 to vector<16x16xf32>
    %535 = arith.mulf %534, %533 : vector<16x16xf32>
    %536 = arith.addf %530, %535 : vector<16x16xf32>
    %c85 = arith.constant 85 : index
    %537 = memref.load %arg1[%c85] : memref<144xf32, #tpu.memory_space<smem>>
    %c0_358 = arith.constant 0 : index
    %c1_359 = arith.constant 1 : index
    %c1_360 = arith.constant 1 : index
    %c1_361 = arith.constant 1 : index
    %538 = vector.load %arg7[%c0_358, %c1_359, %c1_360, %c1_361] : memref<1x4x18x18xf32, #tpu.memory_space<vmem>>, vector<1x1x16x16xf32>
    %539 = vector.shape_cast %538 : vector<1x1x16x16xf32> to vector<16x16xf32>
    %540 = vector.broadcast %537 : f32 to vector<16x16xf32>
    %541 = arith.mulf %540, %539 : vector<16x16xf32>
    %542 = arith.addf %536, %541 : vector<16x16xf32>
    %c86 = arith.constant 86 : index
    %543 = memref.load %arg1[%c86] : memref<144xf32, #tpu.memory_space<smem>>
    %c0_362 = arith.constant 0 : index
    %c1_363 = arith.constant 1 : index
    %c1_364 = arith.constant 1 : index
    %c2_365 = arith.constant 2 : index
    %544 = vector.load %arg7[%c0_362, %c1_363, %c1_364, %c2_365] : memref<1x4x18x18xf32, #tpu.memory_space<vmem>>, vector<1x1x16x16xf32>
    %545 = vector.shape_cast %544 : vector<1x1x16x16xf32> to vector<16x16xf32>
    %546 = vector.broadcast %543 : f32 to vector<16x16xf32>
    %547 = arith.mulf %546, %545 : vector<16x16xf32>
    %548 = arith.addf %542, %547 : vector<16x16xf32>
    %c87 = arith.constant 87 : index
    %549 = memref.load %arg1[%c87] : memref<144xf32, #tpu.memory_space<smem>>
    %c0_366 = arith.constant 0 : index
    %c1_367 = arith.constant 1 : index
    %c2_368 = arith.constant 2 : index
    %c0_369 = arith.constant 0 : index
    %550 = vector.load %arg7[%c0_366, %c1_367, %c2_368, %c0_369] : memref<1x4x18x18xf32, #tpu.memory_space<vmem>>, vector<1x1x16x16xf32>
    %551 = vector.shape_cast %550 : vector<1x1x16x16xf32> to vector<16x16xf32>
    %552 = vector.broadcast %549 : f32 to vector<16x16xf32>
    %553 = arith.mulf %552, %551 : vector<16x16xf32>
    %554 = arith.addf %548, %553 : vector<16x16xf32>
    %c88 = arith.constant 88 : index
    %555 = memref.load %arg1[%c88] : memref<144xf32, #tpu.memory_space<smem>>
    %c0_370 = arith.constant 0 : index
    %c1_371 = arith.constant 1 : index
    %c2_372 = arith.constant 2 : index
    %c1_373 = arith.constant 1 : index
    %556 = vector.load %arg7[%c0_370, %c1_371, %c2_372, %c1_373] : memref<1x4x18x18xf32, #tpu.memory_space<vmem>>, vector<1x1x16x16xf32>
    %557 = vector.shape_cast %556 : vector<1x1x16x16xf32> to vector<16x16xf32>
    %558 = vector.broadcast %555 : f32 to vector<16x16xf32>
    %559 = arith.mulf %558, %557 : vector<16x16xf32>
    %560 = arith.addf %554, %559 : vector<16x16xf32>
    %c89 = arith.constant 89 : index
    %561 = memref.load %arg1[%c89] : memref<144xf32, #tpu.memory_space<smem>>
    %c0_374 = arith.constant 0 : index
    %c1_375 = arith.constant 1 : index
    %c2_376 = arith.constant 2 : index
    %c2_377 = arith.constant 2 : index
    %562 = vector.load %arg7[%c0_374, %c1_375, %c2_376, %c2_377] : memref<1x4x18x18xf32, #tpu.memory_space<vmem>>, vector<1x1x16x16xf32>
    %563 = vector.shape_cast %562 : vector<1x1x16x16xf32> to vector<16x16xf32>
    %564 = vector.broadcast %561 : f32 to vector<16x16xf32>
    %565 = arith.mulf %564, %563 : vector<16x16xf32>
    %566 = arith.addf %560, %565 : vector<16x16xf32>
    %c90 = arith.constant 90 : index
    %567 = memref.load %arg1[%c90] : memref<144xf32, #tpu.memory_space<smem>>
    %c0_378 = arith.constant 0 : index
    %c2_379 = arith.constant 2 : index
    %c0_380 = arith.constant 0 : index
    %c0_381 = arith.constant 0 : index
    %568 = vector.load %arg7[%c0_378, %c2_379, %c0_380, %c0_381] : memref<1x4x18x18xf32, #tpu.memory_space<vmem>>, vector<1x1x16x16xf32>
    %569 = vector.shape_cast %568 : vector<1x1x16x16xf32> to vector<16x16xf32>
    %570 = vector.broadcast %567 : f32 to vector<16x16xf32>
    %571 = arith.mulf %570, %569 : vector<16x16xf32>
    %572 = arith.addf %566, %571 : vector<16x16xf32>
    %c91 = arith.constant 91 : index
    %573 = memref.load %arg1[%c91] : memref<144xf32, #tpu.memory_space<smem>>
    %c0_382 = arith.constant 0 : index
    %c2_383 = arith.constant 2 : index
    %c0_384 = arith.constant 0 : index
    %c1_385 = arith.constant 1 : index
    %574 = vector.load %arg7[%c0_382, %c2_383, %c0_384, %c1_385] : memref<1x4x18x18xf32, #tpu.memory_space<vmem>>, vector<1x1x16x16xf32>
    %575 = vector.shape_cast %574 : vector<1x1x16x16xf32> to vector<16x16xf32>
    %576 = vector.broadcast %573 : f32 to vector<16x16xf32>
    %577 = arith.mulf %576, %575 : vector<16x16xf32>
    %578 = arith.addf %572, %577 : vector<16x16xf32>
    %c92 = arith.constant 92 : index
    %579 = memref.load %arg1[%c92] : memref<144xf32, #tpu.memory_space<smem>>
    %c0_386 = arith.constant 0 : index
    %c2_387 = arith.constant 2 : index
    %c0_388 = arith.constant 0 : index
    %c2_389 = arith.constant 2 : index
    %580 = vector.load %arg7[%c0_386, %c2_387, %c0_388, %c2_389] : memref<1x4x18x18xf32, #tpu.memory_space<vmem>>, vector<1x1x16x16xf32>
    %581 = vector.shape_cast %580 : vector<1x1x16x16xf32> to vector<16x16xf32>
    %582 = vector.broadcast %579 : f32 to vector<16x16xf32>
    %583 = arith.mulf %582, %581 : vector<16x16xf32>
    %584 = arith.addf %578, %583 : vector<16x16xf32>
    %c93 = arith.constant 93 : index
    %585 = memref.load %arg1[%c93] : memref<144xf32, #tpu.memory_space<smem>>
    %c0_390 = arith.constant 0 : index
    %c2_391 = arith.constant 2 : index
    %c1_392 = arith.constant 1 : index
    %c0_393 = arith.constant 0 : index
    %586 = vector.load %arg7[%c0_390, %c2_391, %c1_392, %c0_393] : memref<1x4x18x18xf32, #tpu.memory_space<vmem>>, vector<1x1x16x16xf32>
    %587 = vector.shape_cast %586 : vector<1x1x16x16xf32> to vector<16x16xf32>
    %588 = vector.broadcast %585 : f32 to vector<16x16xf32>
    %589 = arith.mulf %588, %587 : vector<16x16xf32>
    %590 = arith.addf %584, %589 : vector<16x16xf32>
    %c94 = arith.constant 94 : index
    %591 = memref.load %arg1[%c94] : memref<144xf32, #tpu.memory_space<smem>>
    %c0_394 = arith.constant 0 : index
    %c2_395 = arith.constant 2 : index
    %c1_396 = arith.constant 1 : index
    %c1_397 = arith.constant 1 : index
    %592 = vector.load %arg7[%c0_394, %c2_395, %c1_396, %c1_397] : memref<1x4x18x18xf32, #tpu.memory_space<vmem>>, vector<1x1x16x16xf32>
    %593 = vector.shape_cast %592 : vector<1x1x16x16xf32> to vector<16x16xf32>
    %594 = vector.broadcast %591 : f32 to vector<16x16xf32>
    %595 = arith.mulf %594, %593 : vector<16x16xf32>
    %596 = arith.addf %590, %595 : vector<16x16xf32>
    %c95 = arith.constant 95 : index
    %597 = memref.load %arg1[%c95] : memref<144xf32, #tpu.memory_space<smem>>
    %c0_398 = arith.constant 0 : index
    %c2_399 = arith.constant 2 : index
    %c1_400 = arith.constant 1 : index
    %c2_401 = arith.constant 2 : index
    %598 = vector.load %arg7[%c0_398, %c2_399, %c1_400, %c2_401] : memref<1x4x18x18xf32, #tpu.memory_space<vmem>>, vector<1x1x16x16xf32>
    %599 = vector.shape_cast %598 : vector<1x1x16x16xf32> to vector<16x16xf32>
    %600 = vector.broadcast %597 : f32 to vector<16x16xf32>
    %601 = arith.mulf %600, %599 : vector<16x16xf32>
    %602 = arith.addf %596, %601 : vector<16x16xf32>
    %c96 = arith.constant 96 : index
    %603 = memref.load %arg1[%c96] : memref<144xf32, #tpu.memory_space<smem>>
    %c0_402 = arith.constant 0 : index
    %c2_403 = arith.constant 2 : index
    %c2_404 = arith.constant 2 : index
    %c0_405 = arith.constant 0 : index
    %604 = vector.load %arg7[%c0_402, %c2_403, %c2_404, %c0_405] : memref<1x4x18x18xf32, #tpu.memory_space<vmem>>, vector<1x1x16x16xf32>
    %605 = vector.shape_cast %604 : vector<1x1x16x16xf32> to vector<16x16xf32>
    %606 = vector.broadcast %603 : f32 to vector<16x16xf32>
    %607 = arith.mulf %606, %605 : vector<16x16xf32>
    %608 = arith.addf %602, %607 : vector<16x16xf32>
    %c97 = arith.constant 97 : index
    %609 = memref.load %arg1[%c97] : memref<144xf32, #tpu.memory_space<smem>>
    %c0_406 = arith.constant 0 : index
    %c2_407 = arith.constant 2 : index
    %c2_408 = arith.constant 2 : index
    %c1_409 = arith.constant 1 : index
    %610 = vector.load %arg7[%c0_406, %c2_407, %c2_408, %c1_409] : memref<1x4x18x18xf32, #tpu.memory_space<vmem>>, vector<1x1x16x16xf32>
    %611 = vector.shape_cast %610 : vector<1x1x16x16xf32> to vector<16x16xf32>
    %612 = vector.broadcast %609 : f32 to vector<16x16xf32>
    %613 = arith.mulf %612, %611 : vector<16x16xf32>
    %614 = arith.addf %608, %613 : vector<16x16xf32>
    %c98 = arith.constant 98 : index
    %615 = memref.load %arg1[%c98] : memref<144xf32, #tpu.memory_space<smem>>
    %c0_410 = arith.constant 0 : index
    %c2_411 = arith.constant 2 : index
    %c2_412 = arith.constant 2 : index
    %c2_413 = arith.constant 2 : index
    %616 = vector.load %arg7[%c0_410, %c2_411, %c2_412, %c2_413] : memref<1x4x18x18xf32, #tpu.memory_space<vmem>>, vector<1x1x16x16xf32>
    %617 = vector.shape_cast %616 : vector<1x1x16x16xf32> to vector<16x16xf32>
    %618 = vector.broadcast %615 : f32 to vector<16x16xf32>
    %619 = arith.mulf %618, %617 : vector<16x16xf32>
    %620 = arith.addf %614, %619 : vector<16x16xf32>
    %c99 = arith.constant 99 : index
    %621 = memref.load %arg1[%c99] : memref<144xf32, #tpu.memory_space<smem>>
    %c0_414 = arith.constant 0 : index
    %c3_415 = arith.constant 3 : index
    %c0_416 = arith.constant 0 : index
    %c0_417 = arith.constant 0 : index
    %622 = vector.load %arg7[%c0_414, %c3_415, %c0_416, %c0_417] : memref<1x4x18x18xf32, #tpu.memory_space<vmem>>, vector<1x1x16x16xf32>
    %623 = vector.shape_cast %622 : vector<1x1x16x16xf32> to vector<16x16xf32>
    %624 = vector.broadcast %621 : f32 to vector<16x16xf32>
    %625 = arith.mulf %624, %623 : vector<16x16xf32>
    %626 = arith.addf %620, %625 : vector<16x16xf32>
    %c100 = arith.constant 100 : index
    %627 = memref.load %arg1[%c100] : memref<144xf32, #tpu.memory_space<smem>>
    %c0_418 = arith.constant 0 : index
    %c3_419 = arith.constant 3 : index
    %c0_420 = arith.constant 0 : index
    %c1_421 = arith.constant 1 : index
    %628 = vector.load %arg7[%c0_418, %c3_419, %c0_420, %c1_421] : memref<1x4x18x18xf32, #tpu.memory_space<vmem>>, vector<1x1x16x16xf32>
    %629 = vector.shape_cast %628 : vector<1x1x16x16xf32> to vector<16x16xf32>
    %630 = vector.broadcast %627 : f32 to vector<16x16xf32>
    %631 = arith.mulf %630, %629 : vector<16x16xf32>
    %632 = arith.addf %626, %631 : vector<16x16xf32>
    %c101 = arith.constant 101 : index
    %633 = memref.load %arg1[%c101] : memref<144xf32, #tpu.memory_space<smem>>
    %c0_422 = arith.constant 0 : index
    %c3_423 = arith.constant 3 : index
    %c0_424 = arith.constant 0 : index
    %c2_425 = arith.constant 2 : index
    %634 = vector.load %arg7[%c0_422, %c3_423, %c0_424, %c2_425] : memref<1x4x18x18xf32, #tpu.memory_space<vmem>>, vector<1x1x16x16xf32>
    %635 = vector.shape_cast %634 : vector<1x1x16x16xf32> to vector<16x16xf32>
    %636 = vector.broadcast %633 : f32 to vector<16x16xf32>
    %637 = arith.mulf %636, %635 : vector<16x16xf32>
    %638 = arith.addf %632, %637 : vector<16x16xf32>
    %c102 = arith.constant 102 : index
    %639 = memref.load %arg1[%c102] : memref<144xf32, #tpu.memory_space<smem>>
    %c0_426 = arith.constant 0 : index
    %c3_427 = arith.constant 3 : index
    %c1_428 = arith.constant 1 : index
    %c0_429 = arith.constant 0 : index
    %640 = vector.load %arg7[%c0_426, %c3_427, %c1_428, %c0_429] : memref<1x4x18x18xf32, #tpu.memory_space<vmem>>, vector<1x1x16x16xf32>
    %641 = vector.shape_cast %640 : vector<1x1x16x16xf32> to vector<16x16xf32>
    %642 = vector.broadcast %639 : f32 to vector<16x16xf32>
    %643 = arith.mulf %642, %641 : vector<16x16xf32>
    %644 = arith.addf %638, %643 : vector<16x16xf32>
    %c103 = arith.constant 103 : index
    %645 = memref.load %arg1[%c103] : memref<144xf32, #tpu.memory_space<smem>>
    %c0_430 = arith.constant 0 : index
    %c3_431 = arith.constant 3 : index
    %c1_432 = arith.constant 1 : index
    %c1_433 = arith.constant 1 : index
    %646 = vector.load %arg7[%c0_430, %c3_431, %c1_432, %c1_433] : memref<1x4x18x18xf32, #tpu.memory_space<vmem>>, vector<1x1x16x16xf32>
    %647 = vector.shape_cast %646 : vector<1x1x16x16xf32> to vector<16x16xf32>
    %648 = vector.broadcast %645 : f32 to vector<16x16xf32>
    %649 = arith.mulf %648, %647 : vector<16x16xf32>
    %650 = arith.addf %644, %649 : vector<16x16xf32>
    %c104 = arith.constant 104 : index
    %651 = memref.load %arg1[%c104] : memref<144xf32, #tpu.memory_space<smem>>
    %c0_434 = arith.constant 0 : index
    %c3_435 = arith.constant 3 : index
    %c1_436 = arith.constant 1 : index
    %c2_437 = arith.constant 2 : index
    %652 = vector.load %arg7[%c0_434, %c3_435, %c1_436, %c2_437] : memref<1x4x18x18xf32, #tpu.memory_space<vmem>>, vector<1x1x16x16xf32>
    %653 = vector.shape_cast %652 : vector<1x1x16x16xf32> to vector<16x16xf32>
    %654 = vector.broadcast %651 : f32 to vector<16x16xf32>
    %655 = arith.mulf %654, %653 : vector<16x16xf32>
    %656 = arith.addf %650, %655 : vector<16x16xf32>
    %c105 = arith.constant 105 : index
    %657 = memref.load %arg1[%c105] : memref<144xf32, #tpu.memory_space<smem>>
    %c0_438 = arith.constant 0 : index
    %c3_439 = arith.constant 3 : index
    %c2_440 = arith.constant 2 : index
    %c0_441 = arith.constant 0 : index
    %658 = vector.load %arg7[%c0_438, %c3_439, %c2_440, %c0_441] : memref<1x4x18x18xf32, #tpu.memory_space<vmem>>, vector<1x1x16x16xf32>
    %659 = vector.shape_cast %658 : vector<1x1x16x16xf32> to vector<16x16xf32>
    %660 = vector.broadcast %657 : f32 to vector<16x16xf32>
    %661 = arith.mulf %660, %659 : vector<16x16xf32>
    %662 = arith.addf %656, %661 : vector<16x16xf32>
    %c106 = arith.constant 106 : index
    %663 = memref.load %arg1[%c106] : memref<144xf32, #tpu.memory_space<smem>>
    %c0_442 = arith.constant 0 : index
    %c3_443 = arith.constant 3 : index
    %c2_444 = arith.constant 2 : index
    %c1_445 = arith.constant 1 : index
    %664 = vector.load %arg7[%c0_442, %c3_443, %c2_444, %c1_445] : memref<1x4x18x18xf32, #tpu.memory_space<vmem>>, vector<1x1x16x16xf32>
    %665 = vector.shape_cast %664 : vector<1x1x16x16xf32> to vector<16x16xf32>
    %666 = vector.broadcast %663 : f32 to vector<16x16xf32>
    %667 = arith.mulf %666, %665 : vector<16x16xf32>
    %668 = arith.addf %662, %667 : vector<16x16xf32>
    %c107 = arith.constant 107 : index
    %669 = memref.load %arg1[%c107] : memref<144xf32, #tpu.memory_space<smem>>
    %c0_446 = arith.constant 0 : index
    %c3_447 = arith.constant 3 : index
    %c2_448 = arith.constant 2 : index
    %c2_449 = arith.constant 2 : index
    %670 = vector.load %arg7[%c0_446, %c3_447, %c2_448, %c2_449] : memref<1x4x18x18xf32, #tpu.memory_space<vmem>>, vector<1x1x16x16xf32>
    %671 = vector.shape_cast %670 : vector<1x1x16x16xf32> to vector<16x16xf32>
    %672 = vector.broadcast %669 : f32 to vector<16x16xf32>
    %673 = arith.mulf %672, %671 : vector<16x16xf32>
    %674 = arith.addf %668, %673 : vector<16x16xf32>
    %c2_450 = arith.constant 2 : index
    %675 = memref.load %arg2[%c2_450] : memref<4xf32, #tpu.memory_space<smem>>
    %676 = vector.broadcast %675 : f32 to vector<16x16xf32>
    %677 = arith.mulf %674, %676 : vector<16x16xf32>
    %c2_451 = arith.constant 2 : index
    %678 = memref.load %arg3[%c2_451] : memref<4xf32, #tpu.memory_space<smem>>
    %679 = vector.broadcast %678 : f32 to vector<16x16xf32>
    %680 = arith.addf %677, %679 : vector<16x16xf32>
    %cst_452 = arith.constant 0.000000e+00 : f32
    %681 = vector.broadcast %cst_452 : f32 to vector<16x16xf32>
    %682 = arith.maximumf %680, %681 : vector<16x16xf32>
    %c2_453 = arith.constant 2 : index
    %c1_454 = arith.constant 1 : index
    %c1_455 = arith.constant 1 : index
    %683 = vector.load %arg9[%c2_453, %c1_454, %c1_455] : memref<4x18x18xf32, #tpu.memory_space<vmem>>, vector<1x16x16xf32>
    %684 = vector.shape_cast %683 : vector<1x16x16xf32> to vector<16x16xf32>
    %685 = vector.shape_cast %682 : vector<16x16xf32> to vector<1x16x16xf32>
    tpu.vector_store %arg9[%c2_453, %c1_454, %c1_455], %685 {strides = array<i32>} : memref<4x18x18xf32, #tpu.memory_space<vmem>>, vector<1x16x16xf32>,
    %cst_456 = arith.constant 0.000000e+00 : f32
    %686 = vector.broadcast %cst_456 : f32 to vector<16x16xf32>
    %c108 = arith.constant 108 : index
    %687 = memref.load %arg1[%c108] : memref<144xf32, #tpu.memory_space<smem>>
    %c0_457 = arith.constant 0 : index
    %c0_458 = arith.constant 0 : index
    %c0_459 = arith.constant 0 : index
    %c0_460 = arith.constant 0 : index
    %688 = vector.load %arg7[%c0_457, %c0_458, %c0_459, %c0_460] : memref<1x4x18x18xf32, #tpu.memory_space<vmem>>, vector<1x1x16x16xf32>
    %689 = vector.shape_cast %688 : vector<1x1x16x16xf32> to vector<16x16xf32>
    %690 = vector.broadcast %687 : f32 to vector<16x16xf32>
    %691 = arith.mulf %690, %689 : vector<16x16xf32>
    %692 = arith.addf %686, %691 : vector<16x16xf32>
    %c109 = arith.constant 109 : index
    %693 = memref.load %arg1[%c109] : memref<144xf32, #tpu.memory_space<smem>>
    %c0_461 = arith.constant 0 : index
    %c0_462 = arith.constant 0 : index
    %c0_463 = arith.constant 0 : index
    %c1_464 = arith.constant 1 : index
    %694 = vector.load %arg7[%c0_461, %c0_462, %c0_463, %c1_464] : memref<1x4x18x18xf32, #tpu.memory_space<vmem>>, vector<1x1x16x16xf32>
    %695 = vector.shape_cast %694 : vector<1x1x16x16xf32> to vector<16x16xf32>
    %696 = vector.broadcast %693 : f32 to vector<16x16xf32>
    %697 = arith.mulf %696, %695 : vector<16x16xf32>
    %698 = arith.addf %692, %697 : vector<16x16xf32>
    %c110 = arith.constant 110 : index
    %699 = memref.load %arg1[%c110] : memref<144xf32, #tpu.memory_space<smem>>
    %c0_465 = arith.constant 0 : index
    %c0_466 = arith.constant 0 : index
    %c0_467 = arith.constant 0 : index
    %c2_468 = arith.constant 2 : index
    %700 = vector.load %arg7[%c0_465, %c0_466, %c0_467, %c2_468] : memref<1x4x18x18xf32, #tpu.memory_space<vmem>>, vector<1x1x16x16xf32>
    %701 = vector.shape_cast %700 : vector<1x1x16x16xf32> to vector<16x16xf32>
    %702 = vector.broadcast %699 : f32 to vector<16x16xf32>
    %703 = arith.mulf %702, %701 : vector<16x16xf32>
    %704 = arith.addf %698, %703 : vector<16x16xf32>
    %c111 = arith.constant 111 : index
    %705 = memref.load %arg1[%c111] : memref<144xf32, #tpu.memory_space<smem>>
    %c0_469 = arith.constant 0 : index
    %c0_470 = arith.constant 0 : index
    %c1_471 = arith.constant 1 : index
    %c0_472 = arith.constant 0 : index
    %706 = vector.load %arg7[%c0_469, %c0_470, %c1_471, %c0_472] : memref<1x4x18x18xf32, #tpu.memory_space<vmem>>, vector<1x1x16x16xf32>
    %707 = vector.shape_cast %706 : vector<1x1x16x16xf32> to vector<16x16xf32>
    %708 = vector.broadcast %705 : f32 to vector<16x16xf32>
    %709 = arith.mulf %708, %707 : vector<16x16xf32>
    %710 = arith.addf %704, %709 : vector<16x16xf32>
    %c112 = arith.constant 112 : index
    %711 = memref.load %arg1[%c112] : memref<144xf32, #tpu.memory_space<smem>>
    %c0_473 = arith.constant 0 : index
    %c0_474 = arith.constant 0 : index
    %c1_475 = arith.constant 1 : index
    %c1_476 = arith.constant 1 : index
    %712 = vector.load %arg7[%c0_473, %c0_474, %c1_475, %c1_476] : memref<1x4x18x18xf32, #tpu.memory_space<vmem>>, vector<1x1x16x16xf32>
    %713 = vector.shape_cast %712 : vector<1x1x16x16xf32> to vector<16x16xf32>
    %714 = vector.broadcast %711 : f32 to vector<16x16xf32>
    %715 = arith.mulf %714, %713 : vector<16x16xf32>
    %716 = arith.addf %710, %715 : vector<16x16xf32>
    %c113 = arith.constant 113 : index
    %717 = memref.load %arg1[%c113] : memref<144xf32, #tpu.memory_space<smem>>
    %c0_477 = arith.constant 0 : index
    %c0_478 = arith.constant 0 : index
    %c1_479 = arith.constant 1 : index
    %c2_480 = arith.constant 2 : index
    %718 = vector.load %arg7[%c0_477, %c0_478, %c1_479, %c2_480] : memref<1x4x18x18xf32, #tpu.memory_space<vmem>>, vector<1x1x16x16xf32>
    %719 = vector.shape_cast %718 : vector<1x1x16x16xf32> to vector<16x16xf32>
    %720 = vector.broadcast %717 : f32 to vector<16x16xf32>
    %721 = arith.mulf %720, %719 : vector<16x16xf32>
    %722 = arith.addf %716, %721 : vector<16x16xf32>
    %c114 = arith.constant 114 : index
    %723 = memref.load %arg1[%c114] : memref<144xf32, #tpu.memory_space<smem>>
    %c0_481 = arith.constant 0 : index
    %c0_482 = arith.constant 0 : index
    %c2_483 = arith.constant 2 : index
    %c0_484 = arith.constant 0 : index
    %724 = vector.load %arg7[%c0_481, %c0_482, %c2_483, %c0_484] : memref<1x4x18x18xf32, #tpu.memory_space<vmem>>, vector<1x1x16x16xf32>
    %725 = vector.shape_cast %724 : vector<1x1x16x16xf32> to vector<16x16xf32>
    %726 = vector.broadcast %723 : f32 to vector<16x16xf32>
    %727 = arith.mulf %726, %725 : vector<16x16xf32>
    %728 = arith.addf %722, %727 : vector<16x16xf32>
    %c115 = arith.constant 115 : index
    %729 = memref.load %arg1[%c115] : memref<144xf32, #tpu.memory_space<smem>>
    %c0_485 = arith.constant 0 : index
    %c0_486 = arith.constant 0 : index
    %c2_487 = arith.constant 2 : index
    %c1_488 = arith.constant 1 : index
    %730 = vector.load %arg7[%c0_485, %c0_486, %c2_487, %c1_488] : memref<1x4x18x18xf32, #tpu.memory_space<vmem>>, vector<1x1x16x16xf32>
    %731 = vector.shape_cast %730 : vector<1x1x16x16xf32> to vector<16x16xf32>
    %732 = vector.broadcast %729 : f32 to vector<16x16xf32>
    %733 = arith.mulf %732, %731 : vector<16x16xf32>
    %734 = arith.addf %728, %733 : vector<16x16xf32>
    %c116 = arith.constant 116 : index
    %735 = memref.load %arg1[%c116] : memref<144xf32, #tpu.memory_space<smem>>
    %c0_489 = arith.constant 0 : index
    %c0_490 = arith.constant 0 : index
    %c2_491 = arith.constant 2 : index
    %c2_492 = arith.constant 2 : index
    %736 = vector.load %arg7[%c0_489, %c0_490, %c2_491, %c2_492] : memref<1x4x18x18xf32, #tpu.memory_space<vmem>>, vector<1x1x16x16xf32>
    %737 = vector.shape_cast %736 : vector<1x1x16x16xf32> to vector<16x16xf32>
    %738 = vector.broadcast %735 : f32 to vector<16x16xf32>
    %739 = arith.mulf %738, %737 : vector<16x16xf32>
    %740 = arith.addf %734, %739 : vector<16x16xf32>
    %c117 = arith.constant 117 : index
    %741 = memref.load %arg1[%c117] : memref<144xf32, #tpu.memory_space<smem>>
    %c0_493 = arith.constant 0 : index
    %c1_494 = arith.constant 1 : index
    %c0_495 = arith.constant 0 : index
    %c0_496 = arith.constant 0 : index
    %742 = vector.load %arg7[%c0_493, %c1_494, %c0_495, %c0_496] : memref<1x4x18x18xf32, #tpu.memory_space<vmem>>, vector<1x1x16x16xf32>
    %743 = vector.shape_cast %742 : vector<1x1x16x16xf32> to vector<16x16xf32>
    %744 = vector.broadcast %741 : f32 to vector<16x16xf32>
    %745 = arith.mulf %744, %743 : vector<16x16xf32>
    %746 = arith.addf %740, %745 : vector<16x16xf32>
    %c118 = arith.constant 118 : index
    %747 = memref.load %arg1[%c118] : memref<144xf32, #tpu.memory_space<smem>>
    %c0_497 = arith.constant 0 : index
    %c1_498 = arith.constant 1 : index
    %c0_499 = arith.constant 0 : index
    %c1_500 = arith.constant 1 : index
    %748 = vector.load %arg7[%c0_497, %c1_498, %c0_499, %c1_500] : memref<1x4x18x18xf32, #tpu.memory_space<vmem>>, vector<1x1x16x16xf32>
    %749 = vector.shape_cast %748 : vector<1x1x16x16xf32> to vector<16x16xf32>
    %750 = vector.broadcast %747 : f32 to vector<16x16xf32>
    %751 = arith.mulf %750, %749 : vector<16x16xf32>
    %752 = arith.addf %746, %751 : vector<16x16xf32>
    %c119 = arith.constant 119 : index
    %753 = memref.load %arg1[%c119] : memref<144xf32, #tpu.memory_space<smem>>
    %c0_501 = arith.constant 0 : index
    %c1_502 = arith.constant 1 : index
    %c0_503 = arith.constant 0 : index
    %c2_504 = arith.constant 2 : index
    %754 = vector.load %arg7[%c0_501, %c1_502, %c0_503, %c2_504] : memref<1x4x18x18xf32, #tpu.memory_space<vmem>>, vector<1x1x16x16xf32>
    %755 = vector.shape_cast %754 : vector<1x1x16x16xf32> to vector<16x16xf32>
    %756 = vector.broadcast %753 : f32 to vector<16x16xf32>
    %757 = arith.mulf %756, %755 : vector<16x16xf32>
    %758 = arith.addf %752, %757 : vector<16x16xf32>
    %c120 = arith.constant 120 : index
    %759 = memref.load %arg1[%c120] : memref<144xf32, #tpu.memory_space<smem>>
    %c0_505 = arith.constant 0 : index
    %c1_506 = arith.constant 1 : index
    %c1_507 = arith.constant 1 : index
    %c0_508 = arith.constant 0 : index
    %760 = vector.load %arg7[%c0_505, %c1_506, %c1_507, %c0_508] : memref<1x4x18x18xf32, #tpu.memory_space<vmem>>, vector<1x1x16x16xf32>
    %761 = vector.shape_cast %760 : vector<1x1x16x16xf32> to vector<16x16xf32>
    %762 = vector.broadcast %759 : f32 to vector<16x16xf32>
    %763 = arith.mulf %762, %761 : vector<16x16xf32>
    %764 = arith.addf %758, %763 : vector<16x16xf32>
    %c121 = arith.constant 121 : index
    %765 = memref.load %arg1[%c121] : memref<144xf32, #tpu.memory_space<smem>>
    %c0_509 = arith.constant 0 : index
    %c1_510 = arith.constant 1 : index
    %c1_511 = arith.constant 1 : index
    %c1_512 = arith.constant 1 : index
    %766 = vector.load %arg7[%c0_509, %c1_510, %c1_511, %c1_512] : memref<1x4x18x18xf32, #tpu.memory_space<vmem>>, vector<1x1x16x16xf32>
    %767 = vector.shape_cast %766 : vector<1x1x16x16xf32> to vector<16x16xf32>
    %768 = vector.broadcast %765 : f32 to vector<16x16xf32>
    %769 = arith.mulf %768, %767 : vector<16x16xf32>
    %770 = arith.addf %764, %769 : vector<16x16xf32>
    %c122 = arith.constant 122 : index
    %771 = memref.load %arg1[%c122] : memref<144xf32, #tpu.memory_space<smem>>
    %c0_513 = arith.constant 0 : index
    %c1_514 = arith.constant 1 : index
    %c1_515 = arith.constant 1 : index
    %c2_516 = arith.constant 2 : index
    %772 = vector.load %arg7[%c0_513, %c1_514, %c1_515, %c2_516] : memref<1x4x18x18xf32, #tpu.memory_space<vmem>>, vector<1x1x16x16xf32>
    %773 = vector.shape_cast %772 : vector<1x1x16x16xf32> to vector<16x16xf32>
    %774 = vector.broadcast %771 : f32 to vector<16x16xf32>
    %775 = arith.mulf %774, %773 : vector<16x16xf32>
    %776 = arith.addf %770, %775 : vector<16x16xf32>
    %c123 = arith.constant 123 : index
    %777 = memref.load %arg1[%c123] : memref<144xf32, #tpu.memory_space<smem>>
    %c0_517 = arith.constant 0 : index
    %c1_518 = arith.constant 1 : index
    %c2_519 = arith.constant 2 : index
    %c0_520 = arith.constant 0 : index
    %778 = vector.load %arg7[%c0_517, %c1_518, %c2_519, %c0_520] : memref<1x4x18x18xf32, #tpu.memory_space<vmem>>, vector<1x1x16x16xf32>
    %779 = vector.shape_cast %778 : vector<1x1x16x16xf32> to vector<16x16xf32>
    %780 = vector.broadcast %777 : f32 to vector<16x16xf32>
    %781 = arith.mulf %780, %779 : vector<16x16xf32>
    %782 = arith.addf %776, %781 : vector<16x16xf32>
    %c124 = arith.constant 124 : index
    %783 = memref.load %arg1[%c124] : memref<144xf32, #tpu.memory_space<smem>>
    %c0_521 = arith.constant 0 : index
    %c1_522 = arith.constant 1 : index
    %c2_523 = arith.constant 2 : index
    %c1_524 = arith.constant 1 : index
    %784 = vector.load %arg7[%c0_521, %c1_522, %c2_523, %c1_524] : memref<1x4x18x18xf32, #tpu.memory_space<vmem>>, vector<1x1x16x16xf32>
    %785 = vector.shape_cast %784 : vector<1x1x16x16xf32> to vector<16x16xf32>
    %786 = vector.broadcast %783 : f32 to vector<16x16xf32>
    %787 = arith.mulf %786, %785 : vector<16x16xf32>
    %788 = arith.addf %782, %787 : vector<16x16xf32>
    %c125 = arith.constant 125 : index
    %789 = memref.load %arg1[%c125] : memref<144xf32, #tpu.memory_space<smem>>
    %c0_525 = arith.constant 0 : index
    %c1_526 = arith.constant 1 : index
    %c2_527 = arith.constant 2 : index
    %c2_528 = arith.constant 2 : index
    %790 = vector.load %arg7[%c0_525, %c1_526, %c2_527, %c2_528] : memref<1x4x18x18xf32, #tpu.memory_space<vmem>>, vector<1x1x16x16xf32>
    %791 = vector.shape_cast %790 : vector<1x1x16x16xf32> to vector<16x16xf32>
    %792 = vector.broadcast %789 : f32 to vector<16x16xf32>
    %793 = arith.mulf %792, %791 : vector<16x16xf32>
    %794 = arith.addf %788, %793 : vector<16x16xf32>
    %c126 = arith.constant 126 : index
    %795 = memref.load %arg1[%c126] : memref<144xf32, #tpu.memory_space<smem>>
    %c0_529 = arith.constant 0 : index
    %c2_530 = arith.constant 2 : index
    %c0_531 = arith.constant 0 : index
    %c0_532 = arith.constant 0 : index
    %796 = vector.load %arg7[%c0_529, %c2_530, %c0_531, %c0_532] : memref<1x4x18x18xf32, #tpu.memory_space<vmem>>, vector<1x1x16x16xf32>
    %797 = vector.shape_cast %796 : vector<1x1x16x16xf32> to vector<16x16xf32>
    %798 = vector.broadcast %795 : f32 to vector<16x16xf32>
    %799 = arith.mulf %798, %797 : vector<16x16xf32>
    %800 = arith.addf %794, %799 : vector<16x16xf32>
    %c127 = arith.constant 127 : index
    %801 = memref.load %arg1[%c127] : memref<144xf32, #tpu.memory_space<smem>>
    %c0_533 = arith.constant 0 : index
    %c2_534 = arith.constant 2 : index
    %c0_535 = arith.constant 0 : index
    %c1_536 = arith.constant 1 : index
    %802 = vector.load %arg7[%c0_533, %c2_534, %c0_535, %c1_536] : memref<1x4x18x18xf32, #tpu.memory_space<vmem>>, vector<1x1x16x16xf32>
    %803 = vector.shape_cast %802 : vector<1x1x16x16xf32> to vector<16x16xf32>
    %804 = vector.broadcast %801 : f32 to vector<16x16xf32>
    %805 = arith.mulf %804, %803 : vector<16x16xf32>
    %806 = arith.addf %800, %805 : vector<16x16xf32>
    %c128 = arith.constant 128 : index
    %807 = memref.load %arg1[%c128] : memref<144xf32, #tpu.memory_space<smem>>
    %c0_537 = arith.constant 0 : index
    %c2_538 = arith.constant 2 : index
    %c0_539 = arith.constant 0 : index
    %c2_540 = arith.constant 2 : index
    %808 = vector.load %arg7[%c0_537, %c2_538, %c0_539, %c2_540] : memref<1x4x18x18xf32, #tpu.memory_space<vmem>>, vector<1x1x16x16xf32>
    %809 = vector.shape_cast %808 : vector<1x1x16x16xf32> to vector<16x16xf32>
    %810 = vector.broadcast %807 : f32 to vector<16x16xf32>
    %811 = arith.mulf %810, %809 : vector<16x16xf32>
    %812 = arith.addf %806, %811 : vector<16x16xf32>
    %c129 = arith.constant 129 : index
    %813 = memref.load %arg1[%c129] : memref<144xf32, #tpu.memory_space<smem>>
    %c0_541 = arith.constant 0 : index
    %c2_542 = arith.constant 2 : index
    %c1_543 = arith.constant 1 : index
    %c0_544 = arith.constant 0 : index
    %814 = vector.load %arg7[%c0_541, %c2_542, %c1_543, %c0_544] : memref<1x4x18x18xf32, #tpu.memory_space<vmem>>, vector<1x1x16x16xf32>
    %815 = vector.shape_cast %814 : vector<1x1x16x16xf32> to vector<16x16xf32>
    %816 = vector.broadcast %813 : f32 to vector<16x16xf32>
    %817 = arith.mulf %816, %815 : vector<16x16xf32>
    %818 = arith.addf %812, %817 : vector<16x16xf32>
    %c130 = arith.constant 130 : index
    %819 = memref.load %arg1[%c130] : memref<144xf32, #tpu.memory_space<smem>>
    %c0_545 = arith.constant 0 : index
    %c2_546 = arith.constant 2 : index
    %c1_547 = arith.constant 1 : index
    %c1_548 = arith.constant 1 : index
    %820 = vector.load %arg7[%c0_545, %c2_546, %c1_547, %c1_548] : memref<1x4x18x18xf32, #tpu.memory_space<vmem>>, vector<1x1x16x16xf32>
    %821 = vector.shape_cast %820 : vector<1x1x16x16xf32> to vector<16x16xf32>
    %822 = vector.broadcast %819 : f32 to vector<16x16xf32>
    %823 = arith.mulf %822, %821 : vector<16x16xf32>
    %824 = arith.addf %818, %823 : vector<16x16xf32>
    %c131 = arith.constant 131 : index
    %825 = memref.load %arg1[%c131] : memref<144xf32, #tpu.memory_space<smem>>
    %c0_549 = arith.constant 0 : index
    %c2_550 = arith.constant 2 : index
    %c1_551 = arith.constant 1 : index
    %c2_552 = arith.constant 2 : index
    %826 = vector.load %arg7[%c0_549, %c2_550, %c1_551, %c2_552] : memref<1x4x18x18xf32, #tpu.memory_space<vmem>>, vector<1x1x16x16xf32>
    %827 = vector.shape_cast %826 : vector<1x1x16x16xf32> to vector<16x16xf32>
    %828 = vector.broadcast %825 : f32 to vector<16x16xf32>
    %829 = arith.mulf %828, %827 : vector<16x16xf32>
    %830 = arith.addf %824, %829 : vector<16x16xf32>
    %c132 = arith.constant 132 : index
    %831 = memref.load %arg1[%c132] : memref<144xf32, #tpu.memory_space<smem>>
    %c0_553 = arith.constant 0 : index
    %c2_554 = arith.constant 2 : index
    %c2_555 = arith.constant 2 : index
    %c0_556 = arith.constant 0 : index
    %832 = vector.load %arg7[%c0_553, %c2_554, %c2_555, %c0_556] : memref<1x4x18x18xf32, #tpu.memory_space<vmem>>, vector<1x1x16x16xf32>
    %833 = vector.shape_cast %832 : vector<1x1x16x16xf32> to vector<16x16xf32>
    %834 = vector.broadcast %831 : f32 to vector<16x16xf32>
    %835 = arith.mulf %834, %833 : vector<16x16xf32>
    %836 = arith.addf %830, %835 : vector<16x16xf32>
    %c133 = arith.constant 133 : index
    %837 = memref.load %arg1[%c133] : memref<144xf32, #tpu.memory_space<smem>>
    %c0_557 = arith.constant 0 : index
    %c2_558 = arith.constant 2 : index
    %c2_559 = arith.constant 2 : index
    %c1_560 = arith.constant 1 : index
    %838 = vector.load %arg7[%c0_557, %c2_558, %c2_559, %c1_560] : memref<1x4x18x18xf32, #tpu.memory_space<vmem>>, vector<1x1x16x16xf32>
    %839 = vector.shape_cast %838 : vector<1x1x16x16xf32> to vector<16x16xf32>
    %840 = vector.broadcast %837 : f32 to vector<16x16xf32>
    %841 = arith.mulf %840, %839 : vector<16x16xf32>
    %842 = arith.addf %836, %841 : vector<16x16xf32>
    %c134 = arith.constant 134 : index
    %843 = memref.load %arg1[%c134] : memref<144xf32, #tpu.memory_space<smem>>
    %c0_561 = arith.constant 0 : index
    %c2_562 = arith.constant 2 : index
    %c2_563 = arith.constant 2 : index
    %c2_564 = arith.constant 2 : index
    %844 = vector.load %arg7[%c0_561, %c2_562, %c2_563, %c2_564] : memref<1x4x18x18xf32, #tpu.memory_space<vmem>>, vector<1x1x16x16xf32>
    %845 = vector.shape_cast %844 : vector<1x1x16x16xf32> to vector<16x16xf32>
    %846 = vector.broadcast %843 : f32 to vector<16x16xf32>
    %847 = arith.mulf %846, %845 : vector<16x16xf32>
    %848 = arith.addf %842, %847 : vector<16x16xf32>
    %c135 = arith.constant 135 : index
    %849 = memref.load %arg1[%c135] : memref<144xf32, #tpu.memory_space<smem>>
    %c0_565 = arith.constant 0 : index
    %c3_566 = arith.constant 3 : index
    %c0_567 = arith.constant 0 : index
    %c0_568 = arith.constant 0 : index
    %850 = vector.load %arg7[%c0_565, %c3_566, %c0_567, %c0_568] : memref<1x4x18x18xf32, #tpu.memory_space<vmem>>, vector<1x1x16x16xf32>
    %851 = vector.shape_cast %850 : vector<1x1x16x16xf32> to vector<16x16xf32>
    %852 = vector.broadcast %849 : f32 to vector<16x16xf32>
    %853 = arith.mulf %852, %851 : vector<16x16xf32>
    %854 = arith.addf %848, %853 : vector<16x16xf32>
    %c136 = arith.constant 136 : index
    %855 = memref.load %arg1[%c136] : memref<144xf32, #tpu.memory_space<smem>>
    %c0_569 = arith.constant 0 : index
    %c3_570 = arith.constant 3 : index
    %c0_571 = arith.constant 0 : index
    %c1_572 = arith.constant 1 : index
    %856 = vector.load %arg7[%c0_569, %c3_570, %c0_571, %c1_572] : memref<1x4x18x18xf32, #tpu.memory_space<vmem>>, vector<1x1x16x16xf32>
    %857 = vector.shape_cast %856 : vector<1x1x16x16xf32> to vector<16x16xf32>
    %858 = vector.broadcast %855 : f32 to vector<16x16xf32>
    %859 = arith.mulf %858, %857 : vector<16x16xf32>
    %860 = arith.addf %854, %859 : vector<16x16xf32>
    %c137 = arith.constant 137 : index
    %861 = memref.load %arg1[%c137] : memref<144xf32, #tpu.memory_space<smem>>
    %c0_573 = arith.constant 0 : index
    %c3_574 = arith.constant 3 : index
    %c0_575 = arith.constant 0 : index
    %c2_576 = arith.constant 2 : index
    %862 = vector.load %arg7[%c0_573, %c3_574, %c0_575, %c2_576] : memref<1x4x18x18xf32, #tpu.memory_space<vmem>>, vector<1x1x16x16xf32>
    %863 = vector.shape_cast %862 : vector<1x1x16x16xf32> to vector<16x16xf32>
    %864 = vector.broadcast %861 : f32 to vector<16x16xf32>
    %865 = arith.mulf %864, %863 : vector<16x16xf32>
    %866 = arith.addf %860, %865 : vector<16x16xf32>
    %c138 = arith.constant 138 : index
    %867 = memref.load %arg1[%c138] : memref<144xf32, #tpu.memory_space<smem>>
    %c0_577 = arith.constant 0 : index
    %c3_578 = arith.constant 3 : index
    %c1_579 = arith.constant 1 : index
    %c0_580 = arith.constant 0 : index
    %868 = vector.load %arg7[%c0_577, %c3_578, %c1_579, %c0_580] : memref<1x4x18x18xf32, #tpu.memory_space<vmem>>, vector<1x1x16x16xf32>
    %869 = vector.shape_cast %868 : vector<1x1x16x16xf32> to vector<16x16xf32>
    %870 = vector.broadcast %867 : f32 to vector<16x16xf32>
    %871 = arith.mulf %870, %869 : vector<16x16xf32>
    %872 = arith.addf %866, %871 : vector<16x16xf32>
    %c139 = arith.constant 139 : index
    %873 = memref.load %arg1[%c139] : memref<144xf32, #tpu.memory_space<smem>>
    %c0_581 = arith.constant 0 : index
    %c3_582 = arith.constant 3 : index
    %c1_583 = arith.constant 1 : index
    %c1_584 = arith.constant 1 : index
    %874 = vector.load %arg7[%c0_581, %c3_582, %c1_583, %c1_584] : memref<1x4x18x18xf32, #tpu.memory_space<vmem>>, vector<1x1x16x16xf32>
    %875 = vector.shape_cast %874 : vector<1x1x16x16xf32> to vector<16x16xf32>
    %876 = vector.broadcast %873 : f32 to vector<16x16xf32>
    %877 = arith.mulf %876, %875 : vector<16x16xf32>
    %878 = arith.addf %872, %877 : vector<16x16xf32>
    %c140 = arith.constant 140 : index
    %879 = memref.load %arg1[%c140] : memref<144xf32, #tpu.memory_space<smem>>
    %c0_585 = arith.constant 0 : index
    %c3_586 = arith.constant 3 : index
    %c1_587 = arith.constant 1 : index
    %c2_588 = arith.constant 2 : index
    %880 = vector.load %arg7[%c0_585, %c3_586, %c1_587, %c2_588] : memref<1x4x18x18xf32, #tpu.memory_space<vmem>>, vector<1x1x16x16xf32>
    %881 = vector.shape_cast %880 : vector<1x1x16x16xf32> to vector<16x16xf32>
    %882 = vector.broadcast %879 : f32 to vector<16x16xf32>
    %883 = arith.mulf %882, %881 : vector<16x16xf32>
    %884 = arith.addf %878, %883 : vector<16x16xf32>
    %c141 = arith.constant 141 : index
    %885 = memref.load %arg1[%c141] : memref<144xf32, #tpu.memory_space<smem>>
    %c0_589 = arith.constant 0 : index
    %c3_590 = arith.constant 3 : index
    %c2_591 = arith.constant 2 : index
    %c0_592 = arith.constant 0 : index
    %886 = vector.load %arg7[%c0_589, %c3_590, %c2_591, %c0_592] : memref<1x4x18x18xf32, #tpu.memory_space<vmem>>, vector<1x1x16x16xf32>
    %887 = vector.shape_cast %886 : vector<1x1x16x16xf32> to vector<16x16xf32>
    %888 = vector.broadcast %885 : f32 to vector<16x16xf32>
    %889 = arith.mulf %888, %887 : vector<16x16xf32>
    %890 = arith.addf %884, %889 : vector<16x16xf32>
    %c142 = arith.constant 142 : index
    %891 = memref.load %arg1[%c142] : memref<144xf32, #tpu.memory_space<smem>>
    %c0_593 = arith.constant 0 : index
    %c3_594 = arith.constant 3 : index
    %c2_595 = arith.constant 2 : index
    %c1_596 = arith.constant 1 : index
    %892 = vector.load %arg7[%c0_593, %c3_594, %c2_595, %c1_596] : memref<1x4x18x18xf32, #tpu.memory_space<vmem>>, vector<1x1x16x16xf32>
    %893 = vector.shape_cast %892 : vector<1x1x16x16xf32> to vector<16x16xf32>
    %894 = vector.broadcast %891 : f32 to vector<16x16xf32>
    %895 = arith.mulf %894, %893 : vector<16x16xf32>
    %896 = arith.addf %890, %895 : vector<16x16xf32>
    %c143 = arith.constant 143 : index
    %897 = memref.load %arg1[%c143] : memref<144xf32, #tpu.memory_space<smem>>
    %c0_597 = arith.constant 0 : index
    %c3_598 = arith.constant 3 : index
    %c2_599 = arith.constant 2 : index
    %c2_600 = arith.constant 2 : index
    %898 = vector.load %arg7[%c0_597, %c3_598, %c2_599, %c2_600] : memref<1x4x18x18xf32, #tpu.memory_space<vmem>>, vector<1x1x16x16xf32>
    %899 = vector.shape_cast %898 : vector<1x1x16x16xf32> to vector<16x16xf32>
    %900 = vector.broadcast %897 : f32 to vector<16x16xf32>
    %901 = arith.mulf %900, %899 : vector<16x16xf32>
    %902 = arith.addf %896, %901 : vector<16x16xf32>
    %c3_601 = arith.constant 3 : index
    %903 = memref.load %arg2[%c3_601] : memref<4xf32, #tpu.memory_space<smem>>
    %904 = vector.broadcast %903 : f32 to vector<16x16xf32>
    %905 = arith.mulf %902, %904 : vector<16x16xf32>
    %c3_602 = arith.constant 3 : index
    %906 = memref.load %arg3[%c3_602] : memref<4xf32, #tpu.memory_space<smem>>
    %907 = vector.broadcast %906 : f32 to vector<16x16xf32>
    %908 = arith.addf %905, %907 : vector<16x16xf32>
    %cst_603 = arith.constant 0.000000e+00 : f32
    %909 = vector.broadcast %cst_603 : f32 to vector<16x16xf32>
    %910 = arith.maximumf %908, %909 : vector<16x16xf32>
    %c3_604 = arith.constant 3 : index
    %c1_605 = arith.constant 1 : index
    %c1_606 = arith.constant 1 : index
    %911 = vector.load %arg9[%c3_604, %c1_605, %c1_606] : memref<4x18x18xf32, #tpu.memory_space<vmem>>, vector<1x16x16xf32>
    %912 = vector.shape_cast %911 : vector<1x16x16xf32> to vector<16x16xf32>
    %913 = vector.shape_cast %910 : vector<16x16xf32> to vector<1x16x16xf32>
    tpu.vector_store %arg9[%c3_604, %c1_605, %c1_606], %913 {strides = array<i32>} : memref<4x18x18xf32, #tpu.memory_space<vmem>>, vector<1x16x16xf32>,
    %cst_607 = arith.constant 0.000000e+00 : f32
    %914 = vector.broadcast %cst_607 : f32 to vector<16x16xf32>
    %c0_608 = arith.constant 0 : index
    %915 = memref.load %arg4[%c0_608] : memref<144xf32, #tpu.memory_space<smem>>
    %c0_609 = arith.constant 0 : index
    %c0_610 = arith.constant 0 : index
    %c0_611 = arith.constant 0 : index
    %916 = vector.load %arg9[%c0_609, %c0_610, %c0_611] : memref<4x18x18xf32, #tpu.memory_space<vmem>>, vector<1x16x16xf32>
    %917 = vector.shape_cast %916 : vector<1x16x16xf32> to vector<16x16xf32>
    %918 = vector.broadcast %915 : f32 to vector<16x16xf32>
    %919 = arith.mulf %918, %917 : vector<16x16xf32>
    %920 = arith.addf %914, %919 : vector<16x16xf32>
    %c1_612 = arith.constant 1 : index
    %921 = memref.load %arg4[%c1_612] : memref<144xf32, #tpu.memory_space<smem>>
    %c0_613 = arith.constant 0 : index
    %c0_614 = arith.constant 0 : index
    %c1_615 = arith.constant 1 : index
    %922 = vector.load %arg9[%c0_613, %c0_614, %c1_615] : memref<4x18x18xf32, #tpu.memory_space<vmem>>, vector<1x16x16xf32>
    %923 = vector.shape_cast %922 : vector<1x16x16xf32> to vector<16x16xf32>
    %924 = vector.broadcast %921 : f32 to vector<16x16xf32>
    %925 = arith.mulf %924, %923 : vector<16x16xf32>
    %926 = arith.addf %920, %925 : vector<16x16xf32>
    %c2_616 = arith.constant 2 : index
    %927 = memref.load %arg4[%c2_616] : memref<144xf32, #tpu.memory_space<smem>>
    %c0_617 = arith.constant 0 : index
    %c0_618 = arith.constant 0 : index
    %c2_619 = arith.constant 2 : index
    %928 = vector.load %arg9[%c0_617, %c0_618, %c2_619] : memref<4x18x18xf32, #tpu.memory_space<vmem>>, vector<1x16x16xf32>
    %929 = vector.shape_cast %928 : vector<1x16x16xf32> to vector<16x16xf32>
    %930 = vector.broadcast %927 : f32 to vector<16x16xf32>
    %931 = arith.mulf %930, %929 : vector<16x16xf32>
    %932 = arith.addf %926, %931 : vector<16x16xf32>
    %c3_620 = arith.constant 3 : index
    %933 = memref.load %arg4[%c3_620] : memref<144xf32, #tpu.memory_space<smem>>
    %c0_621 = arith.constant 0 : index
    %c1_622 = arith.constant 1 : index
    %c0_623 = arith.constant 0 : index
    %934 = vector.load %arg9[%c0_621, %c1_622, %c0_623] : memref<4x18x18xf32, #tpu.memory_space<vmem>>, vector<1x16x16xf32>
    %935 = vector.shape_cast %934 : vector<1x16x16xf32> to vector<16x16xf32>
    %936 = vector.broadcast %933 : f32 to vector<16x16xf32>
    %937 = arith.mulf %936, %935 : vector<16x16xf32>
    %938 = arith.addf %932, %937 : vector<16x16xf32>
    %c4_624 = arith.constant 4 : index
    %939 = memref.load %arg4[%c4_624] : memref<144xf32, #tpu.memory_space<smem>>
    %c0_625 = arith.constant 0 : index
    %c1_626 = arith.constant 1 : index
    %c1_627 = arith.constant 1 : index
    %940 = vector.load %arg9[%c0_625, %c1_626, %c1_627] : memref<4x18x18xf32, #tpu.memory_space<vmem>>, vector<1x16x16xf32>
    %941 = vector.shape_cast %940 : vector<1x16x16xf32> to vector<16x16xf32>
    %942 = vector.broadcast %939 : f32 to vector<16x16xf32>
    %943 = arith.mulf %942, %941 : vector<16x16xf32>
    %944 = arith.addf %938, %943 : vector<16x16xf32>
    %c5_628 = arith.constant 5 : index
    %945 = memref.load %arg4[%c5_628] : memref<144xf32, #tpu.memory_space<smem>>
    %c0_629 = arith.constant 0 : index
    %c1_630 = arith.constant 1 : index
    %c2_631 = arith.constant 2 : index
    %946 = vector.load %arg9[%c0_629, %c1_630, %c2_631] : memref<4x18x18xf32, #tpu.memory_space<vmem>>, vector<1x16x16xf32>
    %947 = vector.shape_cast %946 : vector<1x16x16xf32> to vector<16x16xf32>
    %948 = vector.broadcast %945 : f32 to vector<16x16xf32>
    %949 = arith.mulf %948, %947 : vector<16x16xf32>
    %950 = arith.addf %944, %949 : vector<16x16xf32>
    %c6_632 = arith.constant 6 : index
    %951 = memref.load %arg4[%c6_632] : memref<144xf32, #tpu.memory_space<smem>>
    %c0_633 = arith.constant 0 : index
    %c2_634 = arith.constant 2 : index
    %c0_635 = arith.constant 0 : index
    %952 = vector.load %arg9[%c0_633, %c2_634, %c0_635] : memref<4x18x18xf32, #tpu.memory_space<vmem>>, vector<1x16x16xf32>
    %953 = vector.shape_cast %952 : vector<1x16x16xf32> to vector<16x16xf32>
    %954 = vector.broadcast %951 : f32 to vector<16x16xf32>
    %955 = arith.mulf %954, %953 : vector<16x16xf32>
    %956 = arith.addf %950, %955 : vector<16x16xf32>
    %c7_636 = arith.constant 7 : index
    %957 = memref.load %arg4[%c7_636] : memref<144xf32, #tpu.memory_space<smem>>
    %c0_637 = arith.constant 0 : index
    %c2_638 = arith.constant 2 : index
    %c1_639 = arith.constant 1 : index
    %958 = vector.load %arg9[%c0_637, %c2_638, %c1_639] : memref<4x18x18xf32, #tpu.memory_space<vmem>>, vector<1x16x16xf32>
    %959 = vector.shape_cast %958 : vector<1x16x16xf32> to vector<16x16xf32>
    %960 = vector.broadcast %957 : f32 to vector<16x16xf32>
    %961 = arith.mulf %960, %959 : vector<16x16xf32>
    %962 = arith.addf %956, %961 : vector<16x16xf32>
    %c8_640 = arith.constant 8 : index
    %963 = memref.load %arg4[%c8_640] : memref<144xf32, #tpu.memory_space<smem>>
    %c0_641 = arith.constant 0 : index
    %c2_642 = arith.constant 2 : index
    %c2_643 = arith.constant 2 : index
    %964 = vector.load %arg9[%c0_641, %c2_642, %c2_643] : memref<4x18x18xf32, #tpu.memory_space<vmem>>, vector<1x16x16xf32>
    %965 = vector.shape_cast %964 : vector<1x16x16xf32> to vector<16x16xf32>
    %966 = vector.broadcast %963 : f32 to vector<16x16xf32>
    %967 = arith.mulf %966, %965 : vector<16x16xf32>
    %968 = arith.addf %962, %967 : vector<16x16xf32>
    %c9_644 = arith.constant 9 : index
    %969 = memref.load %arg4[%c9_644] : memref<144xf32, #tpu.memory_space<smem>>
    %c1_645 = arith.constant 1 : index
    %c0_646 = arith.constant 0 : index
    %c0_647 = arith.constant 0 : index
    %970 = vector.load %arg9[%c1_645, %c0_646, %c0_647] : memref<4x18x18xf32, #tpu.memory_space<vmem>>, vector<1x16x16xf32>
    %971 = vector.shape_cast %970 : vector<1x16x16xf32> to vector<16x16xf32>
    %972 = vector.broadcast %969 : f32 to vector<16x16xf32>
    %973 = arith.mulf %972, %971 : vector<16x16xf32>
    %974 = arith.addf %968, %973 : vector<16x16xf32>
    %c10_648 = arith.constant 10 : index
    %975 = memref.load %arg4[%c10_648] : memref<144xf32, #tpu.memory_space<smem>>
    %c1_649 = arith.constant 1 : index
    %c0_650 = arith.constant 0 : index
    %c1_651 = arith.constant 1 : index
    %976 = vector.load %arg9[%c1_649, %c0_650, %c1_651] : memref<4x18x18xf32, #tpu.memory_space<vmem>>, vector<1x16x16xf32>
    %977 = vector.shape_cast %976 : vector<1x16x16xf32> to vector<16x16xf32>
    %978 = vector.broadcast %975 : f32 to vector<16x16xf32>
    %979 = arith.mulf %978, %977 : vector<16x16xf32>
    %980 = arith.addf %974, %979 : vector<16x16xf32>
    %c11_652 = arith.constant 11 : index
    %981 = memref.load %arg4[%c11_652] : memref<144xf32, #tpu.memory_space<smem>>
    %c1_653 = arith.constant 1 : index
    %c0_654 = arith.constant 0 : index
    %c2_655 = arith.constant 2 : index
    %982 = vector.load %arg9[%c1_653, %c0_654, %c2_655] : memref<4x18x18xf32, #tpu.memory_space<vmem>>, vector<1x16x16xf32>
    %983 = vector.shape_cast %982 : vector<1x16x16xf32> to vector<16x16xf32>
    %984 = vector.broadcast %981 : f32 to vector<16x16xf32>
    %985 = arith.mulf %984, %983 : vector<16x16xf32>
    %986 = arith.addf %980, %985 : vector<16x16xf32>
    %c12_656 = arith.constant 12 : index
    %987 = memref.load %arg4[%c12_656] : memref<144xf32, #tpu.memory_space<smem>>
    %c1_657 = arith.constant 1 : index
    %c1_658 = arith.constant 1 : index
    %c0_659 = arith.constant 0 : index
    %988 = vector.load %arg9[%c1_657, %c1_658, %c0_659] : memref<4x18x18xf32, #tpu.memory_space<vmem>>, vector<1x16x16xf32>
    %989 = vector.shape_cast %988 : vector<1x16x16xf32> to vector<16x16xf32>
    %990 = vector.broadcast %987 : f32 to vector<16x16xf32>
    %991 = arith.mulf %990, %989 : vector<16x16xf32>
    %992 = arith.addf %986, %991 : vector<16x16xf32>
    %c13_660 = arith.constant 13 : index
    %993 = memref.load %arg4[%c13_660] : memref<144xf32, #tpu.memory_space<smem>>
    %c1_661 = arith.constant 1 : index
    %c1_662 = arith.constant 1 : index
    %c1_663 = arith.constant 1 : index
    %994 = vector.load %arg9[%c1_661, %c1_662, %c1_663] : memref<4x18x18xf32, #tpu.memory_space<vmem>>, vector<1x16x16xf32>
    %995 = vector.shape_cast %994 : vector<1x16x16xf32> to vector<16x16xf32>
    %996 = vector.broadcast %993 : f32 to vector<16x16xf32>
    %997 = arith.mulf %996, %995 : vector<16x16xf32>
    %998 = arith.addf %992, %997 : vector<16x16xf32>
    %c14_664 = arith.constant 14 : index
    %999 = memref.load %arg4[%c14_664] : memref<144xf32, #tpu.memory_space<smem>>
    %c1_665 = arith.constant 1 : index
    %c1_666 = arith.constant 1 : index
    %c2_667 = arith.constant 2 : index
    %1000 = vector.load %arg9[%c1_665, %c1_666, %c2_667] : memref<4x18x18xf32, #tpu.memory_space<vmem>>, vector<1x16x16xf32>
    %1001 = vector.shape_cast %1000 : vector<1x16x16xf32> to vector<16x16xf32>
    %1002 = vector.broadcast %999 : f32 to vector<16x16xf32>
    %1003 = arith.mulf %1002, %1001 : vector<16x16xf32>
    %1004 = arith.addf %998, %1003 : vector<16x16xf32>
    %c15_668 = arith.constant 15 : index
    %1005 = memref.load %arg4[%c15_668] : memref<144xf32, #tpu.memory_space<smem>>
    %c1_669 = arith.constant 1 : index
    %c2_670 = arith.constant 2 : index
    %c0_671 = arith.constant 0 : index
    %1006 = vector.load %arg9[%c1_669, %c2_670, %c0_671] : memref<4x18x18xf32, #tpu.memory_space<vmem>>, vector<1x16x16xf32>
    %1007 = vector.shape_cast %1006 : vector<1x16x16xf32> to vector<16x16xf32>
    %1008 = vector.broadcast %1005 : f32 to vector<16x16xf32>
    %1009 = arith.mulf %1008, %1007 : vector<16x16xf32>
    %1010 = arith.addf %1004, %1009 : vector<16x16xf32>
    %c16_672 = arith.constant 16 : index
    %1011 = memref.load %arg4[%c16_672] : memref<144xf32, #tpu.memory_space<smem>>
    %c1_673 = arith.constant 1 : index
    %c2_674 = arith.constant 2 : index
    %c1_675 = arith.constant 1 : index
    %1012 = vector.load %arg9[%c1_673, %c2_674, %c1_675] : memref<4x18x18xf32, #tpu.memory_space<vmem>>, vector<1x16x16xf32>
    %1013 = vector.shape_cast %1012 : vector<1x16x16xf32> to vector<16x16xf32>
    %1014 = vector.broadcast %1011 : f32 to vector<16x16xf32>
    %1015 = arith.mulf %1014, %1013 : vector<16x16xf32>
    %1016 = arith.addf %1010, %1015 : vector<16x16xf32>
    %c17_676 = arith.constant 17 : index
    %1017 = memref.load %arg4[%c17_676] : memref<144xf32, #tpu.memory_space<smem>>
    %c1_677 = arith.constant 1 : index
    %c2_678 = arith.constant 2 : index
    %c2_679 = arith.constant 2 : index
    %1018 = vector.load %arg9[%c1_677, %c2_678, %c2_679] : memref<4x18x18xf32, #tpu.memory_space<vmem>>, vector<1x16x16xf32>
    %1019 = vector.shape_cast %1018 : vector<1x16x16xf32> to vector<16x16xf32>
    %1020 = vector.broadcast %1017 : f32 to vector<16x16xf32>
    %1021 = arith.mulf %1020, %1019 : vector<16x16xf32>
    %1022 = arith.addf %1016, %1021 : vector<16x16xf32>
    %c18_680 = arith.constant 18 : index
    %1023 = memref.load %arg4[%c18_680] : memref<144xf32, #tpu.memory_space<smem>>
    %c2_681 = arith.constant 2 : index
    %c0_682 = arith.constant 0 : index
    %c0_683 = arith.constant 0 : index
    %1024 = vector.load %arg9[%c2_681, %c0_682, %c0_683] : memref<4x18x18xf32, #tpu.memory_space<vmem>>, vector<1x16x16xf32>
    %1025 = vector.shape_cast %1024 : vector<1x16x16xf32> to vector<16x16xf32>
    %1026 = vector.broadcast %1023 : f32 to vector<16x16xf32>
    %1027 = arith.mulf %1026, %1025 : vector<16x16xf32>
    %1028 = arith.addf %1022, %1027 : vector<16x16xf32>
    %c19_684 = arith.constant 19 : index
    %1029 = memref.load %arg4[%c19_684] : memref<144xf32, #tpu.memory_space<smem>>
    %c2_685 = arith.constant 2 : index
    %c0_686 = arith.constant 0 : index
    %c1_687 = arith.constant 1 : index
    %1030 = vector.load %arg9[%c2_685, %c0_686, %c1_687] : memref<4x18x18xf32, #tpu.memory_space<vmem>>, vector<1x16x16xf32>
    %1031 = vector.shape_cast %1030 : vector<1x16x16xf32> to vector<16x16xf32>
    %1032 = vector.broadcast %1029 : f32 to vector<16x16xf32>
    %1033 = arith.mulf %1032, %1031 : vector<16x16xf32>
    %1034 = arith.addf %1028, %1033 : vector<16x16xf32>
    %c20_688 = arith.constant 20 : index
    %1035 = memref.load %arg4[%c20_688] : memref<144xf32, #tpu.memory_space<smem>>
    %c2_689 = arith.constant 2 : index
    %c0_690 = arith.constant 0 : index
    %c2_691 = arith.constant 2 : index
    %1036 = vector.load %arg9[%c2_689, %c0_690, %c2_691] : memref<4x18x18xf32, #tpu.memory_space<vmem>>, vector<1x16x16xf32>
    %1037 = vector.shape_cast %1036 : vector<1x16x16xf32> to vector<16x16xf32>
    %1038 = vector.broadcast %1035 : f32 to vector<16x16xf32>
    %1039 = arith.mulf %1038, %1037 : vector<16x16xf32>
    %1040 = arith.addf %1034, %1039 : vector<16x16xf32>
    %c21_692 = arith.constant 21 : index
    %1041 = memref.load %arg4[%c21_692] : memref<144xf32, #tpu.memory_space<smem>>
    %c2_693 = arith.constant 2 : index
    %c1_694 = arith.constant 1 : index
    %c0_695 = arith.constant 0 : index
    %1042 = vector.load %arg9[%c2_693, %c1_694, %c0_695] : memref<4x18x18xf32, #tpu.memory_space<vmem>>, vector<1x16x16xf32>
    %1043 = vector.shape_cast %1042 : vector<1x16x16xf32> to vector<16x16xf32>
    %1044 = vector.broadcast %1041 : f32 to vector<16x16xf32>
    %1045 = arith.mulf %1044, %1043 : vector<16x16xf32>
    %1046 = arith.addf %1040, %1045 : vector<16x16xf32>
    %c22_696 = arith.constant 22 : index
    %1047 = memref.load %arg4[%c22_696] : memref<144xf32, #tpu.memory_space<smem>>
    %c2_697 = arith.constant 2 : index
    %c1_698 = arith.constant 1 : index
    %c1_699 = arith.constant 1 : index
    %1048 = vector.load %arg9[%c2_697, %c1_698, %c1_699] : memref<4x18x18xf32, #tpu.memory_space<vmem>>, vector<1x16x16xf32>
    %1049 = vector.shape_cast %1048 : vector<1x16x16xf32> to vector<16x16xf32>
    %1050 = vector.broadcast %1047 : f32 to vector<16x16xf32>
    %1051 = arith.mulf %1050, %1049 : vector<16x16xf32>
    %1052 = arith.addf %1046, %1051 : vector<16x16xf32>
    %c23_700 = arith.constant 23 : index
    %1053 = memref.load %arg4[%c23_700] : memref<144xf32, #tpu.memory_space<smem>>
    %c2_701 = arith.constant 2 : index
    %c1_702 = arith.constant 1 : index
    %c2_703 = arith.constant 2 : index
    %1054 = vector.load %arg9[%c2_701, %c1_702, %c2_703] : memref<4x18x18xf32, #tpu.memory_space<vmem>>, vector<1x16x16xf32>
    %1055 = vector.shape_cast %1054 : vector<1x16x16xf32> to vector<16x16xf32>
    %1056 = vector.broadcast %1053 : f32 to vector<16x16xf32>
    %1057 = arith.mulf %1056, %1055 : vector<16x16xf32>
    %1058 = arith.addf %1052, %1057 : vector<16x16xf32>
    %c24_704 = arith.constant 24 : index
    %1059 = memref.load %arg4[%c24_704] : memref<144xf32, #tpu.memory_space<smem>>
    %c2_705 = arith.constant 2 : index
    %c2_706 = arith.constant 2 : index
    %c0_707 = arith.constant 0 : index
    %1060 = vector.load %arg9[%c2_705, %c2_706, %c0_707] : memref<4x18x18xf32, #tpu.memory_space<vmem>>, vector<1x16x16xf32>
    %1061 = vector.shape_cast %1060 : vector<1x16x16xf32> to vector<16x16xf32>
    %1062 = vector.broadcast %1059 : f32 to vector<16x16xf32>
    %1063 = arith.mulf %1062, %1061 : vector<16x16xf32>
    %1064 = arith.addf %1058, %1063 : vector<16x16xf32>
    %c25_708 = arith.constant 25 : index
    %1065 = memref.load %arg4[%c25_708] : memref<144xf32, #tpu.memory_space<smem>>
    %c2_709 = arith.constant 2 : index
    %c2_710 = arith.constant 2 : index
    %c1_711 = arith.constant 1 : index
    %1066 = vector.load %arg9[%c2_709, %c2_710, %c1_711] : memref<4x18x18xf32, #tpu.memory_space<vmem>>, vector<1x16x16xf32>
    %1067 = vector.shape_cast %1066 : vector<1x16x16xf32> to vector<16x16xf32>
    %1068 = vector.broadcast %1065 : f32 to vector<16x16xf32>
    %1069 = arith.mulf %1068, %1067 : vector<16x16xf32>
    %1070 = arith.addf %1064, %1069 : vector<16x16xf32>
    %c26_712 = arith.constant 26 : index
    %1071 = memref.load %arg4[%c26_712] : memref<144xf32, #tpu.memory_space<smem>>
    %c2_713 = arith.constant 2 : index
    %c2_714 = arith.constant 2 : index
    %c2_715 = arith.constant 2 : index
    %1072 = vector.load %arg9[%c2_713, %c2_714, %c2_715] : memref<4x18x18xf32, #tpu.memory_space<vmem>>, vector<1x16x16xf32>
    %1073 = vector.shape_cast %1072 : vector<1x16x16xf32> to vector<16x16xf32>
    %1074 = vector.broadcast %1071 : f32 to vector<16x16xf32>
    %1075 = arith.mulf %1074, %1073 : vector<16x16xf32>
    %1076 = arith.addf %1070, %1075 : vector<16x16xf32>
    %c27_716 = arith.constant 27 : index
    %1077 = memref.load %arg4[%c27_716] : memref<144xf32, #tpu.memory_space<smem>>
    %c3_717 = arith.constant 3 : index
    %c0_718 = arith.constant 0 : index
    %c0_719 = arith.constant 0 : index
    %1078 = vector.load %arg9[%c3_717, %c0_718, %c0_719] : memref<4x18x18xf32, #tpu.memory_space<vmem>>, vector<1x16x16xf32>
    %1079 = vector.shape_cast %1078 : vector<1x16x16xf32> to vector<16x16xf32>
    %1080 = vector.broadcast %1077 : f32 to vector<16x16xf32>
    %1081 = arith.mulf %1080, %1079 : vector<16x16xf32>
    %1082 = arith.addf %1076, %1081 : vector<16x16xf32>
    %c28_720 = arith.constant 28 : index
    %1083 = memref.load %arg4[%c28_720] : memref<144xf32, #tpu.memory_space<smem>>
    %c3_721 = arith.constant 3 : index
    %c0_722 = arith.constant 0 : index
    %c1_723 = arith.constant 1 : index
    %1084 = vector.load %arg9[%c3_721, %c0_722, %c1_723] : memref<4x18x18xf32, #tpu.memory_space<vmem>>, vector<1x16x16xf32>
    %1085 = vector.shape_cast %1084 : vector<1x16x16xf32> to vector<16x16xf32>
    %1086 = vector.broadcast %1083 : f32 to vector<16x16xf32>
    %1087 = arith.mulf %1086, %1085 : vector<16x16xf32>
    %1088 = arith.addf %1082, %1087 : vector<16x16xf32>
    %c29_724 = arith.constant 29 : index
    %1089 = memref.load %arg4[%c29_724] : memref<144xf32, #tpu.memory_space<smem>>
    %c3_725 = arith.constant 3 : index
    %c0_726 = arith.constant 0 : index
    %c2_727 = arith.constant 2 : index
    %1090 = vector.load %arg9[%c3_725, %c0_726, %c2_727] : memref<4x18x18xf32, #tpu.memory_space<vmem>>, vector<1x16x16xf32>
    %1091 = vector.shape_cast %1090 : vector<1x16x16xf32> to vector<16x16xf32>
    %1092 = vector.broadcast %1089 : f32 to vector<16x16xf32>
    %1093 = arith.mulf %1092, %1091 : vector<16x16xf32>
    %1094 = arith.addf %1088, %1093 : vector<16x16xf32>
    %c30_728 = arith.constant 30 : index
    %1095 = memref.load %arg4[%c30_728] : memref<144xf32, #tpu.memory_space<smem>>
    %c3_729 = arith.constant 3 : index
    %c1_730 = arith.constant 1 : index
    %c0_731 = arith.constant 0 : index
    %1096 = vector.load %arg9[%c3_729, %c1_730, %c0_731] : memref<4x18x18xf32, #tpu.memory_space<vmem>>, vector<1x16x16xf32>
    %1097 = vector.shape_cast %1096 : vector<1x16x16xf32> to vector<16x16xf32>
    %1098 = vector.broadcast %1095 : f32 to vector<16x16xf32>
    %1099 = arith.mulf %1098, %1097 : vector<16x16xf32>
    %1100 = arith.addf %1094, %1099 : vector<16x16xf32>
    %c31_732 = arith.constant 31 : index
    %1101 = memref.load %arg4[%c31_732] : memref<144xf32, #tpu.memory_space<smem>>
    %c3_733 = arith.constant 3 : index
    %c1_734 = arith.constant 1 : index
    %c1_735 = arith.constant 1 : index
    %1102 = vector.load %arg9[%c3_733, %c1_734, %c1_735] : memref<4x18x18xf32, #tpu.memory_space<vmem>>, vector<1x16x16xf32>
    %1103 = vector.shape_cast %1102 : vector<1x16x16xf32> to vector<16x16xf32>
    %1104 = vector.broadcast %1101 : f32 to vector<16x16xf32>
    %1105 = arith.mulf %1104, %1103 : vector<16x16xf32>
    %1106 = arith.addf %1100, %1105 : vector<16x16xf32>
    %c32_736 = arith.constant 32 : index
    %1107 = memref.load %arg4[%c32_736] : memref<144xf32, #tpu.memory_space<smem>>
    %c3_737 = arith.constant 3 : index
    %c1_738 = arith.constant 1 : index
    %c2_739 = arith.constant 2 : index
    %1108 = vector.load %arg9[%c3_737, %c1_738, %c2_739] : memref<4x18x18xf32, #tpu.memory_space<vmem>>, vector<1x16x16xf32>
    %1109 = vector.shape_cast %1108 : vector<1x16x16xf32> to vector<16x16xf32>
    %1110 = vector.broadcast %1107 : f32 to vector<16x16xf32>
    %1111 = arith.mulf %1110, %1109 : vector<16x16xf32>
    %1112 = arith.addf %1106, %1111 : vector<16x16xf32>
    %c33_740 = arith.constant 33 : index
    %1113 = memref.load %arg4[%c33_740] : memref<144xf32, #tpu.memory_space<smem>>
    %c3_741 = arith.constant 3 : index
    %c2_742 = arith.constant 2 : index
    %c0_743 = arith.constant 0 : index
    %1114 = vector.load %arg9[%c3_741, %c2_742, %c0_743] : memref<4x18x18xf32, #tpu.memory_space<vmem>>, vector<1x16x16xf32>
    %1115 = vector.shape_cast %1114 : vector<1x16x16xf32> to vector<16x16xf32>
    %1116 = vector.broadcast %1113 : f32 to vector<16x16xf32>
    %1117 = arith.mulf %1116, %1115 : vector<16x16xf32>
    %1118 = arith.addf %1112, %1117 : vector<16x16xf32>
    %c34_744 = arith.constant 34 : index
    %1119 = memref.load %arg4[%c34_744] : memref<144xf32, #tpu.memory_space<smem>>
    %c3_745 = arith.constant 3 : index
    %c2_746 = arith.constant 2 : index
    %c1_747 = arith.constant 1 : index
    %1120 = vector.load %arg9[%c3_745, %c2_746, %c1_747] : memref<4x18x18xf32, #tpu.memory_space<vmem>>, vector<1x16x16xf32>
    %1121 = vector.shape_cast %1120 : vector<1x16x16xf32> to vector<16x16xf32>
    %1122 = vector.broadcast %1119 : f32 to vector<16x16xf32>
    %1123 = arith.mulf %1122, %1121 : vector<16x16xf32>
    %1124 = arith.addf %1118, %1123 : vector<16x16xf32>
    %c35_748 = arith.constant 35 : index
    %1125 = memref.load %arg4[%c35_748] : memref<144xf32, #tpu.memory_space<smem>>
    %c3_749 = arith.constant 3 : index
    %c2_750 = arith.constant 2 : index
    %c2_751 = arith.constant 2 : index
    %1126 = vector.load %arg9[%c3_749, %c2_750, %c2_751] : memref<4x18x18xf32, #tpu.memory_space<vmem>>, vector<1x16x16xf32>
    %1127 = vector.shape_cast %1126 : vector<1x16x16xf32> to vector<16x16xf32>
    %1128 = vector.broadcast %1125 : f32 to vector<16x16xf32>
    %1129 = arith.mulf %1128, %1127 : vector<16x16xf32>
    %1130 = arith.addf %1124, %1129 : vector<16x16xf32>
    %c0_752 = arith.constant 0 : index
    %1131 = memref.load %arg5[%c0_752] : memref<4xf32, #tpu.memory_space<smem>>
    %1132 = vector.broadcast %1131 : f32 to vector<16x16xf32>
    %1133 = arith.mulf %1130, %1132 : vector<16x16xf32>
    %c0_753 = arith.constant 0 : index
    %1134 = memref.load %arg6[%c0_753] : memref<4xf32, #tpu.memory_space<smem>>
    %1135 = vector.broadcast %1134 : f32 to vector<16x16xf32>
    %1136 = arith.addf %1133, %1135 : vector<16x16xf32>
    %cst_754 = arith.constant 0.000000e+00 : f32
    %1137 = vector.broadcast %cst_754 : f32 to vector<16x16xf32>
    %1138 = arith.maximumf %1136, %1137 : vector<16x16xf32>
    %c0_755 = arith.constant 0 : index
    %c0_756 = arith.constant 0 : index
    %c0_757 = arith.constant 0 : index
    %c0_758 = arith.constant 0 : index
    %1139 = vector.load %arg8[%c0_755, %c0_756, %c0_757, %c0_758] : memref<1x4x16x16xf32, #tpu.memory_space<vmem>>, vector<1x1x16x16xf32>
    %1140 = vector.shape_cast %1139 : vector<1x1x16x16xf32> to vector<16x16xf32>
    %1141 = vector.shape_cast %1138 : vector<16x16xf32> to vector<1x1x16x16xf32>
    tpu.vector_store %arg8[%c0_755, %c0_756, %c0_757, %c0_758], %1141 {strides = array<i32>} : memref<1x4x16x16xf32, #tpu.memory_space<vmem>>, vector<1x1x16x16xf32>,
    %cst_759 = arith.constant 0.000000e+00 : f32
    %1142 = vector.broadcast %cst_759 : f32 to vector<16x16xf32>
    %c36_760 = arith.constant 36 : index
    %1143 = memref.load %arg4[%c36_760] : memref<144xf32, #tpu.memory_space<smem>>
    %c0_761 = arith.constant 0 : index
    %c0_762 = arith.constant 0 : index
    %c0_763 = arith.constant 0 : index
    %1144 = vector.load %arg9[%c0_761, %c0_762, %c0_763] : memref<4x18x18xf32, #tpu.memory_space<vmem>>, vector<1x16x16xf32>
    %1145 = vector.shape_cast %1144 : vector<1x16x16xf32> to vector<16x16xf32>
    %1146 = vector.broadcast %1143 : f32 to vector<16x16xf32>
    %1147 = arith.mulf %1146, %1145 : vector<16x16xf32>
    %1148 = arith.addf %1142, %1147 : vector<16x16xf32>
    %c37_764 = arith.constant 37 : index
    %1149 = memref.load %arg4[%c37_764] : memref<144xf32, #tpu.memory_space<smem>>
    %c0_765 = arith.constant 0 : index
    %c0_766 = arith.constant 0 : index
    %c1_767 = arith.constant 1 : index
    %1150 = vector.load %arg9[%c0_765, %c0_766, %c1_767] : memref<4x18x18xf32, #tpu.memory_space<vmem>>, vector<1x16x16xf32>
    %1151 = vector.shape_cast %1150 : vector<1x16x16xf32> to vector<16x16xf32>
    %1152 = vector.broadcast %1149 : f32 to vector<16x16xf32>
    %1153 = arith.mulf %1152, %1151 : vector<16x16xf32>
    %1154 = arith.addf %1148, %1153 : vector<16x16xf32>
    %c38_768 = arith.constant 38 : index
    %1155 = memref.load %arg4[%c38_768] : memref<144xf32, #tpu.memory_space<smem>>
    %c0_769 = arith.constant 0 : index
    %c0_770 = arith.constant 0 : index
    %c2_771 = arith.constant 2 : index
    %1156 = vector.load %arg9[%c0_769, %c0_770, %c2_771] : memref<4x18x18xf32, #tpu.memory_space<vmem>>, vector<1x16x16xf32>
    %1157 = vector.shape_cast %1156 : vector<1x16x16xf32> to vector<16x16xf32>
    %1158 = vector.broadcast %1155 : f32 to vector<16x16xf32>
    %1159 = arith.mulf %1158, %1157 : vector<16x16xf32>
    %1160 = arith.addf %1154, %1159 : vector<16x16xf32>
    %c39_772 = arith.constant 39 : index
    %1161 = memref.load %arg4[%c39_772] : memref<144xf32, #tpu.memory_space<smem>>
    %c0_773 = arith.constant 0 : index
    %c1_774 = arith.constant 1 : index
    %c0_775 = arith.constant 0 : index
    %1162 = vector.load %arg9[%c0_773, %c1_774, %c0_775] : memref<4x18x18xf32, #tpu.memory_space<vmem>>, vector<1x16x16xf32>
    %1163 = vector.shape_cast %1162 : vector<1x16x16xf32> to vector<16x16xf32>
    %1164 = vector.broadcast %1161 : f32 to vector<16x16xf32>
    %1165 = arith.mulf %1164, %1163 : vector<16x16xf32>
    %1166 = arith.addf %1160, %1165 : vector<16x16xf32>
    %c40_776 = arith.constant 40 : index
    %1167 = memref.load %arg4[%c40_776] : memref<144xf32, #tpu.memory_space<smem>>
    %c0_777 = arith.constant 0 : index
    %c1_778 = arith.constant 1 : index
    %c1_779 = arith.constant 1 : index
    %1168 = vector.load %arg9[%c0_777, %c1_778, %c1_779] : memref<4x18x18xf32, #tpu.memory_space<vmem>>, vector<1x16x16xf32>
    %1169 = vector.shape_cast %1168 : vector<1x16x16xf32> to vector<16x16xf32>
    %1170 = vector.broadcast %1167 : f32 to vector<16x16xf32>
    %1171 = arith.mulf %1170, %1169 : vector<16x16xf32>
    %1172 = arith.addf %1166, %1171 : vector<16x16xf32>
    %c41_780 = arith.constant 41 : index
    %1173 = memref.load %arg4[%c41_780] : memref<144xf32, #tpu.memory_space<smem>>
    %c0_781 = arith.constant 0 : index
    %c1_782 = arith.constant 1 : index
    %c2_783 = arith.constant 2 : index
    %1174 = vector.load %arg9[%c0_781, %c1_782, %c2_783] : memref<4x18x18xf32, #tpu.memory_space<vmem>>, vector<1x16x16xf32>
    %1175 = vector.shape_cast %1174 : vector<1x16x16xf32> to vector<16x16xf32>
    %1176 = vector.broadcast %1173 : f32 to vector<16x16xf32>
    %1177 = arith.mulf %1176, %1175 : vector<16x16xf32>
    %1178 = arith.addf %1172, %1177 : vector<16x16xf32>
    %c42_784 = arith.constant 42 : index
    %1179 = memref.load %arg4[%c42_784] : memref<144xf32, #tpu.memory_space<smem>>
    %c0_785 = arith.constant 0 : index
    %c2_786 = arith.constant 2 : index
    %c0_787 = arith.constant 0 : index
    %1180 = vector.load %arg9[%c0_785, %c2_786, %c0_787] : memref<4x18x18xf32, #tpu.memory_space<vmem>>, vector<1x16x16xf32>
    %1181 = vector.shape_cast %1180 : vector<1x16x16xf32> to vector<16x16xf32>
    %1182 = vector.broadcast %1179 : f32 to vector<16x16xf32>
    %1183 = arith.mulf %1182, %1181 : vector<16x16xf32>
    %1184 = arith.addf %1178, %1183 : vector<16x16xf32>
    %c43_788 = arith.constant 43 : index
    %1185 = memref.load %arg4[%c43_788] : memref<144xf32, #tpu.memory_space<smem>>
    %c0_789 = arith.constant 0 : index
    %c2_790 = arith.constant 2 : index
    %c1_791 = arith.constant 1 : index
    %1186 = vector.load %arg9[%c0_789, %c2_790, %c1_791] : memref<4x18x18xf32, #tpu.memory_space<vmem>>, vector<1x16x16xf32>
    %1187 = vector.shape_cast %1186 : vector<1x16x16xf32> to vector<16x16xf32>
    %1188 = vector.broadcast %1185 : f32 to vector<16x16xf32>
    %1189 = arith.mulf %1188, %1187 : vector<16x16xf32>
    %1190 = arith.addf %1184, %1189 : vector<16x16xf32>
    %c44_792 = arith.constant 44 : index
    %1191 = memref.load %arg4[%c44_792] : memref<144xf32, #tpu.memory_space<smem>>
    %c0_793 = arith.constant 0 : index
    %c2_794 = arith.constant 2 : index
    %c2_795 = arith.constant 2 : index
    %1192 = vector.load %arg9[%c0_793, %c2_794, %c2_795] : memref<4x18x18xf32, #tpu.memory_space<vmem>>, vector<1x16x16xf32>
    %1193 = vector.shape_cast %1192 : vector<1x16x16xf32> to vector<16x16xf32>
    %1194 = vector.broadcast %1191 : f32 to vector<16x16xf32>
    %1195 = arith.mulf %1194, %1193 : vector<16x16xf32>
    %1196 = arith.addf %1190, %1195 : vector<16x16xf32>
    %c45_796 = arith.constant 45 : index
    %1197 = memref.load %arg4[%c45_796] : memref<144xf32, #tpu.memory_space<smem>>
    %c1_797 = arith.constant 1 : index
    %c0_798 = arith.constant 0 : index
    %c0_799 = arith.constant 0 : index
    %1198 = vector.load %arg9[%c1_797, %c0_798, %c0_799] : memref<4x18x18xf32, #tpu.memory_space<vmem>>, vector<1x16x16xf32>
    %1199 = vector.shape_cast %1198 : vector<1x16x16xf32> to vector<16x16xf32>
    %1200 = vector.broadcast %1197 : f32 to vector<16x16xf32>
    %1201 = arith.mulf %1200, %1199 : vector<16x16xf32>
    %1202 = arith.addf %1196, %1201 : vector<16x16xf32>
    %c46_800 = arith.constant 46 : index
    %1203 = memref.load %arg4[%c46_800] : memref<144xf32, #tpu.memory_space<smem>>
    %c1_801 = arith.constant 1 : index
    %c0_802 = arith.constant 0 : index
    %c1_803 = arith.constant 1 : index
    %1204 = vector.load %arg9[%c1_801, %c0_802, %c1_803] : memref<4x18x18xf32, #tpu.memory_space<vmem>>, vector<1x16x16xf32>
    %1205 = vector.shape_cast %1204 : vector<1x16x16xf32> to vector<16x16xf32>
    %1206 = vector.broadcast %1203 : f32 to vector<16x16xf32>
    %1207 = arith.mulf %1206, %1205 : vector<16x16xf32>
    %1208 = arith.addf %1202, %1207 : vector<16x16xf32>
    %c47_804 = arith.constant 47 : index
    %1209 = memref.load %arg4[%c47_804] : memref<144xf32, #tpu.memory_space<smem>>
    %c1_805 = arith.constant 1 : index
    %c0_806 = arith.constant 0 : index
    %c2_807 = arith.constant 2 : index
    %1210 = vector.load %arg9[%c1_805, %c0_806, %c2_807] : memref<4x18x18xf32, #tpu.memory_space<vmem>>, vector<1x16x16xf32>
    %1211 = vector.shape_cast %1210 : vector<1x16x16xf32> to vector<16x16xf32>
    %1212 = vector.broadcast %1209 : f32 to vector<16x16xf32>
    %1213 = arith.mulf %1212, %1211 : vector<16x16xf32>
    %1214 = arith.addf %1208, %1213 : vector<16x16xf32>
    %c48_808 = arith.constant 48 : index
    %1215 = memref.load %arg4[%c48_808] : memref<144xf32, #tpu.memory_space<smem>>
    %c1_809 = arith.constant 1 : index
    %c1_810 = arith.constant 1 : index
    %c0_811 = arith.constant 0 : index
    %1216 = vector.load %arg9[%c1_809, %c1_810, %c0_811] : memref<4x18x18xf32, #tpu.memory_space<vmem>>, vector<1x16x16xf32>
    %1217 = vector.shape_cast %1216 : vector<1x16x16xf32> to vector<16x16xf32>
    %1218 = vector.broadcast %1215 : f32 to vector<16x16xf32>
    %1219 = arith.mulf %1218, %1217 : vector<16x16xf32>
    %1220 = arith.addf %1214, %1219 : vector<16x16xf32>
    %c49_812 = arith.constant 49 : index
    %1221 = memref.load %arg4[%c49_812] : memref<144xf32, #tpu.memory_space<smem>>
    %c1_813 = arith.constant 1 : index
    %c1_814 = arith.constant 1 : index
    %c1_815 = arith.constant 1 : index
    %1222 = vector.load %arg9[%c1_813, %c1_814, %c1_815] : memref<4x18x18xf32, #tpu.memory_space<vmem>>, vector<1x16x16xf32>
    %1223 = vector.shape_cast %1222 : vector<1x16x16xf32> to vector<16x16xf32>
    %1224 = vector.broadcast %1221 : f32 to vector<16x16xf32>
    %1225 = arith.mulf %1224, %1223 : vector<16x16xf32>
    %1226 = arith.addf %1220, %1225 : vector<16x16xf32>
    %c50_816 = arith.constant 50 : index
    %1227 = memref.load %arg4[%c50_816] : memref<144xf32, #tpu.memory_space<smem>>
    %c1_817 = arith.constant 1 : index
    %c1_818 = arith.constant 1 : index
    %c2_819 = arith.constant 2 : index
    %1228 = vector.load %arg9[%c1_817, %c1_818, %c2_819] : memref<4x18x18xf32, #tpu.memory_space<vmem>>, vector<1x16x16xf32>
    %1229 = vector.shape_cast %1228 : vector<1x16x16xf32> to vector<16x16xf32>
    %1230 = vector.broadcast %1227 : f32 to vector<16x16xf32>
    %1231 = arith.mulf %1230, %1229 : vector<16x16xf32>
    %1232 = arith.addf %1226, %1231 : vector<16x16xf32>
    %c51_820 = arith.constant 51 : index
    %1233 = memref.load %arg4[%c51_820] : memref<144xf32, #tpu.memory_space<smem>>
    %c1_821 = arith.constant 1 : index
    %c2_822 = arith.constant 2 : index
    %c0_823 = arith.constant 0 : index
    %1234 = vector.load %arg9[%c1_821, %c2_822, %c0_823] : memref<4x18x18xf32, #tpu.memory_space<vmem>>, vector<1x16x16xf32>
    %1235 = vector.shape_cast %1234 : vector<1x16x16xf32> to vector<16x16xf32>
    %1236 = vector.broadcast %1233 : f32 to vector<16x16xf32>
    %1237 = arith.mulf %1236, %1235 : vector<16x16xf32>
    %1238 = arith.addf %1232, %1237 : vector<16x16xf32>
    %c52_824 = arith.constant 52 : index
    %1239 = memref.load %arg4[%c52_824] : memref<144xf32, #tpu.memory_space<smem>>
    %c1_825 = arith.constant 1 : index
    %c2_826 = arith.constant 2 : index
    %c1_827 = arith.constant 1 : index
    %1240 = vector.load %arg9[%c1_825, %c2_826, %c1_827] : memref<4x18x18xf32, #tpu.memory_space<vmem>>, vector<1x16x16xf32>
    %1241 = vector.shape_cast %1240 : vector<1x16x16xf32> to vector<16x16xf32>
    %1242 = vector.broadcast %1239 : f32 to vector<16x16xf32>
    %1243 = arith.mulf %1242, %1241 : vector<16x16xf32>
    %1244 = arith.addf %1238, %1243 : vector<16x16xf32>
    %c53_828 = arith.constant 53 : index
    %1245 = memref.load %arg4[%c53_828] : memref<144xf32, #tpu.memory_space<smem>>
    %c1_829 = arith.constant 1 : index
    %c2_830 = arith.constant 2 : index
    %c2_831 = arith.constant 2 : index
    %1246 = vector.load %arg9[%c1_829, %c2_830, %c2_831] : memref<4x18x18xf32, #tpu.memory_space<vmem>>, vector<1x16x16xf32>
    %1247 = vector.shape_cast %1246 : vector<1x16x16xf32> to vector<16x16xf32>
    %1248 = vector.broadcast %1245 : f32 to vector<16x16xf32>
    %1249 = arith.mulf %1248, %1247 : vector<16x16xf32>
    %1250 = arith.addf %1244, %1249 : vector<16x16xf32>
    %c54_832 = arith.constant 54 : index
    %1251 = memref.load %arg4[%c54_832] : memref<144xf32, #tpu.memory_space<smem>>
    %c2_833 = arith.constant 2 : index
    %c0_834 = arith.constant 0 : index
    %c0_835 = arith.constant 0 : index
    %1252 = vector.load %arg9[%c2_833, %c0_834, %c0_835] : memref<4x18x18xf32, #tpu.memory_space<vmem>>, vector<1x16x16xf32>
    %1253 = vector.shape_cast %1252 : vector<1x16x16xf32> to vector<16x16xf32>
    %1254 = vector.broadcast %1251 : f32 to vector<16x16xf32>
    %1255 = arith.mulf %1254, %1253 : vector<16x16xf32>
    %1256 = arith.addf %1250, %1255 : vector<16x16xf32>
    %c55_836 = arith.constant 55 : index
    %1257 = memref.load %arg4[%c55_836] : memref<144xf32, #tpu.memory_space<smem>>
    %c2_837 = arith.constant 2 : index
    %c0_838 = arith.constant 0 : index
    %c1_839 = arith.constant 1 : index
    %1258 = vector.load %arg9[%c2_837, %c0_838, %c1_839] : memref<4x18x18xf32, #tpu.memory_space<vmem>>, vector<1x16x16xf32>
    %1259 = vector.shape_cast %1258 : vector<1x16x16xf32> to vector<16x16xf32>
    %1260 = vector.broadcast %1257 : f32 to vector<16x16xf32>
    %1261 = arith.mulf %1260, %1259 : vector<16x16xf32>
    %1262 = arith.addf %1256, %1261 : vector<16x16xf32>
    %c56_840 = arith.constant 56 : index
    %1263 = memref.load %arg4[%c56_840] : memref<144xf32, #tpu.memory_space<smem>>
    %c2_841 = arith.constant 2 : index
    %c0_842 = arith.constant 0 : index
    %c2_843 = arith.constant 2 : index
    %1264 = vector.load %arg9[%c2_841, %c0_842, %c2_843] : memref<4x18x18xf32, #tpu.memory_space<vmem>>, vector<1x16x16xf32>
    %1265 = vector.shape_cast %1264 : vector<1x16x16xf32> to vector<16x16xf32>
    %1266 = vector.broadcast %1263 : f32 to vector<16x16xf32>
    %1267 = arith.mulf %1266, %1265 : vector<16x16xf32>
    %1268 = arith.addf %1262, %1267 : vector<16x16xf32>
    %c57_844 = arith.constant 57 : index
    %1269 = memref.load %arg4[%c57_844] : memref<144xf32, #tpu.memory_space<smem>>
    %c2_845 = arith.constant 2 : index
    %c1_846 = arith.constant 1 : index
    %c0_847 = arith.constant 0 : index
    %1270 = vector.load %arg9[%c2_845, %c1_846, %c0_847] : memref<4x18x18xf32, #tpu.memory_space<vmem>>, vector<1x16x16xf32>
    %1271 = vector.shape_cast %1270 : vector<1x16x16xf32> to vector<16x16xf32>
    %1272 = vector.broadcast %1269 : f32 to vector<16x16xf32>
    %1273 = arith.mulf %1272, %1271 : vector<16x16xf32>
    %1274 = arith.addf %1268, %1273 : vector<16x16xf32>
    %c58_848 = arith.constant 58 : index
    %1275 = memref.load %arg4[%c58_848] : memref<144xf32, #tpu.memory_space<smem>>
    %c2_849 = arith.constant 2 : index
    %c1_850 = arith.constant 1 : index
    %c1_851 = arith.constant 1 : index
    %1276 = vector.load %arg9[%c2_849, %c1_850, %c1_851] : memref<4x18x18xf32, #tpu.memory_space<vmem>>, vector<1x16x16xf32>
    %1277 = vector.shape_cast %1276 : vector<1x16x16xf32> to vector<16x16xf32>
    %1278 = vector.broadcast %1275 : f32 to vector<16x16xf32>
    %1279 = arith.mulf %1278, %1277 : vector<16x16xf32>
    %1280 = arith.addf %1274, %1279 : vector<16x16xf32>
    %c59_852 = arith.constant 59 : index
    %1281 = memref.load %arg4[%c59_852] : memref<144xf32, #tpu.memory_space<smem>>
    %c2_853 = arith.constant 2 : index
    %c1_854 = arith.constant 1 : index
    %c2_855 = arith.constant 2 : index
    %1282 = vector.load %arg9[%c2_853, %c1_854, %c2_855] : memref<4x18x18xf32, #tpu.memory_space<vmem>>, vector<1x16x16xf32>
    %1283 = vector.shape_cast %1282 : vector<1x16x16xf32> to vector<16x16xf32>
    %1284 = vector.broadcast %1281 : f32 to vector<16x16xf32>
    %1285 = arith.mulf %1284, %1283 : vector<16x16xf32>
    %1286 = arith.addf %1280, %1285 : vector<16x16xf32>
    %c60_856 = arith.constant 60 : index
    %1287 = memref.load %arg4[%c60_856] : memref<144xf32, #tpu.memory_space<smem>>
    %c2_857 = arith.constant 2 : index
    %c2_858 = arith.constant 2 : index
    %c0_859 = arith.constant 0 : index
    %1288 = vector.load %arg9[%c2_857, %c2_858, %c0_859] : memref<4x18x18xf32, #tpu.memory_space<vmem>>, vector<1x16x16xf32>
    %1289 = vector.shape_cast %1288 : vector<1x16x16xf32> to vector<16x16xf32>
    %1290 = vector.broadcast %1287 : f32 to vector<16x16xf32>
    %1291 = arith.mulf %1290, %1289 : vector<16x16xf32>
    %1292 = arith.addf %1286, %1291 : vector<16x16xf32>
    %c61_860 = arith.constant 61 : index
    %1293 = memref.load %arg4[%c61_860] : memref<144xf32, #tpu.memory_space<smem>>
    %c2_861 = arith.constant 2 : index
    %c2_862 = arith.constant 2 : index
    %c1_863 = arith.constant 1 : index
    %1294 = vector.load %arg9[%c2_861, %c2_862, %c1_863] : memref<4x18x18xf32, #tpu.memory_space<vmem>>, vector<1x16x16xf32>
    %1295 = vector.shape_cast %1294 : vector<1x16x16xf32> to vector<16x16xf32>
    %1296 = vector.broadcast %1293 : f32 to vector<16x16xf32>
    %1297 = arith.mulf %1296, %1295 : vector<16x16xf32>
    %1298 = arith.addf %1292, %1297 : vector<16x16xf32>
    %c62_864 = arith.constant 62 : index
    %1299 = memref.load %arg4[%c62_864] : memref<144xf32, #tpu.memory_space<smem>>
    %c2_865 = arith.constant 2 : index
    %c2_866 = arith.constant 2 : index
    %c2_867 = arith.constant 2 : index
    %1300 = vector.load %arg9[%c2_865, %c2_866, %c2_867] : memref<4x18x18xf32, #tpu.memory_space<vmem>>, vector<1x16x16xf32>
    %1301 = vector.shape_cast %1300 : vector<1x16x16xf32> to vector<16x16xf32>
    %1302 = vector.broadcast %1299 : f32 to vector<16x16xf32>
    %1303 = arith.mulf %1302, %1301 : vector<16x16xf32>
    %1304 = arith.addf %1298, %1303 : vector<16x16xf32>
    %c63_868 = arith.constant 63 : index
    %1305 = memref.load %arg4[%c63_868] : memref<144xf32, #tpu.memory_space<smem>>
    %c3_869 = arith.constant 3 : index
    %c0_870 = arith.constant 0 : index
    %c0_871 = arith.constant 0 : index
    %1306 = vector.load %arg9[%c3_869, %c0_870, %c0_871] : memref<4x18x18xf32, #tpu.memory_space<vmem>>, vector<1x16x16xf32>
    %1307 = vector.shape_cast %1306 : vector<1x16x16xf32> to vector<16x16xf32>
    %1308 = vector.broadcast %1305 : f32 to vector<16x16xf32>
    %1309 = arith.mulf %1308, %1307 : vector<16x16xf32>
    %1310 = arith.addf %1304, %1309 : vector<16x16xf32>
    %c64_872 = arith.constant 64 : index
    %1311 = memref.load %arg4[%c64_872] : memref<144xf32, #tpu.memory_space<smem>>
    %c3_873 = arith.constant 3 : index
    %c0_874 = arith.constant 0 : index
    %c1_875 = arith.constant 1 : index
    %1312 = vector.load %arg9[%c3_873, %c0_874, %c1_875] : memref<4x18x18xf32, #tpu.memory_space<vmem>>, vector<1x16x16xf32>
    %1313 = vector.shape_cast %1312 : vector<1x16x16xf32> to vector<16x16xf32>
    %1314 = vector.broadcast %1311 : f32 to vector<16x16xf32>
    %1315 = arith.mulf %1314, %1313 : vector<16x16xf32>
    %1316 = arith.addf %1310, %1315 : vector<16x16xf32>
    %c65_876 = arith.constant 65 : index
    %1317 = memref.load %arg4[%c65_876] : memref<144xf32, #tpu.memory_space<smem>>
    %c3_877 = arith.constant 3 : index
    %c0_878 = arith.constant 0 : index
    %c2_879 = arith.constant 2 : index
    %1318 = vector.load %arg9[%c3_877, %c0_878, %c2_879] : memref<4x18x18xf32, #tpu.memory_space<vmem>>, vector<1x16x16xf32>
    %1319 = vector.shape_cast %1318 : vector<1x16x16xf32> to vector<16x16xf32>
    %1320 = vector.broadcast %1317 : f32 to vector<16x16xf32>
    %1321 = arith.mulf %1320, %1319 : vector<16x16xf32>
    %1322 = arith.addf %1316, %1321 : vector<16x16xf32>
    %c66_880 = arith.constant 66 : index
    %1323 = memref.load %arg4[%c66_880] : memref<144xf32, #tpu.memory_space<smem>>
    %c3_881 = arith.constant 3 : index
    %c1_882 = arith.constant 1 : index
    %c0_883 = arith.constant 0 : index
    %1324 = vector.load %arg9[%c3_881, %c1_882, %c0_883] : memref<4x18x18xf32, #tpu.memory_space<vmem>>, vector<1x16x16xf32>
    %1325 = vector.shape_cast %1324 : vector<1x16x16xf32> to vector<16x16xf32>
    %1326 = vector.broadcast %1323 : f32 to vector<16x16xf32>
    %1327 = arith.mulf %1326, %1325 : vector<16x16xf32>
    %1328 = arith.addf %1322, %1327 : vector<16x16xf32>
    %c67_884 = arith.constant 67 : index
    %1329 = memref.load %arg4[%c67_884] : memref<144xf32, #tpu.memory_space<smem>>
    %c3_885 = arith.constant 3 : index
    %c1_886 = arith.constant 1 : index
    %c1_887 = arith.constant 1 : index
    %1330 = vector.load %arg9[%c3_885, %c1_886, %c1_887] : memref<4x18x18xf32, #tpu.memory_space<vmem>>, vector<1x16x16xf32>
    %1331 = vector.shape_cast %1330 : vector<1x16x16xf32> to vector<16x16xf32>
    %1332 = vector.broadcast %1329 : f32 to vector<16x16xf32>
    %1333 = arith.mulf %1332, %1331 : vector<16x16xf32>
    %1334 = arith.addf %1328, %1333 : vector<16x16xf32>
    %c68_888 = arith.constant 68 : index
    %1335 = memref.load %arg4[%c68_888] : memref<144xf32, #tpu.memory_space<smem>>
    %c3_889 = arith.constant 3 : index
    %c1_890 = arith.constant 1 : index
    %c2_891 = arith.constant 2 : index
    %1336 = vector.load %arg9[%c3_889, %c1_890, %c2_891] : memref<4x18x18xf32, #tpu.memory_space<vmem>>, vector<1x16x16xf32>
    %1337 = vector.shape_cast %1336 : vector<1x16x16xf32> to vector<16x16xf32>
    %1338 = vector.broadcast %1335 : f32 to vector<16x16xf32>
    %1339 = arith.mulf %1338, %1337 : vector<16x16xf32>
    %1340 = arith.addf %1334, %1339 : vector<16x16xf32>
    %c69_892 = arith.constant 69 : index
    %1341 = memref.load %arg4[%c69_892] : memref<144xf32, #tpu.memory_space<smem>>
    %c3_893 = arith.constant 3 : index
    %c2_894 = arith.constant 2 : index
    %c0_895 = arith.constant 0 : index
    %1342 = vector.load %arg9[%c3_893, %c2_894, %c0_895] : memref<4x18x18xf32, #tpu.memory_space<vmem>>, vector<1x16x16xf32>
    %1343 = vector.shape_cast %1342 : vector<1x16x16xf32> to vector<16x16xf32>
    %1344 = vector.broadcast %1341 : f32 to vector<16x16xf32>
    %1345 = arith.mulf %1344, %1343 : vector<16x16xf32>
    %1346 = arith.addf %1340, %1345 : vector<16x16xf32>
    %c70_896 = arith.constant 70 : index
    %1347 = memref.load %arg4[%c70_896] : memref<144xf32, #tpu.memory_space<smem>>
    %c3_897 = arith.constant 3 : index
    %c2_898 = arith.constant 2 : index
    %c1_899 = arith.constant 1 : index
    %1348 = vector.load %arg9[%c3_897, %c2_898, %c1_899] : memref<4x18x18xf32, #tpu.memory_space<vmem>>, vector<1x16x16xf32>
    %1349 = vector.shape_cast %1348 : vector<1x16x16xf32> to vector<16x16xf32>
    %1350 = vector.broadcast %1347 : f32 to vector<16x16xf32>
    %1351 = arith.mulf %1350, %1349 : vector<16x16xf32>
    %1352 = arith.addf %1346, %1351 : vector<16x16xf32>
    %c71_900 = arith.constant 71 : index
    %1353 = memref.load %arg4[%c71_900] : memref<144xf32, #tpu.memory_space<smem>>
    %c3_901 = arith.constant 3 : index
    %c2_902 = arith.constant 2 : index
    %c2_903 = arith.constant 2 : index
    %1354 = vector.load %arg9[%c3_901, %c2_902, %c2_903] : memref<4x18x18xf32, #tpu.memory_space<vmem>>, vector<1x16x16xf32>
    %1355 = vector.shape_cast %1354 : vector<1x16x16xf32> to vector<16x16xf32>
    %1356 = vector.broadcast %1353 : f32 to vector<16x16xf32>
    %1357 = arith.mulf %1356, %1355 : vector<16x16xf32>
    %1358 = arith.addf %1352, %1357 : vector<16x16xf32>
    %c1_904 = arith.constant 1 : index
    %1359 = memref.load %arg5[%c1_904] : memref<4xf32, #tpu.memory_space<smem>>
    %1360 = vector.broadcast %1359 : f32 to vector<16x16xf32>
    %1361 = arith.mulf %1358, %1360 : vector<16x16xf32>
    %c1_905 = arith.constant 1 : index
    %1362 = memref.load %arg6[%c1_905] : memref<4xf32, #tpu.memory_space<smem>>
    %1363 = vector.broadcast %1362 : f32 to vector<16x16xf32>
    %1364 = arith.addf %1361, %1363 : vector<16x16xf32>
    %cst_906 = arith.constant 0.000000e+00 : f32
    %1365 = vector.broadcast %cst_906 : f32 to vector<16x16xf32>
    %1366 = arith.maximumf %1364, %1365 : vector<16x16xf32>
    %c0_907 = arith.constant 0 : index
    %c1_908 = arith.constant 1 : index
    %c0_909 = arith.constant 0 : index
    %c0_910 = arith.constant 0 : index
    %1367 = vector.load %arg8[%c0_907, %c1_908, %c0_909, %c0_910] : memref<1x4x16x16xf32, #tpu.memory_space<vmem>>, vector<1x1x16x16xf32>
    %1368 = vector.shape_cast %1367 : vector<1x1x16x16xf32> to vector<16x16xf32>
    %1369 = vector.shape_cast %1366 : vector<16x16xf32> to vector<1x1x16x16xf32>
    tpu.vector_store %arg8[%c0_907, %c1_908, %c0_909, %c0_910], %1369 {strides = array<i32>} : memref<1x4x16x16xf32, #tpu.memory_space<vmem>>, vector<1x1x16x16xf32>,
    %cst_911 = arith.constant 0.000000e+00 : f32
    %1370 = vector.broadcast %cst_911 : f32 to vector<16x16xf32>
    %c72_912 = arith.constant 72 : index
    %1371 = memref.load %arg4[%c72_912] : memref<144xf32, #tpu.memory_space<smem>>
    %c0_913 = arith.constant 0 : index
    %c0_914 = arith.constant 0 : index
    %c0_915 = arith.constant 0 : index
    %1372 = vector.load %arg9[%c0_913, %c0_914, %c0_915] : memref<4x18x18xf32, #tpu.memory_space<vmem>>, vector<1x16x16xf32>
    %1373 = vector.shape_cast %1372 : vector<1x16x16xf32> to vector<16x16xf32>
    %1374 = vector.broadcast %1371 : f32 to vector<16x16xf32>
    %1375 = arith.mulf %1374, %1373 : vector<16x16xf32>
    %1376 = arith.addf %1370, %1375 : vector<16x16xf32>
    %c73_916 = arith.constant 73 : index
    %1377 = memref.load %arg4[%c73_916] : memref<144xf32, #tpu.memory_space<smem>>
    %c0_917 = arith.constant 0 : index
    %c0_918 = arith.constant 0 : index
    %c1_919 = arith.constant 1 : index
    %1378 = vector.load %arg9[%c0_917, %c0_918, %c1_919] : memref<4x18x18xf32, #tpu.memory_space<vmem>>, vector<1x16x16xf32>
    %1379 = vector.shape_cast %1378 : vector<1x16x16xf32> to vector<16x16xf32>
    %1380 = vector.broadcast %1377 : f32 to vector<16x16xf32>
    %1381 = arith.mulf %1380, %1379 : vector<16x16xf32>
    %1382 = arith.addf %1376, %1381 : vector<16x16xf32>
    %c74_920 = arith.constant 74 : index
    %1383 = memref.load %arg4[%c74_920] : memref<144xf32, #tpu.memory_space<smem>>
    %c0_921 = arith.constant 0 : index
    %c0_922 = arith.constant 0 : index
    %c2_923 = arith.constant 2 : index
    %1384 = vector.load %arg9[%c0_921, %c0_922, %c2_923] : memref<4x18x18xf32, #tpu.memory_space<vmem>>, vector<1x16x16xf32>
    %1385 = vector.shape_cast %1384 : vector<1x16x16xf32> to vector<16x16xf32>
    %1386 = vector.broadcast %1383 : f32 to vector<16x16xf32>
    %1387 = arith.mulf %1386, %1385 : vector<16x16xf32>
    %1388 = arith.addf %1382, %1387 : vector<16x16xf32>
    %c75_924 = arith.constant 75 : index
    %1389 = memref.load %arg4[%c75_924] : memref<144xf32, #tpu.memory_space<smem>>
    %c0_925 = arith.constant 0 : index
    %c1_926 = arith.constant 1 : index
    %c0_927 = arith.constant 0 : index
    %1390 = vector.load %arg9[%c0_925, %c1_926, %c0_927] : memref<4x18x18xf32, #tpu.memory_space<vmem>>, vector<1x16x16xf32>
    %1391 = vector.shape_cast %1390 : vector<1x16x16xf32> to vector<16x16xf32>
    %1392 = vector.broadcast %1389 : f32 to vector<16x16xf32>
    %1393 = arith.mulf %1392, %1391 : vector<16x16xf32>
    %1394 = arith.addf %1388, %1393 : vector<16x16xf32>
    %c76_928 = arith.constant 76 : index
    %1395 = memref.load %arg4[%c76_928] : memref<144xf32, #tpu.memory_space<smem>>
    %c0_929 = arith.constant 0 : index
    %c1_930 = arith.constant 1 : index
    %c1_931 = arith.constant 1 : index
    %1396 = vector.load %arg9[%c0_929, %c1_930, %c1_931] : memref<4x18x18xf32, #tpu.memory_space<vmem>>, vector<1x16x16xf32>
    %1397 = vector.shape_cast %1396 : vector<1x16x16xf32> to vector<16x16xf32>
    %1398 = vector.broadcast %1395 : f32 to vector<16x16xf32>
    %1399 = arith.mulf %1398, %1397 : vector<16x16xf32>
    %1400 = arith.addf %1394, %1399 : vector<16x16xf32>
    %c77_932 = arith.constant 77 : index
    %1401 = memref.load %arg4[%c77_932] : memref<144xf32, #tpu.memory_space<smem>>
    %c0_933 = arith.constant 0 : index
    %c1_934 = arith.constant 1 : index
    %c2_935 = arith.constant 2 : index
    %1402 = vector.load %arg9[%c0_933, %c1_934, %c2_935] : memref<4x18x18xf32, #tpu.memory_space<vmem>>, vector<1x16x16xf32>
    %1403 = vector.shape_cast %1402 : vector<1x16x16xf32> to vector<16x16xf32>
    %1404 = vector.broadcast %1401 : f32 to vector<16x16xf32>
    %1405 = arith.mulf %1404, %1403 : vector<16x16xf32>
    %1406 = arith.addf %1400, %1405 : vector<16x16xf32>
    %c78_936 = arith.constant 78 : index
    %1407 = memref.load %arg4[%c78_936] : memref<144xf32, #tpu.memory_space<smem>>
    %c0_937 = arith.constant 0 : index
    %c2_938 = arith.constant 2 : index
    %c0_939 = arith.constant 0 : index
    %1408 = vector.load %arg9[%c0_937, %c2_938, %c0_939] : memref<4x18x18xf32, #tpu.memory_space<vmem>>, vector<1x16x16xf32>
    %1409 = vector.shape_cast %1408 : vector<1x16x16xf32> to vector<16x16xf32>
    %1410 = vector.broadcast %1407 : f32 to vector<16x16xf32>
    %1411 = arith.mulf %1410, %1409 : vector<16x16xf32>
    %1412 = arith.addf %1406, %1411 : vector<16x16xf32>
    %c79_940 = arith.constant 79 : index
    %1413 = memref.load %arg4[%c79_940] : memref<144xf32, #tpu.memory_space<smem>>
    %c0_941 = arith.constant 0 : index
    %c2_942 = arith.constant 2 : index
    %c1_943 = arith.constant 1 : index
    %1414 = vector.load %arg9[%c0_941, %c2_942, %c1_943] : memref<4x18x18xf32, #tpu.memory_space<vmem>>, vector<1x16x16xf32>
    %1415 = vector.shape_cast %1414 : vector<1x16x16xf32> to vector<16x16xf32>
    %1416 = vector.broadcast %1413 : f32 to vector<16x16xf32>
    %1417 = arith.mulf %1416, %1415 : vector<16x16xf32>
    %1418 = arith.addf %1412, %1417 : vector<16x16xf32>
    %c80_944 = arith.constant 80 : index
    %1419 = memref.load %arg4[%c80_944] : memref<144xf32, #tpu.memory_space<smem>>
    %c0_945 = arith.constant 0 : index
    %c2_946 = arith.constant 2 : index
    %c2_947 = arith.constant 2 : index
    %1420 = vector.load %arg9[%c0_945, %c2_946, %c2_947] : memref<4x18x18xf32, #tpu.memory_space<vmem>>, vector<1x16x16xf32>
    %1421 = vector.shape_cast %1420 : vector<1x16x16xf32> to vector<16x16xf32>
    %1422 = vector.broadcast %1419 : f32 to vector<16x16xf32>
    %1423 = arith.mulf %1422, %1421 : vector<16x16xf32>
    %1424 = arith.addf %1418, %1423 : vector<16x16xf32>
    %c81_948 = arith.constant 81 : index
    %1425 = memref.load %arg4[%c81_948] : memref<144xf32, #tpu.memory_space<smem>>
    %c1_949 = arith.constant 1 : index
    %c0_950 = arith.constant 0 : index
    %c0_951 = arith.constant 0 : index
    %1426 = vector.load %arg9[%c1_949, %c0_950, %c0_951] : memref<4x18x18xf32, #tpu.memory_space<vmem>>, vector<1x16x16xf32>
    %1427 = vector.shape_cast %1426 : vector<1x16x16xf32> to vector<16x16xf32>
    %1428 = vector.broadcast %1425 : f32 to vector<16x16xf32>
    %1429 = arith.mulf %1428, %1427 : vector<16x16xf32>
    %1430 = arith.addf %1424, %1429 : vector<16x16xf32>
    %c82_952 = arith.constant 82 : index
    %1431 = memref.load %arg4[%c82_952] : memref<144xf32, #tpu.memory_space<smem>>
    %c1_953 = arith.constant 1 : index
    %c0_954 = arith.constant 0 : index
    %c1_955 = arith.constant 1 : index
    %1432 = vector.load %arg9[%c1_953, %c0_954, %c1_955] : memref<4x18x18xf32, #tpu.memory_space<vmem>>, vector<1x16x16xf32>
    %1433 = vector.shape_cast %1432 : vector<1x16x16xf32> to vector<16x16xf32>
    %1434 = vector.broadcast %1431 : f32 to vector<16x16xf32>
    %1435 = arith.mulf %1434, %1433 : vector<16x16xf32>
    %1436 = arith.addf %1430, %1435 : vector<16x16xf32>
    %c83_956 = arith.constant 83 : index
    %1437 = memref.load %arg4[%c83_956] : memref<144xf32, #tpu.memory_space<smem>>
    %c1_957 = arith.constant 1 : index
    %c0_958 = arith.constant 0 : index
    %c2_959 = arith.constant 2 : index
    %1438 = vector.load %arg9[%c1_957, %c0_958, %c2_959] : memref<4x18x18xf32, #tpu.memory_space<vmem>>, vector<1x16x16xf32>
    %1439 = vector.shape_cast %1438 : vector<1x16x16xf32> to vector<16x16xf32>
    %1440 = vector.broadcast %1437 : f32 to vector<16x16xf32>
    %1441 = arith.mulf %1440, %1439 : vector<16x16xf32>
    %1442 = arith.addf %1436, %1441 : vector<16x16xf32>
    %c84_960 = arith.constant 84 : index
    %1443 = memref.load %arg4[%c84_960] : memref<144xf32, #tpu.memory_space<smem>>
    %c1_961 = arith.constant 1 : index
    %c1_962 = arith.constant 1 : index
    %c0_963 = arith.constant 0 : index
    %1444 = vector.load %arg9[%c1_961, %c1_962, %c0_963] : memref<4x18x18xf32, #tpu.memory_space<vmem>>, vector<1x16x16xf32>
    %1445 = vector.shape_cast %1444 : vector<1x16x16xf32> to vector<16x16xf32>
    %1446 = vector.broadcast %1443 : f32 to vector<16x16xf32>
    %1447 = arith.mulf %1446, %1445 : vector<16x16xf32>
    %1448 = arith.addf %1442, %1447 : vector<16x16xf32>
    %c85_964 = arith.constant 85 : index
    %1449 = memref.load %arg4[%c85_964] : memref<144xf32, #tpu.memory_space<smem>>
    %c1_965 = arith.constant 1 : index
    %c1_966 = arith.constant 1 : index
    %c1_967 = arith.constant 1 : index
    %1450 = vector.load %arg9[%c1_965, %c1_966, %c1_967] : memref<4x18x18xf32, #tpu.memory_space<vmem>>, vector<1x16x16xf32>
    %1451 = vector.shape_cast %1450 : vector<1x16x16xf32> to vector<16x16xf32>
    %1452 = vector.broadcast %1449 : f32 to vector<16x16xf32>
    %1453 = arith.mulf %1452, %1451 : vector<16x16xf32>
    %1454 = arith.addf %1448, %1453 : vector<16x16xf32>
    %c86_968 = arith.constant 86 : index
    %1455 = memref.load %arg4[%c86_968] : memref<144xf32, #tpu.memory_space<smem>>
    %c1_969 = arith.constant 1 : index
    %c1_970 = arith.constant 1 : index
    %c2_971 = arith.constant 2 : index
    %1456 = vector.load %arg9[%c1_969, %c1_970, %c2_971] : memref<4x18x18xf32, #tpu.memory_space<vmem>>, vector<1x16x16xf32>
    %1457 = vector.shape_cast %1456 : vector<1x16x16xf32> to vector<16x16xf32>
    %1458 = vector.broadcast %1455 : f32 to vector<16x16xf32>
    %1459 = arith.mulf %1458, %1457 : vector<16x16xf32>
    %1460 = arith.addf %1454, %1459 : vector<16x16xf32>
    %c87_972 = arith.constant 87 : index
    %1461 = memref.load %arg4[%c87_972] : memref<144xf32, #tpu.memory_space<smem>>
    %c1_973 = arith.constant 1 : index
    %c2_974 = arith.constant 2 : index
    %c0_975 = arith.constant 0 : index
    %1462 = vector.load %arg9[%c1_973, %c2_974, %c0_975] : memref<4x18x18xf32, #tpu.memory_space<vmem>>, vector<1x16x16xf32>
    %1463 = vector.shape_cast %1462 : vector<1x16x16xf32> to vector<16x16xf32>
    %1464 = vector.broadcast %1461 : f32 to vector<16x16xf32>
    %1465 = arith.mulf %1464, %1463 : vector<16x16xf32>
    %1466 = arith.addf %1460, %1465 : vector<16x16xf32>
    %c88_976 = arith.constant 88 : index
    %1467 = memref.load %arg4[%c88_976] : memref<144xf32, #tpu.memory_space<smem>>
    %c1_977 = arith.constant 1 : index
    %c2_978 = arith.constant 2 : index
    %c1_979 = arith.constant 1 : index
    %1468 = vector.load %arg9[%c1_977, %c2_978, %c1_979] : memref<4x18x18xf32, #tpu.memory_space<vmem>>, vector<1x16x16xf32>
    %1469 = vector.shape_cast %1468 : vector<1x16x16xf32> to vector<16x16xf32>
    %1470 = vector.broadcast %1467 : f32 to vector<16x16xf32>
    %1471 = arith.mulf %1470, %1469 : vector<16x16xf32>
    %1472 = arith.addf %1466, %1471 : vector<16x16xf32>
    %c89_980 = arith.constant 89 : index
    %1473 = memref.load %arg4[%c89_980] : memref<144xf32, #tpu.memory_space<smem>>
    %c1_981 = arith.constant 1 : index
    %c2_982 = arith.constant 2 : index
    %c2_983 = arith.constant 2 : index
    %1474 = vector.load %arg9[%c1_981, %c2_982, %c2_983] : memref<4x18x18xf32, #tpu.memory_space<vmem>>, vector<1x16x16xf32>
    %1475 = vector.shape_cast %1474 : vector<1x16x16xf32> to vector<16x16xf32>
    %1476 = vector.broadcast %1473 : f32 to vector<16x16xf32>
    %1477 = arith.mulf %1476, %1475 : vector<16x16xf32>
    %1478 = arith.addf %1472, %1477 : vector<16x16xf32>
    %c90_984 = arith.constant 90 : index
    %1479 = memref.load %arg4[%c90_984] : memref<144xf32, #tpu.memory_space<smem>>
    %c2_985 = arith.constant 2 : index
    %c0_986 = arith.constant 0 : index
    %c0_987 = arith.constant 0 : index
    %1480 = vector.load %arg9[%c2_985, %c0_986, %c0_987] : memref<4x18x18xf32, #tpu.memory_space<vmem>>, vector<1x16x16xf32>
    %1481 = vector.shape_cast %1480 : vector<1x16x16xf32> to vector<16x16xf32>
    %1482 = vector.broadcast %1479 : f32 to vector<16x16xf32>
    %1483 = arith.mulf %1482, %1481 : vector<16x16xf32>
    %1484 = arith.addf %1478, %1483 : vector<16x16xf32>
    %c91_988 = arith.constant 91 : index
    %1485 = memref.load %arg4[%c91_988] : memref<144xf32, #tpu.memory_space<smem>>
    %c2_989 = arith.constant 2 : index
    %c0_990 = arith.constant 0 : index
    %c1_991 = arith.constant 1 : index
    %1486 = vector.load %arg9[%c2_989, %c0_990, %c1_991] : memref<4x18x18xf32, #tpu.memory_space<vmem>>, vector<1x16x16xf32>
    %1487 = vector.shape_cast %1486 : vector<1x16x16xf32> to vector<16x16xf32>
    %1488 = vector.broadcast %1485 : f32 to vector<16x16xf32>
    %1489 = arith.mulf %1488, %1487 : vector<16x16xf32>
    %1490 = arith.addf %1484, %1489 : vector<16x16xf32>
    %c92_992 = arith.constant 92 : index
    %1491 = memref.load %arg4[%c92_992] : memref<144xf32, #tpu.memory_space<smem>>
    %c2_993 = arith.constant 2 : index
    %c0_994 = arith.constant 0 : index
    %c2_995 = arith.constant 2 : index
    %1492 = vector.load %arg9[%c2_993, %c0_994, %c2_995] : memref<4x18x18xf32, #tpu.memory_space<vmem>>, vector<1x16x16xf32>
    %1493 = vector.shape_cast %1492 : vector<1x16x16xf32> to vector<16x16xf32>
    %1494 = vector.broadcast %1491 : f32 to vector<16x16xf32>
    %1495 = arith.mulf %1494, %1493 : vector<16x16xf32>
    %1496 = arith.addf %1490, %1495 : vector<16x16xf32>
    %c93_996 = arith.constant 93 : index
    %1497 = memref.load %arg4[%c93_996] : memref<144xf32, #tpu.memory_space<smem>>
    %c2_997 = arith.constant 2 : index
    %c1_998 = arith.constant 1 : index
    %c0_999 = arith.constant 0 : index
    %1498 = vector.load %arg9[%c2_997, %c1_998, %c0_999] : memref<4x18x18xf32, #tpu.memory_space<vmem>>, vector<1x16x16xf32>
    %1499 = vector.shape_cast %1498 : vector<1x16x16xf32> to vector<16x16xf32>
    %1500 = vector.broadcast %1497 : f32 to vector<16x16xf32>
    %1501 = arith.mulf %1500, %1499 : vector<16x16xf32>
    %1502 = arith.addf %1496, %1501 : vector<16x16xf32>
    %c94_1000 = arith.constant 94 : index
    %1503 = memref.load %arg4[%c94_1000] : memref<144xf32, #tpu.memory_space<smem>>
    %c2_1001 = arith.constant 2 : index
    %c1_1002 = arith.constant 1 : index
    %c1_1003 = arith.constant 1 : index
    %1504 = vector.load %arg9[%c2_1001, %c1_1002, %c1_1003] : memref<4x18x18xf32, #tpu.memory_space<vmem>>, vector<1x16x16xf32>
    %1505 = vector.shape_cast %1504 : vector<1x16x16xf32> to vector<16x16xf32>
    %1506 = vector.broadcast %1503 : f32 to vector<16x16xf32>
    %1507 = arith.mulf %1506, %1505 : vector<16x16xf32>
    %1508 = arith.addf %1502, %1507 : vector<16x16xf32>
    %c95_1004 = arith.constant 95 : index
    %1509 = memref.load %arg4[%c95_1004] : memref<144xf32, #tpu.memory_space<smem>>
    %c2_1005 = arith.constant 2 : index
    %c1_1006 = arith.constant 1 : index
    %c2_1007 = arith.constant 2 : index
    %1510 = vector.load %arg9[%c2_1005, %c1_1006, %c2_1007] : memref<4x18x18xf32, #tpu.memory_space<vmem>>, vector<1x16x16xf32>
    %1511 = vector.shape_cast %1510 : vector<1x16x16xf32> to vector<16x16xf32>
    %1512 = vector.broadcast %1509 : f32 to vector<16x16xf32>
    %1513 = arith.mulf %1512, %1511 : vector<16x16xf32>
    %1514 = arith.addf %1508, %1513 : vector<16x16xf32>
    %c96_1008 = arith.constant 96 : index
    %1515 = memref.load %arg4[%c96_1008] : memref<144xf32, #tpu.memory_space<smem>>
    %c2_1009 = arith.constant 2 : index
    %c2_1010 = arith.constant 2 : index
    %c0_1011 = arith.constant 0 : index
    %1516 = vector.load %arg9[%c2_1009, %c2_1010, %c0_1011] : memref<4x18x18xf32, #tpu.memory_space<vmem>>, vector<1x16x16xf32>
    %1517 = vector.shape_cast %1516 : vector<1x16x16xf32> to vector<16x16xf32>
    %1518 = vector.broadcast %1515 : f32 to vector<16x16xf32>
    %1519 = arith.mulf %1518, %1517 : vector<16x16xf32>
    %1520 = arith.addf %1514, %1519 : vector<16x16xf32>
    %c97_1012 = arith.constant 97 : index
    %1521 = memref.load %arg4[%c97_1012] : memref<144xf32, #tpu.memory_space<smem>>
    %c2_1013 = arith.constant 2 : index
    %c2_1014 = arith.constant 2 : index
    %c1_1015 = arith.constant 1 : index
    %1522 = vector.load %arg9[%c2_1013, %c2_1014, %c1_1015] : memref<4x18x18xf32, #tpu.memory_space<vmem>>, vector<1x16x16xf32>
    %1523 = vector.shape_cast %1522 : vector<1x16x16xf32> to vector<16x16xf32>
    %1524 = vector.broadcast %1521 : f32 to vector<16x16xf32>
    %1525 = arith.mulf %1524, %1523 : vector<16x16xf32>
    %1526 = arith.addf %1520, %1525 : vector<16x16xf32>
    %c98_1016 = arith.constant 98 : index
    %1527 = memref.load %arg4[%c98_1016] : memref<144xf32, #tpu.memory_space<smem>>
    %c2_1017 = arith.constant 2 : index
    %c2_1018 = arith.constant 2 : index
    %c2_1019 = arith.constant 2 : index
    %1528 = vector.load %arg9[%c2_1017, %c2_1018, %c2_1019] : memref<4x18x18xf32, #tpu.memory_space<vmem>>, vector<1x16x16xf32>
    %1529 = vector.shape_cast %1528 : vector<1x16x16xf32> to vector<16x16xf32>
    %1530 = vector.broadcast %1527 : f32 to vector<16x16xf32>
    %1531 = arith.mulf %1530, %1529 : vector<16x16xf32>
    %1532 = arith.addf %1526, %1531 : vector<16x16xf32>
    %c99_1020 = arith.constant 99 : index
    %1533 = memref.load %arg4[%c99_1020] : memref<144xf32, #tpu.memory_space<smem>>
    %c3_1021 = arith.constant 3 : index
    %c0_1022 = arith.constant 0 : index
    %c0_1023 = arith.constant 0 : index
    %1534 = vector.load %arg9[%c3_1021, %c0_1022, %c0_1023] : memref<4x18x18xf32, #tpu.memory_space<vmem>>, vector<1x16x16xf32>
    %1535 = vector.shape_cast %1534 : vector<1x16x16xf32> to vector<16x16xf32>
    %1536 = vector.broadcast %1533 : f32 to vector<16x16xf32>
    %1537 = arith.mulf %1536, %1535 : vector<16x16xf32>
    %1538 = arith.addf %1532, %1537 : vector<16x16xf32>
    %c100_1024 = arith.constant 100 : index
    %1539 = memref.load %arg4[%c100_1024] : memref<144xf32, #tpu.memory_space<smem>>
    %c3_1025 = arith.constant 3 : index
    %c0_1026 = arith.constant 0 : index
    %c1_1027 = arith.constant 1 : index
    %1540 = vector.load %arg9[%c3_1025, %c0_1026, %c1_1027] : memref<4x18x18xf32, #tpu.memory_space<vmem>>, vector<1x16x16xf32>
    %1541 = vector.shape_cast %1540 : vector<1x16x16xf32> to vector<16x16xf32>
    %1542 = vector.broadcast %1539 : f32 to vector<16x16xf32>
    %1543 = arith.mulf %1542, %1541 : vector<16x16xf32>
    %1544 = arith.addf %1538, %1543 : vector<16x16xf32>
    %c101_1028 = arith.constant 101 : index
    %1545 = memref.load %arg4[%c101_1028] : memref<144xf32, #tpu.memory_space<smem>>
    %c3_1029 = arith.constant 3 : index
    %c0_1030 = arith.constant 0 : index
    %c2_1031 = arith.constant 2 : index
    %1546 = vector.load %arg9[%c3_1029, %c0_1030, %c2_1031] : memref<4x18x18xf32, #tpu.memory_space<vmem>>, vector<1x16x16xf32>
    %1547 = vector.shape_cast %1546 : vector<1x16x16xf32> to vector<16x16xf32>
    %1548 = vector.broadcast %1545 : f32 to vector<16x16xf32>
    %1549 = arith.mulf %1548, %1547 : vector<16x16xf32>
    %1550 = arith.addf %1544, %1549 : vector<16x16xf32>
    %c102_1032 = arith.constant 102 : index
    %1551 = memref.load %arg4[%c102_1032] : memref<144xf32, #tpu.memory_space<smem>>
    %c3_1033 = arith.constant 3 : index
    %c1_1034 = arith.constant 1 : index
    %c0_1035 = arith.constant 0 : index
    %1552 = vector.load %arg9[%c3_1033, %c1_1034, %c0_1035] : memref<4x18x18xf32, #tpu.memory_space<vmem>>, vector<1x16x16xf32>
    %1553 = vector.shape_cast %1552 : vector<1x16x16xf32> to vector<16x16xf32>
    %1554 = vector.broadcast %1551 : f32 to vector<16x16xf32>
    %1555 = arith.mulf %1554, %1553 : vector<16x16xf32>
    %1556 = arith.addf %1550, %1555 : vector<16x16xf32>
    %c103_1036 = arith.constant 103 : index
    %1557 = memref.load %arg4[%c103_1036] : memref<144xf32, #tpu.memory_space<smem>>
    %c3_1037 = arith.constant 3 : index
    %c1_1038 = arith.constant 1 : index
    %c1_1039 = arith.constant 1 : index
    %1558 = vector.load %arg9[%c3_1037, %c1_1038, %c1_1039] : memref<4x18x18xf32, #tpu.memory_space<vmem>>, vector<1x16x16xf32>
    %1559 = vector.shape_cast %1558 : vector<1x16x16xf32> to vector<16x16xf32>
    %1560 = vector.broadcast %1557 : f32 to vector<16x16xf32>
    %1561 = arith.mulf %1560, %1559 : vector<16x16xf32>
    %1562 = arith.addf %1556, %1561 : vector<16x16xf32>
    %c104_1040 = arith.constant 104 : index
    %1563 = memref.load %arg4[%c104_1040] : memref<144xf32, #tpu.memory_space<smem>>
    %c3_1041 = arith.constant 3 : index
    %c1_1042 = arith.constant 1 : index
    %c2_1043 = arith.constant 2 : index
    %1564 = vector.load %arg9[%c3_1041, %c1_1042, %c2_1043] : memref<4x18x18xf32, #tpu.memory_space<vmem>>, vector<1x16x16xf32>
    %1565 = vector.shape_cast %1564 : vector<1x16x16xf32> to vector<16x16xf32>
    %1566 = vector.broadcast %1563 : f32 to vector<16x16xf32>
    %1567 = arith.mulf %1566, %1565 : vector<16x16xf32>
    %1568 = arith.addf %1562, %1567 : vector<16x16xf32>
    %c105_1044 = arith.constant 105 : index
    %1569 = memref.load %arg4[%c105_1044] : memref<144xf32, #tpu.memory_space<smem>>
    %c3_1045 = arith.constant 3 : index
    %c2_1046 = arith.constant 2 : index
    %c0_1047 = arith.constant 0 : index
    %1570 = vector.load %arg9[%c3_1045, %c2_1046, %c0_1047] : memref<4x18x18xf32, #tpu.memory_space<vmem>>, vector<1x16x16xf32>
    %1571 = vector.shape_cast %1570 : vector<1x16x16xf32> to vector<16x16xf32>
    %1572 = vector.broadcast %1569 : f32 to vector<16x16xf32>
    %1573 = arith.mulf %1572, %1571 : vector<16x16xf32>
    %1574 = arith.addf %1568, %1573 : vector<16x16xf32>
    %c106_1048 = arith.constant 106 : index
    %1575 = memref.load %arg4[%c106_1048] : memref<144xf32, #tpu.memory_space<smem>>
    %c3_1049 = arith.constant 3 : index
    %c2_1050 = arith.constant 2 : index
    %c1_1051 = arith.constant 1 : index
    %1576 = vector.load %arg9[%c3_1049, %c2_1050, %c1_1051] : memref<4x18x18xf32, #tpu.memory_space<vmem>>, vector<1x16x16xf32>
    %1577 = vector.shape_cast %1576 : vector<1x16x16xf32> to vector<16x16xf32>
    %1578 = vector.broadcast %1575 : f32 to vector<16x16xf32>
    %1579 = arith.mulf %1578, %1577 : vector<16x16xf32>
    %1580 = arith.addf %1574, %1579 : vector<16x16xf32>
    %c107_1052 = arith.constant 107 : index
    %1581 = memref.load %arg4[%c107_1052] : memref<144xf32, #tpu.memory_space<smem>>
    %c3_1053 = arith.constant 3 : index
    %c2_1054 = arith.constant 2 : index
    %c2_1055 = arith.constant 2 : index
    %1582 = vector.load %arg9[%c3_1053, %c2_1054, %c2_1055] : memref<4x18x18xf32, #tpu.memory_space<vmem>>, vector<1x16x16xf32>
    %1583 = vector.shape_cast %1582 : vector<1x16x16xf32> to vector<16x16xf32>
    %1584 = vector.broadcast %1581 : f32 to vector<16x16xf32>
    %1585 = arith.mulf %1584, %1583 : vector<16x16xf32>
    %1586 = arith.addf %1580, %1585 : vector<16x16xf32>
    %c2_1056 = arith.constant 2 : index
    %1587 = memref.load %arg5[%c2_1056] : memref<4xf32, #tpu.memory_space<smem>>
    %1588 = vector.broadcast %1587 : f32 to vector<16x16xf32>
    %1589 = arith.mulf %1586, %1588 : vector<16x16xf32>
    %c2_1057 = arith.constant 2 : index
    %1590 = memref.load %arg6[%c2_1057] : memref<4xf32, #tpu.memory_space<smem>>
    %1591 = vector.broadcast %1590 : f32 to vector<16x16xf32>
    %1592 = arith.addf %1589, %1591 : vector<16x16xf32>
    %cst_1058 = arith.constant 0.000000e+00 : f32
    %1593 = vector.broadcast %cst_1058 : f32 to vector<16x16xf32>
    %1594 = arith.maximumf %1592, %1593 : vector<16x16xf32>
    %c0_1059 = arith.constant 0 : index
    %c2_1060 = arith.constant 2 : index
    %c0_1061 = arith.constant 0 : index
    %c0_1062 = arith.constant 0 : index
    %1595 = vector.load %arg8[%c0_1059, %c2_1060, %c0_1061, %c0_1062] : memref<1x4x16x16xf32, #tpu.memory_space<vmem>>, vector<1x1x16x16xf32>
    %1596 = vector.shape_cast %1595 : vector<1x1x16x16xf32> to vector<16x16xf32>
    %1597 = vector.shape_cast %1594 : vector<16x16xf32> to vector<1x1x16x16xf32>
    tpu.vector_store %arg8[%c0_1059, %c2_1060, %c0_1061, %c0_1062], %1597 {strides = array<i32>} : memref<1x4x16x16xf32, #tpu.memory_space<vmem>>, vector<1x1x16x16xf32>,
    %cst_1063 = arith.constant 0.000000e+00 : f32
    %1598 = vector.broadcast %cst_1063 : f32 to vector<16x16xf32>
    %c108_1064 = arith.constant 108 : index
    %1599 = memref.load %arg4[%c108_1064] : memref<144xf32, #tpu.memory_space<smem>>
    %c0_1065 = arith.constant 0 : index
    %c0_1066 = arith.constant 0 : index
    %c0_1067 = arith.constant 0 : index
    %1600 = vector.load %arg9[%c0_1065, %c0_1066, %c0_1067] : memref<4x18x18xf32, #tpu.memory_space<vmem>>, vector<1x16x16xf32>
    %1601 = vector.shape_cast %1600 : vector<1x16x16xf32> to vector<16x16xf32>
    %1602 = vector.broadcast %1599 : f32 to vector<16x16xf32>
    %1603 = arith.mulf %1602, %1601 : vector<16x16xf32>
    %1604 = arith.addf %1598, %1603 : vector<16x16xf32>
    %c109_1068 = arith.constant 109 : index
    %1605 = memref.load %arg4[%c109_1068] : memref<144xf32, #tpu.memory_space<smem>>
    %c0_1069 = arith.constant 0 : index
    %c0_1070 = arith.constant 0 : index
    %c1_1071 = arith.constant 1 : index
    %1606 = vector.load %arg9[%c0_1069, %c0_1070, %c1_1071] : memref<4x18x18xf32, #tpu.memory_space<vmem>>, vector<1x16x16xf32>
    %1607 = vector.shape_cast %1606 : vector<1x16x16xf32> to vector<16x16xf32>
    %1608 = vector.broadcast %1605 : f32 to vector<16x16xf32>
    %1609 = arith.mulf %1608, %1607 : vector<16x16xf32>
    %1610 = arith.addf %1604, %1609 : vector<16x16xf32>
    %c110_1072 = arith.constant 110 : index
    %1611 = memref.load %arg4[%c110_1072] : memref<144xf32, #tpu.memory_space<smem>>
    %c0_1073 = arith.constant 0 : index
    %c0_1074 = arith.constant 0 : index
    %c2_1075 = arith.constant 2 : index
    %1612 = vector.load %arg9[%c0_1073, %c0_1074, %c2_1075] : memref<4x18x18xf32, #tpu.memory_space<vmem>>, vector<1x16x16xf32>
    %1613 = vector.shape_cast %1612 : vector<1x16x16xf32> to vector<16x16xf32>
    %1614 = vector.broadcast %1611 : f32 to vector<16x16xf32>
    %1615 = arith.mulf %1614, %1613 : vector<16x16xf32>
    %1616 = arith.addf %1610, %1615 : vector<16x16xf32>
    %c111_1076 = arith.constant 111 : index
    %1617 = memref.load %arg4[%c111_1076] : memref<144xf32, #tpu.memory_space<smem>>
    %c0_1077 = arith.constant 0 : index
    %c1_1078 = arith.constant 1 : index
    %c0_1079 = arith.constant 0 : index
    %1618 = vector.load %arg9[%c0_1077, %c1_1078, %c0_1079] : memref<4x18x18xf32, #tpu.memory_space<vmem>>, vector<1x16x16xf32>
    %1619 = vector.shape_cast %1618 : vector<1x16x16xf32> to vector<16x16xf32>
    %1620 = vector.broadcast %1617 : f32 to vector<16x16xf32>
    %1621 = arith.mulf %1620, %1619 : vector<16x16xf32>
    %1622 = arith.addf %1616, %1621 : vector<16x16xf32>
    %c112_1080 = arith.constant 112 : index
    %1623 = memref.load %arg4[%c112_1080] : memref<144xf32, #tpu.memory_space<smem>>
    %c0_1081 = arith.constant 0 : index
    %c1_1082 = arith.constant 1 : index
    %c1_1083 = arith.constant 1 : index
    %1624 = vector.load %arg9[%c0_1081, %c1_1082, %c1_1083] : memref<4x18x18xf32, #tpu.memory_space<vmem>>, vector<1x16x16xf32>
    %1625 = vector.shape_cast %1624 : vector<1x16x16xf32> to vector<16x16xf32>
    %1626 = vector.broadcast %1623 : f32 to vector<16x16xf32>
    %1627 = arith.mulf %1626, %1625 : vector<16x16xf32>
    %1628 = arith.addf %1622, %1627 : vector<16x16xf32>
    %c113_1084 = arith.constant 113 : index
    %1629 = memref.load %arg4[%c113_1084] : memref<144xf32, #tpu.memory_space<smem>>
    %c0_1085 = arith.constant 0 : index
    %c1_1086 = arith.constant 1 : index
    %c2_1087 = arith.constant 2 : index
    %1630 = vector.load %arg9[%c0_1085, %c1_1086, %c2_1087] : memref<4x18x18xf32, #tpu.memory_space<vmem>>, vector<1x16x16xf32>
    %1631 = vector.shape_cast %1630 : vector<1x16x16xf32> to vector<16x16xf32>
    %1632 = vector.broadcast %1629 : f32 to vector<16x16xf32>
    %1633 = arith.mulf %1632, %1631 : vector<16x16xf32>
    %1634 = arith.addf %1628, %1633 : vector<16x16xf32>
    %c114_1088 = arith.constant 114 : index
    %1635 = memref.load %arg4[%c114_1088] : memref<144xf32, #tpu.memory_space<smem>>
    %c0_1089 = arith.constant 0 : index
    %c2_1090 = arith.constant 2 : index
    %c0_1091 = arith.constant 0 : index
    %1636 = vector.load %arg9[%c0_1089, %c2_1090, %c0_1091] : memref<4x18x18xf32, #tpu.memory_space<vmem>>, vector<1x16x16xf32>
    %1637 = vector.shape_cast %1636 : vector<1x16x16xf32> to vector<16x16xf32>
    %1638 = vector.broadcast %1635 : f32 to vector<16x16xf32>
    %1639 = arith.mulf %1638, %1637 : vector<16x16xf32>
    %1640 = arith.addf %1634, %1639 : vector<16x16xf32>
    %c115_1092 = arith.constant 115 : index
    %1641 = memref.load %arg4[%c115_1092] : memref<144xf32, #tpu.memory_space<smem>>
    %c0_1093 = arith.constant 0 : index
    %c2_1094 = arith.constant 2 : index
    %c1_1095 = arith.constant 1 : index
    %1642 = vector.load %arg9[%c0_1093, %c2_1094, %c1_1095] : memref<4x18x18xf32, #tpu.memory_space<vmem>>, vector<1x16x16xf32>
    %1643 = vector.shape_cast %1642 : vector<1x16x16xf32> to vector<16x16xf32>
    %1644 = vector.broadcast %1641 : f32 to vector<16x16xf32>
    %1645 = arith.mulf %1644, %1643 : vector<16x16xf32>
    %1646 = arith.addf %1640, %1645 : vector<16x16xf32>
    %c116_1096 = arith.constant 116 : index
    %1647 = memref.load %arg4[%c116_1096] : memref<144xf32, #tpu.memory_space<smem>>
    %c0_1097 = arith.constant 0 : index
    %c2_1098 = arith.constant 2 : index
    %c2_1099 = arith.constant 2 : index
    %1648 = vector.load %arg9[%c0_1097, %c2_1098, %c2_1099] : memref<4x18x18xf32, #tpu.memory_space<vmem>>, vector<1x16x16xf32>
    %1649 = vector.shape_cast %1648 : vector<1x16x16xf32> to vector<16x16xf32>
    %1650 = vector.broadcast %1647 : f32 to vector<16x16xf32>
    %1651 = arith.mulf %1650, %1649 : vector<16x16xf32>
    %1652 = arith.addf %1646, %1651 : vector<16x16xf32>
    %c117_1100 = arith.constant 117 : index
    %1653 = memref.load %arg4[%c117_1100] : memref<144xf32, #tpu.memory_space<smem>>
    %c1_1101 = arith.constant 1 : index
    %c0_1102 = arith.constant 0 : index
    %c0_1103 = arith.constant 0 : index
    %1654 = vector.load %arg9[%c1_1101, %c0_1102, %c0_1103] : memref<4x18x18xf32, #tpu.memory_space<vmem>>, vector<1x16x16xf32>
    %1655 = vector.shape_cast %1654 : vector<1x16x16xf32> to vector<16x16xf32>
    %1656 = vector.broadcast %1653 : f32 to vector<16x16xf32>
    %1657 = arith.mulf %1656, %1655 : vector<16x16xf32>
    %1658 = arith.addf %1652, %1657 : vector<16x16xf32>
    %c118_1104 = arith.constant 118 : index
    %1659 = memref.load %arg4[%c118_1104] : memref<144xf32, #tpu.memory_space<smem>>
    %c1_1105 = arith.constant 1 : index
    %c0_1106 = arith.constant 0 : index
    %c1_1107 = arith.constant 1 : index
    %1660 = vector.load %arg9[%c1_1105, %c0_1106, %c1_1107] : memref<4x18x18xf32, #tpu.memory_space<vmem>>, vector<1x16x16xf32>
    %1661 = vector.shape_cast %1660 : vector<1x16x16xf32> to vector<16x16xf32>
    %1662 = vector.broadcast %1659 : f32 to vector<16x16xf32>
    %1663 = arith.mulf %1662, %1661 : vector<16x16xf32>
    %1664 = arith.addf %1658, %1663 : vector<16x16xf32>
    %c119_1108 = arith.constant 119 : index
    %1665 = memref.load %arg4[%c119_1108] : memref<144xf32, #tpu.memory_space<smem>>
    %c1_1109 = arith.constant 1 : index
    %c0_1110 = arith.constant 0 : index
    %c2_1111 = arith.constant 2 : index
    %1666 = vector.load %arg9[%c1_1109, %c0_1110, %c2_1111] : memref<4x18x18xf32, #tpu.memory_space<vmem>>, vector<1x16x16xf32>
    %1667 = vector.shape_cast %1666 : vector<1x16x16xf32> to vector<16x16xf32>
    %1668 = vector.broadcast %1665 : f32 to vector<16x16xf32>
    %1669 = arith.mulf %1668, %1667 : vector<16x16xf32>
    %1670 = arith.addf %1664, %1669 : vector<16x16xf32>
    %c120_1112 = arith.constant 120 : index
    %1671 = memref.load %arg4[%c120_1112] : memref<144xf32, #tpu.memory_space<smem>>
    %c1_1113 = arith.constant 1 : index
    %c1_1114 = arith.constant 1 : index
    %c0_1115 = arith.constant 0 : index
    %1672 = vector.load %arg9[%c1_1113, %c1_1114, %c0_1115] : memref<4x18x18xf32, #tpu.memory_space<vmem>>, vector<1x16x16xf32>
    %1673 = vector.shape_cast %1672 : vector<1x16x16xf32> to vector<16x16xf32>
    %1674 = vector.broadcast %1671 : f32 to vector<16x16xf32>
    %1675 = arith.mulf %1674, %1673 : vector<16x16xf32>
    %1676 = arith.addf %1670, %1675 : vector<16x16xf32>
    %c121_1116 = arith.constant 121 : index
    %1677 = memref.load %arg4[%c121_1116] : memref<144xf32, #tpu.memory_space<smem>>
    %c1_1117 = arith.constant 1 : index
    %c1_1118 = arith.constant 1 : index
    %c1_1119 = arith.constant 1 : index
    %1678 = vector.load %arg9[%c1_1117, %c1_1118, %c1_1119] : memref<4x18x18xf32, #tpu.memory_space<vmem>>, vector<1x16x16xf32>
    %1679 = vector.shape_cast %1678 : vector<1x16x16xf32> to vector<16x16xf32>
    %1680 = vector.broadcast %1677 : f32 to vector<16x16xf32>
    %1681 = arith.mulf %1680, %1679 : vector<16x16xf32>
    %1682 = arith.addf %1676, %1681 : vector<16x16xf32>
    %c122_1120 = arith.constant 122 : index
    %1683 = memref.load %arg4[%c122_1120] : memref<144xf32, #tpu.memory_space<smem>>
    %c1_1121 = arith.constant 1 : index
    %c1_1122 = arith.constant 1 : index
    %c2_1123 = arith.constant 2 : index
    %1684 = vector.load %arg9[%c1_1121, %c1_1122, %c2_1123] : memref<4x18x18xf32, #tpu.memory_space<vmem>>, vector<1x16x16xf32>
    %1685 = vector.shape_cast %1684 : vector<1x16x16xf32> to vector<16x16xf32>
    %1686 = vector.broadcast %1683 : f32 to vector<16x16xf32>
    %1687 = arith.mulf %1686, %1685 : vector<16x16xf32>
    %1688 = arith.addf %1682, %1687 : vector<16x16xf32>
    %c123_1124 = arith.constant 123 : index
    %1689 = memref.load %arg4[%c123_1124] : memref<144xf32, #tpu.memory_space<smem>>
    %c1_1125 = arith.constant 1 : index
    %c2_1126 = arith.constant 2 : index
    %c0_1127 = arith.constant 0 : index
    %1690 = vector.load %arg9[%c1_1125, %c2_1126, %c0_1127] : memref<4x18x18xf32, #tpu.memory_space<vmem>>, vector<1x16x16xf32>
    %1691 = vector.shape_cast %1690 : vector<1x16x16xf32> to vector<16x16xf32>
    %1692 = vector.broadcast %1689 : f32 to vector<16x16xf32>
    %1693 = arith.mulf %1692, %1691 : vector<16x16xf32>
    %1694 = arith.addf %1688, %1693 : vector<16x16xf32>
    %c124_1128 = arith.constant 124 : index
    %1695 = memref.load %arg4[%c124_1128] : memref<144xf32, #tpu.memory_space<smem>>
    %c1_1129 = arith.constant 1 : index
    %c2_1130 = arith.constant 2 : index
    %c1_1131 = arith.constant 1 : index
    %1696 = vector.load %arg9[%c1_1129, %c2_1130, %c1_1131] : memref<4x18x18xf32, #tpu.memory_space<vmem>>, vector<1x16x16xf32>
    %1697 = vector.shape_cast %1696 : vector<1x16x16xf32> to vector<16x16xf32>
    %1698 = vector.broadcast %1695 : f32 to vector<16x16xf32>
    %1699 = arith.mulf %1698, %1697 : vector<16x16xf32>
    %1700 = arith.addf %1694, %1699 : vector<16x16xf32>
    %c125_1132 = arith.constant 125 : index
    %1701 = memref.load %arg4[%c125_1132] : memref<144xf32, #tpu.memory_space<smem>>
    %c1_1133 = arith.constant 1 : index
    %c2_1134 = arith.constant 2 : index
    %c2_1135 = arith.constant 2 : index
    %1702 = vector.load %arg9[%c1_1133, %c2_1134, %c2_1135] : memref<4x18x18xf32, #tpu.memory_space<vmem>>, vector<1x16x16xf32>
    %1703 = vector.shape_cast %1702 : vector<1x16x16xf32> to vector<16x16xf32>
    %1704 = vector.broadcast %1701 : f32 to vector<16x16xf32>
    %1705 = arith.mulf %1704, %1703 : vector<16x16xf32>
    %1706 = arith.addf %1700, %1705 : vector<16x16xf32>
    %c126_1136 = arith.constant 126 : index
    %1707 = memref.load %arg4[%c126_1136] : memref<144xf32, #tpu.memory_space<smem>>
    %c2_1137 = arith.constant 2 : index
    %c0_1138 = arith.constant 0 : index
    %c0_1139 = arith.constant 0 : index
    %1708 = vector.load %arg9[%c2_1137, %c0_1138, %c0_1139] : memref<4x18x18xf32, #tpu.memory_space<vmem>>, vector<1x16x16xf32>
    %1709 = vector.shape_cast %1708 : vector<1x16x16xf32> to vector<16x16xf32>
    %1710 = vector.broadcast %1707 : f32 to vector<16x16xf32>
    %1711 = arith.mulf %1710, %1709 : vector<16x16xf32>
    %1712 = arith.addf %1706, %1711 : vector<16x16xf32>
    %c127_1140 = arith.constant 127 : index
    %1713 = memref.load %arg4[%c127_1140] : memref<144xf32, #tpu.memory_space<smem>>
    %c2_1141 = arith.constant 2 : index
    %c0_1142 = arith.constant 0 : index
    %c1_1143 = arith.constant 1 : index
    %1714 = vector.load %arg9[%c2_1141, %c0_1142, %c1_1143] : memref<4x18x18xf32, #tpu.memory_space<vmem>>, vector<1x16x16xf32>
    %1715 = vector.shape_cast %1714 : vector<1x16x16xf32> to vector<16x16xf32>
    %1716 = vector.broadcast %1713 : f32 to vector<16x16xf32>
    %1717 = arith.mulf %1716, %1715 : vector<16x16xf32>
    %1718 = arith.addf %1712, %1717 : vector<16x16xf32>
    %c128_1144 = arith.constant 128 : index
    %1719 = memref.load %arg4[%c128_1144] : memref<144xf32, #tpu.memory_space<smem>>
    %c2_1145 = arith.constant 2 : index
    %c0_1146 = arith.constant 0 : index
    %c2_1147 = arith.constant 2 : index
    %1720 = vector.load %arg9[%c2_1145, %c0_1146, %c2_1147] : memref<4x18x18xf32, #tpu.memory_space<vmem>>, vector<1x16x16xf32>
    %1721 = vector.shape_cast %1720 : vector<1x16x16xf32> to vector<16x16xf32>
    %1722 = vector.broadcast %1719 : f32 to vector<16x16xf32>
    %1723 = arith.mulf %1722, %1721 : vector<16x16xf32>
    %1724 = arith.addf %1718, %1723 : vector<16x16xf32>
    %c129_1148 = arith.constant 129 : index
    %1725 = memref.load %arg4[%c129_1148] : memref<144xf32, #tpu.memory_space<smem>>
    %c2_1149 = arith.constant 2 : index
    %c1_1150 = arith.constant 1 : index
    %c0_1151 = arith.constant 0 : index
    %1726 = vector.load %arg9[%c2_1149, %c1_1150, %c0_1151] : memref<4x18x18xf32, #tpu.memory_space<vmem>>, vector<1x16x16xf32>
    %1727 = vector.shape_cast %1726 : vector<1x16x16xf32> to vector<16x16xf32>
    %1728 = vector.broadcast %1725 : f32 to vector<16x16xf32>
    %1729 = arith.mulf %1728, %1727 : vector<16x16xf32>
    %1730 = arith.addf %1724, %1729 : vector<16x16xf32>
    %c130_1152 = arith.constant 130 : index
    %1731 = memref.load %arg4[%c130_1152] : memref<144xf32, #tpu.memory_space<smem>>
    %c2_1153 = arith.constant 2 : index
    %c1_1154 = arith.constant 1 : index
    %c1_1155 = arith.constant 1 : index
    %1732 = vector.load %arg9[%c2_1153, %c1_1154, %c1_1155] : memref<4x18x18xf32, #tpu.memory_space<vmem>>, vector<1x16x16xf32>
    %1733 = vector.shape_cast %1732 : vector<1x16x16xf32> to vector<16x16xf32>
    %1734 = vector.broadcast %1731 : f32 to vector<16x16xf32>
    %1735 = arith.mulf %1734, %1733 : vector<16x16xf32>
    %1736 = arith.addf %1730, %1735 : vector<16x16xf32>
    %c131_1156 = arith.constant 131 : index
    %1737 = memref.load %arg4[%c131_1156] : memref<144xf32, #tpu.memory_space<smem>>
    %c2_1157 = arith.constant 2 : index
    %c1_1158 = arith.constant 1 : index
    %c2_1159 = arith.constant 2 : index
    %1738 = vector.load %arg9[%c2_1157, %c1_1158, %c2_1159] : memref<4x18x18xf32, #tpu.memory_space<vmem>>, vector<1x16x16xf32>
    %1739 = vector.shape_cast %1738 : vector<1x16x16xf32> to vector<16x16xf32>
    %1740 = vector.broadcast %1737 : f32 to vector<16x16xf32>
    %1741 = arith.mulf %1740, %1739 : vector<16x16xf32>
    %1742 = arith.addf %1736, %1741 : vector<16x16xf32>
    %c132_1160 = arith.constant 132 : index
    %1743 = memref.load %arg4[%c132_1160] : memref<144xf32, #tpu.memory_space<smem>>
    %c2_1161 = arith.constant 2 : index
    %c2_1162 = arith.constant 2 : index
    %c0_1163 = arith.constant 0 : index
    %1744 = vector.load %arg9[%c2_1161, %c2_1162, %c0_1163] : memref<4x18x18xf32, #tpu.memory_space<vmem>>, vector<1x16x16xf32>
    %1745 = vector.shape_cast %1744 : vector<1x16x16xf32> to vector<16x16xf32>
    %1746 = vector.broadcast %1743 : f32 to vector<16x16xf32>
    %1747 = arith.mulf %1746, %1745 : vector<16x16xf32>
    %1748 = arith.addf %1742, %1747 : vector<16x16xf32>
    %c133_1164 = arith.constant 133 : index
    %1749 = memref.load %arg4[%c133_1164] : memref<144xf32, #tpu.memory_space<smem>>
    %c2_1165 = arith.constant 2 : index
    %c2_1166 = arith.constant 2 : index
    %c1_1167 = arith.constant 1 : index
    %1750 = vector.load %arg9[%c2_1165, %c2_1166, %c1_1167] : memref<4x18x18xf32, #tpu.memory_space<vmem>>, vector<1x16x16xf32>
    %1751 = vector.shape_cast %1750 : vector<1x16x16xf32> to vector<16x16xf32>
    %1752 = vector.broadcast %1749 : f32 to vector<16x16xf32>
    %1753 = arith.mulf %1752, %1751 : vector<16x16xf32>
    %1754 = arith.addf %1748, %1753 : vector<16x16xf32>
    %c134_1168 = arith.constant 134 : index
    %1755 = memref.load %arg4[%c134_1168] : memref<144xf32, #tpu.memory_space<smem>>
    %c2_1169 = arith.constant 2 : index
    %c2_1170 = arith.constant 2 : index
    %c2_1171 = arith.constant 2 : index
    %1756 = vector.load %arg9[%c2_1169, %c2_1170, %c2_1171] : memref<4x18x18xf32, #tpu.memory_space<vmem>>, vector<1x16x16xf32>
    %1757 = vector.shape_cast %1756 : vector<1x16x16xf32> to vector<16x16xf32>
    %1758 = vector.broadcast %1755 : f32 to vector<16x16xf32>
    %1759 = arith.mulf %1758, %1757 : vector<16x16xf32>
    %1760 = arith.addf %1754, %1759 : vector<16x16xf32>
    %c135_1172 = arith.constant 135 : index
    %1761 = memref.load %arg4[%c135_1172] : memref<144xf32, #tpu.memory_space<smem>>
    %c3_1173 = arith.constant 3 : index
    %c0_1174 = arith.constant 0 : index
    %c0_1175 = arith.constant 0 : index
    %1762 = vector.load %arg9[%c3_1173, %c0_1174, %c0_1175] : memref<4x18x18xf32, #tpu.memory_space<vmem>>, vector<1x16x16xf32>
    %1763 = vector.shape_cast %1762 : vector<1x16x16xf32> to vector<16x16xf32>
    %1764 = vector.broadcast %1761 : f32 to vector<16x16xf32>
    %1765 = arith.mulf %1764, %1763 : vector<16x16xf32>
    %1766 = arith.addf %1760, %1765 : vector<16x16xf32>
    %c136_1176 = arith.constant 136 : index
    %1767 = memref.load %arg4[%c136_1176] : memref<144xf32, #tpu.memory_space<smem>>
    %c3_1177 = arith.constant 3 : index
    %c0_1178 = arith.constant 0 : index
    %c1_1179 = arith.constant 1 : index
    %1768 = vector.load %arg9[%c3_1177, %c0_1178, %c1_1179] : memref<4x18x18xf32, #tpu.memory_space<vmem>>, vector<1x16x16xf32>
    %1769 = vector.shape_cast %1768 : vector<1x16x16xf32> to vector<16x16xf32>
    %1770 = vector.broadcast %1767 : f32 to vector<16x16xf32>
    %1771 = arith.mulf %1770, %1769 : vector<16x16xf32>
    %1772 = arith.addf %1766, %1771 : vector<16x16xf32>
    %c137_1180 = arith.constant 137 : index
    %1773 = memref.load %arg4[%c137_1180] : memref<144xf32, #tpu.memory_space<smem>>
    %c3_1181 = arith.constant 3 : index
    %c0_1182 = arith.constant 0 : index
    %c2_1183 = arith.constant 2 : index
    %1774 = vector.load %arg9[%c3_1181, %c0_1182, %c2_1183] : memref<4x18x18xf32, #tpu.memory_space<vmem>>, vector<1x16x16xf32>
    %1775 = vector.shape_cast %1774 : vector<1x16x16xf32> to vector<16x16xf32>
    %1776 = vector.broadcast %1773 : f32 to vector<16x16xf32>
    %1777 = arith.mulf %1776, %1775 : vector<16x16xf32>
    %1778 = arith.addf %1772, %1777 : vector<16x16xf32>
    %c138_1184 = arith.constant 138 : index
    %1779 = memref.load %arg4[%c138_1184] : memref<144xf32, #tpu.memory_space<smem>>
    %c3_1185 = arith.constant 3 : index
    %c1_1186 = arith.constant 1 : index
    %c0_1187 = arith.constant 0 : index
    %1780 = vector.load %arg9[%c3_1185, %c1_1186, %c0_1187] : memref<4x18x18xf32, #tpu.memory_space<vmem>>, vector<1x16x16xf32>
    %1781 = vector.shape_cast %1780 : vector<1x16x16xf32> to vector<16x16xf32>
    %1782 = vector.broadcast %1779 : f32 to vector<16x16xf32>
    %1783 = arith.mulf %1782, %1781 : vector<16x16xf32>
    %1784 = arith.addf %1778, %1783 : vector<16x16xf32>
    %c139_1188 = arith.constant 139 : index
    %1785 = memref.load %arg4[%c139_1188] : memref<144xf32, #tpu.memory_space<smem>>
    %c3_1189 = arith.constant 3 : index
    %c1_1190 = arith.constant 1 : index
    %c1_1191 = arith.constant 1 : index
    %1786 = vector.load %arg9[%c3_1189, %c1_1190, %c1_1191] : memref<4x18x18xf32, #tpu.memory_space<vmem>>, vector<1x16x16xf32>
    %1787 = vector.shape_cast %1786 : vector<1x16x16xf32> to vector<16x16xf32>
    %1788 = vector.broadcast %1785 : f32 to vector<16x16xf32>
    %1789 = arith.mulf %1788, %1787 : vector<16x16xf32>
    %1790 = arith.addf %1784, %1789 : vector<16x16xf32>
    %c140_1192 = arith.constant 140 : index
    %1791 = memref.load %arg4[%c140_1192] : memref<144xf32, #tpu.memory_space<smem>>
    %c3_1193 = arith.constant 3 : index
    %c1_1194 = arith.constant 1 : index
    %c2_1195 = arith.constant 2 : index
    %1792 = vector.load %arg9[%c3_1193, %c1_1194, %c2_1195] : memref<4x18x18xf32, #tpu.memory_space<vmem>>, vector<1x16x16xf32>
    %1793 = vector.shape_cast %1792 : vector<1x16x16xf32> to vector<16x16xf32>
    %1794 = vector.broadcast %1791 : f32 to vector<16x16xf32>
    %1795 = arith.mulf %1794, %1793 : vector<16x16xf32>
    %1796 = arith.addf %1790, %1795 : vector<16x16xf32>
    %c141_1196 = arith.constant 141 : index
    %1797 = memref.load %arg4[%c141_1196] : memref<144xf32, #tpu.memory_space<smem>>
    %c3_1197 = arith.constant 3 : index
    %c2_1198 = arith.constant 2 : index
    %c0_1199 = arith.constant 0 : index
    %1798 = vector.load %arg9[%c3_1197, %c2_1198, %c0_1199] : memref<4x18x18xf32, #tpu.memory_space<vmem>>, vector<1x16x16xf32>
    %1799 = vector.shape_cast %1798 : vector<1x16x16xf32> to vector<16x16xf32>
    %1800 = vector.broadcast %1797 : f32 to vector<16x16xf32>
    %1801 = arith.mulf %1800, %1799 : vector<16x16xf32>
    %1802 = arith.addf %1796, %1801 : vector<16x16xf32>
    %c142_1200 = arith.constant 142 : index
    %1803 = memref.load %arg4[%c142_1200] : memref<144xf32, #tpu.memory_space<smem>>
    %c3_1201 = arith.constant 3 : index
    %c2_1202 = arith.constant 2 : index
    %c1_1203 = arith.constant 1 : index
    %1804 = vector.load %arg9[%c3_1201, %c2_1202, %c1_1203] : memref<4x18x18xf32, #tpu.memory_space<vmem>>, vector<1x16x16xf32>
    %1805 = vector.shape_cast %1804 : vector<1x16x16xf32> to vector<16x16xf32>
    %1806 = vector.broadcast %1803 : f32 to vector<16x16xf32>
    %1807 = arith.mulf %1806, %1805 : vector<16x16xf32>
    %1808 = arith.addf %1802, %1807 : vector<16x16xf32>
    %c143_1204 = arith.constant 143 : index
    %1809 = memref.load %arg4[%c143_1204] : memref<144xf32, #tpu.memory_space<smem>>
    %c3_1205 = arith.constant 3 : index
    %c2_1206 = arith.constant 2 : index
    %c2_1207 = arith.constant 2 : index
    %1810 = vector.load %arg9[%c3_1205, %c2_1206, %c2_1207] : memref<4x18x18xf32, #tpu.memory_space<vmem>>, vector<1x16x16xf32>
    %1811 = vector.shape_cast %1810 : vector<1x16x16xf32> to vector<16x16xf32>
    %1812 = vector.broadcast %1809 : f32 to vector<16x16xf32>
    %1813 = arith.mulf %1812, %1811 : vector<16x16xf32>
    %1814 = arith.addf %1808, %1813 : vector<16x16xf32>
    %c3_1208 = arith.constant 3 : index
    %1815 = memref.load %arg5[%c3_1208] : memref<4xf32, #tpu.memory_space<smem>>
    %1816 = vector.broadcast %1815 : f32 to vector<16x16xf32>
    %1817 = arith.mulf %1814, %1816 : vector<16x16xf32>
    %c3_1209 = arith.constant 3 : index
    %1818 = memref.load %arg6[%c3_1209] : memref<4xf32, #tpu.memory_space<smem>>
    %1819 = vector.broadcast %1818 : f32 to vector<16x16xf32>
    %1820 = arith.addf %1817, %1819 : vector<16x16xf32>
    %cst_1210 = arith.constant 0.000000e+00 : f32
    %1821 = vector.broadcast %cst_1210 : f32 to vector<16x16xf32>
    %1822 = arith.maximumf %1820, %1821 : vector<16x16xf32>
    %c0_1211 = arith.constant 0 : index
    %c3_1212 = arith.constant 3 : index
    %c0_1213 = arith.constant 0 : index
    %c0_1214 = arith.constant 0 : index
    %1823 = vector.load %arg8[%c0_1211, %c3_1212, %c0_1213, %c0_1214] : memref<1x4x16x16xf32, #tpu.memory_space<vmem>>, vector<1x1x16x16xf32>
    %1824 = vector.shape_cast %1823 : vector<1x1x16x16xf32> to vector<16x16xf32>
    %1825 = vector.shape_cast %1822 : vector<16x16xf32> to vector<1x1x16x16xf32>
    tpu.vector_store %arg8[%c0_1211, %c3_1212, %c0_1213, %c0_1214], %1825 {strides = array<i32>} : memref<1x4x16x16xf32, #tpu.memory_space<vmem>>, vector<1x1x16x16xf32>,
    return
  }
  func.func @transform_0(%arg0: i32) -> i32 {
    %c0_i32 = arith.constant 0 : i32
    %c0_i32_0 = arith.constant 0 : i32
    return %c0_i32 : i32
  }
  func.func @transform_1(%arg0: i32) -> i32 {
    %c0_i32 = arith.constant 0 : i32
    %c0_i32_0 = arith.constant 0 : i32
    return %c0_i32 : i32
  }
  func.func @transform_2(%arg0: i32) -> i32 {
    %c0_i32 = arith.constant 0 : i32
    %c0_i32_0 = arith.constant 0 : i32
    return %c0_i32 : i32
  }
  func.func @transform_3(%arg0: i32) -> i32 {
    %c0_i32 = arith.constant 0 : i32
    %c0_i32_0 = arith.constant 0 : i32
    return %c0_i32 : i32
  }
  func.func @transform_4(%arg0: i32) -> i32 {
    %c0_i32 = arith.constant 0 : i32
    %c0_i32_0 = arith.constant 0 : i32
    return %c0_i32 : i32
  }
  func.func @transform_5(%arg0: i32) -> i32 {
    %c0_i32 = arith.constant 0 : i32
    %c0_i32_0 = arith.constant 0 : i32
    return %c0_i32 : i32
  }
  func.func @transform_6(%arg0: i32) -> (i32, i32, i32, i32) {
    %c0_i32 = arith.constant 0 : i32
    %c0_i32_0 = arith.constant 0 : i32
    %c0_i32_1 = arith.constant 0 : i32
    %c0_i32_2 = arith.constant 0 : i32
    return %arg0, %c0_i32, %c0_i32_0, %c0_i32_1 : i32, i32, i32, i32
  }
  func.func @transform_7(%arg0: i32) -> (i32, i32, i32, i32) {
    %c0_i32 = arith.constant 0 : i32
    %c0_i32_0 = arith.constant 0 : i32
    %c0_i32_1 = arith.constant 0 : i32
    %c0_i32_2 = arith.constant 0 : i32
    return %arg0, %c0_i32, %c0_i32_0, %c0_i32_1 : i32, i32, i32, i32
  }
}

</mosaic_0001>

<llo_original>
// kernel: tpu_custom_call.1
$region0: #{tpu_custom_call.1}
  #allocation0 [shape = 'u32[]', space=smem, size = 0x4, offset = 0x4, fixed_abs, tag = 'smem constant byte address 0x4 - core index']
  #allocation1 [shape = 'u32[72,128]{1,0:T(1,128)}', space=vmem, size = 0x9000, scoped, tag = 'internal scratch']
  #allocation2 [shape = 'f32[4,18,18]{2,1,0:T(8,128)}', space=vmem, size = 0xc000, scoped, tag = 'scratch operand']
  %s0 = inlined_call_operand.vmem [shape: f32[144], index: 0, kind: input, shape index: {}]
  %s1 = inlined_call_operand.vmem [shape: f32[4], index: 1, kind: input, shape index: {}]
  %s2 = inlined_call_operand.vmem [shape: f32[4], index: 2, kind: input, shape index: {}]
  %s3 = inlined_call_operand.vmem [shape: f32[144], index: 3, kind: input, shape index: {}]
  %s4 = inlined_call_operand.vmem [shape: f32[4], index: 4, kind: input, shape index: {}]
  %s5 = inlined_call_operand.vmem [shape: f32[4], index: 5, kind: input, shape index: {}]
  %s6 = inlined_call_operand.vmem [shape: f32[2,4,18,18], index: 6, kind: input, shape index: {}]
  %s7 = inlined_call_operand.hbm [shape: f32[2,4,16,16], index: 7, kind: output, shape index: {}]
  %s8 = sld [smem:[#allocation0]]
  $region85: #{tpu_custom_call.1} parent=0
    _
  %s10 = ssub.s32 1, %s8
  %s11 = scalar_select 0, %s10, %s8
  $region1: #{tpu_custom_call.1} parent=0
    #allocation3 [shape = 'u8[1024]{0}', space=smem, size = 0x400, scoped, tag = 'input window, operand 0, single buffered']
    #allocation4 [shape = 's32[2]{0}', space=sflag, size = 0x8, scoped, tag = 'scoped memory for tpu_custom_call.1']
    #allocation5 [shape = 's32[2]{0}', space=sflag, size = 0x8, scoped, tag = 'scoped memory for tpu_custom_call.1']
    #allocation6 [shape = 'u8[512]{0}', space=smem, size = 0x200, scoped, tag = 'input window, operand 1, single buffered']
    #allocation7 [shape = 's32[1]{0}', space=sflag, size = 0x4, scoped, tag = 'scoped memory for tpu_custom_call.1']
    #allocation8 [shape = 'u8[512]{0}', space=smem, size = 0x200, scoped, tag = 'input window, operand 2, single buffered']
    #allocation9 [shape = 'u8[1024]{0}', space=smem, size = 0x400, scoped, tag = 'input window, operand 3, single buffered']
    #allocation10 [shape = 's32[1]{0}', space=sflag, size = 0x4, scoped, tag = 'scoped memory for tpu_custom_call.1']
    #allocation11 [shape = 'u8[512]{0}', space=smem, size = 0x200, scoped, tag = 'input window, operand 4, single buffered']
    #allocation12 [shape = 'u8[512]{0}', space=smem, size = 0x200, scoped, tag = 'input window, operand 5, single buffered']
    #allocation13 [shape = 's32[1]{0}', space=sflag, size = 0x4, scoped, tag = 'scoped memory for tpu_custom_call.1']
    #allocation14 [shape = 'u8[65536]{0}', space=vmem, size = 0x10000, scoped, tag = 'output window, operand 0']
    %12 = vsyncpa [#allocation5], 0
    %13 = vsyncpa [#allocation7], 0
    %14 = vsyncpa [#allocation10], 0
    %15 = vsyncpa [#allocation13], 0
    %16 = vsyncpa [#allocation4], 0
    %s17 = scalar_lea.sflag [#allocation4], 1
    %18 = vsyncpa %s17, 0
    loop: start=0, step=1, limit=4
    $region2: #{tpu_custom_call.1} parent=1 // loop_pre_header
      _
    $region3: #{tpu_custom_call.1} parent=1 // loop_header
      %s20 = sphi 0, %s24
      %p21 = scmp.ge.s32.totalorder %s20, 4
      %s28 = sphi 0, %s28
      %s30 = sphi 0, %s28
      %s31 = sphi 0, %s30
      %s45 = sphi 0, %s31
      %s49 = sphi 0, %s49
      %s51 = sphi 0, %s49
      %s52 = sphi 0, %s51
      %s66 = sphi 0, %s52
      %s70 = sphi 0, %s70
      %s72 = sphi 0, %s70
      %s73 = sphi 0, %s72
      %s87 = sphi 0, %s73
      %s91 = sphi 0, %s91
      %s93 = sphi 0, %s91
      %s94 = sphi 0, %s93
      %s108 = sphi 0, %s94
      %s112 = sphi 0, %s112
      %s114 = sphi 0, %s112
      %s115 = sphi 0, %s114
      %s129 = sphi 0, %s115
      %s133 = sphi 0, %s133
      %s135 = sphi 0, %s133
      %s136 = sphi 0, %s135
      %s150 = sphi 0, %s136
      %s156 = sphi 0, %s158
      %s159 = sphi 0, %s156
      %s160 = sphi 0, %s159
      %s176 = sphi 0, %s160
      %s182 = sphi 0, %s184
      %s185 = sphi 0, %s182
      %s186 = sphi 0, %s185
      %s202 = sphi 0, %s186
    $region4: #{tpu_custom_call.1} parent=1 // loop_header_branch
      %23 = sbr.rel (%p21) target = $region8
    $region5: #{tpu_custom_call.1} parent=1 // loop_body
      %s25 = ssub.s32 %s20, 1
      %s26 = ssub.s32 %s20, 2
      %s27 = sadd.s32 %s20, 1
      %s29 = sadd.s32 %s28, 1
      %p32 = scmp.eq.s32.totalorder %s20, 1
      %p33 = scmp.ne.s32.totalorder %s28, %s30
      %p34 = scmp.eq.s32.totalorder %s20, 0
      %p35 = por %p33, %p34
      %p36 = scmp.ne.s32.totalorder %s28, %s30
      %p37 = scmp.eq.s32.totalorder %s25, 1
      %p38 = por %p36, %p37
      %p39 = scmp.ne.s32.totalorder %s30, %s31
      %p40 = scmp.eq.s32.totalorder %s25, 0
      %p41 = por %p39, %p40
      %p42 = scmp.ne.s32.totalorder %s30, %s31
      %p43 = scmp.eq.s32.totalorder %s26, 1
      %p44 = por %p42, %p43
      %p46 = scmp.ne.s32.totalorder %s31, %s45
      %p47 = scmp.eq.s32.totalorder %s26, 0
      %p48 = por %p46, %p47
      %s50 = sadd.s32 %s49, 1
      %p53 = scmp.eq.s32.totalorder %s20, 1
      %p54 = scmp.ne.s32.totalorder %s49, %s51
      %p55 = scmp.eq.s32.totalorder %s20, 0
      %p56 = por %p54, %p55
      %p57 = scmp.ne.s32.totalorder %s49, %s51
      %p58 = scmp.eq.s32.totalorder %s25, 1
      %p59 = por %p57, %p58
      %p60 = scmp.ne.s32.totalorder %s51, %s52
      %p61 = scmp.eq.s32.totalorder %s25, 0
      %p62 = por %p60, %p61
      %p63 = scmp.ne.s32.totalorder %s51, %s52
      %p64 = scmp.eq.s32.totalorder %s26, 1
      %p65 = por %p63, %p64
      %p67 = scmp.ne.s32.totalorder %s52, %s66
      %p68 = scmp.eq.s32.totalorder %s26, 0
      %p69 = por %p67, %p68
      %s71 = sadd.s32 %s70, 1
      %p74 = scmp.eq.s32.totalorder %s20, 1
      %p75 = scmp.ne.s32.totalorder %s70, %s72
      %p76 = scmp.eq.s32.totalorder %s20, 0
      %p77 = por %p75, %p76
      %p78 = scmp.ne.s32.totalorder %s70, %s72
      %p79 = scmp.eq.s32.totalorder %s25, 1
      %p80 = por %p78, %p79
      %p81 = scmp.ne.s32.totalorder %s72, %s73
      %p82 = scmp.eq.s32.totalorder %s25, 0
      %p83 = por %p81, %p82
      %p84 = scmp.ne.s32.totalorder %s72, %s73
      %p85 = scmp.eq.s32.totalorder %s26, 1
      %p86 = por %p84, %p85
      %p88 = scmp.ne.s32.totalorder %s73, %s87
      %p89 = scmp.eq.s32.totalorder %s26, 0
      %p90 = por %p88, %p89
      %s92 = sadd.s32 %s91, 1
      %p95 = scmp.eq.s32.totalorder %s20, 1
      %p96 = scmp.ne.s32.totalorder %s91, %s93
      %p97 = scmp.eq.s32.totalorder %s20, 0
      %p98 = por %p96, %p97
      %p99 = scmp.ne.s32.totalorder %s91, %s93
      %p100 = scmp.eq.s32.totalorder %s25, 1
      %p101 = por %p99, %p100
      %p102 = scmp.ne.s32.totalorder %s93, %s94
      %p103 = scmp.eq.s32.totalorder %s25, 0
      %p104 = por %p102, %p103
      %p105 = scmp.ne.s32.totalorder %s93, %s94
      %p106 = scmp.eq.s32.totalorder %s26, 1
      %p107 = por %p105, %p106
      %p109 = scmp.ne.s32.totalorder %s94, %s108
      %p110 = scmp.eq.s32.totalorder %s26, 0
      %p111 = por %p109, %p110
      %s113 = sadd.s32 %s112, 1
      %p116 = scmp.eq.s32.totalorder %s20, 1
      %p117 = scmp.ne.s32.totalorder %s112, %s114
      %p118 = scmp.eq.s32.totalorder %s20, 0
      %p119 = por %p117, %p118
      %p120 = scmp.ne.s32.totalorder %s112, %s114
      %p121 = scmp.eq.s32.totalorder %s25, 1
      %p122 = por %p120, %p121
      %p123 = scmp.ne.s32.totalorder %s114, %s115
      %p124 = scmp.eq.s32.totalorder %s25, 0
      %p125 = por %p123, %p124
      %p126 = scmp.ne.s32.totalorder %s114, %s115
      %p127 = scmp.eq.s32.totalorder %s26, 1
      %p128 = por %p126, %p127
      %p130 = scmp.ne.s32.totalorder %s115, %s129
      %p131 = scmp.eq.s32.totalorder %s26, 0
      %p132 = por %p130, %p131
      %s134 = sadd.s32 %s133, 1
      %p137 = scmp.eq.s32.totalorder %s20, 1
      %p138 = scmp.ne.s32.totalorder %s133, %s135
      %p139 = scmp.eq.s32.totalorder %s20, 0
      %p140 = por %p138, %p139
      %p141 = scmp.ne.s32.totalorder %s133, %s135
      %p142 = scmp.eq.s32.totalorder %s25, 1
      %p143 = por %p141, %p142
      %p144 = scmp.ne.s32.totalorder %s135, %s136
      %p145 = scmp.eq.s32.totalorder %s25, 0
      %p146 = por %p144, %p145
      %p147 = scmp.ne.s32.totalorder %s135, %s136
      %p148 = scmp.eq.s32.totalorder %s26, 1
      %p149 = por %p147, %p148
      %p151 = scmp.ne.s32.totalorder %s136, %s150
      %p152 = scmp.eq.s32.totalorder %s26, 0
      %p153 = por %p151, %p152
      %s154 = ssub.s32 %s20, %s27
      %p155 = scmp.eq.s32.totalorder %s154, 0
      %s157 = sadd.s32 %s156, 1
      %s158 = scalar_select %p155, %s156, %s157
      %p161 = pneg %p155
      %p162 = scmp.eq.s32.totalorder %s20, 1
      %p163 = por %p161, %p162
      %p164 = scmp.ne.s32.totalorder %s156, %s159
      %p165 = scmp.eq.s32.totalorder %s20, 0
      %p166 = por %p164, %p165
      %p167 = scmp.ne.s32.totalorder %s156, %s159
      %p168 = scmp.eq.s32.totalorder %s25, 1
      %p169 = por %p167, %p168
      %p170 = scmp.ne.s32.totalorder %s159, %s160
      %p171 = scmp.eq.s32.totalorder %s25, 0
      %p172 = por %p170, %p171
      %p173 = scmp.ne.s32.totalorder %s159, %s160
      %p174 = scmp.eq.s32.totalorder %s26, 1
      %p175 = por %p173, %p174
      %p177 = scmp.ne.s32.totalorder %s160, %s176
      %p178 = scmp.eq.s32.totalorder %s26, 0
      %p179 = por %p177, %p178
      %s180 = ssub.s32 %s20, %s27
      %p181 = scmp.eq.s32.totalorder %s180, 0
      %s183 = sadd.s32 %s182, 1
      %s184 = scalar_select %p181, %s182, %s183
      %p187 = pneg %p181
      %p188 = scmp.eq.s32.totalorder %s20, 1
      %p189 = por %p187, %p188
      %p190 = scmp.ne.s32.totalorder %s182, %s185
      %p191 = scmp.eq.s32.totalorder %s20, 0
      %p192 = por %p190, %p191
      %p193 = scmp.ne.s32.totalorder %s182, %s185
      %p194 = scmp.eq.s32.totalorder %s25, 1
      %p195 = por %p193, %p194
      %p196 = scmp.ne.s32.totalorder %s185, %s186
      %p197 = scmp.eq.s32.totalorder %s25, 0
      %p198 = por %p196, %p197
      %p199 = scmp.ne.s32.totalorder %s185, %s186
      %p200 = scmp.eq.s32.totalorder %s26, 1
      %p201 = por %p199, %p200
      %p203 = scmp.ne.s32.totalorder %s186, %s202
      %p204 = scmp.eq.s32.totalorder %s26, 0
      %p205 = por %p203, %p204
      %p206 = scmp.le.s32.totalorder 1, %s20
      %p207 = scmp.lt.s32.totalorder %s20, 3
      %p208 = pnand %p206, %p207
      %p209 = pneg %p208
      // Predicated region
      $region9: #{tpu_custom_call.1} parent=5 // pred_check
        _
      $region10: #{tpu_custom_call.1} parent=5 // pred_check_branch
        %211 = sbr.rel (%p208) target = $region12
      $region11: #{tpu_custom_call.1} parent=5 // pred_region
        %s212 = ssub.s32 %s20, 1
        // Predicated region
        $region13: #{tpu_custom_call.1} parent=11 // pred_check
          %p213 = pneg %p41
        $region14: #{tpu_custom_call.1} parent=11 // pred_check_branch
          %215 = sbr.rel (%p213) target = $region16
        $region15: #{tpu_custom_call.1} parent=11 // pred_region
          %217 = vsyncadd [#allocation5], 0
          %s219 = sshll.u32 %s0, 4
          %s220 = int_to_ptr.vmem [resolvable:$true] %s219
          %222 = dma.vmem_to_smem %s220, 32, [#allocation3], [#allocation5]
        $region16: #{tpu_custom_call.1} parent=11 // pred_fallthru
          _
        // Predicated region
        $region17: #{tpu_custom_call.1} parent=11 // pred_check
          %p223 = pneg %p62
        $region18: #{tpu_custom_call.1} parent=11 // pred_check_branch
          %225 = sbr.rel (%p223) target = $region20
        $region19: #{tpu_custom_call.1} parent=11 // pred_region
          %227 = vsyncadd [#allocation7], 0
          %s229 = sshll.u32 %s1, 4
          %s230 = int_to_ptr.vmem [resolvable:$true] %s229
          %232 = dma.vmem_to_smem %s230, 16, [#allocation6], [#allocation7]
        $region20: #{tpu_custom_call.1} parent=11 // pred_fallthru
          _
        // Predicated region
        $region21: #{tpu_custom_call.1} parent=11 // pred_check
          %p233 = pneg %p83
        $region22: #{tpu_custom_call.1} parent=11 // pred_check_branch
          %235 = sbr.rel (%p233) target = $region24
        $region23: #{tpu_custom_call.1} parent=11 // pred_region
          %237 = vsyncadd [#allocation7], 0
          %s239 = sshll.u32 %s2, 4
          %s240 = int_to_ptr.vmem [resolvable:$true] %s239
          %242 = dma.vmem_to_smem %s240, 16, [#allocation8], [#allocation7]
        $region24: #{tpu_custom_call.1} parent=11 // pred_fallthru
          _
        // Predicated region
        $region25: #{tpu_custom_call.1} parent=11 // pred_check
          %p243 = pneg %p104
        $region26: #{tpu_custom_call.1} parent=11 // pred_check_branch
          %245 = sbr.rel (%p243) target = $region28
        $region27: #{tpu_custom_call.1} parent=11 // pred_region
          %247 = vsyncadd [#allocation10], 0
          %s249 = sshll.u32 %s3, 4
          %s250 = int_to_ptr.vmem [resolvable:$true] %s249
          %252 = dma.vmem_to_smem %s250, 32, [#allocation9], [#allocation10]
        $region28: #{tpu_custom_call.1} parent=11 // pred_fallthru
          _
        // Predicated region
        $region29: #{tpu_custom_call.1} parent=11 // pred_check
          %p253 = pneg %p125
        $region30: #{tpu_custom_call.1} parent=11 // pred_check_branch
          %255 = sbr.rel (%p253) target = $region32
        $region31: #{tpu_custom_call.1} parent=11 // pred_region
          %257 = vsyncadd [#allocation10], 0
          %s259 = sshll.u32 %s4, 4
          %s260 = int_to_ptr.vmem [resolvable:$true] %s259
          %262 = dma.vmem_to_smem %s260, 16, [#allocation11], [#allocation10]
        $region32: #{tpu_custom_call.1} parent=11 // pred_fallthru
          _
        // Predicated region
        $region33: #{tpu_custom_call.1} parent=11 // pred_check
          %p263 = pneg %p146
        $region34: #{tpu_custom_call.1} parent=11 // pred_check_branch
          %265 = sbr.rel (%p263) target = $region36
        $region35: #{tpu_custom_call.1} parent=11 // pred_region
          %267 = vsyncadd [#allocation13], 0
          %s269 = sshll.u32 %s5, 4
          %s270 = int_to_ptr.vmem [resolvable:$true] %s269
          %272 = dma.vmem_to_smem %s270, 16, [#allocation12], [#allocation13]
        $region36: #{tpu_custom_call.1} parent=11 // pred_fallthru
          _
      $region12: #{tpu_custom_call.1} parent=5 // pred_fallthru
        _
      %p273 = scmp.lt.s32.totalorder %s20, 2
      // Predicated region
      $region37: #{tpu_custom_call.1} parent=5 // pred_check
        %p274 = pneg %p273
      $region38: #{tpu_custom_call.1} parent=5 // pred_check_branch
        %276 = sbr.rel (%p274) target = $region40
      $region39: #{tpu_custom_call.1} parent=5 // pred_region
        // Predicated region
        $region41: #{tpu_custom_call.1} parent=39 // pred_check
          %p277 = pneg %p166
        $region42: #{tpu_custom_call.1} parent=39 // pred_check_branch
          %279 = sbr.rel (%p277) target = $region44
        $region43: #{tpu_custom_call.1} parent=39 // pred_region
          %p280 = scmp.lt.s32.totalorder %s20, 1
          %s281 = scalar_select %p280, %s20, 1
          %s282 = smul.addr %s281, 12
          %s283 = smul.addr %s282, 8
          %s284 = scalar_lea.vmem %s6, %s283
        $region44: #{tpu_custom_call.1} parent=39 // pred_fallthru
          _
      $region40: #{tpu_custom_call.1} parent=5 // pred_fallthru
        _
      %p285 = scmp.le.s32.totalorder 1, %s20
      %p286 = scmp.lt.s32.totalorder %s20, 3
      %p287 = pnand %p285, %p286
      %p288 = pneg %p287
      // Predicated region
      $region45: #{tpu_custom_call.1} parent=5 // pred_check
        _
      $region46: #{tpu_custom_call.1} parent=5 // pred_check_branch
        %290 = sbr.rel (%p287) target = $region48
      $region47: #{tpu_custom_call.1} parent=5 // pred_region
        %s291 = ssub.s32 %s20, 1
        // Predicated region
        $region49: #{tpu_custom_call.1} parent=47 // pred_check
          %p292 = pneg %p41
        $region50: #{tpu_custom_call.1} parent=47 // pred_check_branch
          %294 = sbr.rel (%p292) target = $region52
        $region51: #{tpu_custom_call.1} parent=47 // pred_region
          %296 = dma.done [#allocation5], 32
        $region52: #{tpu_custom_call.1} parent=47 // pred_fallthru
          _
        // Predicated region
        $region53: #{tpu_custom_call.1} parent=47 // pred_check
          %p297 = pneg %p62
        $region54: #{tpu_custom_call.1} parent=47 // pred_check_branch
          %299 = sbr.rel (%p297) target = $region56
        $region55: #{tpu_custom_call.1} parent=47 // pred_region
          %301 = dma.done [#allocation7], 16
        $region56: #{tpu_custom_call.1} parent=47 // pred_fallthru
          _
        // Predicated region
        $region57: #{tpu_custom_call.1} parent=47 // pred_check
          %p302 = pneg %p83
        $region58: #{tpu_custom_call.1} parent=47 // pred_check_branch
          %304 = sbr.rel (%p302) target = $region60
        $region59: #{tpu_custom_call.1} parent=47 // pred_region
          %306 = dma.done [#allocation7], 16
        $region60: #{tpu_custom_call.1} parent=47 // pred_fallthru
          _
        // Predicated region
        $region61: #{tpu_custom_call.1} parent=47 // pred_check
          %p307 = pneg %p104
        $region62: #{tpu_custom_call.1} parent=47 // pred_check_branch
          %309 = sbr.rel (%p307) target = $region64
        $region63: #{tpu_custom_call.1} parent=47 // pred_region
          %311 = dma.done [#allocation10], 32
        $region64: #{tpu_custom_call.1} parent=47 // pred_fallthru
          _
        // Predicated region
        $region65: #{tpu_custom_call.1} parent=47 // pred_check
          %p312 = pneg %p125
        $region66: #{tpu_custom_call.1} parent=47 // pred_check_branch
          %314 = sbr.rel (%p312) target = $region68
        $region67: #{tpu_custom_call.1} parent=47 // pred_region
          %316 = dma.done [#allocation10], 16
        $region68: #{tpu_custom_call.1} parent=47 // pred_fallthru
          _
        // Predicated region
        $region69: #{tpu_custom_call.1} parent=47 // pred_check
          %p317 = pneg %p146
        $region70: #{tpu_custom_call.1} parent=47 // pred_check_branch
          %319 = sbr.rel (%p317) target = $region72
        $region71: #{tpu_custom_call.1} parent=47 // pred_region
          %321 = dma.done [#allocation13], 16
        $region72: #{tpu_custom_call.1} parent=47 // pred_fallthru
          _
        %322 = sfence
        %p323 = pneg %p41
        %p324 = pneg %p38
        %p325 = pneg %p62
        %p326 = pneg %p59
        %p327 = pneg %p83
        %p328 = pneg %p80
        %p329 = pneg %p104
        %p330 = pneg %p101
        %p331 = pneg %p125
        %p332 = pneg %p122
        %p333 = pneg %p146
        %p334 = pneg %p143
        %p335 = scmp.lt.s32.totalorder %s25, 1
        %s336 = scalar_select %p335, %s25, 1
        %s337 = smul.addr %s336, 12
        %s338 = smul.addr %s337, 8
        %s339 = scalar_lea.vmem %s6, %s338
        %p340 = pneg %p172
        %p341 = pneg %p169
        %p342 = pneg %p198
        %p343 = pneg %p195
        %s344 = sand.u32 %s185, 1
        %s345 = scalar_lea.sflag [#allocation4], %s344
        %s346 = sand.u32 %s185, 1
        %s347 = smul.addr %s346, 64
        %s348 = scalar_lea.vmem [#allocation14], %s347
        %p349 = scmp.lt.s32.totalorder %s25, 1
        %s350 = scalar_select %p349, %s25, 1
        %s351 = smul.addr %s350, 12
        %s352 = smul.addr %s351, 8
        %s353 = scalar_lea.vmem %s6, %s352
        %vm354 = vcmask 146432
        %355 = vst.msk [vmem:[#allocation2] sm:$0xff] %vm354, 0.0
        %356 = vst.msk [vmem:[#allocation2 + $0x8] sm:$0xff] %vm354, 0.0
        %vm357 = vcmask 140288
        %358 = vst.msk [vmem:[#allocation2 + $0x10] sm:$0x3] %vm357, 0.0
        %359 = vst.msk [vmem:[#allocation2 + $0x18] sm:$0xff] %vm354, 0.0
        %360 = vst.msk [vmem:[#allocation2 + $0x20] sm:$0xff] %vm354, 0.0
        %361 = vst.msk [vmem:[#allocation2 + $0x28] sm:$0x3] %vm357, 0.0
        %362 = vst.msk [vmem:[#allocation2 + $0x30] sm:$0xff] %vm354, 0.0
        %363 = vst.msk [vmem:[#allocation2 + $0x38] sm:$0xff] %vm354, 0.0
        %364 = vst.msk [vmem:[#allocation2 + $0x40] sm:$0x3] %vm357, 0.0
        %365 = vst.msk [vmem:[#allocation2 + $0x48] sm:$0xff] %vm354, 0.0
        %366 = vst.msk [vmem:[#allocation2 + $0x50] sm:$0xff] %vm354, 0.0
        %367 = vst.msk [vmem:[#allocation2 + $0x58] sm:$0x3] %vm357, 0.0
        %s368 = sld [smem:[#allocation3]]
        %v369 = vld [vmem:[%s353] sm:$0xff]
        %v370 = vld [vmem:[%s353 + $0x8] sm:$0xff]
        %v371 = vstv %s368
        %v372 = vmul.f32 %v371, %v369
        %v373 = vmul.f32 %v371, %v370
        %v374 = vadd.f32 %v372, 0.0
        %v375 = vadd.f32 %v373, 0.0
        %s376 = sld [smem:[#allocation3 + $0x1]]
        %v377 = vstv %s376
        %v378 = vmul.f32 %v377, %v369
        %v379 = vmul.f32 %v377, %v370
        %382 = vrot.lane.b32.xlu0 %v378, 127
        %v383 = vpop.permute.xlu0 %382
        %384 = vrot.lane.b32.xlu0 %v379, 127
        %v385 = vpop.permute.xlu0 %384
        %v388 = vadd.f32 %v374, %v383
        %v389 = vadd.f32 %v375, %v385
        %s390 = sld [smem:[#allocation3 + $0x2]]
        %v391 = vstv %s390
        %v392 = vmul.f32 %v391, %v369
        %v393 = vmul.f32 %v391, %v370
        %396 = vrot.lane.b32.xlu0 %v392, 126
        %v397 = vpop.permute.xlu0 %396
        %398 = vrot.lane.b32.xlu0 %v393, 126
        %v399 = vpop.permute.xlu0 %398
        %v402 = vadd.f32 %v388, %v397
        %v403 = vadd.f32 %v389, %v399
        %s404 = sld [smem:[#allocation3 + $0x3]]
        %v405 = vld [vmem:[%s353 + $0x1] sm:$0xff]
        %v406 = vld [vmem:[%s353 + $0x9] sm:$0xff]
        %v407 = vstv %s404
        %v408 = vmul.f32 %v407, %v405
        %v409 = vmul.f32 %v407, %v406
        %v410 = vadd.f32 %v402, %v408
        %v411 = vadd.f32 %v403, %v409
        %s412 = sld [smem:[#allocation3 + $0x4]]
        %v413 = vstv %s412
        %v414 = vmul.f32 %v413, %v405
        %v415 = vmul.f32 %v413, %v406
        %418 = vrot.lane.b32.xlu0 %v414, 127
        %v419 = vpop.permute.xlu0 %418
        %420 = vrot.lane.b32.xlu0 %v415, 127
        %v421 = vpop.permute.xlu0 %420
        %v424 = vadd.f32 %v410, %v419
        %v425 = vadd.f32 %v411, %v421
        %s426 = sld [smem:[#allocation3 + $0x5]]
        %v427 = vstv %s426
        %v428 = vmul.f32 %v427, %v405
        %v429 = vmul.f32 %v427, %v406
        %432 = vrot.lane.b32.xlu0 %v428, 126
        %v433 = vpop.permute.xlu0 %432
        %434 = vrot.lane.b32.xlu0 %v429, 126
        %v435 = vpop.permute.xlu0 %434
        %v438 = vadd.f32 %v424, %v433
        %v439 = vadd.f32 %v425, %v435
        %s440 = sld [smem:[#allocation3 + $0x6]]
        %v441 = vld [vmem:[%s353 + $0x2] sm:$0xff]
        %v442 = vld [vmem:[%s353 + $0xa] sm:$0xff]
        %v443 = vstv %s440
        %v444 = vmul.f32 %v443, %v441
        %v445 = vmul.f32 %v443, %v442
        %v446 = vadd.f32 %v438, %v444
        %v447 = vadd.f32 %v439, %v445
        %s448 = sld [smem:[#allocation3 + $0x7]]
        %v449 = vstv %s448
        %v450 = vmul.f32 %v449, %v441
        %v451 = vmul.f32 %v449, %v442
        %454 = vrot.lane.b32.xlu0 %v450, 127
        %v455 = vpop.permute.xlu0 %454
        %456 = vrot.lane.b32.xlu0 %v451, 127
        %v457 = vpop.permute.xlu0 %456
        %v460 = vadd.f32 %v446, %v455
        %v461 = vadd.f32 %v447, %v457
        %s462 = sld [smem:[#allocation3 + $0x8]]
        %v463 = vstv %s462
        %v464 = vmul.f32 %v463, %v441
        %v465 = vmul.f32 %v463, %v442
        %468 = vrot.lane.b32.xlu0 %v464, 126
        %v469 = vpop.permute.xlu0 %468
        %470 = vrot.lane.b32.xlu0 %v465, 126
        %v471 = vpop.permute.xlu0 %470
        %v474 = vadd.f32 %v460, %v469
        %v475 = vadd.f32 %v461, %v471
        %s476 = sld [smem:[#allocation3 + $0x9]]
        %s477 = scalar_lea.vmem %s353, 24
        %v478 = vld [vmem:[%s477] sm:$0xff]
        %v479 = vld [vmem:[%s477 + $0x8] sm:$0xff]
        %v480 = vstv %s476
        %v481 = vmul.f32 %v480, %v478
        %v482 = vmul.f32 %v480, %v479
        %v483 = vadd.f32 %v474, %v481
        %v484 = vadd.f32 %v475, %v482
        %s485 = sld [smem:[#allocation3 + $0xa]]
        %v486 = vstv %s485
        %v487 = vmul.f32 %v486, %v478
        %v488 = vmul.f32 %v486, %v479
        %491 = vrot.lane.b32.xlu0 %v487, 127
        %v492 = vpop.permute.xlu0 %491
        %493 = vrot.lane.b32.xlu0 %v488, 127
        %v494 = vpop.permute.xlu0 %493
        %v497 = vadd.f32 %v483, %v492
        %v498 = vadd.f32 %v484, %v494
        %s499 = sld [smem:[#allocation3 + $0xb]]
        %v500 = vstv %s499
        %v501 = vmul.f32 %v500, %v478
        %v502 = vmul.f32 %v500, %v479
        %505 = vrot.lane.b32.xlu0 %v501, 126
        %v506 = vpop.permute.xlu0 %505
        %507 = vrot.lane.b32.xlu0 %v502, 126
        %v508 = vpop.permute.xlu0 %507
        %v511 = vadd.f32 %v497, %v506
        %v512 = vadd.f32 %v498, %v508
        %s513 = sld [smem:[#allocation3 + $0xc]]
        %v514 = vld [vmem:[%s477 + $0x1] sm:$0xff]
        %v515 = vld [vmem:[%s477 + $0x9] sm:$0xff]
        %v516 = vstv %s513
        %v517 = vmul.f32 %v516, %v514
        %v518 = vmul.f32 %v516, %v515
        %v519 = vadd.f32 %v511, %v517
        %v520 = vadd.f32 %v512, %v518
        %s521 = sld [smem:[#allocation3 + $0xd]]
        %v522 = vstv %s521
        %v523 = vmul.f32 %v522, %v514
        %v524 = vmul.f32 %v522, %v515
        %527 = vrot.lane.b32.xlu0 %v523, 127
        %v528 = vpop.permute.xlu0 %527
        %529 = vrot.lane.b32.xlu0 %v524, 127
        %v530 = vpop.permute.xlu0 %529
        %v533 = vadd.f32 %v519, %v528
        %v534 = vadd.f32 %v520, %v530
        %s535 = sld [smem:[#allocation3 + $0xe]]
        %v536 = vstv %s535
        %v537 = vmul.f32 %v536, %v514
        %v538 = vmul.f32 %v536, %v515
        %541 = vrot.lane.b32.xlu0 %v537, 126
        %v542 = vpop.permute.xlu0 %541
        %543 = vrot.lane.b32.xlu0 %v538, 126
        %v544 = vpop.permute.xlu0 %543
        %v547 = vadd.f32 %v533, %v542
        %v548 = vadd.f32 %v534, %v544
        %s549 = sld [smem:[#allocation3 + $0xf]]
        %v550 = vld [vmem:[%s477 + $0x2] sm:$0xff]
        %v551 = vld [vmem:[%s477 + $0xa] sm:$0xff]
        %v552 = vstv %s549
        %v553 = vmul.f32 %v552, %v550
        %v554 = vmul.f32 %v552, %v551
        %v555 = vadd.f32 %v547, %v553
        %v556 = vadd.f32 %v548, %v554
        %s557 = sld [smem:[#allocation3 + $0x10]]
        %v558 = vstv %s557
        %v559 = vmul.f32 %v558, %v550
        %v560 = vmul.f32 %v558, %v551
        %563 = vrot.lane.b32.xlu0 %v559, 127
        %v564 = vpop.permute.xlu0 %563
        %565 = vrot.lane.b32.xlu0 %v560, 127
        %v566 = vpop.permute.xlu0 %565
        %v569 = vadd.f32 %v555, %v564
        %v570 = vadd.f32 %v556, %v566
        %s571 = sld [smem:[#allocation3 + $0x11]]
        %v572 = vstv %s571
        %v573 = vmul.f32 %v572, %v550
        %v574 = vmul.f32 %v572, %v551
        %577 = vrot.lane.b32.xlu0 %v573, 126
        %v578 = vpop.permute.xlu0 %577
        %579 = vrot.lane.b32.xlu0 %v574, 126
        %v580 = vpop.permute.xlu0 %579
        %v583 = vadd.f32 %v569, %v578
        %v584 = vadd.f32 %v570, %v580
        %s585 = sld [smem:[#allocation3 + $0x12]]
        %s586 = scalar_lea.vmem %s353, 48
        %v587 = vld [vmem:[%s586] sm:$0xff]
        %v588 = vld [vmem:[%s586 + $0x8] sm:$0xff]
        %v589 = vstv %s585
        %v590 = vmul.f32 %v589, %v587
        %v591 = vmul.f32 %v589, %v588
        %v592 = vadd.f32 %v583, %v590
        %v593 = vadd.f32 %v584, %v591
        %s594 = sld [smem:[#allocation3 + $0x13]]
        %v595 = vstv %s594
        %v596 = vmul.f32 %v595, %v587
        %v597 = vmul.f32 %v595, %v588
        %600 = vrot.lane.b32.xlu0 %v596, 127
        %v601 = vpop.permute.xlu0 %600
        %602 = vrot.lane.b32.xlu0 %v597, 127
        %v603 = vpop.permute.xlu0 %602
        %v606 = vadd.f32 %v592, %v601
        %v607 = vadd.f32 %v593, %v603
        %s608 = sld [smem:[#allocation3 + $0x14]]
        %v609 = vstv %s608
        %v610 = vmul.f32 %v609, %v587
        %v611 = vmul.f32 %v609, %v588
        %614 = vrot.lane.b32.xlu0 %v610, 126
        %v615 = vpop.permute.xlu0 %614
        %616 = vrot.lane.b32.xlu0 %v611, 126
        %v617 = vpop.permute.xlu0 %616
        %v620 = vadd.f32 %v606, %v615
        %v621 = vadd.f32 %v607, %v617
        %s622 = sld [smem:[#allocation3 + $0x15]]
        %v623 = vld [vmem:[%s586 + $0x1] sm:$0xff]
        %v624 = vld [vmem:[%s586 + $0x9] sm:$0xff]
        %v625 = vstv %s622
        %v626 = vmul.f32 %v625, %v623
        %v627 = vmul.f32 %v625, %v624
        %v628 = vadd.f32 %v620, %v626
        %v629 = vadd.f32 %v621, %v627
        %s630 = sld [smem:[#allocation3 + $0x16]]
        %v631 = vstv %s630
        %v632 = vmul.f32 %v631, %v623
        %v633 = vmul.f32 %v631, %v624
        %636 = vrot.lane.b32.xlu0 %v632, 127
        %v637 = vpop.permute.xlu0 %636
        %638 = vrot.lane.b32.xlu0 %v633, 127
        %v639 = vpop.permute.xlu0 %638
        %v642 = vadd.f32 %v628, %v637
        %v643 = vadd.f32 %v629, %v639
        %s644 = sld [smem:[#allocation3 + $0x17]]
        %v645 = vstv %s644
        %v646 = vmul.f32 %v645, %v623
        %v647 = vmul.f32 %v645, %v624
        %650 = vrot.lane.b32.xlu0 %v646, 126
        %v651 = vpop.permute.xlu0 %650
        %652 = vrot.lane.b32.xlu0 %v647, 126
        %v653 = vpop.permute.xlu0 %652
        %v656 = vadd.f32 %v642, %v651
        %v657 = vadd.f32 %v643, %v653
        %s658 = sld [smem:[#allocation3 + $0x18]]
        %v659 = vld [vmem:[%s586 + $0x2] sm:$0xff]
        %v660 = vld [vmem:[%s586 + $0xa] sm:$0xff]
        %v661 = vstv %s658
        %v662 = vmul.f32 %v661, %v659
        %v663 = vmul.f32 %v661, %v660
        %v664 = vadd.f32 %v656, %v662
        %v665 = vadd.f32 %v657, %v663
        %s666 = sld [smem:[#allocation3 + $0x19]]
        %v667 = vstv %s666
        %v668 = vmul.f32 %v667, %v659
        %v669 = vmul.f32 %v667, %v660
        %672 = vrot.lane.b32.xlu0 %v668, 127
        %v673 = vpop.permute.xlu0 %672
        %674 = vrot.lane.b32.xlu0 %v669, 127
        %v675 = vpop.permute.xlu0 %674
        %v678 = vadd.f32 %v664, %v673
        %v679 = vadd.f32 %v665, %v675
        %s680 = sld [smem:[#allocation3 + $0x1a]]
        %v681 = vstv %s680
        %v682 = vmul.f32 %v681, %v659
        %v683 = vmul.f32 %v681, %v660
        %686 = vrot.lane.b32.xlu0 %v682, 126
        %v687 = vpop.permute.xlu0 %686
        %688 = vrot.lane.b32.xlu0 %v683, 126
        %v689 = vpop.permute.xlu0 %688
        %v692 = vadd.f32 %v678, %v687
        %v693 = vadd.f32 %v679, %v689
        %s694 = sld [smem:[#allocation3 + $0x1b]]
        %s695 = scalar_lea.vmem %s353, 72
        %v696 = vld [vmem:[%s695] sm:$0xff]
        %v697 = vld [vmem:[%s695 + $0x8] sm:$0xff]
        %v698 = vstv %s694
        %v699 = vmul.f32 %v698, %v696
        %v700 = vmul.f32 %v698, %v697
        %v701 = vadd.f32 %v692, %v699
        %v702 = vadd.f32 %v693, %v700
        %s703 = sld [smem:[#allocation3 + $0x1c]]
        %v704 = vstv %s703
        %v705 = vmul.f32 %v704, %v696
        %v706 = vmul.f32 %v704, %v697
        %709 = vrot.lane.b32.xlu0 %v705, 127
        %v710 = vpop.permute.xlu0 %709
        %711 = vrot.lane.b32.xlu0 %v706, 127
        %v712 = vpop.permute.xlu0 %711
        %v715 = vadd.f32 %v701, %v710
        %v716 = vadd.f32 %v702, %v712
        %s717 = sld [smem:[#allocation3 + $0x1d]]
        %v718 = vstv %s717
        %v719 = vmul.f32 %v718, %v696
        %v720 = vmul.f32 %v718, %v697
        %723 = vrot.lane.b32.xlu0 %v719, 126
        %v724 = vpop.permute.xlu0 %723
        %725 = vrot.lane.b32.xlu0 %v720, 126
        %v726 = vpop.permute.xlu0 %725
        %v729 = vadd.f32 %v715, %v724
        %v730 = vadd.f32 %v716, %v726
        %s731 = sld [smem:[#allocation3 + $0x1e]]
        %v732 = vld [vmem:[%s695 + $0x1] sm:$0xff]
        %v733 = vld [vmem:[%s695 + $0x9] sm:$0xff]
        %v734 = vstv %s731
        %v735 = vmul.f32 %v734, %v732
        %v736 = vmul.f32 %v734, %v733
        %v737 = vadd.f32 %v729, %v735
        %v738 = vadd.f32 %v730, %v736
        %s739 = sld [smem:[#allocation3 + $0x1f]]
        %v740 = vstv %s739
        %v741 = vmul.f32 %v740, %v732
        %v742 = vmul.f32 %v740, %v733
        %745 = vrot.lane.b32.xlu0 %v741, 127
        %v746 = vpop.permute.xlu0 %745
        %747 = vrot.lane.b32.xlu0 %v742, 127
        %v748 = vpop.permute.xlu0 %747
        %v751 = vadd.f32 %v737, %v746
        %v752 = vadd.f32 %v738, %v748
        %s753 = sld [smem:[#allocation3 + $0x20]]
        %v754 = vstv %s753
        %v755 = vmul.f32 %v754, %v732
        %v756 = vmul.f32 %v754, %v733
        %759 = vrot.lane.b32.xlu0 %v755, 126
        %v760 = vpop.permute.xlu0 %759
        %761 = vrot.lane.b32.xlu0 %v756, 126
        %v762 = vpop.permute.xlu0 %761
        %v765 = vadd.f32 %v751, %v760
        %v766 = vadd.f32 %v752, %v762
        %s767 = sld [smem:[#allocation3 + $0x21]]
        %v768 = vld [vmem:[%s695 + $0x2] sm:$0xff]
        %v769 = vld [vmem:[%s695 + $0xa] sm:$0xff]
        %v770 = vstv %s767
        %v771 = vmul.f32 %v770, %v768
        %v772 = vmul.f32 %v770, %v769
        %v773 = vadd.f32 %v765, %v771
        %v774 = vadd.f32 %v766, %v772
        %s775 = sld [smem:[#allocation3 + $0x22]]
        %v776 = vstv %s775
        %v777 = vmul.f32 %v776, %v768
        %v778 = vmul.f32 %v776, %v769
        %781 = vrot.lane.b32.xlu0 %v777, 127
        %v782 = vpop.permute.xlu0 %781
        %783 = vrot.lane.b32.xlu0 %v778, 127
        %v784 = vpop.permute.xlu0 %783
        %v787 = vadd.f32 %v773, %v782
        %v788 = vadd.f32 %v774, %v784
        %s789 = sld [smem:[#allocation3 + $0x23]]
        %v790 = vstv %s789
        %v791 = vmul.f32 %v790, %v768
        %v792 = vmul.f32 %v790, %v769
        %795 = vrot.lane.b32.xlu0 %v791, 126
        %v796 = vpop.permute.xlu0 %795
        %797 = vrot.lane.b32.xlu0 %v792, 126
        %v798 = vpop.permute.xlu0 %797
        %v801 = vadd.f32 %v787, %v796
        %v802 = vadd.f32 %v788, %v798
        %s803 = sld [smem:[#allocation6]]
        %v804 = vstv %s803
        %v805 = vmul.f32 %v801, %v804
        %v806 = vmul.f32 %v802, %v804
        %s807 = sld [smem:[#allocation8]]
        %v808 = vstv %s807
        %v809 = vadd.f32 %v805, %v808
        %v810 = vadd.f32 %v806, %v808
        %v811 = vmax.f32 %v809, 0.0
        %v812 = vmax.f32 %v810, 0.0
        %815 = vrot.lane.b32.xlu0 %v811, 1
        %v816 = vpop.permute.xlu0 %815
        %817 = vrot.lane.b32.xlu0 %v812, 1
        %v818 = vpop.permute.xlu0 %817
        %vm821 = vcmask 138248
        %822 = vst.msk [vmem:[#allocation2 + $0x1] sm:$0xff] %vm821, %v816
        %823 = vst.msk [vmem:[#allocation2 + $0x9] sm:$0xff] %vm821, %v818
        %s824 = sld [smem:[#allocation3 + $0x24]]
        %v825 = vld [vmem:[%s353] sm:$0xff]
        %v826 = vld [vmem:[%s353 + $0x8] sm:$0xff]
        %v827 = vstv %s824
        %v828 = vmul.f32 %v827, %v825
        %v829 = vmul.f32 %v827, %v826
        %v830 = vadd.f32 %v828, 0.0
        %v831 = vadd.f32 %v829, 0.0
        %s832 = sld [smem:[#allocation3 + $0x25]]
        %v833 = vstv %s832
        %v834 = vmul.f32 %v833, %v825
        %v835 = vmul.f32 %v833, %v826
        %838 = vrot.lane.b32.xlu0 %v834, 127
        %v839 = vpop.permute.xlu0 %838
        %840 = vrot.lane.b32.xlu0 %v835, 127
        %v841 = vpop.permute.xlu0 %840
        %v844 = vadd.f32 %v830, %v839
        %v845 = vadd.f32 %v831, %v841
        %s846 = sld [smem:[#allocation3 + $0x26]]
        %v847 = vstv %s846
        %v848 = vmul.f32 %v847, %v825
        %v849 = vmul.f32 %v847, %v826
        %852 = vrot.lane.b32.xlu0 %v848, 126
        %v853 = vpop.permute.xlu0 %852
        %854 = vrot.lane.b32.xlu0 %v849, 126
        %v855 = vpop.permute.xlu0 %854
        %v858 = vadd.f32 %v844, %v853
        %v859 = vadd.f32 %v845, %v855
        %s860 = sld [smem:[#allocation3 + $0x27]]
        %v861 = vld [vmem:[%s353 + $0x1] sm:$0xff]
        %v862 = vld [vmem:[%s353 + $0x9] sm:$0xff]
        %v863 = vstv %s860
        %v864 = vmul.f32 %v863, %v861
        %v865 = vmul.f32 %v863, %v862
        %v866 = vadd.f32 %v858, %v864
        %v867 = vadd.f32 %v859, %v865
        %s868 = sld [smem:[#allocation3 + $0x28]]
        %v869 = vstv %s868
        %v870 = vmul.f32 %v869, %v861
        %v871 = vmul.f32 %v869, %v862
        %874 = vrot.lane.b32.xlu0 %v870, 127
        %v875 = vpop.permute.xlu0 %874
        %876 = vrot.lane.b32.xlu0 %v871, 127
        %v877 = vpop.permute.xlu0 %876
        %v880 = vadd.f32 %v866, %v875
        %v881 = vadd.f32 %v867, %v877
        %s882 = sld [smem:[#allocation3 + $0x29]]
        %v883 = vstv %s882
        %v884 = vmul.f32 %v883, %v861
        %v885 = vmul.f32 %v883, %v862
        %888 = vrot.lane.b32.xlu0 %v884, 126
        %v889 = vpop.permute.xlu0 %888
        %890 = vrot.lane.b32.xlu0 %v885, 126
        %v891 = vpop.permute.xlu0 %890
        %v894 = vadd.f32 %v880, %v889
        %v895 = vadd.f32 %v881, %v891
        %s896 = sld [smem:[#allocation3 + $0x2a]]
        %v897 = vld [vmem:[%s353 + $0x2] sm:$0xff]
        %v898 = vld [vmem:[%s353 + $0xa] sm:$0xff]
        %v899 = vstv %s896
        %v900 = vmul.f32 %v899, %v897
        %v901 = vmul.f32 %v899, %v898
        %v902 = vadd.f32 %v894, %v900
        %v903 = vadd.f32 %v895, %v901
        %s904 = sld [smem:[#allocation3 + $0x2b]]
        %v905 = vstv %s904
        %v906 = vmul.f32 %v905, %v897
        %v907 = vmul.f32 %v905, %v898
        %910 = vrot.lane.b32.xlu0 %v906, 127
        %v911 = vpop.permute.xlu0 %910
        %912 = vrot.lane.b32.xlu0 %v907, 127
        %v913 = vpop.permute.xlu0 %912
        %v916 = vadd.f32 %v902, %v911
        %v917 = vadd.f32 %v903, %v913
        %s918 = sld [smem:[#allocation3 + $0x2c]]
        %v919 = vstv %s918
        %v920 = vmul.f32 %v919, %v897
        %v921 = vmul.f32 %v919, %v898
        %924 = vrot.lane.b32.xlu0 %v920, 126
        %v925 = vpop.permute.xlu0 %924
        %926 = vrot.lane.b32.xlu0 %v921, 126
        %v927 = vpop.permute.xlu0 %926
        %v930 = vadd.f32 %v916, %v925
        %v931 = vadd.f32 %v917, %v927
        %s932 = sld [smem:[#allocation3 + $0x2d]]
        %v933 = vld [vmem:[%s477] sm:$0xff]
        %v934 = vld [vmem:[%s477 + $0x8] sm:$0xff]
        %v935 = vstv %s932
        %v936 = vmul.f32 %v935, %v933
        %v937 = vmul.f32 %v935, %v934
        %v938 = vadd.f32 %v930, %v936
        %v939 = vadd.f32 %v931, %v937
        %s940 = sld [smem:[#allocation3 + $0x2e]]
        %v941 = vstv %s940
        %v942 = vmul.f32 %v941, %v933
        %v943 = vmul.f32 %v941, %v934
        %946 = vrot.lane.b32.xlu0 %v942, 127
        %v947 = vpop.permute.xlu0 %946
        %948 = vrot.lane.b32.xlu0 %v943, 127
        %v949 = vpop.permute.xlu0 %948
        %v952 = vadd.f32 %v938, %v947
        %v953 = vadd.f32 %v939, %v949
        %s954 = sld [smem:[#allocation3 + $0x2f]]
        %v955 = vstv %s954
        %v956 = vmul.f32 %v955, %v933
        %v957 = vmul.f32 %v955, %v934
        %960 = vrot.lane.b32.xlu0 %v956, 126
        %v961 = vpop.permute.xlu0 %960
        %962 = vrot.lane.b32.xlu0 %v957, 126
        %v963 = vpop.permute.xlu0 %962
        %v966 = vadd.f32 %v952, %v961
        %v967 = vadd.f32 %v953, %v963
        %s968 = sld [smem:[#allocation3 + $0x30]]
        %v969 = vld [vmem:[%s477 + $0x1] sm:$0xff]
        %v970 = vld [vmem:[%s477 + $0x9] sm:$0xff]
        %v971 = vstv %s968
        %v972 = vmul.f32 %v971, %v969
        %v973 = vmul.f32 %v971, %v970
        %v974 = vadd.f32 %v966, %v972
        %v975 = vadd.f32 %v967, %v973
        %s976 = sld [smem:[#allocation3 + $0x31]]
        %v977 = vstv %s976
        %v978 = vmul.f32 %v977, %v969
        %v979 = vmul.f32 %v977, %v970
        %982 = vrot.lane.b32.xlu0 %v978, 127
        %v983 = vpop.permute.xlu0 %982
        %984 = vrot.lane.b32.xlu0 %v979, 127
        %v985 = vpop.permute.xlu0 %984
        %v988 = vadd.f32 %v974, %v983
        %v989 = vadd.f32 %v975, %v985
        %s990 = sld [smem:[#allocation3 + $0x32]]
        %v991 = vstv %s990
        %v992 = vmul.f32 %v991, %v969
        %v993 = vmul.f32 %v991, %v970
        %996 = vrot.lane.b32.xlu0 %v992, 126
        %v997 = vpop.permute.xlu0 %996
        %998 = vrot.lane.b32.xlu0 %v993, 126
        %v999 = vpop.permute.xlu0 %998
        %v1002 = vadd.f32 %v988, %v997
        %v1003 = vadd.f32 %v989, %v999
        %s1004 = sld [smem:[#allocation3 + $0x33]]
        %v1005 = vld [vmem:[%s477 + $0x2] sm:$0xff]
        %v1006 = vld [vmem:[%s477 + $0xa] sm:$0xff]
        %v1007 = vstv %s1004
        %v1008 = vmul.f32 %v1007, %v1005
        %v1009 = vmul.f32 %v1007, %v1006
        %v1010 = vadd.f32 %v1002, %v1008
        %v1011 = vadd.f32 %v1003, %v1009
        %s1012 = sld [smem:[#allocation3 + $0x34]]
        %v1013 = vstv %s1012
        %v1014 = vmul.f32 %v1013, %v1005
        %v1015 = vmul.f32 %v1013, %v1006
        %1018 = vrot.lane.b32.xlu0 %v1014, 127
        %v1019 = vpop.permute.xlu0 %1018
        %1020 = vrot.lane.b32.xlu0 %v1015, 127
        %v1021 = vpop.permute.xlu0 %1020
        %v1024 = vadd.f32 %v1010, %v1019
        %v1025 = vadd.f32 %v1011, %v1021
        %s1026 = sld [smem:[#allocation3 + $0x35]]
        %v1027 = vstv %s1026
        %v1028 = vmul.f32 %v1027, %v1005
        %v1029 = vmul.f32 %v1027, %v1006
        %1032 = vrot.lane.b32.xlu0 %v1028, 126
        %v1033 = vpop.permute.xlu0 %1032
        %1034 = vrot.lane.b32.xlu0 %v1029, 126
        %v1035 = vpop.permute.xlu0 %1034
        %v1038 = vadd.f32 %v1024, %v1033
        %v1039 = vadd.f32 %v1025, %v1035
        %s1040 = sld [smem:[#allocation3 + $0x36]]
        %v1041 = vld [vmem:[%s586] sm:$0xff]
        %v1042 = vld [vmem:[%s586 + $0x8] sm:$0xff]
        %v1043 = vstv %s1040
        %v1044 = vmul.f32 %v1043, %v1041
        %v1045 = vmul.f32 %v1043, %v1042
        %v1046 = vadd.f32 %v1038, %v1044
        %v1047 = vadd.f32 %v1039, %v1045
        %s1048 = sld [smem:[#allocation3 + $0x37]]
        %v1049 = vstv %s1048
        %v1050 = vmul.f32 %v1049, %v1041
        %v1051 = vmul.f32 %v1049, %v1042
        %1054 = vrot.lane.b32.xlu0 %v1050, 127
        %v1055 = vpop.permute.xlu0 %1054
        %1056 = vrot.lane.b32.xlu0 %v1051, 127
        %v1057 = vpop.permute.xlu0 %1056
        %v1060 = vadd.f32 %v1046, %v1055
        %v1061 = vadd.f32 %v1047, %v1057
        %s1062 = sld [smem:[#allocation3 + $0x38]]
        %v1063 = vstv %s1062
        %v1064 = vmul.f32 %v1063, %v1041
        %v1065 = vmul.f32 %v1063, %v1042
        %1068 = vrot.lane.b32.xlu0 %v1064, 126
        %v1069 = vpop.permute.xlu0 %1068
        %1070 = vrot.lane.b32.xlu0 %v1065, 126
        %v1071 = vpop.permute.xlu0 %1070
        %v1074 = vadd.f32 %v1060, %v1069
        %v1075 = vadd.f32 %v1061, %v1071
        %s1076 = sld [smem:[#allocation3 + $0x39]]
        %v1077 = vld [vmem:[%s586 + $0x1] sm:$0xff]
        %v1078 = vld [vmem:[%s586 + $0x9] sm:$0xff]
        %v1079 = vstv %s1076
        %v1080 = vmul.f32 %v1079, %v1077
        %v1081 = vmul.f32 %v1079, %v1078
        %v1082 = vadd.f32 %v1074, %v1080
        %v1083 = vadd.f32 %v1075, %v1081
        %s1084 = sld [smem:[#allocation3 + $0x3a]]
        %v1085 = vstv %s1084
        %v1086 = vmul.f32 %v1085, %v1077
        %v1087 = vmul.f32 %v1085, %v1078
        %1090 = vrot.lane.b32.xlu0 %v1086, 127
        %v1091 = vpop.permute.xlu0 %1090
        %1092 = vrot.lane.b32.xlu0 %v1087, 127
        %v1093 = vpop.permute.xlu0 %1092
        %v1096 = vadd.f32 %v1082, %v1091
        %v1097 = vadd.f32 %v1083, %v1093
        %s1098 = sld [smem:[#allocation3 + $0x3b]]
        %v1099 = vstv %s1098
        %v1100 = vmul.f32 %v1099, %v1077
        %v1101 = vmul.f32 %v1099, %v1078
        %1104 = vrot.lane.b32.xlu0 %v1100, 126
        %v1105 = vpop.permute.xlu0 %1104
        %1106 = vrot.lane.b32.xlu0 %v1101, 126
        %v1107 = vpop.permute.xlu0 %1106
        %v1110 = vadd.f32 %v1096, %v1105
        %v1111 = vadd.f32 %v1097, %v1107
        %s1112 = sld [smem:[#allocation3 + $0x3c]]
        %v1113 = vld [vmem:[%s586 + $0x2] sm:$0xff]
        %v1114 = vld [vmem:[%s586 + $0xa] sm:$0xff]
        %v1115 = vstv %s1112
        %v1116 = vmul.f32 %v1115, %v1113
        %v1117 = vmul.f32 %v1115, %v1114
        %v1118 = vadd.f32 %v1110, %v1116
        %v1119 = vadd.f32 %v1111, %v1117
        %s1120 = sld [smem:[#allocation3 + $0x3d]]
        %v1121 = vstv %s1120
        %v1122 = vmul.f32 %v1121, %v1113
        %v1123 = vmul.f32 %v1121, %v1114
        %1126 = vrot.lane.b32.xlu0 %v1122, 127
        %v1127 = vpop.permute.xlu0 %1126
        %1128 = vrot.lane.b32.xlu0 %v1123, 127
        %v1129 = vpop.permute.xlu0 %1128
        %v1132 = vadd.f32 %v1118, %v1127
        %v1133 = vadd.f32 %v1119, %v1129
        %s1134 = sld [smem:[#allocation3 + $0x3e]]
        %v1135 = vstv %s1134
        %v1136 = vmul.f32 %v1135, %v1113
        %v1137 = vmul.f32 %v1135, %v1114
        %1140 = vrot.lane.b32.xlu0 %v1136, 126
        %v1141 = vpop.permute.xlu0 %1140
        %1142 = vrot.lane.b32.xlu0 %v1137, 126
        %v1143 = vpop.permute.xlu0 %1142
        %v1146 = vadd.f32 %v1132, %v1141
        %v1147 = vadd.f32 %v1133, %v1143
        %s1148 = sld [smem:[#allocation3 + $0x3f]]
        %v1149 = vld [vmem:[%s695] sm:$0xff]
        %v1150 = vld [vmem:[%s695 + $0x8] sm:$0xff]
        %v1151 = vstv %s1148
        %v1152 = vmul.f32 %v1151, %v1149
        %v1153 = vmul.f32 %v1151, %v1150
        %v1154 = vadd.f32 %v1146, %v1152
        %v1155 = vadd.f32 %v1147, %v1153
        %s1156 = sld [smem:[#allocation3 + $0x40]]
        %v1157 = vstv %s1156
        %v1158 = vmul.f32 %v1157, %v1149
        %v1159 = vmul.f32 %v1157, %v1150
        %1162 = vrot.lane.b32.xlu0 %v1158, 127
        %v1163 = vpop.permute.xlu0 %1162
        %1164 = vrot.lane.b32.xlu0 %v1159, 127
        %v1165 = vpop.permute.xlu0 %1164
        %v1168 = vadd.f32 %v1154, %v1163
        %v1169 = vadd.f32 %v1155, %v1165
        %s1170 = sld [smem:[#allocation3 + $0x41]]
        %v1171 = vstv %s1170
        %v1172 = vmul.f32 %v1171, %v1149
        %v1173 = vmul.f32 %v1171, %v1150
        %1176 = vrot.lane.b32.xlu0 %v1172, 126
        %v1177 = vpop.permute.xlu0 %1176
        %1178 = vrot.lane.b32.xlu0 %v1173, 126
        %v1179 = vpop.permute.xlu0 %1178
        %v1182 = vadd.f32 %v1168, %v1177
        %v1183 = vadd.f32 %v1169, %v1179
        %s1184 = sld [smem:[#allocation3 + $0x42]]
        %v1185 = vld [vmem:[%s695 + $0x1] sm:$0xff]
        %v1186 = vld [vmem:[%s695 + $0x9] sm:$0xff]
        %v1187 = vstv %s1184
        %v1188 = vmul.f32 %v1187, %v1185
        %v1189 = vmul.f32 %v1187, %v1186
        %v1190 = vadd.f32 %v1182, %v1188
        %v1191 = vadd.f32 %v1183, %v1189
        %s1192 = sld [smem:[#allocation3 + $0x43]]
        %v1193 = vstv %s1192
        %v1194 = vmul.f32 %v1193, %v1185
        %v1195 = vmul.f32 %v1193, %v1186
        %1198 = vrot.lane.b32.xlu0 %v1194, 127
        %v1199 = vpop.permute.xlu0 %1198
        %1200 = vrot.lane.b32.xlu0 %v1195, 127
        %v1201 = vpop.permute.xlu0 %1200
        %v1204 = vadd.f32 %v1190, %v1199
        %v1205 = vadd.f32 %v1191, %v1201
        %s1206 = sld [smem:[#allocation3 + $0x44]]
        %v1207 = vstv %s1206
        %v1208 = vmul.f32 %v1207, %v1185
        %v1209 = vmul.f32 %v1207, %v1186
        %1212 = vrot.lane.b32.xlu0 %v1208, 126
        %v1213 = vpop.permute.xlu0 %1212
        %1214 = vrot.lane.b32.xlu0 %v1209, 126
        %v1215 = vpop.permute.xlu0 %1214
        %v1218 = vadd.f32 %v1204, %v1213
        %v1219 = vadd.f32 %v1205, %v1215
        %s1220 = sld [smem:[#allocation3 + $0x45]]
        %v1221 = vld [vmem:[%s695 + $0x2] sm:$0xff]
        %v1222 = vld [vmem:[%s695 + $0xa] sm:$0xff]
        %v1223 = vstv %s1220
        %v1224 = vmul.f32 %v1223, %v1221
        %v1225 = vmul.f32 %v1223, %v1222
        %v1226 = vadd.f32 %v1218, %v1224
        %v1227 = vadd.f32 %v1219, %v1225
        %s1228 = sld [smem:[#allocation3 + $0x46]]
        %v1229 = vstv %s1228
        %v1230 = vmul.f32 %v1229, %v1221
        %v1231 = vmul.f32 %v1229, %v1222
        %1234 = vrot.lane.b32.xlu0 %v1230, 127
        %v1235 = vpop.permute.xlu0 %1234
        %1236 = vrot.lane.b32.xlu0 %v1231, 127
        %v1237 = vpop.permute.xlu0 %1236
        %v1240 = vadd.f32 %v1226, %v1235
        %v1241 = vadd.f32 %v1227, %v1237
        %s1242 = sld [smem:[#allocation3 + $0x47]]
        %v1243 = vstv %s1242
        %v1244 = vmul.f32 %v1243, %v1221
        %v1245 = vmul.f32 %v1243, %v1222
        %1248 = vrot.lane.b32.xlu0 %v1244, 126
        %v1249 = vpop.permute.xlu0 %1248
        %1250 = vrot.lane.b32.xlu0 %v1245, 126
        %v1251 = vpop.permute.xlu0 %1250
        %v1254 = vadd.f32 %v1240, %v1249
        %v1255 = vadd.f32 %v1241, %v1251
        %s1256 = sld [smem:[#allocation6 + $0x1]]
        %v1257 = vstv %s1256
        %v1258 = vmul.f32 %v1254, %v1257
        %v1259 = vmul.f32 %v1255, %v1257
        %s1260 = sld [smem:[#allocation8 + $0x1]]
        %v1261 = vstv %s1260
        %v1262 = vadd.f32 %v1258, %v1261
        %v1263 = vadd.f32 %v1259, %v1261
        %v1264 = vmax.f32 %v1262, 0.0
        %v1265 = vmax.f32 %v1263, 0.0
        %1268 = vrot.lane.b32.xlu0 %v1264, 1
        %v1269 = vpop.permute.xlu0 %1268
        %1270 = vrot.lane.b32.xlu0 %v1265, 1
        %v1271 = vpop.permute.xlu0 %1270
        %s1274 = scalar_lea.vmem [#allocation2], 24
        %1275 = vst.msk [vmem:[%s1274 + $0x1] sm:$0xff] %vm821, %v1269
        %1276 = vst.msk [vmem:[%s1274 + $0x9] sm:$0xff] %vm821, %v1271
        %s1277 = sld [smem:[#allocation3 + $0x48]]
        %v1278 = vld [vmem:[%s353] sm:$0xff]
        %v1279 = vld [vmem:[%s353 + $0x8] sm:$0xff]
        %v1280 = vstv %s1277
        %v1281 = vmul.f32 %v1280, %v1278
        %v1282 = vmul.f32 %v1280, %v1279
        %v1283 = vadd.f32 %v1281, 0.0
        %v1284 = vadd.f32 %v1282, 0.0
        %s1285 = sld [smem:[#allocation3 + $0x49]]
        %v1286 = vstv %s1285
        %v1287 = vmul.f32 %v1286, %v1278
        %v1288 = vmul.f32 %v1286, %v1279
        %1291 = vrot.lane.b32.xlu0 %v1287, 127
        %v1292 = vpop.permute.xlu0 %1291
        %1293 = vrot.lane.b32.xlu0 %v1288, 127
        %v1294 = vpop.permute.xlu0 %1293
        %v1297 = vadd.f32 %v1283, %v1292
        %v1298 = vadd.f32 %v1284, %v1294
        %s1299 = sld [smem:[#allocation3 + $0x4a]]
        %v1300 = vstv %s1299
        %v1301 = vmul.f32 %v1300, %v1278
        %v1302 = vmul.f32 %v1300, %v1279
        %1305 = vrot.lane.b32.xlu0 %v1301, 126
        %v1306 = vpop.permute.xlu0 %1305
        %1307 = vrot.lane.b32.xlu0 %v1302, 126
        %v1308 = vpop.permute.xlu0 %1307
        %v1311 = vadd.f32 %v1297, %v1306
        %v1312 = vadd.f32 %v1298, %v1308
        %s1313 = sld [smem:[#allocation3 + $0x4b]]
        %v1314 = vld [vmem:[%s353 + $0x1] sm:$0xff]
        %v1315 = vld [vmem:[%s353 + $0x9] sm:$0xff]
        %v1316 = vstv %s1313
        %v1317 = vmul.f32 %v1316, %v1314
        %v1318 = vmul.f32 %v1316, %v1315
        %v1319 = vadd.f32 %v1311, %v1317
        %v1320 = vadd.f32 %v1312, %v1318
        %s1321 = sld [smem:[#allocation3 + $0x4c]]
        %v1322 = vstv %s1321
        %v1323 = vmul.f32 %v1322, %v1314
        %v1324 = vmul.f32 %v1322, %v1315
        %1327 = vrot.lane.b32.xlu0 %v1323, 127
        %v1328 = vpop.permute.xlu0 %1327
        %1329 = vrot.lane.b32.xlu0 %v1324, 127
        %v1330 = vpop.permute.xlu0 %1329
        %v1333 = vadd.f32 %v1319, %v1328
        %v1334 = vadd.f32 %v1320, %v1330
        %s1335 = sld [smem:[#allocation3 + $0x4d]]
        %v1336 = vstv %s1335
        %v1337 = vmul.f32 %v1336, %v1314
        %v1338 = vmul.f32 %v1336, %v1315
        %1341 = vrot.lane.b32.xlu0 %v1337, 126
        %v1342 = vpop.permute.xlu0 %1341
        %1343 = vrot.lane.b32.xlu0 %v1338, 126
        %v1344 = vpop.permute.xlu0 %1343
        %v1347 = vadd.f32 %v1333, %v1342
        %v1348 = vadd.f32 %v1334, %v1344
        %s1349 = sld [smem:[#allocation3 + $0x4e]]
        %v1350 = vld [vmem:[%s353 + $0x2] sm:$0xff]
        %v1351 = vld [vmem:[%s353 + $0xa] sm:$0xff]
        %v1352 = vstv %s1349
        %v1353 = vmul.f32 %v1352, %v1350
        %v1354 = vmul.f32 %v1352, %v1351
        %v1355 = vadd.f32 %v1347, %v1353
        %v1356 = vadd.f32 %v1348, %v1354
        %s1357 = sld [smem:[#allocation3 + $0x4f]]
        %v1358 = vstv %s1357
        %v1359 = vmul.f32 %v1358, %v1350
        %v1360 = vmul.f32 %v1358, %v1351
        %1363 = vrot.lane.b32.xlu0 %v1359, 127
        %v1364 = vpop.permute.xlu0 %1363
        %1365 = vrot.lane.b32.xlu0 %v1360, 127
        %v1366 = vpop.permute.xlu0 %1365
        %v1369 = vadd.f32 %v1355, %v1364
        %v1370 = vadd.f32 %v1356, %v1366
        %s1371 = sld [smem:[#allocation3 + $0x50]]
        %v1372 = vstv %s1371
        %v1373 = vmul.f32 %v1372, %v1350
        %v1374 = vmul.f32 %v1372, %v1351
        %1377 = vrot.lane.b32.xlu0 %v1373, 126
        %v1378 = vpop.permute.xlu0 %1377
        %1379 = vrot.lane.b32.xlu0 %v1374, 126
        %v1380 = vpop.permute.xlu0 %1379
        %v1383 = vadd.f32 %v1369, %v1378
        %v1384 = vadd.f32 %v1370, %v1380
        %s1385 = sld [smem:[#allocation3 + $0x51]]
        %v1386 = vld [vmem:[%s477] sm:$0xff]
        %v1387 = vld [vmem:[%s477 + $0x8] sm:$0xff]
        %v1388 = vstv %s1385
        %v1389 = vmul.f32 %v1388, %v1386
        %v1390 = vmul.f32 %v1388, %v1387
        %v1391 = vadd.f32 %v1383, %v1389
        %v1392 = vadd.f32 %v1384, %v1390
        %s1393 = sld [smem:[#allocation3 + $0x52]]
        %v1394 = vstv %s1393
        %v1395 = vmul.f32 %v1394, %v1386
        %v1396 = vmul.f32 %v1394, %v1387
        %1399 = vrot.lane.b32.xlu0 %v1395, 127
        %v1400 = vpop.permute.xlu0 %1399
        %1401 = vrot.lane.b32.xlu0 %v1396, 127
        %v1402 = vpop.permute.xlu0 %1401
        %v1405 = vadd.f32 %v1391, %v1400
        %v1406 = vadd.f32 %v1392, %v1402
        %s1407 = sld [smem:[#allocation3 + $0x53]]
        %v1408 = vstv %s1407
        %v1409 = vmul.f32 %v1408, %v1386
        %v1410 = vmul.f32 %v1408, %v1387
        %1413 = vrot.lane.b32.xlu0 %v1409, 126
        %v1414 = vpop.permute.xlu0 %1413
        %1415 = vrot.lane.b32.xlu0 %v1410, 126
        %v1416 = vpop.permute.xlu0 %1415
        %v1419 = vadd.f32 %v1405, %v1414
        %v1420 = vadd.f32 %v1406, %v1416
        %s1421 = sld [smem:[#allocation3 + $0x54]]
        %v1422 = vld [vmem:[%s477 + $0x1] sm:$0xff]
        %v1423 = vld [vmem:[%s477 + $0x9] sm:$0xff]
        %v1424 = vstv %s1421
        %v1425 = vmul.f32 %v1424, %v1422
        %v1426 = vmul.f32 %v1424, %v1423
        %v1427 = vadd.f32 %v1419, %v1425
        %v1428 = vadd.f32 %v1420, %v1426
        %s1429 = sld [smem:[#allocation3 + $0x55]]
        %v1430 = vstv %s1429
        %v1431 = vmul.f32 %v1430, %v1422
        %v1432 = vmul.f32 %v1430, %v1423
        %1435 = vrot.lane.b32.xlu0 %v1431, 127
        %v1436 = vpop.permute.xlu0 %1435
        %1437 = vrot.lane.b32.xlu0 %v1432, 127
        %v1438 = vpop.permute.xlu0 %1437
        %v1441 = vadd.f32 %v1427, %v1436
        %v1442 = vadd.f32 %v1428, %v1438
        %s1443 = sld [smem:[#allocation3 + $0x56]]
        %v1444 = vstv %s1443
        %v1445 = vmul.f32 %v1444, %v1422
        %v1446 = vmul.f32 %v1444, %v1423
        %1449 = vrot.lane.b32.xlu0 %v1445, 126
        %v1450 = vpop.permute.xlu0 %1449
        %1451 = vrot.lane.b32.xlu0 %v1446, 126
        %v1452 = vpop.permute.xlu0 %1451
        %v1455 = vadd.f32 %v1441, %v1450
        %v1456 = vadd.f32 %v1442, %v1452
        %s1457 = sld [smem:[#allocation3 + $0x57]]
        %v1458 = vld [vmem:[%s477 + $0x2] sm:$0xff]
        %v1459 = vld [vmem:[%s477 + $0xa] sm:$0xff]
        %v1460 = vstv %s1457
        %v1461 = vmul.f32 %v1460, %v1458
        %v1462 = vmul.f32 %v1460, %v1459
        %v1463 = vadd.f32 %v1455, %v1461
        %v1464 = vadd.f32 %v1456, %v1462
        %s1465 = sld [smem:[#allocation3 + $0x58]]
        %v1466 = vstv %s1465
        %v1467 = vmul.f32 %v1466, %v1458
        %v1468 = vmul.f32 %v1466, %v1459
        %1471 = vrot.lane.b32.xlu0 %v1467, 127
        %v1472 = vpop.permute.xlu0 %1471
        %1473 = vrot.lane.b32.xlu0 %v1468, 127
        %v1474 = vpop.permute.xlu0 %1473
        %v1477 = vadd.f32 %v1463, %v1472
        %v1478 = vadd.f32 %v1464, %v1474
        %s1479 = sld [smem:[#allocation3 + $0x59]]
        %v1480 = vstv %s1479
        %v1481 = vmul.f32 %v1480, %v1458
        %v1482 = vmul.f32 %v1480, %v1459
        %1485 = vrot.lane.b32.xlu0 %v1481, 126
        %v1486 = vpop.permute.xlu0 %1485
        %1487 = vrot.lane.b32.xlu0 %v1482, 126
        %v1488 = vpop.permute.xlu0 %1487
        %v1491 = vadd.f32 %v1477, %v1486
        %v1492 = vadd.f32 %v1478, %v1488
        %s1493 = sld [smem:[#allocation3 + $0x5a]]
        %v1494 = vld [vmem:[%s586] sm:$0xff]
        %v1495 = vld [vmem:[%s586 + $0x8] sm:$0xff]
        %v1496 = vstv %s1493
        %v1497 = vmul.f32 %v1496, %v1494
        %v1498 = vmul.f32 %v1496, %v1495
        %v1499 = vadd.f32 %v1491, %v1497
        %v1500 = vadd.f32 %v1492, %v1498
        %s1501 = sld [smem:[#allocation3 + $0x5b]]
        %v1502 = vstv %s1501
        %v1503 = vmul.f32 %v1502, %v1494
        %v1504 = vmul.f32 %v1502, %v1495
        %1507 = vrot.lane.b32.xlu0 %v1503, 127
        %v1508 = vpop.permute.xlu0 %1507
        %1509 = vrot.lane.b32.xlu0 %v1504, 127
        %v1510 = vpop.permute.xlu0 %1509
        %v1513 = vadd.f32 %v1499, %v1508
        %v1514 = vadd.f32 %v1500, %v1510
        %s1515 = sld [smem:[#allocation3 + $0x5c]]
        %v1516 = vstv %s1515
        %v1517 = vmul.f32 %v1516, %v1494
        %v1518 = vmul.f32 %v1516, %v1495
        %1521 = vrot.lane.b32.xlu0 %v1517, 126
        %v1522 = vpop.permute.xlu0 %1521
        %1523 = vrot.lane.b32.xlu0 %v1518, 126
        %v1524 = vpop.permute.xlu0 %1523
        %v1527 = vadd.f32 %v1513, %v1522
        %v1528 = vadd.f32 %v1514, %v1524
        %s1529 = sld [smem:[#allocation3 + $0x5d]]
        %v1530 = vld [vmem:[%s586 + $0x1] sm:$0xff]
        %v1531 = vld [vmem:[%s586 + $0x9] sm:$0xff]
        %v1532 = vstv %s1529
        %v1533 = vmul.f32 %v1532, %v1530
        %v1534 = vmul.f32 %v1532, %v1531
        %v1535 = vadd.f32 %v1527, %v1533
        %v1536 = vadd.f32 %v1528, %v1534
        %s1537 = sld [smem:[#allocation3 + $0x5e]]
        %v1538 = vstv %s1537
        %v1539 = vmul.f32 %v1538, %v1530
        %v1540 = vmul.f32 %v1538, %v1531
        %1543 = vrot.lane.b32.xlu0 %v1539, 127
        %v1544 = vpop.permute.xlu0 %1543
        %1545 = vrot.lane.b32.xlu0 %v1540, 127
        %v1546 = vpop.permute.xlu0 %1545
        %v1549 = vadd.f32 %v1535, %v1544
        %v1550 = vadd.f32 %v1536, %v1546
        %s1551 = sld [smem:[#allocation3 + $0x5f]]
        %v1552 = vstv %s1551
        %v1553 = vmul.f32 %v1552, %v1530
        %v1554 = vmul.f32 %v1552, %v1531
        %1557 = vrot.lane.b32.xlu0 %v1553, 126
        %v1558 = vpop.permute.xlu0 %1557
        %1559 = vrot.lane.b32.xlu0 %v1554, 126
        %v1560 = vpop.permute.xlu0 %1559
        %v1563 = vadd.f32 %v1549, %v1558
        %v1564 = vadd.f32 %v1550, %v1560
        %s1565 = sld [smem:[#allocation3 + $0x60]]
        %v1566 = vld [vmem:[%s586 + $0x2] sm:$0xff]
        %v1567 = vld [vmem:[%s586 + $0xa] sm:$0xff]
        %v1568 = vstv %s1565
        %v1569 = vmul.f32 %v1568, %v1566
        %v1570 = vmul.f32 %v1568, %v1567
        %v1571 = vadd.f32 %v1563, %v1569
        %v1572 = vadd.f32 %v1564, %v1570
        %s1573 = sld [smem:[#allocation3 + $0x61]]
        %v1574 = vstv %s1573
        %v1575 = vmul.f32 %v1574, %v1566
        %v1576 = vmul.f32 %v1574, %v1567
        %1579 = vrot.lane.b32.xlu0 %v1575, 127
        %v1580 = vpop.permute.xlu0 %1579
        %1581 = vrot.lane.b32.xlu0 %v1576, 127
        %v1582 = vpop.permute.xlu0 %1581
        %v1585 = vadd.f32 %v1571, %v1580
        %v1586 = vadd.f32 %v1572, %v1582
        %s1587 = sld [smem:[#allocation3 + $0x62]]
        %v1588 = vstv %s1587
        %v1589 = vmul.f32 %v1588, %v1566
        %v1590 = vmul.f32 %v1588, %v1567
        %1593 = vrot.lane.b32.xlu0 %v1589, 126
        %v1594 = vpop.permute.xlu0 %1593
        %1595 = vrot.lane.b32.xlu0 %v1590, 126
        %v1596 = vpop.permute.xlu0 %1595
        %v1599 = vadd.f32 %v1585, %v1594
        %v1600 = vadd.f32 %v1586, %v1596
        %s1601 = sld [smem:[#allocation3 + $0x63]]
        %v1602 = vld [vmem:[%s695] sm:$0xff]
        %v1603 = vld [vmem:[%s695 + $0x8] sm:$0xff]
        %v1604 = vstv %s1601
        %v1605 = vmul.f32 %v1604, %v1602
        %v1606 = vmul.f32 %v1604, %v1603
        %v1607 = vadd.f32 %v1599, %v1605
        %v1608 = vadd.f32 %v1600, %v1606
        %s1609 = sld [smem:[#allocation3 + $0x64]]
        %v1610 = vstv %s1609
        %v1611 = vmul.f32 %v1610, %v1602
        %v1612 = vmul.f32 %v1610, %v1603
        %1615 = vrot.lane.b32.xlu0 %v1611, 127
        %v1616 = vpop.permute.xlu0 %1615
        %1617 = vrot.lane.b32.xlu0 %v1612, 127
        %v1618 = vpop.permute.xlu0 %1617
        %v1621 = vadd.f32 %v1607, %v1616
        %v1622 = vadd.f32 %v1608, %v1618
        %s1623 = sld [smem:[#allocation3 + $0x65]]
        %v1624 = vstv %s1623
        %v1625 = vmul.f32 %v1624, %v1602
        %v1626 = vmul.f32 %v1624, %v1603
        %1629 = vrot.lane.b32.xlu0 %v1625, 126
        %v1630 = vpop.permute.xlu0 %1629
        %1631 = vrot.lane.b32.xlu0 %v1626, 126
        %v1632 = vpop.permute.xlu0 %1631
        %v1635 = vadd.f32 %v1621, %v1630
        %v1636 = vadd.f32 %v1622, %v1632
        %s1637 = sld [smem:[#allocation3 + $0x66]]
        %v1638 = vld [vmem:[%s695 + $0x1] sm:$0xff]
        %v1639 = vld [vmem:[%s695 + $0x9] sm:$0xff]
        %v1640 = vstv %s1637
        %v1641 = vmul.f32 %v1640, %v1638
        %v1642 = vmul.f32 %v1640, %v1639
        %v1643 = vadd.f32 %v1635, %v1641
        %v1644 = vadd.f32 %v1636, %v1642
        %s1645 = sld [smem:[#allocation3 + $0x67]]
        %v1646 = vstv %s1645
        %v1647 = vmul.f32 %v1646, %v1638
        %v1648 = vmul.f32 %v1646, %v1639
        %1651 = vrot.lane.b32.xlu0 %v1647, 127
        %v1652 = vpop.permute.xlu0 %1651
        %1653 = vrot.lane.b32.xlu0 %v1648, 127
        %v1654 = vpop.permute.xlu0 %1653
        %v1657 = vadd.f32 %v1643, %v1652
        %v1658 = vadd.f32 %v1644, %v1654
        %s1659 = sld [smem:[#allocation3 + $0x68]]
        %v1660 = vstv %s1659
        %v1661 = vmul.f32 %v1660, %v1638
        %v1662 = vmul.f32 %v1660, %v1639
        %1665 = vrot.lane.b32.xlu0 %v1661, 126
        %v1666 = vpop.permute.xlu0 %1665
        %1667 = vrot.lane.b32.xlu0 %v1662, 126
        %v1668 = vpop.permute.xlu0 %1667
        %v1671 = vadd.f32 %v1657, %v1666
        %v1672 = vadd.f32 %v1658, %v1668
        %s1673 = sld [smem:[#allocation3 + $0x69]]
        %v1674 = vld [vmem:[%s695 + $0x2] sm:$0xff]
        %v1675 = vld [vmem:[%s695 + $0xa] sm:$0xff]
        %v1676 = vstv %s1673
        %v1677 = vmul.f32 %v1676, %v1674
        %v1678 = vmul.f32 %v1676, %v1675
        %v1679 = vadd.f32 %v1671, %v1677
        %v1680 = vadd.f32 %v1672, %v1678
        %s1681 = sld [smem:[#allocation3 + $0x6a]]
        %v1682 = vstv %s1681
        %v1683 = vmul.f32 %v1682, %v1674
        %v1684 = vmul.f32 %v1682, %v1675
        %1687 = vrot.lane.b32.xlu0 %v1683, 127
        %v1688 = vpop.permute.xlu0 %1687
        %1689 = vrot.lane.b32.xlu0 %v1684, 127
        %v1690 = vpop.permute.xlu0 %1689
        %v1693 = vadd.f32 %v1679, %v1688
        %v1694 = vadd.f32 %v1680, %v1690
        %s1695 = sld [smem:[#allocation3 + $0x6b]]
        %v1696 = vstv %s1695
        %v1697 = vmul.f32 %v1696, %v1674
        %v1698 = vmul.f32 %v1696, %v1675
        %1701 = vrot.lane.b32.xlu0 %v1697, 126
        %v1702 = vpop.permute.xlu0 %1701
        %1703 = vrot.lane.b32.xlu0 %v1698, 126
        %v1704 = vpop.permute.xlu0 %1703
        %v1707 = vadd.f32 %v1693, %v1702
        %v1708 = vadd.f32 %v1694, %v1704
        %s1709 = sld [smem:[#allocation6 + $0x2]]
        %v1710 = vstv %s1709
        %v1711 = vmul.f32 %v1707, %v1710
        %v1712 = vmul.f32 %v1708, %v1710
        %s1713 = sld [smem:[#allocation8 + $0x2]]
        %v1714 = vstv %s1713
        %v1715 = vadd.f32 %v1711, %v1714
        %v1716 = vadd.f32 %v1712, %v1714
        %v1717 = vmax.f32 %v1715, 0.0
        %v1718 = vmax.f32 %v1716, 0.0
        %1721 = vrot.lane.b32.xlu0 %v1717, 1
        %v1722 = vpop.permute.xlu0 %1721
        %1723 = vrot.lane.b32.xlu0 %v1718, 1
        %v1724 = vpop.permute.xlu0 %1723
        %s1727 = scalar_lea.vmem [#allocation2], 48
        %1728 = vst.msk [vmem:[%s1727 + $0x1] sm:$0xff] %vm821, %v1722
        %1729 = vst.msk [vmem:[%s1727 + $0x9] sm:$0xff] %vm821, %v1724
        %s1730 = sld [smem:[#allocation3 + $0x6c]]
        %v1731 = vld [vmem:[%s353] sm:$0xff]
        %v1732 = vld [vmem:[%s353 + $0x8] sm:$0xff]
        %v1733 = vstv %s1730
        %v1734 = vmul.f32 %v1733, %v1731
        %v1735 = vmul.f32 %v1733, %v1732
        %v1736 = vadd.f32 %v1734, 0.0
        %v1737 = vadd.f32 %v1735, 0.0
        %s1738 = sld [smem:[#allocation3 + $0x6d]]
        %v1739 = vstv %s1738
        %v1740 = vmul.f32 %v1739, %v1731
        %v1741 = vmul.f32 %v1739, %v1732
        %1744 = vrot.lane.b32.xlu0 %v1740, 127
        %v1745 = vpop.permute.xlu0 %1744
        %1746 = vrot.lane.b32.xlu0 %v1741, 127
        %v1747 = vpop.permute.xlu0 %1746
        %v1750 = vadd.f32 %v1736, %v1745
        %v1751 = vadd.f32 %v1737, %v1747
        %s1752 = sld [smem:[#allocation3 + $0x6e]]
        %v1753 = vstv %s1752
        %v1754 = vmul.f32 %v1753, %v1731
        %v1755 = vmul.f32 %v1753, %v1732
        %1758 = vrot.lane.b32.xlu0 %v1754, 126
        %v1759 = vpop.permute.xlu0 %1758
        %1760 = vrot.lane.b32.xlu0 %v1755, 126
        %v1761 = vpop.permute.xlu0 %1760
        %v1764 = vadd.f32 %v1750, %v1759
        %v1765 = vadd.f32 %v1751, %v1761
        %s1766 = sld [smem:[#allocation3 + $0x6f]]
        %v1767 = vld [vmem:[%s353 + $0x1] sm:$0xff]
        %v1768 = vld [vmem:[%s353 + $0x9] sm:$0xff]
        %v1769 = vstv %s1766
        %v1770 = vmul.f32 %v1769, %v1767
        %v1771 = vmul.f32 %v1769, %v1768
        %v1772 = vadd.f32 %v1764, %v1770
        %v1773 = vadd.f32 %v1765, %v1771
        %s1774 = sld [smem:[#allocation3 + $0x70]]
        %v1775 = vstv %s1774
        %v1776 = vmul.f32 %v1775, %v1767
        %v1777 = vmul.f32 %v1775, %v1768
        %1780 = vrot.lane.b32.xlu0 %v1776, 127
        %v1781 = vpop.permute.xlu0 %1780
        %1782 = vrot.lane.b32.xlu0 %v1777, 127
        %v1783 = vpop.permute.xlu0 %1782
        %v1786 = vadd.f32 %v1772, %v1781
        %v1787 = vadd.f32 %v1773, %v1783
        %s1788 = sld [smem:[#allocation3 + $0x71]]
        %v1789 = vstv %s1788
        %v1790 = vmul.f32 %v1789, %v1767
        %v1791 = vmul.f32 %v1789, %v1768
        %1794 = vrot.lane.b32.xlu0 %v1790, 126
        %v1795 = vpop.permute.xlu0 %1794
        %1796 = vrot.lane.b32.xlu0 %v1791, 126
        %v1797 = vpop.permute.xlu0 %1796
        %v1800 = vadd.f32 %v1786, %v1795
        %v1801 = vadd.f32 %v1787, %v1797
        %s1802 = sld [smem:[#allocation3 + $0x72]]
        %v1803 = vld [vmem:[%s353 + $0x2] sm:$0xff]
        %v1804 = vld [vmem:[%s353 + $0xa] sm:$0xff]
        %v1805 = vstv %s1802
        %v1806 = vmul.f32 %v1805, %v1803
        %v1807 = vmul.f32 %v1805, %v1804
        %v1808 = vadd.f32 %v1800, %v1806
        %v1809 = vadd.f32 %v1801, %v1807
        %s1810 = sld [smem:[#allocation3 + $0x73]]
        %v1811 = vstv %s1810
        %v1812 = vmul.f32 %v1811, %v1803
        %v1813 = vmul.f32 %v1811, %v1804
        %1816 = vrot.lane.b32.xlu0 %v1812, 127
        %v1817 = vpop.permute.xlu0 %1816
        %1818 = vrot.lane.b32.xlu0 %v1813, 127
        %v1819 = vpop.permute.xlu0 %1818
        %v1822 = vadd.f32 %v1808, %v1817
        %v1823 = vadd.f32 %v1809, %v1819
        %s1824 = sld [smem:[#allocation3 + $0x74]]
        %v1825 = vstv %s1824
        %v1826 = vmul.f32 %v1825, %v1803
        %v1827 = vmul.f32 %v1825, %v1804
        %1830 = vrot.lane.b32.xlu0 %v1826, 126
        %v1831 = vpop.permute.xlu0 %1830
        %1832 = vrot.lane.b32.xlu0 %v1827, 126
        %v1833 = vpop.permute.xlu0 %1832
        %v1836 = vadd.f32 %v1822, %v1831
        %v1837 = vadd.f32 %v1823, %v1833
        %s1838 = sld [smem:[#allocation3 + $0x75]]
        %v1839 = vld [vmem:[%s477] sm:$0xff]
        %v1840 = vld [vmem:[%s477 + $0x8] sm:$0xff]
        %v1841 = vstv %s1838
        %v1842 = vmul.f32 %v1841, %v1839
        %v1843 = vmul.f32 %v1841, %v1840
        %v1844 = vadd.f32 %v1836, %v1842
        %v1845 = vadd.f32 %v1837, %v1843
        %s1846 = sld [smem:[#allocation3 + $0x76]]
        %v1847 = vstv %s1846
        %v1848 = vmul.f32 %v1847, %v1839
        %v1849 = vmul.f32 %v1847, %v1840
        %1852 = vrot.lane.b32.xlu0 %v1848, 127
        %v1853 = vpop.permute.xlu0 %1852
        %1854 = vrot.lane.b32.xlu0 %v1849, 127
        %v1855 = vpop.permute.xlu0 %1854
        %v1858 = vadd.f32 %v1844, %v1853
        %v1859 = vadd.f32 %v1845, %v1855
        %s1860 = sld [smem:[#allocation3 + $0x77]]
        %v1861 = vstv %s1860
        %v1862 = vmul.f32 %v1861, %v1839
        %v1863 = vmul.f32 %v1861, %v1840
        %1866 = vrot.lane.b32.xlu0 %v1862, 126
        %v1867 = vpop.permute.xlu0 %1866
        %1868 = vrot.lane.b32.xlu0 %v1863, 126
        %v1869 = vpop.permute.xlu0 %1868
        %v1872 = vadd.f32 %v1858, %v1867
        %v1873 = vadd.f32 %v1859, %v1869
        %s1874 = sld [smem:[#allocation3 + $0x78]]
        %v1875 = vld [vmem:[%s477 + $0x1] sm:$0xff]
        %v1876 = vld [vmem:[%s477 + $0x9] sm:$0xff]
        %v1877 = vstv %s1874
        %v1878 = vmul.f32 %v1877, %v1875
        %v1879 = vmul.f32 %v1877, %v1876
        %v1880 = vadd.f32 %v1872, %v1878
        %v1881 = vadd.f32 %v1873, %v1879
        %s1882 = sld [smem:[#allocation3 + $0x79]]
        %v1883 = vstv %s1882
        %v1884 = vmul.f32 %v1883, %v1875
        %v1885 = vmul.f32 %v1883, %v1876
        %1888 = vrot.lane.b32.xlu0 %v1884, 127
        %v1889 = vpop.permute.xlu0 %1888
        %1890 = vrot.lane.b32.xlu0 %v1885, 127
        %v1891 = vpop.permute.xlu0 %1890
        %v1894 = vadd.f32 %v1880, %v1889
        %v1895 = vadd.f32 %v1881, %v1891
        %s1896 = sld [smem:[#allocation3 + $0x7a]]
        %v1897 = vstv %s1896
        %v1898 = vmul.f32 %v1897, %v1875
        %v1899 = vmul.f32 %v1897, %v1876
        %1902 = vrot.lane.b32.xlu0 %v1898, 126
        %v1903 = vpop.permute.xlu0 %1902
        %1904 = vrot.lane.b32.xlu0 %v1899, 126
        %v1905 = vpop.permute.xlu0 %1904
        %v1908 = vadd.f32 %v1894, %v1903
        %v1909 = vadd.f32 %v1895, %v1905
        %s1910 = sld [smem:[#allocation3 + $0x7b]]
        %v1911 = vld [vmem:[%s477 + $0x2] sm:$0xff]
        %v1912 = vld [vmem:[%s477 + $0xa] sm:$0xff]
        %v1913 = vstv %s1910
        %v1914 = vmul.f32 %v1913, %v1911
        %v1915 = vmul.f32 %v1913, %v1912
        %v1916 = vadd.f32 %v1908, %v1914
        %v1917 = vadd.f32 %v1909, %v1915
        %s1918 = sld [smem:[#allocation3 + $0x7c]]
        %v1919 = vstv %s1918
        %v1920 = vmul.f32 %v1919, %v1911
        %v1921 = vmul.f32 %v1919, %v1912
        %1924 = vrot.lane.b32.xlu0 %v1920, 127
        %v1925 = vpop.permute.xlu0 %1924
        %1926 = vrot.lane.b32.xlu0 %v1921, 127
        %v1927 = vpop.permute.xlu0 %1926
        %v1930 = vadd.f32 %v1916, %v1925
        %v1931 = vadd.f32 %v1917, %v1927
        %s1932 = sld [smem:[#allocation3 + $0x7d]]
        %v1933 = vstv %s1932
        %v1934 = vmul.f32 %v1933, %v1911
        %v1935 = vmul.f32 %v1933, %v1912
        %1938 = vrot.lane.b32.xlu0 %v1934, 126
        %v1939 = vpop.permute.xlu0 %1938
        %1940 = vrot.lane.b32.xlu0 %v1935, 126
        %v1941 = vpop.permute.xlu0 %1940
        %v1944 = vadd.f32 %v1930, %v1939
        %v1945 = vadd.f32 %v1931, %v1941
        %s1946 = sld [smem:[#allocation3 + $0x7e]]
        %v1947 = vld [vmem:[%s586] sm:$0xff]
        %v1948 = vld [vmem:[%s586 + $0x8] sm:$0xff]
        %v1949 = vstv %s1946
        %v1950 = vmul.f32 %v1949, %v1947
        %v1951 = vmul.f32 %v1949, %v1948
        %v1952 = vadd.f32 %v1944, %v1950
        %v1953 = vadd.f32 %v1945, %v1951
        %s1954 = sld [smem:[#allocation3 + $0x7f]]
        %v1955 = vstv %s1954
        %v1956 = vmul.f32 %v1955, %v1947
        %v1957 = vmul.f32 %v1955, %v1948
        %1960 = vrot.lane.b32.xlu0 %v1956, 127
        %v1961 = vpop.permute.xlu0 %1960
        %1962 = vrot.lane.b32.xlu0 %v1957, 127
        %v1963 = vpop.permute.xlu0 %1962
        %v1966 = vadd.f32 %v1952, %v1961
        %v1967 = vadd.f32 %v1953, %v1963
        %s1968 = sld [smem:[#allocation3 + $0x80]]
        %v1969 = vstv %s1968
        %v1970 = vmul.f32 %v1969, %v1947
        %v1971 = vmul.f32 %v1969, %v1948
        %1974 = vrot.lane.b32.xlu0 %v1970, 126
        %v1975 = vpop.permute.xlu0 %1974
        %1976 = vrot.lane.b32.xlu0 %v1971, 126
        %v1977 = vpop.permute.xlu0 %1976
        %v1980 = vadd.f32 %v1966, %v1975
        %v1981 = vadd.f32 %v1967, %v1977
        %s1982 = sld [smem:[#allocation3 + $0x81]]
        %v1983 = vld [vmem:[%s586 + $0x1] sm:$0xff]
        %v1984 = vld [vmem:[%s586 + $0x9] sm:$0xff]
        %v1985 = vstv %s1982
        %v1986 = vmul.f32 %v1985, %v1983
        %v1987 = vmul.f32 %v1985, %v1984
        %v1988 = vadd.f32 %v1980, %v1986
        %v1989 = vadd.f32 %v1981, %v1987
        %s1990 = sld [smem:[#allocation3 + $0x82]]
        %v1991 = vstv %s1990
        %v1992 = vmul.f32 %v1991, %v1983
        %v1993 = vmul.f32 %v1991, %v1984
        %1996 = vrot.lane.b32.xlu0 %v1992, 127
        %v1997 = vpop.permute.xlu0 %1996
        %1998 = vrot.lane.b32.xlu0 %v1993, 127
        %v1999 = vpop.permute.xlu0 %1998
        %v2002 = vadd.f32 %v1988, %v1997
        %v2003 = vadd.f32 %v1989, %v1999
        %s2004 = sld [smem:[#allocation3 + $0x83]]
        %v2005 = vstv %s2004
        %v2006 = vmul.f32 %v2005, %v1983
        %v2007 = vmul.f32 %v2005, %v1984
        %2010 = vrot.lane.b32.xlu0 %v2006, 126
        %v2011 = vpop.permute.xlu0 %2010
        %2012 = vrot.lane.b32.xlu0 %v2007, 126
        %v2013 = vpop.permute.xlu0 %2012
        %v2016 = vadd.f32 %v2002, %v2011
        %v2017 = vadd.f32 %v2003, %v2013
        %s2018 = sld [smem:[#allocation3 + $0x84]]
        %v2019 = vld [vmem:[%s586 + $0x2] sm:$0xff]
        %v2020 = vld [vmem:[%s586 + $0xa] sm:$0xff]
        %v2021 = vstv %s2018
        %v2022 = vmul.f32 %v2021, %v2019
        %v2023 = vmul.f32 %v2021, %v2020
        %v2024 = vadd.f32 %v2016, %v2022
        %v2025 = vadd.f32 %v2017, %v2023
        %s2026 = sld [smem:[#allocation3 + $0x85]]
        %v2027 = vstv %s2026
        %v2028 = vmul.f32 %v2027, %v2019
        %v2029 = vmul.f32 %v2027, %v2020
        %2032 = vrot.lane.b32.xlu0 %v2028, 127
        %v2033 = vpop.permute.xlu0 %2032
        %2034 = vrot.lane.b32.xlu0 %v2029, 127
        %v2035 = vpop.permute.xlu0 %2034
        %v2038 = vadd.f32 %v2024, %v2033
        %v2039 = vadd.f32 %v2025, %v2035
        %s2040 = sld [smem:[#allocation3 + $0x86]]
        %v2041 = vstv %s2040
        %v2042 = vmul.f32 %v2041, %v2019
        %v2043 = vmul.f32 %v2041, %v2020
        %2046 = vrot.lane.b32.xlu0 %v2042, 126
        %v2047 = vpop.permute.xlu0 %2046
        %2048 = vrot.lane.b32.xlu0 %v2043, 126
        %v2049 = vpop.permute.xlu0 %2048
        %v2052 = vadd.f32 %v2038, %v2047
        %v2053 = vadd.f32 %v2039, %v2049
        %s2054 = sld [smem:[#allocation3 + $0x87]]
        %v2055 = vld [vmem:[%s695] sm:$0xff]
        %v2056 = vld [vmem:[%s695 + $0x8] sm:$0xff]
        %v2057 = vstv %s2054
        %v2058 = vmul.f32 %v2057, %v2055
        %v2059 = vmul.f32 %v2057, %v2056
        %v2060 = vadd.f32 %v2052, %v2058
        %v2061 = vadd.f32 %v2053, %v2059
        %s2062 = sld [smem:[#allocation3 + $0x88]]
        %v2063 = vstv %s2062
        %v2064 = vmul.f32 %v2063, %v2055
        %v2065 = vmul.f32 %v2063, %v2056
        %2068 = vrot.lane.b32.xlu0 %v2064, 127
        %v2069 = vpop.permute.xlu0 %2068
        %2070 = vrot.lane.b32.xlu0 %v2065, 127
        %v2071 = vpop.permute.xlu0 %2070
        %v2074 = vadd.f32 %v2060, %v2069
        %v2075 = vadd.f32 %v2061, %v2071
        %s2076 = sld [smem:[#allocation3 + $0x89]]
        %v2077 = vstv %s2076
        %v2078 = vmul.f32 %v2077, %v2055
        %v2079 = vmul.f32 %v2077, %v2056
        %2082 = vrot.lane.b32.xlu0 %v2078, 126
        %v2083 = vpop.permute.xlu0 %2082
        %2084 = vrot.lane.b32.xlu0 %v2079, 126
        %v2085 = vpop.permute.xlu0 %2084
        %v2088 = vadd.f32 %v2074, %v2083
        %v2089 = vadd.f32 %v2075, %v2085
        %s2090 = sld [smem:[#allocation3 + $0x8a]]
        %v2091 = vld [vmem:[%s695 + $0x1] sm:$0xff]
        %v2092 = vld [vmem:[%s695 + $0x9] sm:$0xff]
        %v2093 = vstv %s2090
        %v2094 = vmul.f32 %v2093, %v2091
        %v2095 = vmul.f32 %v2093, %v2092
        %v2096 = vadd.f32 %v2088, %v2094
        %v2097 = vadd.f32 %v2089, %v2095
        %s2098 = sld [smem:[#allocation3 + $0x8b]]
        %v2099 = vstv %s2098
        %v2100 = vmul.f32 %v2099, %v2091
        %v2101 = vmul.f32 %v2099, %v2092
        %2104 = vrot.lane.b32.xlu0 %v2100, 127
        %v2105 = vpop.permute.xlu0 %2104
        %2106 = vrot.lane.b32.xlu0 %v2101, 127
        %v2107 = vpop.permute.xlu0 %2106
        %v2110 = vadd.f32 %v2096, %v2105
        %v2111 = vadd.f32 %v2097, %v2107
        %s2112 = sld [smem:[#allocation3 + $0x8c]]
        %v2113 = vstv %s2112
        %v2114 = vmul.f32 %v2113, %v2091
        %v2115 = vmul.f32 %v2113, %v2092
        %2118 = vrot.lane.b32.xlu0 %v2114, 126
        %v2119 = vpop.permute.xlu0 %2118
        %2120 = vrot.lane.b32.xlu0 %v2115, 126
        %v2121 = vpop.permute.xlu0 %2120
        %v2124 = vadd.f32 %v2110, %v2119
        %v2125 = vadd.f32 %v2111, %v2121
        %s2126 = sld [smem:[#allocation3 + $0x8d]]
        %v2127 = vld [vmem:[%s695 + $0x2] sm:$0xff]
        %v2128 = vld [vmem:[%s695 + $0xa] sm:$0xff]
        %v2129 = vstv %s2126
        %v2130 = vmul.f32 %v2129, %v2127
        %v2131 = vmul.f32 %v2129, %v2128
        %v2132 = vadd.f32 %v2124, %v2130
        %v2133 = vadd.f32 %v2125, %v2131
        %s2134 = sld [smem:[#allocation3 + $0x8e]]
        %v2135 = vstv %s2134
        %v2136 = vmul.f32 %v2135, %v2127
        %v2137 = vmul.f32 %v2135, %v2128
        %2140 = vrot.lane.b32.xlu0 %v2136, 127
        %v2141 = vpop.permute.xlu0 %2140
        %2142 = vrot.lane.b32.xlu0 %v2137, 127
        %v2143 = vpop.permute.xlu0 %2142
        %v2146 = vadd.f32 %v2132, %v2141
        %v2147 = vadd.f32 %v2133, %v2143
        %s2148 = sld [smem:[#allocation3 + $0x8f]]
        %v2149 = vstv %s2148
        %v2150 = vmul.f32 %v2149, %v2127
        %v2151 = vmul.f32 %v2149, %v2128
        %2154 = vrot.lane.b32.xlu0 %v2150, 126
        %v2155 = vpop.permute.xlu0 %2154
        %2156 = vrot.lane.b32.xlu0 %v2151, 126
        %v2157 = vpop.permute.xlu0 %2156
        %v2160 = vadd.f32 %v2146, %v2155
        %v2161 = vadd.f32 %v2147, %v2157
        %s2162 = sld [smem:[#allocation6 + $0x3]]
        %v2163 = vstv %s2162
        %v2164 = vmul.f32 %v2160, %v2163
        %v2165 = vmul.f32 %v2161, %v2163
        %s2166 = sld [smem:[#allocation8 + $0x3]]
        %v2167 = vstv %s2166
        %v2168 = vadd.f32 %v2164, %v2167
        %v2169 = vadd.f32 %v2165, %v2167
        %v2170 = vmax.f32 %v2168, 0.0
        %v2171 = vmax.f32 %v2169, 0.0
        %2174 = vrot.lane.b32.xlu0 %v2170, 1
        %v2175 = vpop.permute.xlu0 %2174
        %2176 = vrot.lane.b32.xlu0 %v2171, 1
        %v2177 = vpop.permute.xlu0 %2176
        %s2180 = scalar_lea.vmem [#allocation2], 72
        %2181 = vst.msk [vmem:[%s2180 + $0x1] sm:$0xff] %vm821, %v2175
        %2182 = vst.msk [vmem:[%s2180 + $0x9] sm:$0xff] %vm821, %v2177
        %s2183 = sld [smem:[#allocation9]]
        %v2184 = vld [vmem:[#allocation2] sm:$0xff]
        %v2185 = vld [vmem:[#allocation2 + $0x8] sm:$0xff]
        %v2186 = vstv %s2183
        %v2187 = vmul.f32 %v2186, %v2184
        %v2188 = vmul.f32 %v2186, %v2185
        %v2189 = vadd.f32 %v2187, 0.0
        %v2190 = vadd.f32 %v2188, 0.0
        %s2191 = sld [smem:[#allocation9 + $0x1]]
        %v2192 = vstv %s2191
        %v2193 = vmul.f32 %v2192, %v2184
        %v2194 = vmul.f32 %v2192, %v2185
        %2197 = vrot.lane.b32.xlu0 %v2193, 127
        %v2198 = vpop.permute.xlu0 %2197
        %2199 = vrot.lane.b32.xlu0 %v2194, 127
        %v2200 = vpop.permute.xlu0 %2199
        %v2203 = vadd.f32 %v2189, %v2198
        %v2204 = vadd.f32 %v2190, %v2200
        %s2205 = sld [smem:[#allocation9 + $0x2]]
        %v2206 = vstv %s2205
        %v2207 = vmul.f32 %v2206, %v2184
        %v2208 = vmul.f32 %v2206, %v2185
        %2211 = vrot.lane.b32.xlu0 %v2207, 126
        %v2212 = vpop.permute.xlu0 %2211
        %2213 = vrot.lane.b32.xlu0 %v2208, 126
        %v2214 = vpop.permute.xlu0 %2213
        %v2217 = vadd.f32 %v2203, %v2212
        %v2218 = vadd.f32 %v2204, %v2214
        %s2219 = sld [smem:[#allocation9 + $0x3]]
        %v2220 = vld [vmem:[#allocation2 + $0x1] sm:$0xff]
        %v2221 = vld [vmem:[#allocation2 + $0x9] sm:$0xff]
        %v2222 = vstv %s2219
        %v2223 = vmul.f32 %v2222, %v2220
        %v2224 = vmul.f32 %v2222, %v2221
        %v2225 = vadd.f32 %v2217, %v2223
        %v2226 = vadd.f32 %v2218, %v2224
        %s2227 = sld [smem:[#allocation9 + $0x4]]
        %v2228 = vstv %s2227
        %v2229 = vmul.f32 %v2228, %v2220
        %v2230 = vmul.f32 %v2228, %v2221
        %2233 = vrot.lane.b32.xlu0 %v2229, 127
        %v2234 = vpop.permute.xlu0 %2233
        %2235 = vrot.lane.b32.xlu0 %v2230, 127
        %v2236 = vpop.permute.xlu0 %2235
        %v2239 = vadd.f32 %v2225, %v2234
        %v2240 = vadd.f32 %v2226, %v2236
        %s2241 = sld [smem:[#allocation9 + $0x5]]
        %v2242 = vstv %s2241
        %v2243 = vmul.f32 %v2242, %v2220
        %v2244 = vmul.f32 %v2242, %v2221
        %2247 = vrot.lane.b32.xlu0 %v2243, 126
        %v2248 = vpop.permute.xlu0 %2247
        %2249 = vrot.lane.b32.xlu0 %v2244, 126
        %v2250 = vpop.permute.xlu0 %2249
        %v2253 = vadd.f32 %v2239, %v2248
        %v2254 = vadd.f32 %v2240, %v2250
        %s2255 = sld [smem:[#allocation9 + $0x6]]
        %v2256 = vld [vmem:[#allocation2 + $0x2] sm:$0xff]
        %v2257 = vld [vmem:[#allocation2 + $0xa] sm:$0xff]
        %v2258 = vstv %s2255
        %v2259 = vmul.f32 %v2258, %v2256
        %v2260 = vmul.f32 %v2258, %v2257
        %v2261 = vadd.f32 %v2253, %v2259
        %v2262 = vadd.f32 %v2254, %v2260
        %s2263 = sld [smem:[#allocation9 + $0x7]]
        %v2264 = vstv %s2263
        %v2265 = vmul.f32 %v2264, %v2256
        %v2266 = vmul.f32 %v2264, %v2257
        %2269 = vrot.lane.b32.xlu0 %v2265, 127
        %v2270 = vpop.permute.xlu0 %2269
        %2271 = vrot.lane.b32.xlu0 %v2266, 127
        %v2272 = vpop.permute.xlu0 %2271
        %v2275 = vadd.f32 %v2261, %v2270
        %v2276 = vadd.f32 %v2262, %v2272
        %s2277 = sld [smem:[#allocation9 + $0x8]]
        %v2278 = vstv %s2277
        %v2279 = vmul.f32 %v2278, %v2256
        %v2280 = vmul.f32 %v2278, %v2257
        %2283 = vrot.lane.b32.xlu0 %v2279, 126
        %v2284 = vpop.permute.xlu0 %2283
        %2285 = vrot.lane.b32.xlu0 %v2280, 126
        %v2286 = vpop.permute.xlu0 %2285
        %v2289 = vadd.f32 %v2275, %v2284
        %v2290 = vadd.f32 %v2276, %v2286
        %s2291 = sld [smem:[#allocation9 + $0x9]]
        %v2292 = vld [vmem:[%s1274] sm:$0xff]
        %v2293 = vld [vmem:[%s1274 + $0x8] sm:$0xff]
        %v2294 = vstv %s2291
        %v2295 = vmul.f32 %v2294, %v2292
        %v2296 = vmul.f32 %v2294, %v2293
        %v2297 = vadd.f32 %v2289, %v2295
        %v2298 = vadd.f32 %v2290, %v2296
        %s2299 = sld [smem:[#allocation9 + $0xa]]
        %v2300 = vstv %s2299
        %v2301 = vmul.f32 %v2300, %v2292
        %v2302 = vmul.f32 %v2300, %v2293
        %2305 = vrot.lane.b32.xlu0 %v2301, 127
        %v2306 = vpop.permute.xlu0 %2305
        %2307 = vrot.lane.b32.xlu0 %v2302, 127
        %v2308 = vpop.permute.xlu0 %2307
        %v2311 = vadd.f32 %v2297, %v2306
        %v2312 = vadd.f32 %v2298, %v2308
        %s2313 = sld [smem:[#allocation9 + $0xb]]
        %v2314 = vstv %s2313
        %v2315 = vmul.f32 %v2314, %v2292
        %v2316 = vmul.f32 %v2314, %v2293
        %2319 = vrot.lane.b32.xlu0 %v2315, 126
        %v2320 = vpop.permute.xlu0 %2319
        %2321 = vrot.lane.b32.xlu0 %v2316, 126
        %v2322 = vpop.permute.xlu0 %2321
        %v2325 = vadd.f32 %v2311, %v2320
        %v2326 = vadd.f32 %v2312, %v2322
        %s2327 = sld [smem:[#allocation9 + $0xc]]
        %v2328 = vld [vmem:[%s1274 + $0x1] sm:$0xff]
        %v2329 = vld [vmem:[%s1274 + $0x9] sm:$0xff]
        %v2330 = vstv %s2327
        %v2331 = vmul.f32 %v2330, %v2328
        %v2332 = vmul.f32 %v2330, %v2329
        %v2333 = vadd.f32 %v2325, %v2331
        %v2334 = vadd.f32 %v2326, %v2332
        %s2335 = sld [smem:[#allocation9 + $0xd]]
        %v2336 = vstv %s2335
        %v2337 = vmul.f32 %v2336, %v2328
        %v2338 = vmul.f32 %v2336, %v2329
        %2341 = vrot.lane.b32.xlu0 %v2337, 127
        %v2342 = vpop.permute.xlu0 %2341
        %2343 = vrot.lane.b32.xlu0 %v2338, 127
        %v2344 = vpop.permute.xlu0 %2343
        %v2347 = vadd.f32 %v2333, %v2342
        %v2348 = vadd.f32 %v2334, %v2344
        %s2349 = sld [smem:[#allocation9 + $0xe]]
        %v2350 = vstv %s2349
        %v2351 = vmul.f32 %v2350, %v2328
        %v2352 = vmul.f32 %v2350, %v2329
        %2355 = vrot.lane.b32.xlu0 %v2351, 126
        %v2356 = vpop.permute.xlu0 %2355
        %2357 = vrot.lane.b32.xlu0 %v2352, 126
        %v2358 = vpop.permute.xlu0 %2357
        %v2361 = vadd.f32 %v2347, %v2356
        %v2362 = vadd.f32 %v2348, %v2358
        %s2363 = sld [smem:[#allocation9 + $0xf]]
        %v2364 = vld [vmem:[%s1274 + $0x2] sm:$0xff]
        %v2365 = vld [vmem:[%s1274 + $0xa] sm:$0xff]
        %v2366 = vstv %s2363
        %v2367 = vmul.f32 %v2366, %v2364
        %v2368 = vmul.f32 %v2366, %v2365
        %v2369 = vadd.f32 %v2361, %v2367
        %v2370 = vadd.f32 %v2362, %v2368
        %s2371 = sld [smem:[#allocation9 + $0x10]]
        %v2372 = vstv %s2371
        %v2373 = vmul.f32 %v2372, %v2364
        %v2374 = vmul.f32 %v2372, %v2365
        %2377 = vrot.lane.b32.xlu0 %v2373, 127
        %v2378 = vpop.permute.xlu0 %2377
        %2379 = vrot.lane.b32.xlu0 %v2374, 127
        %v2380 = vpop.permute.xlu0 %2379
        %v2383 = vadd.f32 %v2369, %v2378
        %v2384 = vadd.f32 %v2370, %v2380
        %s2385 = sld [smem:[#allocation9 + $0x11]]
        %v2386 = vstv %s2385
        %v2387 = vmul.f32 %v2386, %v2364
        %v2388 = vmul.f32 %v2386, %v2365
        %2391 = vrot.lane.b32.xlu0 %v2387, 126
        %v2392 = vpop.permute.xlu0 %2391
        %2393 = vrot.lane.b32.xlu0 %v2388, 126
        %v2394 = vpop.permute.xlu0 %2393
        %v2397 = vadd.f32 %v2383, %v2392
        %v2398 = vadd.f32 %v2384, %v2394
        %s2399 = sld [smem:[#allocation9 + $0x12]]
        %v2400 = vld [vmem:[%s1727] sm:$0xff]
        %v2401 = vld [vmem:[%s1727 + $0x8] sm:$0xff]
        %v2402 = vstv %s2399
        %v2403 = vmul.f32 %v2402, %v2400
        %v2404 = vmul.f32 %v2402, %v2401
        %v2405 = vadd.f32 %v2397, %v2403
        %v2406 = vadd.f32 %v2398, %v2404
        %s2407 = sld [smem:[#allocation9 + $0x13]]
        %v2408 = vstv %s2407
        %v2409 = vmul.f32 %v2408, %v2400
        %v2410 = vmul.f32 %v2408, %v2401
        %2413 = vrot.lane.b32.xlu0 %v2409, 127
        %v2414 = vpop.permute.xlu0 %2413
        %2415 = vrot.lane.b32.xlu0 %v2410, 127
        %v2416 = vpop.permute.xlu0 %2415
        %v2419 = vadd.f32 %v2405, %v2414
        %v2420 = vadd.f32 %v2406, %v2416
        %s2421 = sld [smem:[#allocation9 + $0x14]]
        %v2422 = vstv %s2421
        %v2423 = vmul.f32 %v2422, %v2400
        %v2424 = vmul.f32 %v2422, %v2401
        %2427 = vrot.lane.b32.xlu0 %v2423, 126
        %v2428 = vpop.permute.xlu0 %2427
        %2429 = vrot.lane.b32.xlu0 %v2424, 126
        %v2430 = vpop.permute.xlu0 %2429
        %v2433 = vadd.f32 %v2419, %v2428
        %v2434 = vadd.f32 %v2420, %v2430
        %s2435 = sld [smem:[#allocation9 + $0x15]]
        %v2436 = vld [vmem:[%s1727 + $0x1] sm:$0xff]
        %v2437 = vld [vmem:[%s1727 + $0x9] sm:$0xff]
        %v2438 = vstv %s2435
        %v2439 = vmul.f32 %v2438, %v2436
        %v2440 = vmul.f32 %v2438, %v2437
        %v2441 = vadd.f32 %v2433, %v2439
        %v2442 = vadd.f32 %v2434, %v2440
        %s2443 = sld [smem:[#allocation9 + $0x16]]
        %v2444 = vstv %s2443
        %v2445 = vmul.f32 %v2444, %v2436
        %v2446 = vmul.f32 %v2444, %v2437
        %2449 = vrot.lane.b32.xlu0 %v2445, 127
        %v2450 = vpop.permute.xlu0 %2449
        %2451 = vrot.lane.b32.xlu0 %v2446, 127
        %v2452 = vpop.permute.xlu0 %2451
        %v2455 = vadd.f32 %v2441, %v2450
        %v2456 = vadd.f32 %v2442, %v2452
        %s2457 = sld [smem:[#allocation9 + $0x17]]
        %v2458 = vstv %s2457
        %v2459 = vmul.f32 %v2458, %v2436
        %v2460 = vmul.f32 %v2458, %v2437
        %2463 = vrot.lane.b32.xlu0 %v2459, 126
        %v2464 = vpop.permute.xlu0 %2463
        %2465 = vrot.lane.b32.xlu0 %v2460, 126
        %v2466 = vpop.permute.xlu0 %2465
        %v2469 = vadd.f32 %v2455, %v2464
        %v2470 = vadd.f32 %v2456, %v2466
        %s2471 = sld [smem:[#allocation9 + $0x18]]
        %v2472 = vld [vmem:[%s1727 + $0x2] sm:$0xff]
        %v2473 = vld [vmem:[%s1727 + $0xa] sm:$0xff]
        %v2474 = vstv %s2471
        %v2475 = vmul.f32 %v2474, %v2472
        %v2476 = vmul.f32 %v2474, %v2473
        %v2477 = vadd.f32 %v2469, %v2475
        %v2478 = vadd.f32 %v2470, %v2476
        %s2479 = sld [smem:[#allocation9 + $0x19]]
        %v2480 = vstv %s2479
        %v2481 = vmul.f32 %v2480, %v2472
        %v2482 = vmul.f32 %v2480, %v2473
        %2485 = vrot.lane.b32.xlu0 %v2481, 127
        %v2486 = vpop.permute.xlu0 %2485
        %2487 = vrot.lane.b32.xlu0 %v2482, 127
        %v2488 = vpop.permute.xlu0 %2487
        %v2491 = vadd.f32 %v2477, %v2486
        %v2492 = vadd.f32 %v2478, %v2488
        %s2493 = sld [smem:[#allocation9 + $0x1a]]
        %v2494 = vstv %s2493
        %v2495 = vmul.f32 %v2494, %v2472
        %v2496 = vmul.f32 %v2494, %v2473
        %2499 = vrot.lane.b32.xlu0 %v2495, 126
        %v2500 = vpop.permute.xlu0 %2499
        %2501 = vrot.lane.b32.xlu0 %v2496, 126
        %v2502 = vpop.permute.xlu0 %2501
        %v2505 = vadd.f32 %v2491, %v2500
        %v2506 = vadd.f32 %v2492, %v2502
        %s2507 = sld [smem:[#allocation9 + $0x1b]]
        %v2508 = vld [vmem:[%s2180] sm:$0xff]
        %v2509 = vld [vmem:[%s2180 + $0x8] sm:$0xff]
        %v2510 = vstv %s2507
        %v2511 = vmul.f32 %v2510, %v2508
        %v2512 = vmul.f32 %v2510, %v2509
        %v2513 = vadd.f32 %v2505, %v2511
        %v2514 = vadd.f32 %v2506, %v2512
        %s2515 = sld [smem:[#allocation9 + $0x1c]]
        %v2516 = vstv %s2515
        %v2517 = vmul.f32 %v2516, %v2508
        %v2518 = vmul.f32 %v2516, %v2509
        %2521 = vrot.lane.b32.xlu0 %v2517, 127
        %v2522 = vpop.permute.xlu0 %2521
        %2523 = vrot.lane.b32.xlu0 %v2518, 127
        %v2524 = vpop.permute.xlu0 %2523
        %v2527 = vadd.f32 %v2513, %v2522
        %v2528 = vadd.f32 %v2514, %v2524
        %s2529 = sld [smem:[#allocation9 + $0x1d]]
        %v2530 = vstv %s2529
        %v2531 = vmul.f32 %v2530, %v2508
        %v2532 = vmul.f32 %v2530, %v2509
        %2535 = vrot.lane.b32.xlu0 %v2531, 126
        %v2536 = vpop.permute.xlu0 %2535
        %2537 = vrot.lane.b32.xlu0 %v2532, 126
        %v2538 = vpop.permute.xlu0 %2537
        %v2541 = vadd.f32 %v2527, %v2536
        %v2542 = vadd.f32 %v2528, %v2538
        %s2543 = sld [smem:[#allocation9 + $0x1e]]
        %v2544 = vld [vmem:[%s2180 + $0x1] sm:$0xff]
        %v2545 = vld [vmem:[%s2180 + $0x9] sm:$0xff]
        %v2546 = vstv %s2543
        %v2547 = vmul.f32 %v2546, %v2544
        %v2548 = vmul.f32 %v2546, %v2545
        %v2549 = vadd.f32 %v2541, %v2547
        %v2550 = vadd.f32 %v2542, %v2548
        %s2551 = sld [smem:[#allocation9 + $0x1f]]
        %v2552 = vstv %s2551
        %v2553 = vmul.f32 %v2552, %v2544
        %v2554 = vmul.f32 %v2552, %v2545
        %2557 = vrot.lane.b32.xlu0 %v2553, 127
        %v2558 = vpop.permute.xlu0 %2557
        %2559 = vrot.lane.b32.xlu0 %v2554, 127
        %v2560 = vpop.permute.xlu0 %2559
        %v2563 = vadd.f32 %v2549, %v2558
        %v2564 = vadd.f32 %v2550, %v2560
        %s2565 = sld [smem:[#allocation9 + $0x20]]
        %v2566 = vstv %s2565
        %v2567 = vmul.f32 %v2566, %v2544
        %v2568 = vmul.f32 %v2566, %v2545
        %2571 = vrot.lane.b32.xlu0 %v2567, 126
        %v2572 = vpop.permute.xlu0 %2571
        %2573 = vrot.lane.b32.xlu0 %v2568, 126
        %v2574 = vpop.permute.xlu0 %2573
        %v2577 = vadd.f32 %v2563, %v2572
        %v2578 = vadd.f32 %v2564, %v2574
        %s2579 = sld [smem:[#allocation9 + $0x21]]
        %v2580 = vld [vmem:[%s2180 + $0x2] sm:$0xff]
        %v2581 = vld [vmem:[%s2180 + $0xa] sm:$0xff]
        %v2582 = vstv %s2579
        %v2583 = vmul.f32 %v2582, %v2580
        %v2584 = vmul.f32 %v2582, %v2581
        %v2585 = vadd.f32 %v2577, %v2583
        %v2586 = vadd.f32 %v2578, %v2584
        %s2587 = sld [smem:[#allocation9 + $0x22]]
        %v2588 = vstv %s2587
        %v2589 = vmul.f32 %v2588, %v2580
        %v2590 = vmul.f32 %v2588, %v2581
        %2593 = vrot.lane.b32.xlu0 %v2589, 127
        %v2594 = vpop.permute.xlu0 %2593
        %2595 = vrot.lane.b32.xlu0 %v2590, 127
        %v2596 = vpop.permute.xlu0 %2595
        %v2599 = vadd.f32 %v2585, %v2594
        %v2600 = vadd.f32 %v2586, %v2596
        %s2601 = sld [smem:[#allocation9 + $0x23]]
        %v2602 = vstv %s2601
        %v2603 = vmul.f32 %v2602, %v2580
        %v2604 = vmul.f32 %v2602, %v2581
        %2607 = vrot.lane.b32.xlu0 %v2603, 126
        %v2608 = vpop.permute.xlu0 %2607
        %2609 = vrot.lane.b32.xlu0 %v2604, 126
        %v2610 = vpop.permute.xlu0 %2609
        %v2613 = vadd.f32 %v2599, %v2608
        %v2614 = vadd.f32 %v2600, %v2610
        %s2615 = sld [smem:[#allocation11]]
        %v2616 = vstv %s2615
        %v2617 = vmul.f32 %v2613, %v2616
        %v2618 = vmul.f32 %v2614, %v2616
        %s2619 = sld [smem:[#allocation12]]
        %v2620 = vstv %s2619
        %v2621 = vadd.f32 %v2617, %v2620
        %v2622 = vadd.f32 %v2618, %v2620
        %v2623 = vmax.f32 %v2621, 0.0
        %v2624 = vmax.f32 %v2622, 0.0
        %vm2625 = vcmask 130048
        %2626 = vst.msk [vmem:[%s348] sm:$0xff] %vm2625, %v2623
        %2627 = vst.msk [vmem:[%s348 + $0x8] sm:$0xff] %vm2625, %v2624
        %s2628 = sld [smem:[#allocation9 + $0x24]]
        %v2629 = vld [vmem:[#allocation2] sm:$0xff]
        %v2630 = vld [vmem:[#allocation2 + $0x8] sm:$0xff]
        %v2631 = vstv %s2628
        %v2632 = vmul.f32 %v2631, %v2629
        %v2633 = vmul.f32 %v2631, %v2630
        %v2634 = vadd.f32 %v2632, 0.0
        %v2635 = vadd.f32 %v2633, 0.0
        %s2636 = sld [smem:[#allocation9 + $0x25]]
        %v2637 = vstv %s2636
        %v2638 = vmul.f32 %v2637, %v2629
        %v2639 = vmul.f32 %v2637, %v2630
        %2642 = vrot.lane.b32.xlu0 %v2638, 127
        %v2643 = vpop.permute.xlu0 %2642
        %2644 = vrot.lane.b32.xlu0 %v2639, 127
        %v2645 = vpop.permute.xlu0 %2644
        %v2648 = vadd.f32 %v2634, %v2643
        %v2649 = vadd.f32 %v2635, %v2645
        %s2650 = sld [smem:[#allocation9 + $0x26]]
        %v2651 = vstv %s2650
        %v2652 = vmul.f32 %v2651, %v2629
        %v2653 = vmul.f32 %v2651, %v2630
        %2656 = vrot.lane.b32.xlu0 %v2652, 126
        %v2657 = vpop.permute.xlu0 %2656
        %2658 = vrot.lane.b32.xlu0 %v2653, 126
        %v2659 = vpop.permute.xlu0 %2658
        %v2662 = vadd.f32 %v2648, %v2657
        %v2663 = vadd.f32 %v2649, %v2659
        %s2664 = sld [smem:[#allocation9 + $0x27]]
        %v2665 = vld [vmem:[#allocation2 + $0x1] sm:$0xff]
        %v2666 = vld [vmem:[#allocation2 + $0x9] sm:$0xff]
        %v2667 = vstv %s2664
        %v2668 = vmul.f32 %v2667, %v2665
        %v2669 = vmul.f32 %v2667, %v2666
        %v2670 = vadd.f32 %v2662, %v2668
        %v2671 = vadd.f32 %v2663, %v2669
        %s2672 = sld [smem:[#allocation9 + $0x28]]
        %v2673 = vstv %s2672
        %v2674 = vmul.f32 %v2673, %v2665
        %v2675 = vmul.f32 %v2673, %v2666
        %2678 = vrot.lane.b32.xlu0 %v2674, 127
        %v2679 = vpop.permute.xlu0 %2678
        %2680 = vrot.lane.b32.xlu0 %v2675, 127
        %v2681 = vpop.permute.xlu0 %2680
        %v2684 = vadd.f32 %v2670, %v2679
        %v2685 = vadd.f32 %v2671, %v2681
        %s2686 = sld [smem:[#allocation9 + $0x29]]
        %v2687 = vstv %s2686
        %v2688 = vmul.f32 %v2687, %v2665
        %v2689 = vmul.f32 %v2687, %v2666
        %2692 = vrot.lane.b32.xlu0 %v2688, 126
        %v2693 = vpop.permute.xlu0 %2692
        %2694 = vrot.lane.b32.xlu0 %v2689, 126
        %v2695 = vpop.permute.xlu0 %2694
        %v2698 = vadd.f32 %v2684, %v2693
        %v2699 = vadd.f32 %v2685, %v2695
        %s2700 = sld [smem:[#allocation9 + $0x2a]]
        %v2701 = vld [vmem:[#allocation2 + $0x2] sm:$0xff]
        %v2702 = vld [vmem:[#allocation2 + $0xa] sm:$0xff]
        %v2703 = vstv %s2700
        %v2704 = vmul.f32 %v2703, %v2701
        %v2705 = vmul.f32 %v2703, %v2702
        %v2706 = vadd.f32 %v2698, %v2704
        %v2707 = vadd.f32 %v2699, %v2705
        %s2708 = sld [smem:[#allocation9 + $0x2b]]
        %v2709 = vstv %s2708
        %v2710 = vmul.f32 %v2709, %v2701
        %v2711 = vmul.f32 %v2709, %v2702
        %2714 = vrot.lane.b32.xlu0 %v2710, 127
        %v2715 = vpop.permute.xlu0 %2714
        %2716 = vrot.lane.b32.xlu0 %v2711, 127
        %v2717 = vpop.permute.xlu0 %2716
        %v2720 = vadd.f32 %v2706, %v2715
        %v2721 = vadd.f32 %v2707, %v2717
        %s2722 = sld [smem:[#allocation9 + $0x2c]]
        %v2723 = vstv %s2722
        %v2724 = vmul.f32 %v2723, %v2701
        %v2725 = vmul.f32 %v2723, %v2702
        %2728 = vrot.lane.b32.xlu0 %v2724, 126
        %v2729 = vpop.permute.xlu0 %2728
        %2730 = vrot.lane.b32.xlu0 %v2725, 126
        %v2731 = vpop.permute.xlu0 %2730
        %v2734 = vadd.f32 %v2720, %v2729
        %v2735 = vadd.f32 %v2721, %v2731
        %s2736 = sld [smem:[#allocation9 + $0x2d]]
        %v2737 = vld [vmem:[%s1274] sm:$0xff]
        %v2738 = vld [vmem:[%s1274 + $0x8] sm:$0xff]
        %v2739 = vstv %s2736
        %v2740 = vmul.f32 %v2739, %v2737
        %v2741 = vmul.f32 %v2739, %v2738
        %v2742 = vadd.f32 %v2734, %v2740
        %v2743 = vadd.f32 %v2735, %v2741
        %s2744 = sld [smem:[#allocation9 + $0x2e]]
        %v2745 = vstv %s2744
        %v2746 = vmul.f32 %v2745, %v2737
        %v2747 = vmul.f32 %v2745, %v2738
        %2750 = vrot.lane.b32.xlu0 %v2746, 127
        %v2751 = vpop.permute.xlu0 %2750
        %2752 = vrot.lane.b32.xlu0 %v2747, 127
        %v2753 = vpop.permute.xlu0 %2752
        %v2756 = vadd.f32 %v2742, %v2751
        %v2757 = vadd.f32 %v2743, %v2753
        %s2758 = sld [smem:[#allocation9 + $0x2f]]
        %v2759 = vstv %s2758
        %v2760 = vmul.f32 %v2759, %v2737
        %v2761 = vmul.f32 %v2759, %v2738
        %2764 = vrot.lane.b32.xlu0 %v2760, 126
        %v2765 = vpop.permute.xlu0 %2764
        %2766 = vrot.lane.b32.xlu0 %v2761, 126
        %v2767 = vpop.permute.xlu0 %2766
        %v2770 = vadd.f32 %v2756, %v2765
        %v2771 = vadd.f32 %v2757, %v2767
        %s2772 = sld [smem:[#allocation9 + $0x30]]
        %v2773 = vld [vmem:[%s1274 + $0x1] sm:$0xff]
        %v2774 = vld [vmem:[%s1274 + $0x9] sm:$0xff]
        %v2775 = vstv %s2772
        %v2776 = vmul.f32 %v2775, %v2773
        %v2777 = vmul.f32 %v2775, %v2774
        %v2778 = vadd.f32 %v2770, %v2776
        %v2779 = vadd.f32 %v2771, %v2777
        %s2780 = sld [smem:[#allocation9 + $0x31]]
        %v2781 = vstv %s2780
        %v2782 = vmul.f32 %v2781, %v2773
        %v2783 = vmul.f32 %v2781, %v2774
        %2786 = vrot.lane.b32.xlu0 %v2782, 127
        %v2787 = vpop.permute.xlu0 %2786
        %2788 = vrot.lane.b32.xlu0 %v2783, 127
        %v2789 = vpop.permute.xlu0 %2788
        %v2792 = vadd.f32 %v2778, %v2787
        %v2793 = vadd.f32 %v2779, %v2789
        %s2794 = sld [smem:[#allocation9 + $0x32]]
        %v2795 = vstv %s2794
        %v2796 = vmul.f32 %v2795, %v2773
        %v2797 = vmul.f32 %v2795, %v2774
        %2800 = vrot.lane.b32.xlu0 %v2796, 126
        %v2801 = vpop.permute.xlu0 %2800
        %2802 = vrot.lane.b32.xlu0 %v2797, 126
        %v2803 = vpop.permute.xlu0 %2802
        %v2806 = vadd.f32 %v2792, %v2801
        %v2807 = vadd.f32 %v2793, %v2803
        %s2808 = sld [smem:[#allocation9 + $0x33]]
        %v2809 = vld [vmem:[%s1274 + $0x2] sm:$0xff]
        %v2810 = vld [vmem:[%s1274 + $0xa] sm:$0xff]
        %v2811 = vstv %s2808
        %v2812 = vmul.f32 %v2811, %v2809
        %v2813 = vmul.f32 %v2811, %v2810
        %v2814 = vadd.f32 %v2806, %v2812
        %v2815 = vadd.f32 %v2807, %v2813
        %s2816 = sld [smem:[#allocation9 + $0x34]]
        %v2817 = vstv %s2816
        %v2818 = vmul.f32 %v2817, %v2809
        %v2819 = vmul.f32 %v2817, %v2810
        %2822 = vrot.lane.b32.xlu0 %v2818, 127
        %v2823 = vpop.permute.xlu0 %2822
        %2824 = vrot.lane.b32.xlu0 %v2819, 127
        %v2825 = vpop.permute.xlu0 %2824
        %v2828 = vadd.f32 %v2814, %v2823
        %v2829 = vadd.f32 %v2815, %v2825
        %s2830 = sld [smem:[#allocation9 + $0x35]]
        %v2831 = vstv %s2830
        %v2832 = vmul.f32 %v2831, %v2809
        %v2833 = vmul.f32 %v2831, %v2810
        %2836 = vrot.lane.b32.xlu0 %v2832, 126
        %v2837 = vpop.permute.xlu0 %2836
        %2838 = vrot.lane.b32.xlu0 %v2833, 126
        %v2839 = vpop.permute.xlu0 %2838
        %v2842 = vadd.f32 %v2828, %v2837
        %v2843 = vadd.f32 %v2829, %v2839
        %s2844 = sld [smem:[#allocation9 + $0x36]]
        %v2845 = vld [vmem:[%s1727] sm:$0xff]
        %v2846 = vld [vmem:[%s1727 + $0x8] sm:$0xff]
        %v2847 = vstv %s2844
        %v2848 = vmul.f32 %v2847, %v2845
        %v2849 = vmul.f32 %v2847, %v2846
        %v2850 = vadd.f32 %v2842, %v2848
        %v2851 = vadd.f32 %v2843, %v2849
        %s2852 = sld [smem:[#allocation9 + $0x37]]
        %v2853 = vstv %s2852
        %v2854 = vmul.f32 %v2853, %v2845
        %v2855 = vmul.f32 %v2853, %v2846
        %2858 = vrot.lane.b32.xlu0 %v2854, 127
        %v2859 = vpop.permute.xlu0 %2858
        %2860 = vrot.lane.b32.xlu0 %v2855, 127
        %v2861 = vpop.permute.xlu0 %2860
        %v2864 = vadd.f32 %v2850, %v2859
        %v2865 = vadd.f32 %v2851, %v2861
        %s2866 = sld [smem:[#allocation9 + $0x38]]
        %v2867 = vstv %s2866
        %v2868 = vmul.f32 %v2867, %v2845
        %v2869 = vmul.f32 %v2867, %v2846
        %2872 = vrot.lane.b32.xlu0 %v2868, 126
        %v2873 = vpop.permute.xlu0 %2872
        %2874 = vrot.lane.b32.xlu0 %v2869, 126
        %v2875 = vpop.permute.xlu0 %2874
        %v2878 = vadd.f32 %v2864, %v2873
        %v2879 = vadd.f32 %v2865, %v2875
        %s2880 = sld [smem:[#allocation9 + $0x39]]
        %v2881 = vld [vmem:[%s1727 + $0x1] sm:$0xff]
        %v2882 = vld [vmem:[%s1727 + $0x9] sm:$0xff]
        %v2883 = vstv %s2880
        %v2884 = vmul.f32 %v2883, %v2881
        %v2885 = vmul.f32 %v2883, %v2882
        %v2886 = vadd.f32 %v2878, %v2884
        %v2887 = vadd.f32 %v2879, %v2885
        %s2888 = sld [smem:[#allocation9 + $0x3a]]
        %v2889 = vstv %s2888
        %v2890 = vmul.f32 %v2889, %v2881
        %v2891 = vmul.f32 %v2889, %v2882
        %2894 = vrot.lane.b32.xlu0 %v2890, 127
        %v2895 = vpop.permute.xlu0 %2894
        %2896 = vrot.lane.b32.xlu0 %v2891, 127
        %v2897 = vpop.permute.xlu0 %2896
        %v2900 = vadd.f32 %v2886, %v2895
        %v2901 = vadd.f32 %v2887, %v2897
        %s2902 = sld [smem:[#allocation9 + $0x3b]]
        %v2903 = vstv %s2902
        %v2904 = vmul.f32 %v2903, %v2881
        %v2905 = vmul.f32 %v2903, %v2882
        %2908 = vrot.lane.b32.xlu0 %v2904, 126
        %v2909 = vpop.permute.xlu0 %2908
        %2910 = vrot.lane.b32.xlu0 %v2905, 126
        %v2911 = vpop.permute.xlu0 %2910
        %v2914 = vadd.f32 %v2900, %v2909
        %v2915 = vadd.f32 %v2901, %v2911
        %s2916 = sld [smem:[#allocation9 + $0x3c]]
        %v2917 = vld [vmem:[%s1727 + $0x2] sm:$0xff]
        %v2918 = vld [vmem:[%s1727 + $0xa] sm:$0xff]
        %v2919 = vstv %s2916
        %v2920 = vmul.f32 %v2919, %v2917
        %v2921 = vmul.f32 %v2919, %v2918
        %v2922 = vadd.f32 %v2914, %v2920
        %v2923 = vadd.f32 %v2915, %v2921
        %s2924 = sld [smem:[#allocation9 + $0x3d]]
        %v2925 = vstv %s2924
        %v2926 = vmul.f32 %v2925, %v2917
        %v2927 = vmul.f32 %v2925, %v2918
        %2930 = vrot.lane.b32.xlu0 %v2926, 127
        %v2931 = vpop.permute.xlu0 %2930
        %2932 = vrot.lane.b32.xlu0 %v2927, 127
        %v2933 = vpop.permute.xlu0 %2932
        %v2936 = vadd.f32 %v2922, %v2931
        %v2937 = vadd.f32 %v2923, %v2933
        %s2938 = sld [smem:[#allocation9 + $0x3e]]
        %v2939 = vstv %s2938
        %v2940 = vmul.f32 %v2939, %v2917
        %v2941 = vmul.f32 %v2939, %v2918
        %2944 = vrot.lane.b32.xlu0 %v2940, 126
        %v2945 = vpop.permute.xlu0 %2944
        %2946 = vrot.lane.b32.xlu0 %v2941, 126
        %v2947 = vpop.permute.xlu0 %2946
        %v2950 = vadd.f32 %v2936, %v2945
        %v2951 = vadd.f32 %v2937, %v2947
        %s2952 = sld [smem:[#allocation9 + $0x3f]]
        %v2953 = vld [vmem:[%s2180] sm:$0xff]
        %v2954 = vld [vmem:[%s2180 + $0x8] sm:$0xff]
        %v2955 = vstv %s2952
        %v2956 = vmul.f32 %v2955, %v2953
        %v2957 = vmul.f32 %v2955, %v2954
        %v2958 = vadd.f32 %v2950, %v2956
        %v2959 = vadd.f32 %v2951, %v2957
        %s2960 = sld [smem:[#allocation9 + $0x40]]
        %v2961 = vstv %s2960
        %v2962 = vmul.f32 %v2961, %v2953
        %v2963 = vmul.f32 %v2961, %v2954
        %2966 = vrot.lane.b32.xlu0 %v2962, 127
        %v2967 = vpop.permute.xlu0 %2966
        %2968 = vrot.lane.b32.xlu0 %v2963, 127
        %v2969 = vpop.permute.xlu0 %2968
        %v2972 = vadd.f32 %v2958, %v2967
        %v2973 = vadd.f32 %v2959, %v2969
        %s2974 = sld [smem:[#allocation9 + $0x41]]
        %v2975 = vstv %s2974
        %v2976 = vmul.f32 %v2975, %v2953
        %v2977 = vmul.f32 %v2975, %v2954
        %2980 = vrot.lane.b32.xlu0 %v2976, 126
        %v2981 = vpop.permute.xlu0 %2980
        %2982 = vrot.lane.b32.xlu0 %v2977, 126
        %v2983 = vpop.permute.xlu0 %2982
        %v2986 = vadd.f32 %v2972, %v2981
        %v2987 = vadd.f32 %v2973, %v2983
        %s2988 = sld [smem:[#allocation9 + $0x42]]
        %v2989 = vld [vmem:[%s2180 + $0x1] sm:$0xff]
        %v2990 = vld [vmem:[%s2180 + $0x9] sm:$0xff]
        %v2991 = vstv %s2988
        %v2992 = vmul.f32 %v2991, %v2989
        %v2993 = vmul.f32 %v2991, %v2990
        %v2994 = vadd.f32 %v2986, %v2992
        %v2995 = vadd.f32 %v2987, %v2993
        %s2996 = sld [smem:[#allocation9 + $0x43]]
        %v2997 = vstv %s2996
        %v2998 = vmul.f32 %v2997, %v2989
        %v2999 = vmul.f32 %v2997, %v2990
        %3002 = vrot.lane.b32.xlu0 %v2998, 127
        %v3003 = vpop.permute.xlu0 %3002
        %3004 = vrot.lane.b32.xlu0 %v2999, 127
        %v3005 = vpop.permute.xlu0 %3004
        %v3008 = vadd.f32 %v2994, %v3003
        %v3009 = vadd.f32 %v2995, %v3005
        %s3010 = sld [smem:[#allocation9 + $0x44]]
        %v3011 = vstv %s3010
        %v3012 = vmul.f32 %v3011, %v2989
        %v3013 = vmul.f32 %v3011, %v2990
        %3016 = vrot.lane.b32.xlu0 %v3012, 126
        %v3017 = vpop.permute.xlu0 %3016
        %3018 = vrot.lane.b32.xlu0 %v3013, 126
        %v3019 = vpop.permute.xlu0 %3018
        %v3022 = vadd.f32 %v3008, %v3017
        %v3023 = vadd.f32 %v3009, %v3019
        %s3024 = sld [smem:[#allocation9 + $0x45]]
        %v3025 = vld [vmem:[%s2180 + $0x2] sm:$0xff]
        %v3026 = vld [vmem:[%s2180 + $0xa] sm:$0xff]
        %v3027 = vstv %s3024
        %v3028 = vmul.f32 %v3027, %v3025
        %v3029 = vmul.f32 %v3027, %v3026
        %v3030 = vadd.f32 %v3022, %v3028
        %v3031 = vadd.f32 %v3023, %v3029
        %s3032 = sld [smem:[#allocation9 + $0x46]]
        %v3033 = vstv %s3032
        %v3034 = vmul.f32 %v3033, %v3025
        %v3035 = vmul.f32 %v3033, %v3026
        %3038 = vrot.lane.b32.xlu0 %v3034, 127
        %v3039 = vpop.permute.xlu0 %3038
        %3040 = vrot.lane.b32.xlu0 %v3035, 127
        %v3041 = vpop.permute.xlu0 %3040
        %v3044 = vadd.f32 %v3030, %v3039
        %v3045 = vadd.f32 %v3031, %v3041
        %s3046 = sld [smem:[#allocation9 + $0x47]]
        %v3047 = vstv %s3046
        %v3048 = vmul.f32 %v3047, %v3025
        %v3049 = vmul.f32 %v3047, %v3026
        %3052 = vrot.lane.b32.xlu0 %v3048, 126
        %v3053 = vpop.permute.xlu0 %3052
        %3054 = vrot.lane.b32.xlu0 %v3049, 126
        %v3055 = vpop.permute.xlu0 %3054
        %v3058 = vadd.f32 %v3044, %v3053
        %v3059 = vadd.f32 %v3045, %v3055
        %s3060 = sld [smem:[#allocation11 + $0x1]]
        %v3061 = vstv %s3060
        %v3062 = vmul.f32 %v3058, %v3061
        %v3063 = vmul.f32 %v3059, %v3061
        %s3064 = sld [smem:[#allocation12 + $0x1]]
        %v3065 = vstv %s3064
        %v3066 = vadd.f32 %v3062, %v3065
        %v3067 = vadd.f32 %v3063, %v3065
        %v3068 = vmax.f32 %v3066, 0.0
        %v3069 = vmax.f32 %v3067, 0.0
        %s3070 = scalar_lea.vmem %s348, 16 [#allocation14]
        %3071 = vst.msk [vmem:[%s3070] sm:$0xff] %vm2625, %v3068
        %3072 = vst.msk [vmem:[%s3070 + $0x8] sm:$0xff] %vm2625, %v3069
        %s3073 = sld [smem:[#allocation9 + $0x48]]
        %v3074 = vld [vmem:[#allocation2] sm:$0xff]
        %v3075 = vld [vmem:[#allocation2 + $0x8] sm:$0xff]
        %v3076 = vstv %s3073
        %v3077 = vmul.f32 %v3076, %v3074
        %v3078 = vmul.f32 %v3076, %v3075
        %v3079 = vadd.f32 %v3077, 0.0
        %v3080 = vadd.f32 %v3078, 0.0
        %s3081 = sld [smem:[#allocation9 + $0x49]]
        %v3082 = vstv %s3081
        %v3083 = vmul.f32 %v3082, %v3074
        %v3084 = vmul.f32 %v3082, %v3075
        %3087 = vrot.lane.b32.xlu0 %v3083, 127
        %v3088 = vpop.permute.xlu0 %3087
        %3089 = vrot.lane.b32.xlu0 %v3084, 127
        %v3090 = vpop.permute.xlu0 %3089
        %v3093 = vadd.f32 %v3079, %v3088
        %v3094 = vadd.f32 %v3080, %v3090
        %s3095 = sld [smem:[#allocation9 + $0x4a]]
        %v3096 = vstv %s3095
        %v3097 = vmul.f32 %v3096, %v3074
        %v3098 = vmul.f32 %v3096, %v3075
        %3101 = vrot.lane.b32.xlu0 %v3097, 126
        %v3102 = vpop.permute.xlu0 %3101
        %3103 = vrot.lane.b32.xlu0 %v3098, 126
        %v3104 = vpop.permute.xlu0 %3103
        %v3107 = vadd.f32 %v3093, %v3102
        %v3108 = vadd.f32 %v3094, %v3104
        %s3109 = sld [smem:[#allocation9 + $0x4b]]
        %v3110 = vld [vmem:[#allocation2 + $0x1] sm:$0xff]
        %v3111 = vld [vmem:[#allocation2 + $0x9] sm:$0xff]
        %v3112 = vstv %s3109
        %v3113 = vmul.f32 %v3112, %v3110
        %v3114 = vmul.f32 %v3112, %v3111
        %v3115 = vadd.f32 %v3107, %v3113
        %v3116 = vadd.f32 %v3108, %v3114
        %s3117 = sld [smem:[#allocation9 + $0x4c]]
        %v3118 = vstv %s3117
        %v3119 = vmul.f32 %v3118, %v3110
        %v3120 = vmul.f32 %v3118, %v3111
        %3123 = vrot.lane.b32.xlu0 %v3119, 127
        %v3124 = vpop.permute.xlu0 %3123
        %3125 = vrot.lane.b32.xlu0 %v3120, 127
        %v3126 = vpop.permute.xlu0 %3125
        %v3129 = vadd.f32 %v3115, %v3124
        %v3130 = vadd.f32 %v3116, %v3126
        %s3131 = sld [smem:[#allocation9 + $0x4d]]
        %v3132 = vstv %s3131
        %v3133 = vmul.f32 %v3132, %v3110
        %v3134 = vmul.f32 %v3132, %v3111
        %3137 = vrot.lane.b32.xlu0 %v3133, 126
        %v3138 = vpop.permute.xlu0 %3137
        %3139 = vrot.lane.b32.xlu0 %v3134, 126
        %v3140 = vpop.permute.xlu0 %3139
        %v3143 = vadd.f32 %v3129, %v3138
        %v3144 = vadd.f32 %v3130, %v3140
        %s3145 = sld [smem:[#allocation9 + $0x4e]]
        %v3146 = vld [vmem:[#allocation2 + $0x2] sm:$0xff]
        %v3147 = vld [vmem:[#allocation2 + $0xa] sm:$0xff]
        %v3148 = vstv %s3145
        %v3149 = vmul.f32 %v3148, %v3146
        %v3150 = vmul.f32 %v3148, %v3147
        %v3151 = vadd.f32 %v3143, %v3149
        %v3152 = vadd.f32 %v3144, %v3150
        %s3153 = sld [smem:[#allocation9 + $0x4f]]
        %v3154 = vstv %s3153
        %v3155 = vmul.f32 %v3154, %v3146
        %v3156 = vmul.f32 %v3154, %v3147
        %3159 = vrot.lane.b32.xlu0 %v3155, 127
        %v3160 = vpop.permute.xlu0 %3159
        %3161 = vrot.lane.b32.xlu0 %v3156, 127
        %v3162 = vpop.permute.xlu0 %3161
        %v3165 = vadd.f32 %v3151, %v3160
        %v3166 = vadd.f32 %v3152, %v3162
        %s3167 = sld [smem:[#allocation9 + $0x50]]
        %v3168 = vstv %s3167
        %v3169 = vmul.f32 %v3168, %v3146
        %v3170 = vmul.f32 %v3168, %v3147
        %3173 = vrot.lane.b32.xlu0 %v3169, 126
        %v3174 = vpop.permute.xlu0 %3173
        %3175 = vrot.lane.b32.xlu0 %v3170, 126
        %v3176 = vpop.permute.xlu0 %3175
        %v3179 = vadd.f32 %v3165, %v3174
        %v3180 = vadd.f32 %v3166, %v3176
        %s3181 = sld [smem:[#allocation9 + $0x51]]
        %v3182 = vld [vmem:[%s1274] sm:$0xff]
        %v3183 = vld [vmem:[%s1274 + $0x8] sm:$0xff]
        %v3184 = vstv %s3181
        %v3185 = vmul.f32 %v3184, %v3182
        %v3186 = vmul.f32 %v3184, %v3183
        %v3187 = vadd.f32 %v3179, %v3185
        %v3188 = vadd.f32 %v3180, %v3186
        %s3189 = sld [smem:[#allocation9 + $0x52]]
        %v3190 = vstv %s3189
        %v3191 = vmul.f32 %v3190, %v3182
        %v3192 = vmul.f32 %v3190, %v3183
        %3195 = vrot.lane.b32.xlu0 %v3191, 127
        %v3196 = vpop.permute.xlu0 %3195
        %3197 = vrot.lane.b32.xlu0 %v3192, 127
        %v3198 = vpop.permute.xlu0 %3197
        %v3201 = vadd.f32 %v3187, %v3196
        %v3202 = vadd.f32 %v3188, %v3198
        %s3203 = sld [smem:[#allocation9 + $0x53]]
        %v3204 = vstv %s3203
        %v3205 = vmul.f32 %v3204, %v3182
        %v3206 = vmul.f32 %v3204, %v3183
        %3209 = vrot.lane.b32.xlu0 %v3205, 126
        %v3210 = vpop.permute.xlu0 %3209
        %3211 = vrot.lane.b32.xlu0 %v3206, 126
        %v3212 = vpop.permute.xlu0 %3211
        %v3215 = vadd.f32 %v3201, %v3210
        %v3216 = vadd.f32 %v3202, %v3212
        %s3217 = sld [smem:[#allocation9 + $0x54]]
        %v3218 = vld [vmem:[%s1274 + $0x1] sm:$0xff]
        %v3219 = vld [vmem:[%s1274 + $0x9] sm:$0xff]
        %v3220 = vstv %s3217
        %v3221 = vmul.f32 %v3220, %v3218
        %v3222 = vmul.f32 %v3220, %v3219
        %v3223 = vadd.f32 %v3215, %v3221
        %v3224 = vadd.f32 %v3216, %v3222
        %s3225 = sld [smem:[#allocation9 + $0x55]]
        %v3226 = vstv %s3225
        %v3227 = vmul.f32 %v3226, %v3218
        %v3228 = vmul.f32 %v3226, %v3219
        %3231 = vrot.lane.b32.xlu0 %v3227, 127
        %v3232 = vpop.permute.xlu0 %3231
        %3233 = vrot.lane.b32.xlu0 %v3228, 127
        %v3234 = vpop.permute.xlu0 %3233
        %v3237 = vadd.f32 %v3223, %v3232
        %v3238 = vadd.f32 %v3224, %v3234
        %s3239 = sld [smem:[#allocation9 + $0x56]]
        %v3240 = vstv %s3239
        %v3241 = vmul.f32 %v3240, %v3218
        %v3242 = vmul.f32 %v3240, %v3219
        %3245 = vrot.lane.b32.xlu0 %v3241, 126
        %v3246 = vpop.permute.xlu0 %3245
        %3247 = vrot.lane.b32.xlu0 %v3242, 126
        %v3248 = vpop.permute.xlu0 %3247
        %v3251 = vadd.f32 %v3237, %v3246
        %v3252 = vadd.f32 %v3238, %v3248
        %s3253 = sld [smem:[#allocation9 + $0x57]]
        %v3254 = vld [vmem:[%s1274 + $0x2] sm:$0xff]
        %v3255 = vld [vmem:[%s1274 + $0xa] sm:$0xff]
        %v3256 = vstv %s3253
        %v3257 = vmul.f32 %v3256, %v3254
        %v3258 = vmul.f32 %v3256, %v3255
        %v3259 = vadd.f32 %v3251, %v3257
        %v3260 = vadd.f32 %v3252, %v3258
        %s3261 = sld [smem:[#allocation9 + $0x58]]
        %v3262 = vstv %s3261
        %v3263 = vmul.f32 %v3262, %v3254
        %v3264 = vmul.f32 %v3262, %v3255
        %3267 = vrot.lane.b32.xlu0 %v3263, 127
        %v3268 = vpop.permute.xlu0 %3267
        %3269 = vrot.lane.b32.xlu0 %v3264, 127
        %v3270 = vpop.permute.xlu0 %3269
        %v3273 = vadd.f32 %v3259, %v3268
        %v3274 = vadd.f32 %v3260, %v3270
        %s3275 = sld [smem:[#allocation9 + $0x59]]
        %v3276 = vstv %s3275
        %v3277 = vmul.f32 %v3276, %v3254
        %v3278 = vmul.f32 %v3276, %v3255
        %3281 = vrot.lane.b32.xlu0 %v3277, 126
        %v3282 = vpop.permute.xlu0 %3281
        %3283 = vrot.lane.b32.xlu0 %v3278, 126
        %v3284 = vpop.permute.xlu0 %3283
        %v3287 = vadd.f32 %v3273, %v3282
        %v3288 = vadd.f32 %v3274, %v3284
        %s3289 = sld [smem:[#allocation9 + $0x5a]]
        %v3290 = vld [vmem:[%s1727] sm:$0xff]
        %v3291 = vld [vmem:[%s1727 + $0x8] sm:$0xff]
        %v3292 = vstv %s3289
        %v3293 = vmul.f32 %v3292, %v3290
        %v3294 = vmul.f32 %v3292, %v3291
        %v3295 = vadd.f32 %v3287, %v3293
        %v3296 = vadd.f32 %v3288, %v3294
        %s3297 = sld [smem:[#allocation9 + $0x5b]]
        %v3298 = vstv %s3297
        %v3299 = vmul.f32 %v3298, %v3290
        %v3300 = vmul.f32 %v3298, %v3291
        %3303 = vrot.lane.b32.xlu0 %v3299, 127
        %v3304 = vpop.permute.xlu0 %3303
        %3305 = vrot.lane.b32.xlu0 %v3300, 127
        %v3306 = vpop.permute.xlu0 %3305
        %v3309 = vadd.f32 %v3295, %v3304
        %v3310 = vadd.f32 %v3296, %v3306
        %s3311 = sld [smem:[#allocation9 + $0x5c]]
        %v3312 = vstv %s3311
        %v3313 = vmul.f32 %v3312, %v3290
        %v3314 = vmul.f32 %v3312, %v3291
        %3317 = vrot.lane.b32.xlu0 %v3313, 126
        %v3318 = vpop.permute.xlu0 %3317
        %3319 = vrot.lane.b32.xlu0 %v3314, 126
        %v3320 = vpop.permute.xlu0 %3319
        %v3323 = vadd.f32 %v3309, %v3318
        %v3324 = vadd.f32 %v3310, %v3320
        %s3325 = sld [smem:[#allocation9 + $0x5d]]
        %v3326 = vld [vmem:[%s1727 + $0x1] sm:$0xff]
        %v3327 = vld [vmem:[%s1727 + $0x9] sm:$0xff]
        %v3328 = vstv %s3325
        %v3329 = vmul.f32 %v3328, %v3326
        %v3330 = vmul.f32 %v3328, %v3327
        %v3331 = vadd.f32 %v3323, %v3329
        %v3332 = vadd.f32 %v3324, %v3330
        %s3333 = sld [smem:[#allocation9 + $0x5e]]
        %v3334 = vstv %s3333
        %v3335 = vmul.f32 %v3334, %v3326
        %v3336 = vmul.f32 %v3334, %v3327
        %3339 = vrot.lane.b32.xlu0 %v3335, 127
        %v3340 = vpop.permute.xlu0 %3339
        %3341 = vrot.lane.b32.xlu0 %v3336, 127
        %v3342 = vpop.permute.xlu0 %3341
        %v3345 = vadd.f32 %v3331, %v3340
        %v3346 = vadd.f32 %v3332, %v3342
        %s3347 = sld [smem:[#allocation9 + $0x5f]]
        %v3348 = vstv %s3347
        %v3349 = vmul.f32 %v3348, %v3326
        %v3350 = vmul.f32 %v3348, %v3327
        %3353 = vrot.lane.b32.xlu0 %v3349, 126
        %v3354 = vpop.permute.xlu0 %3353
        %3355 = vrot.lane.b32.xlu0 %v3350, 126
        %v3356 = vpop.permute.xlu0 %3355
        %v3359 = vadd.f32 %v3345, %v3354
        %v3360 = vadd.f32 %v3346, %v3356
        %s3361 = sld [smem:[#allocation9 + $0x60]]
        %v3362 = vld [vmem:[%s1727 + $0x2] sm:$0xff]
        %v3363 = vld [vmem:[%s1727 + $0xa] sm:$0xff]
        %v3364 = vstv %s3361
        %v3365 = vmul.f32 %v3364, %v3362
        %v3366 = vmul.f32 %v3364, %v3363
        %v3367 = vadd.f32 %v3359, %v3365
        %v3368 = vadd.f32 %v3360, %v3366
        %s3369 = sld [smem:[#allocation9 + $0x61]]
        %v3370 = vstv %s3369
        %v3371 = vmul.f32 %v3370, %v3362
        %v3372 = vmul.f32 %v3370, %v3363
        %3375 = vrot.lane.b32.xlu0 %v3371, 127
        %v3376 = vpop.permute.xlu0 %3375
        %3377 = vrot.lane.b32.xlu0 %v3372, 127
        %v3378 = vpop.permute.xlu0 %3377
        %v3381 = vadd.f32 %v3367, %v3376
        %v3382 = vadd.f32 %v3368, %v3378
        %s3383 = sld [smem:[#allocation9 + $0x62]]
        %v3384 = vstv %s3383
        %v3385 = vmul.f32 %v3384, %v3362
        %v3386 = vmul.f32 %v3384, %v3363
        %3389 = vrot.lane.b32.xlu0 %v3385, 126
        %v3390 = vpop.permute.xlu0 %3389
        %3391 = vrot.lane.b32.xlu0 %v3386, 126
        %v3392 = vpop.permute.xlu0 %3391
        %v3395 = vadd.f32 %v3381, %v3390
        %v3396 = vadd.f32 %v3382, %v3392
        %s3397 = sld [smem:[#allocation9 + $0x63]]
        %v3398 = vld [vmem:[%s2180] sm:$0xff]
        %v3399 = vld [vmem:[%s2180 + $0x8] sm:$0xff]
        %v3400 = vstv %s3397
        %v3401 = vmul.f32 %v3400, %v3398
        %v3402 = vmul.f32 %v3400, %v3399
        %v3403 = vadd.f32 %v3395, %v3401
        %v3404 = vadd.f32 %v3396, %v3402
        %s3405 = sld [smem:[#allocation9 + $0x64]]
        %v3406 = vstv %s3405
        %v3407 = vmul.f32 %v3406, %v3398
        %v3408 = vmul.f32 %v3406, %v3399
        %3411 = vrot.lane.b32.xlu0 %v3407, 127
        %v3412 = vpop.permute.xlu0 %3411
        %3413 = vrot.lane.b32.xlu0 %v3408, 127
        %v3414 = vpop.permute.xlu0 %3413
        %v3417 = vadd.f32 %v3403, %v3412
        %v3418 = vadd.f32 %v3404, %v3414
        %s3419 = sld [smem:[#allocation9 + $0x65]]
        %v3420 = vstv %s3419
        %v3421 = vmul.f32 %v3420, %v3398
        %v3422 = vmul.f32 %v3420, %v3399
        %3425 = vrot.lane.b32.xlu0 %v3421, 126
        %v3426 = vpop.permute.xlu0 %3425
        %3427 = vrot.lane.b32.xlu0 %v3422, 126
        %v3428 = vpop.permute.xlu0 %3427
        %v3431 = vadd.f32 %v3417, %v3426
        %v3432 = vadd.f32 %v3418, %v3428
        %s3433 = sld [smem:[#allocation9 + $0x66]]
        %v3434 = vld [vmem:[%s2180 + $0x1] sm:$0xff]
        %v3435 = vld [vmem:[%s2180 + $0x9] sm:$0xff]
        %v3436 = vstv %s3433
        %v3437 = vmul.f32 %v3436, %v3434
        %v3438 = vmul.f32 %v3436, %v3435
        %v3439 = vadd.f32 %v3431, %v3437
        %v3440 = vadd.f32 %v3432, %v3438
        %s3441 = sld [smem:[#allocation9 + $0x67]]
        %v3442 = vstv %s3441
        %v3443 = vmul.f32 %v3442, %v3434
        %v3444 = vmul.f32 %v3442, %v3435
        %3447 = vrot.lane.b32.xlu0 %v3443, 127
        %v3448 = vpop.permute.xlu0 %3447
        %3449 = vrot.lane.b32.xlu0 %v3444, 127
        %v3450 = vpop.permute.xlu0 %3449
        %v3453 = vadd.f32 %v3439, %v3448
        %v3454 = vadd.f32 %v3440, %v3450
        %s3455 = sld [smem:[#allocation9 + $0x68]]
        %v3456 = vstv %s3455
        %v3457 = vmul.f32 %v3456, %v3434
        %v3458 = vmul.f32 %v3456, %v3435
        %3461 = vrot.lane.b32.xlu0 %v3457, 126
        %v3462 = vpop.permute.xlu0 %3461
        %3463 = vrot.lane.b32.xlu0 %v3458, 126
        %v3464 = vpop.permute.xlu0 %3463
        %v3467 = vadd.f32 %v3453, %v3462
        %v3468 = vadd.f32 %v3454, %v3464
        %s3469 = sld [smem:[#allocation9 + $0x69]]
        %v3470 = vld [vmem:[%s2180 + $0x2] sm:$0xff]
        %v3471 = vld [vmem:[%s2180 + $0xa] sm:$0xff]
        %v3472 = vstv %s3469
        %v3473 = vmul.f32 %v3472, %v3470
        %v3474 = vmul.f32 %v3472, %v3471
        %v3475 = vadd.f32 %v3467, %v3473
        %v3476 = vadd.f32 %v3468, %v3474
        %s3477 = sld [smem:[#allocation9 + $0x6a]]
        %v3478 = vstv %s3477
        %v3479 = vmul.f32 %v3478, %v3470
        %v3480 = vmul.f32 %v3478, %v3471
        %3483 = vrot.lane.b32.xlu0 %v3479, 127
        %v3484 = vpop.permute.xlu0 %3483
        %3485 = vrot.lane.b32.xlu0 %v3480, 127
        %v3486 = vpop.permute.xlu0 %3485
        %v3489 = vadd.f32 %v3475, %v3484
        %v3490 = vadd.f32 %v3476, %v3486
        %s3491 = sld [smem:[#allocation9 + $0x6b]]
        %v3492 = vstv %s3491
        %v3493 = vmul.f32 %v3492, %v3470
        %v3494 = vmul.f32 %v3492, %v3471
        %3497 = vrot.lane.b32.xlu0 %v3493, 126
        %v3498 = vpop.permute.xlu0 %3497
        %3499 = vrot.lane.b32.xlu0 %v3494, 126
        %v3500 = vpop.permute.xlu0 %3499
        %v3503 = vadd.f32 %v3489, %v3498
        %v3504 = vadd.f32 %v3490, %v3500
        %s3505 = sld [smem:[#allocation11 + $0x2]]
        %v3506 = vstv %s3505
        %v3507 = vmul.f32 %v3503, %v3506
        %v3508 = vmul.f32 %v3504, %v3506
        %s3509 = sld [smem:[#allocation12 + $0x2]]
        %v3510 = vstv %s3509
        %v3511 = vadd.f32 %v3507, %v3510
        %v3512 = vadd.f32 %v3508, %v3510
        %v3513 = vmax.f32 %v3511, 0.0
        %v3514 = vmax.f32 %v3512, 0.0
        %s3515 = scalar_lea.vmem %s348, 32 [#allocation14]
        %3516 = vst.msk [vmem:[%s3515] sm:$0xff] %vm2625, %v3513
        %3517 = vst.msk [vmem:[%s3515 + $0x8] sm:$0xff] %vm2625, %v3514
        %s3518 = sld [smem:[#allocation9 + $0x6c]]
        %v3519 = vld [vmem:[#allocation2] sm:$0xff]
        %v3520 = vld [vmem:[#allocation2 + $0x8] sm:$0xff]
        %v3521 = vstv %s3518
        %v3522 = vmul.f32 %v3521, %v3519
        %v3523 = vmul.f32 %v3521, %v3520
        %v3524 = vadd.f32 %v3522, 0.0
        %v3525 = vadd.f32 %v3523, 0.0
        %s3526 = sld [smem:[#allocation9 + $0x6d]]
        %v3527 = vstv %s3526
        %v3528 = vmul.f32 %v3527, %v3519
        %v3529 = vmul.f32 %v3527, %v3520
        %3532 = vrot.lane.b32.xlu0 %v3528, 127
        %v3533 = vpop.permute.xlu0 %3532
        %3534 = vrot.lane.b32.xlu0 %v3529, 127
        %v3535 = vpop.permute.xlu0 %3534
        %v3538 = vadd.f32 %v3524, %v3533
        %v3539 = vadd.f32 %v3525, %v3535
        %s3540 = sld [smem:[#allocation9 + $0x6e]]
        %v3541 = vstv %s3540
        %v3542 = vmul.f32 %v3541, %v3519
        %v3543 = vmul.f32 %v3541, %v3520
        %3546 = vrot.lane.b32.xlu0 %v3542, 126
        %v3547 = vpop.permute.xlu0 %3546
        %3548 = vrot.lane.b32.xlu0 %v3543, 126
        %v3549 = vpop.permute.xlu0 %3548
        %v3552 = vadd.f32 %v3538, %v3547
        %v3553 = vadd.f32 %v3539, %v3549
        %s3554 = sld [smem:[#allocation9 + $0x6f]]
        %v3555 = vld [vmem:[#allocation2 + $0x1] sm:$0xff]
        %v3556 = vld [vmem:[#allocation2 + $0x9] sm:$0xff]
        %v3557 = vstv %s3554
        %v3558 = vmul.f32 %v3557, %v3555
        %v3559 = vmul.f32 %v3557, %v3556
        %v3560 = vadd.f32 %v3552, %v3558
        %v3561 = vadd.f32 %v3553, %v3559
        %s3562 = sld [smem:[#allocation9 + $0x70]]
        %v3563 = vstv %s3562
        %v3564 = vmul.f32 %v3563, %v3555
        %v3565 = vmul.f32 %v3563, %v3556
        %3568 = vrot.lane.b32.xlu0 %v3564, 127
        %v3569 = vpop.permute.xlu0 %3568
        %3570 = vrot.lane.b32.xlu0 %v3565, 127
        %v3571 = vpop.permute.xlu0 %3570
        %v3574 = vadd.f32 %v3560, %v3569
        %v3575 = vadd.f32 %v3561, %v3571
        %s3576 = sld [smem:[#allocation9 + $0x71]]
        %v3577 = vstv %s3576
        %v3578 = vmul.f32 %v3577, %v3555
        %v3579 = vmul.f32 %v3577, %v3556
        %3582 = vrot.lane.b32.xlu0 %v3578, 126
        %v3583 = vpop.permute.xlu0 %3582
        %3584 = vrot.lane.b32.xlu0 %v3579, 126
        %v3585 = vpop.permute.xlu0 %3584
        %v3588 = vadd.f32 %v3574, %v3583
        %v3589 = vadd.f32 %v3575, %v3585
        %s3590 = sld [smem:[#allocation9 + $0x72]]
        %v3591 = vld [vmem:[#allocation2 + $0x2] sm:$0xff]
        %v3592 = vld [vmem:[#allocation2 + $0xa] sm:$0xff]
        %v3593 = vstv %s3590
        %v3594 = vmul.f32 %v3593, %v3591
        %v3595 = vmul.f32 %v3593, %v3592
        %v3596 = vadd.f32 %v3588, %v3594
        %v3597 = vadd.f32 %v3589, %v3595
        %s3598 = sld [smem:[#allocation9 + $0x73]]
        %v3599 = vstv %s3598
        %v3600 = vmul.f32 %v3599, %v3591
        %v3601 = vmul.f32 %v3599, %v3592
        %3604 = vrot.lane.b32.xlu0 %v3600, 127
        %v3605 = vpop.permute.xlu0 %3604
        %3606 = vrot.lane.b32.xlu0 %v3601, 127
        %v3607 = vpop.permute.xlu0 %3606
        %v3610 = vadd.f32 %v3596, %v3605
        %v3611 = vadd.f32 %v3597, %v3607
        %s3612 = sld [smem:[#allocation9 + $0x74]]
        %v3613 = vstv %s3612
        %v3614 = vmul.f32 %v3613, %v3591
        %v3615 = vmul.f32 %v3613, %v3592
        %3618 = vrot.lane.b32.xlu0 %v3614, 126
        %v3619 = vpop.permute.xlu0 %3618
        %3620 = vrot.lane.b32.xlu0 %v3615, 126
        %v3621 = vpop.permute.xlu0 %3620
        %v3624 = vadd.f32 %v3610, %v3619
        %v3625 = vadd.f32 %v3611, %v3621
        %s3626 = sld [smem:[#allocation9 + $0x75]]
        %v3627 = vld [vmem:[%s1274] sm:$0xff]
        %v3628 = vld [vmem:[%s1274 + $0x8] sm:$0xff]
        %v3629 = vstv %s3626
        %v3630 = vmul.f32 %v3629, %v3627
        %v3631 = vmul.f32 %v3629, %v3628
        %v3632 = vadd.f32 %v3624, %v3630
        %v3633 = vadd.f32 %v3625, %v3631
        %s3634 = sld [smem:[#allocation9 + $0x76]]
        %v3635 = vstv %s3634
        %v3636 = vmul.f32 %v3635, %v3627
        %v3637 = vmul.f32 %v3635, %v3628
        %3640 = vrot.lane.b32.xlu0 %v3636, 127
        %v3641 = vpop.permute.xlu0 %3640
        %3642 = vrot.lane.b32.xlu0 %v3637, 127
        %v3643 = vpop.permute.xlu0 %3642
        %v3646 = vadd.f32 %v3632, %v3641
        %v3647 = vadd.f32 %v3633, %v3643
        %s3648 = sld [smem:[#allocation9 + $0x77]]
        %v3649 = vstv %s3648
        %v3650 = vmul.f32 %v3649, %v3627
        %v3651 = vmul.f32 %v3649, %v3628
        %3654 = vrot.lane.b32.xlu0 %v3650, 126
        %v3655 = vpop.permute.xlu0 %3654
        %3656 = vrot.lane.b32.xlu0 %v3651, 126
        %v3657 = vpop.permute.xlu0 %3656
        %v3660 = vadd.f32 %v3646, %v3655
        %v3661 = vadd.f32 %v3647, %v3657
        %s3662 = sld [smem:[#allocation9 + $0x78]]
        %v3663 = vld [vmem:[%s1274 + $0x1] sm:$0xff]
        %v3664 = vld [vmem:[%s1274 + $0x9] sm:$0xff]
        %v3665 = vstv %s3662
        %v3666 = vmul.f32 %v3665, %v3663
        %v3667 = vmul.f32 %v3665, %v3664
        %v3668 = vadd.f32 %v3660, %v3666
        %v3669 = vadd.f32 %v3661, %v3667
        %s3670 = sld [smem:[#allocation9 + $0x79]]
        %v3671 = vstv %s3670
        %v3672 = vmul.f32 %v3671, %v3663
        %v3673 = vmul.f32 %v3671, %v3664
        %3676 = vrot.lane.b32.xlu0 %v3672, 127
        %v3677 = vpop.permute.xlu0 %3676
        %3678 = vrot.lane.b32.xlu0 %v3673, 127
        %v3679 = vpop.permute.xlu0 %3678
        %v3682 = vadd.f32 %v3668, %v3677
        %v3683 = vadd.f32 %v3669, %v3679
        %s3684 = sld [smem:[#allocation9 + $0x7a]]
        %v3685 = vstv %s3684
        %v3686 = vmul.f32 %v3685, %v3663
        %v3687 = vmul.f32 %v3685, %v3664
        %3690 = vrot.lane.b32.xlu0 %v3686, 126
        %v3691 = vpop.permute.xlu0 %3690
        %3692 = vrot.lane.b32.xlu0 %v3687, 126
        %v3693 = vpop.permute.xlu0 %3692
        %v3696 = vadd.f32 %v3682, %v3691
        %v3697 = vadd.f32 %v3683, %v3693
        %s3698 = sld [smem:[#allocation9 + $0x7b]]
        %v3699 = vld [vmem:[%s1274 + $0x2] sm:$0xff]
        %v3700 = vld [vmem:[%s1274 + $0xa] sm:$0xff]
        %v3701 = vstv %s3698
        %v3702 = vmul.f32 %v3701, %v3699
        %v3703 = vmul.f32 %v3701, %v3700
        %v3704 = vadd.f32 %v3696, %v3702
        %v3705 = vadd.f32 %v3697, %v3703
        %s3706 = sld [smem:[#allocation9 + $0x7c]]
        %v3707 = vstv %s3706
        %v3708 = vmul.f32 %v3707, %v3699
        %v3709 = vmul.f32 %v3707, %v3700
        %3712 = vrot.lane.b32.xlu0 %v3708, 127
        %v3713 = vpop.permute.xlu0 %3712
        %3714 = vrot.lane.b32.xlu0 %v3709, 127
        %v3715 = vpop.permute.xlu0 %3714
        %v3718 = vadd.f32 %v3704, %v3713
        %v3719 = vadd.f32 %v3705, %v3715
        %s3720 = sld [smem:[#allocation9 + $0x7d]]
        %v3721 = vstv %s3720
        %v3722 = vmul.f32 %v3721, %v3699
        %v3723 = vmul.f32 %v3721, %v3700
        %3726 = vrot.lane.b32.xlu0 %v3722, 126
        %v3727 = vpop.permute.xlu0 %3726
        %3728 = vrot.lane.b32.xlu0 %v3723, 126
        %v3729 = vpop.permute.xlu0 %3728
        %v3732 = vadd.f32 %v3718, %v3727
        %v3733 = vadd.f32 %v3719, %v3729
        %s3734 = sld [smem:[#allocation9 + $0x7e]]
        %v3735 = vld [vmem:[%s1727] sm:$0xff]
        %v3736 = vld [vmem:[%s1727 + $0x8] sm:$0xff]
        %v3737 = vstv %s3734
        %v3738 = vmul.f32 %v3737, %v3735
        %v3739 = vmul.f32 %v3737, %v3736
        %v3740 = vadd.f32 %v3732, %v3738
        %v3741 = vadd.f32 %v3733, %v3739
        %s3742 = sld [smem:[#allocation9 + $0x7f]]
        %v3743 = vstv %s3742
        %v3744 = vmul.f32 %v3743, %v3735
        %v3745 = vmul.f32 %v3743, %v3736
        %3748 = vrot.lane.b32.xlu0 %v3744, 127
        %v3749 = vpop.permute.xlu0 %3748
        %3750 = vrot.lane.b32.xlu0 %v3745, 127
        %v3751 = vpop.permute.xlu0 %3750
        %v3754 = vadd.f32 %v3740, %v3749
        %v3755 = vadd.f32 %v3741, %v3751
        %s3756 = sld [smem:[#allocation9 + $0x80]]
        %v3757 = vstv %s3756
        %v3758 = vmul.f32 %v3757, %v3735
        %v3759 = vmul.f32 %v3757, %v3736
        %3762 = vrot.lane.b32.xlu0 %v3758, 126
        %v3763 = vpop.permute.xlu0 %3762
        %3764 = vrot.lane.b32.xlu0 %v3759, 126
        %v3765 = vpop.permute.xlu0 %3764
        %v3768 = vadd.f32 %v3754, %v3763
        %v3769 = vadd.f32 %v3755, %v3765
        %s3770 = sld [smem:[#allocation9 + $0x81]]
        %v3771 = vld [vmem:[%s1727 + $0x1] sm:$0xff]
        %v3772 = vld [vmem:[%s1727 + $0x9] sm:$0xff]
        %v3773 = vstv %s3770
        %v3774 = vmul.f32 %v3773, %v3771
        %v3775 = vmul.f32 %v3773, %v3772
        %v3776 = vadd.f32 %v3768, %v3774
        %v3777 = vadd.f32 %v3769, %v3775
        %s3778 = sld [smem:[#allocation9 + $0x82]]
        %v3779 = vstv %s3778
        %v3780 = vmul.f32 %v3779, %v3771
        %v3781 = vmul.f32 %v3779, %v3772
        %3784 = vrot.lane.b32.xlu0 %v3780, 127
        %v3785 = vpop.permute.xlu0 %3784
        %3786 = vrot.lane.b32.xlu0 %v3781, 127
        %v3787 = vpop.permute.xlu0 %3786
        %v3790 = vadd.f32 %v3776, %v3785
        %v3791 = vadd.f32 %v3777, %v3787
        %s3792 = sld [smem:[#allocation9 + $0x83]]
        %v3793 = vstv %s3792
        %v3794 = vmul.f32 %v3793, %v3771
        %v3795 = vmul.f32 %v3793, %v3772
        %3798 = vrot.lane.b32.xlu0 %v3794, 126
        %v3799 = vpop.permute.xlu0 %3798
        %3800 = vrot.lane.b32.xlu0 %v3795, 126
        %v3801 = vpop.permute.xlu0 %3800
        %v3804 = vadd.f32 %v3790, %v3799
        %v3805 = vadd.f32 %v3791, %v3801
        %s3806 = sld [smem:[#allocation9 + $0x84]]
        %v3807 = vld [vmem:[%s1727 + $0x2] sm:$0xff]
        %v3808 = vld [vmem:[%s1727 + $0xa] sm:$0xff]
        %v3809 = vstv %s3806
        %v3810 = vmul.f32 %v3809, %v3807
        %v3811 = vmul.f32 %v3809, %v3808
        %v3812 = vadd.f32 %v3804, %v3810
        %v3813 = vadd.f32 %v3805, %v3811
        %s3814 = sld [smem:[#allocation9 + $0x85]]
        %v3815 = vstv %s3814
        %v3816 = vmul.f32 %v3815, %v3807
        %v3817 = vmul.f32 %v3815, %v3808
        %3820 = vrot.lane.b32.xlu0 %v3816, 127
        %v3821 = vpop.permute.xlu0 %3820
        %3822 = vrot.lane.b32.xlu0 %v3817, 127
        %v3823 = vpop.permute.xlu0 %3822
        %v3826 = vadd.f32 %v3812, %v3821
        %v3827 = vadd.f32 %v3813, %v3823
        %s3828 = sld [smem:[#allocation9 + $0x86]]
        %v3829 = vstv %s3828
        %v3830 = vmul.f32 %v3829, %v3807
        %v3831 = vmul.f32 %v3829, %v3808
        %3834 = vrot.lane.b32.xlu0 %v3830, 126
        %v3835 = vpop.permute.xlu0 %3834
        %3836 = vrot.lane.b32.xlu0 %v3831, 126
        %v3837 = vpop.permute.xlu0 %3836
        %v3840 = vadd.f32 %v3826, %v3835
        %v3841 = vadd.f32 %v3827, %v3837
        %s3842 = sld [smem:[#allocation9 + $0x87]]
        %v3843 = vld [vmem:[%s2180] sm:$0xff]
        %v3844 = vld [vmem:[%s2180 + $0x8] sm:$0xff]
        %v3845 = vstv %s3842
        %v3846 = vmul.f32 %v3845, %v3843
        %v3847 = vmul.f32 %v3845, %v3844
        %v3848 = vadd.f32 %v3840, %v3846
        %v3849 = vadd.f32 %v3841, %v3847
        %s3850 = sld [smem:[#allocation9 + $0x88]]
        %v3851 = vstv %s3850
        %v3852 = vmul.f32 %v3851, %v3843
        %v3853 = vmul.f32 %v3851, %v3844
        %3856 = vrot.lane.b32.xlu0 %v3852, 127
        %v3857 = vpop.permute.xlu0 %3856
        %3858 = vrot.lane.b32.xlu0 %v3853, 127
        %v3859 = vpop.permute.xlu0 %3858
        %v3862 = vadd.f32 %v3848, %v3857
        %v3863 = vadd.f32 %v3849, %v3859
        %s3864 = sld [smem:[#allocation9 + $0x89]]
        %v3865 = vstv %s3864
        %v3866 = vmul.f32 %v3865, %v3843
        %v3867 = vmul.f32 %v3865, %v3844
        %3870 = vrot.lane.b32.xlu0 %v3866, 126
        %v3871 = vpop.permute.xlu0 %3870
        %3872 = vrot.lane.b32.xlu0 %v3867, 126
        %v3873 = vpop.permute.xlu0 %3872
        %v3876 = vadd.f32 %v3862, %v3871
        %v3877 = vadd.f32 %v3863, %v3873
        %s3878 = sld [smem:[#allocation9 + $0x8a]]
        %v3879 = vld [vmem:[%s2180 + $0x1] sm:$0xff]
        %v3880 = vld [vmem:[%s2180 + $0x9] sm:$0xff]
        %v3881 = vstv %s3878
        %v3882 = vmul.f32 %v3881, %v3879
        %v3883 = vmul.f32 %v3881, %v3880
        %v3884 = vadd.f32 %v3876, %v3882
        %v3885 = vadd.f32 %v3877, %v3883
        %s3886 = sld [smem:[#allocation9 + $0x8b]]
        %v3887 = vstv %s3886
        %v3888 = vmul.f32 %v3887, %v3879
        %v3889 = vmul.f32 %v3887, %v3880
        %3892 = vrot.lane.b32.xlu0 %v3888, 127
        %v3893 = vpop.permute.xlu0 %3892
        %3894 = vrot.lane.b32.xlu0 %v3889, 127
        %v3895 = vpop.permute.xlu0 %3894
        %v3898 = vadd.f32 %v3884, %v3893
        %v3899 = vadd.f32 %v3885, %v3895
        %s3900 = sld [smem:[#allocation9 + $0x8c]]
        %v3901 = vstv %s3900
        %v3902 = vmul.f32 %v3901, %v3879
        %v3903 = vmul.f32 %v3901, %v3880
        %3906 = vrot.lane.b32.xlu0 %v3902, 126
        %v3907 = vpop.permute.xlu0 %3906
        %3908 = vrot.lane.b32.xlu0 %v3903, 126
        %v3909 = vpop.permute.xlu0 %3908
        %v3912 = vadd.f32 %v3898, %v3907
        %v3913 = vadd.f32 %v3899, %v3909
        %s3914 = sld [smem:[#allocation9 + $0x8d]]
        %v3915 = vld [vmem:[%s2180 + $0x2] sm:$0xff]
        %v3916 = vld [vmem:[%s2180 + $0xa] sm:$0xff]
        %v3917 = vstv %s3914
        %v3918 = vmul.f32 %v3917, %v3915
        %v3919 = vmul.f32 %v3917, %v3916
        %v3920 = vadd.f32 %v3912, %v3918
        %v3921 = vadd.f32 %v3913, %v3919
        %s3922 = sld [smem:[#allocation9 + $0x8e]]
        %v3923 = vstv %s3922
        %v3924 = vmul.f32 %v3923, %v3915
        %v3925 = vmul.f32 %v3923, %v3916
        %3928 = vrot.lane.b32.xlu0 %v3924, 127
        %v3929 = vpop.permute.xlu0 %3928
        %3930 = vrot.lane.b32.xlu0 %v3925, 127
        %v3931 = vpop.permute.xlu0 %3930
        %v3934 = vadd.f32 %v3920, %v3929
        %v3935 = vadd.f32 %v3921, %v3931
        %s3936 = sld [smem:[#allocation9 + $0x8f]]
        %v3937 = vstv %s3936
        %v3938 = vmul.f32 %v3937, %v3915
        %v3939 = vmul.f32 %v3937, %v3916
        %3942 = vrot.lane.b32.xlu0 %v3938, 126
        %v3943 = vpop.permute.xlu0 %3942
        %3944 = vrot.lane.b32.xlu0 %v3939, 126
        %v3945 = vpop.permute.xlu0 %3944
        %v3948 = vadd.f32 %v3934, %v3943
        %v3949 = vadd.f32 %v3935, %v3945
        %s3950 = sld [smem:[#allocation11 + $0x3]]
        %v3951 = vstv %s3950
        %v3952 = vmul.f32 %v3948, %v3951
        %v3953 = vmul.f32 %v3949, %v3951
        %s3954 = sld [smem:[#allocation12 + $0x3]]
        %v3955 = vstv %s3954
        %v3956 = vadd.f32 %v3952, %v3955
        %v3957 = vadd.f32 %v3953, %v3955
        %v3958 = vmax.f32 %v3956, 0.0
        %v3959 = vmax.f32 %v3957, 0.0
        %s3960 = scalar_lea.vmem %s348, 48 [#allocation14]
        %3961 = vst.msk [vmem:[%s3960] sm:$0xff] %vm2625, %v3958
        %3962 = vst.msk [vmem:[%s3960 + $0x8] sm:$0xff] %vm2625, %v3959
        %s3963 = sand.u32 %s185, 1
        %s3964 = scalar_lea.sflag [#allocation4], %s3963
        %s3965 = sand.u32 %s185, 1
        %s3966 = smul.addr %s3965, 64
        %s3967 = scalar_lea.vmem [#allocation14], %s3966
        // Predicated region
        $region73: #{tpu_custom_call.1} parent=47 // pred_check
          %p3968 = pneg %p195
        $region74: #{tpu_custom_call.1} parent=47 // pred_check_branch
          %3970 = sbr.rel (%p3968) target = $region76
        $region75: #{tpu_custom_call.1} parent=47 // pred_region
          %3972 = vsyncadd %s3964, 0
          %s3973 = smul.addr %s25, 8
          %s3974 = smul.addr %s3973, 8
          %s3975 = scalar_lea.hbm %s7, %s3974
          %s3976 = sshll.u32 %s3967, 4
          %s3977 = int_to_ptr.vmem [resolvable:$true] %s3976
          %s3978 = sshll.u32 %s3975, 4
          %s3979 = int_to_ptr.hbm [resolvable:$true] %s3978
          %3984 = dma.vmem_to_hbm [thread:$0]  %s3977, 1024, %s3979, %s3964, 128, 128, 8
        $region76: #{tpu_custom_call.1} parent=47 // pred_fallthru
          _
      $region48: #{tpu_custom_call.1} parent=5 // pred_fallthru
        _
      %p3985 = scmp.le.s32.totalorder 2, %s20
      // Predicated region
      $region77: #{tpu_custom_call.1} parent=5 // pred_check
        %p3986 = pneg %p3985
      $region78: #{tpu_custom_call.1} parent=5 // pred_check_branch
        %3988 = sbr.rel (%p3986) target = $region80
      $region79: #{tpu_custom_call.1} parent=5 // pred_region
        %s3989 = ssub.s32 %s20, 2
        // Predicated region
        $region81: #{tpu_custom_call.1} parent=79 // pred_check
          %p3990 = pneg %p201
        $region82: #{tpu_custom_call.1} parent=79 // pred_check_branch
          %3992 = sbr.rel (%p3990) target = $region84
        $region83: #{tpu_custom_call.1} parent=79 // pred_region
          %s3993 = sand.u32 %s186, 1
          %s3994 = scalar_lea.sflag [#allocation4], %s3993
          %s3995 = sand.u32 %s186, 1
          %s3996 = smul.addr %s3995, 64
          %s3997 = scalar_lea.vmem [#allocation14], %s3996
          %3999 = dma.done %s3994, 1024
        $region84: #{tpu_custom_call.1} parent=79 // pred_fallthru
          _
      $region80: #{tpu_custom_call.1} parent=5 // pred_fallthru
        _
    $region6: #{tpu_custom_call.1} parent=1 // loop_footer
      %s24 = sadd.s32 1, %s20
    $region7: #{tpu_custom_call.1} parent=1 // loop_footer_branch
      %19 = sbr.rel target = $region3
    $region8: #{tpu_custom_call.1} parent=1 // loop_exit
      _
    %4000 = vsyncpa [#allocation4], 1
    %s4001 = scalar_lea.sflag [#allocation4], 1
    %4002 = vsyncpa %s4001, 1
    %4003 = vsyncpa [#allocation5], 1
    %s4004 = scalar_lea.sflag [#allocation5], 1
    %4005 = vsyncpa %s4004, 1
    %4006 = vsyncpa [#allocation7], 1
    %4007 = vsyncpa [#allocation10], 1
    %4008 = vsyncpa [#allocation13], 1

</llo_original>
